<compile_context>
chip_gen: v5e
topology: v5e:2x2
jax: 0.10.0
libtpu: 0.0.40
codegen_flags: <defaults>
</compile_context>

<pallas_src>
import jax
import jax.numpy as jnp
from jax.experimental import pallas as pl
from jax.experimental.pallas import tpu as pltpu

LEAKY_SLOPE = 0.2
BN_EPS = 1e-5
LANE = 128


def _round_up(x, m):
    return (x + m - 1) // m * m


# ----------------------------------------------------------------------------
# Pallas kernels: fused GEMM + bias (+ BN) + LeakyReLU, tiled over Cout.
# ----------------------------------------------------------------------------
def _gemm_bn_lrelu_kernel(a_ref, w_ref, b_ref, g_ref, bt_ref, o_ref):
    acc = jnp.dot(a_ref[...], w_ref[...], preferred_element_type=jnp.float32)
    y = acc + b_ref[...]                                  # (M, tn) + (1, tn)
    # BatchNorm2d (training mode): per-channel stats over batch*spatial == the
    # full M axis of this block (grid tiles only over channels), biased var.
    mean = jnp.mean(y, axis=0, keepdims=True)
    diff = y - mean
    var = jnp.mean(diff * diff, axis=0, keepdims=True)
    y = diff * jax.lax.rsqrt(var + BN_EPS)
    y = y * g_ref[...] + bt_ref[...]
    o_ref[...] = jnp.where(y > 0, y, LEAKY_SLOPE * y)


def _gemm_lrelu_kernel(a_ref, w_ref, b_ref, o_ref):
    acc = jnp.dot(a_ref[...], w_ref[...], preferred_element_type=jnp.float32)
    y = acc + b_ref[...]
    o_ref[...] = jnp.where(y > 0, y, LEAKY_SLOPE * y)


def _fused_conv_gemm(a, w, bias, gamma=None, beta=None):
    """LeakyReLU( BN( a @ w + bias ) ); BN optional (training-mode stats).

    a:     (M, Kp)  bf16  im2col patches, K order (kh, kw, Cin), Kp % 128 == 0
    w:     (Kp, Np) bf16  conv weights in (K, Cout) layout, Np % 128 == 0
    bias / gamma / beta: (1, Np) f32
    returns (M, Np) f32
    """
    M, K = a.shape
    K2, N = w.shape
    assert K == K2 and K % LANE == 0 and N % LANE == 0
    tn = 256 if N % 256 == 0 else 128                     # MXU-friendly N tile
    grid = (N // tn,)

    a_spec = pl.BlockSpec((M, K), lambda j: (0, 0))
    w_spec = pl.BlockSpec((K, tn), lambda j: (0, j))
    vec_spec = pl.BlockSpec((1, tn), lambda j: (0, j))
    out_spec = pl.BlockSpec((M, tn), lambda j: (0, j))

    if gamma is not None:
        kernel = _gemm_bn_lrelu_kernel
        args = (a, w, bias, gamma, beta)
        in_specs = [a_spec, w_spec, vec_spec, vec_spec, vec_spec]
    else:
        kernel = _gemm_lrelu_kernel
        args = (a, w, bias)
        in_specs = [a_spec, w_spec, vec_spec]

    return pl.pallas_call(
        kernel,
        grid=grid,
        in_specs=in_specs,
        out_specs=out_spec,
        out_shape=jax.ShapeDtypeStruct((M, N), jnp.float32),
        compiler_params=pltpu.CompilerParams(
            dimension_semantics=("parallel",),
            vmem_limit_bytes=48 << 20,    # v7x-safe (64 MiB physical VMEM/TC)
        ),
    )(*args)


# ----------------------------------------------------------------------------
# im2col from NHWC (matches PyTorch Conv2d(k=4, s=2, p=1) receptive fields).
# K order of the rows is (kh, kw, Cin), matching the (K, Cout) weight layout.
# ----------------------------------------------------------------------------
def _im2col_nhwc(x, k=4, s=2, p=1):
    B, H, W, C = x.shape
    xp = jnp.pad(x, ((0, 0), (p, p), (p, p), (0, 0)))
    Ho = (H + 2 * p - k) // s + 1
    Wo = (W + 2 * p - k) // s + 1
    cols = []
    for i in range(k):
        for j in range(k):
            cols.append(xp[:, i:i + s * Ho:s, j:j + s * Wo:s, :])  # (B,Ho,Wo,C)
    pat = jnp.stack(cols, axis=3)                     # (B, Ho, Wo, k*k, C)
    A = pat.reshape(B * Ho * Wo, k * k * C)           # rows ordered (B,Ho,Wo)
    return A, Ho, Wo


# ----------------------------------------------------------------------------
# Parameters (deterministic init). Conv weights are stored ONCE in the kernel
# layout: (K, Cout) bf16 padded to lane multiples; bias/BN params as (1, Np).
# ----------------------------------------------------------------------------
def init_params(key, n_classes, channels, init_size):
    keys = jax.random.split(key, 16)
    ki = iter(keys)

    def normal(k, shape, std):
        return jax.random.normal(k, shape, jnp.float32) * std

    params = {"emb": normal(next(ki), (n_classes, n_classes), 1.0)}

    conv_dims = [(channels, 64), (64, 128), (128, 256), (256, 512)]
    for li, (cin, cout) in enumerate(conv_dims, start=1):
        fan_in = cin * 16
        std = (2.0 / fan_in) ** 0.5
        w = normal(next(ki), (cout, cin, 4, 4), std)       # PyTorch layout
        b = normal(next(ki), (cout,), 0.01)

        K = cin * 16
        Kp = _round_up(K, LANE)
        Np = _round_up(cout, LANE)
        # (Cout, Cin, kh, kw) -> (kh, kw, Cin, Cout) -> (K, Cout), zero-pad.
        wmat = w.transpose(2, 3, 1, 0).reshape(K, cout)
        wmat = jnp.pad(wmat, ((0, Kp - K), (0, Np - cout)))
        params[f"conv{li}_w"] = wmat.astype(jnp.bfloat16)
        params[f"conv{li}_b"] = jnp.pad(b, (0, Np - cout)).reshape(1, Np)
        if li >= 2:
            params[f"bn{li}_g"] = jnp.ones((1, Np), jnp.float32)
            params[f"bn{li}_b"] = jnp.zeros((1, Np), jnp.float32)

    feat = 512 * init_size * init_size + n_classes
    params["adv_w"] = normal(next(ki), (feat, 1), (1.0 / feat) ** 0.5)
    params["adv_b"] = jnp.zeros((1,), jnp.float32)
    return params


# ----------------------------------------------------------------------------
# Forward pass
# ----------------------------------------------------------------------------
_COUTS = (64, 128, 256, 512)


def discriminator_forward(params, img, labels):
    B = img.shape[0]
    # Single NCHW -> NHWC transpose; activations stay NHWC between layers.
    x = img.astype(jnp.float32).transpose(0, 2, 3, 1)

    for li in range(1, 5):
        wmat = params[f"conv{li}_w"]                  # (Kp, Np) bf16
        bias = params[f"conv{li}_b"]                  # (1, Np)  f32
        gamma = params.get(f"bn{li}_g")
        beta = params.get(f"bn{li}_b")

        A, Ho, Wo = _im2col_nhwc(x)                   # (M, K) f32
        Kp = wmat.shape[0]
        if A.shape[1] != Kp:                          # only conv1: K 48 -> 128
            A = jnp.pad(A, ((0, 0), (0, Kp - A.shape[1])))
        A = A.astype(jnp.bfloat16)                    # MXU-native operand

        Y = _fused_conv_gemm(A, wmat, bias, gamma, beta)   # (M, Np) f32
        cout = _COUTS[li - 1]
        x = Y.reshape(B, Ho, Wo, wmat.shape[1])[..., :cout]  # drop lane padding

    # Match torch's out.view(B, -1) (C, H, W) flatten order with one tiny
    # transpose of the final (B, init, init, 512) activation.
    out_flat = x.transpose(0, 3, 1, 2).reshape(B, -1)
    emb = params["emb"][labels.reshape(B)]            # embedding gather (jnp)
    d_in = jnp.concatenate([out_flat, emb], axis=1)
    # Adv head: (B, 522) @ (522, 1) -> lane-width-1 output; plain jnp avoids a
    # pure-overhead pallas_call here.
    validity = d_in @ params["adv_w"] + params["adv_b"]
    return validity


# ----------------------------------------------------------------------------
if __name__ == "__main__":
    n_classes = 10
    img_size = 16
    channels = 3
    batch = 2
    init_size = img_size // 16

    key = jax.random.PRNGKey(0)
    k_params, k_img, k_lbl = jax.random.split(key, 3)

    params = init_params(k_params, n_classes, channels, init_size)
    img = jax.random.normal(k_img, (batch, channels, img_size, img_size),
                            jnp.float32)
    labels = jax.random.randint(k_lbl, (batch, 1), 0, n_classes, jnp.int32)

    fwd = jax.jit(discriminator_forward)
    validity = jax.block_until_ready(fwd(params, img, labels))
    assert validity.shape == (batch, 1)
    assert bool(jnp.all(jnp.isfinite(validity)))
    print("KERNEL_OK")
</pallas_src>

<mosaic_0001>
module attributes {stable_mosaic.version = 11 : i64} {
  func.func @_gemm_lrelu_kernel(%arg0: i32, %arg1: memref<128x128xbf16, #tpu.memory_space<vmem>>, %arg2: memref<128x128xbf16, #tpu.memory_space<vmem>>, %arg3: memref<1x128xf32, #tpu.memory_space<vmem>>, %arg4: memref<128x128xf32, #tpu.memory_space<vmem>>) attributes {dimension_semantics = [#tpu.dimension_semantics<parallel>], iteration_bounds = array<i64: 1>, scalar_prefetch = 0 : i64, scratch_operands = 0 : i64, tpu.core_type = #tpu.core_type<tc>, window_params = [{pipeline_mode = #tpu.pipeline_mode<synchronous>, transform_indices = @transform_0, window_bounds = array<i64: 128, 128>}, {transform_indices = @transform_1, window_bounds = array<i64: 128, 128>}, {transform_indices = @transform_2, window_bounds = array<i64: 1, 128>}, {transform_indices = @transform_3, window_bounds = array<i64: 128, 128>}]} {
    %c0 = arith.constant 0 : index
    %c0_0 = arith.constant 0 : index
    %0 = vector.load %arg1[%c0, %c0_0] : memref<128x128xbf16, #tpu.memory_space<vmem>>, vector<128x128xbf16>
    %c0_1 = arith.constant 0 : index
    %c0_2 = arith.constant 0 : index
    %1 = vector.load %arg2[%c0_1, %c0_2] : memref<128x128xbf16, #tpu.memory_space<vmem>>, vector<128x128xbf16>
    %cst = arith.constant dense<0.000000e+00> : vector<128x128xf32>
    %2 = tpu.matmul %0, %1, %cst {dimension_numbers = #tpu.dot_dimension_numbers<[1], [0], [0], [1], [0, 0, 1, 1], [], []>} : vector<128x128xbf16>, vector<128x128xbf16>, vector<128x128xf32> -> vector<128x128xf32>
    %c0_3 = arith.constant 0 : index
    %c0_4 = arith.constant 0 : index
    %3 = vector.load %arg3[%c0_3, %c0_4] : memref<1x128xf32, #tpu.memory_space<vmem>>, vector<1x128xf32>
    %4 = vector.broadcast %3 : vector<1x128xf32> to vector<128x128xf32>
    %5 = arith.addf %2, %4 : vector<128x128xf32>
    %cst_5 = arith.constant 0.000000e+00 : f32
    %6 = vector.broadcast %cst_5 : f32 to vector<128x128xf32>
    %7 = arith.cmpf ogt, %5, %6 : vector<128x128xf32>
    %cst_6 = arith.constant 2.000000e-01 : f32
    %8 = vector.broadcast %cst_6 : f32 to vector<128x128xf32>
    %9 = arith.mulf %8, %5 : vector<128x128xf32>
    %10 = arith.select %7, %5, %9 : vector<128x128xi1>, vector<128x128xf32>
    %c0_7 = arith.constant 0 : index
    %c0_8 = arith.constant 0 : index
    %11 = vector.load %arg4[%c0_7, %c0_8] : memref<128x128xf32, #tpu.memory_space<vmem>>, vector<128x128xf32>
    tpu.vector_store %arg4[%c0_7, %c0_8], %10 {strides = array<i32>} : memref<128x128xf32, #tpu.memory_space<vmem>>, vector<128x128xf32>,
    return
  }
  func.func @transform_0(%arg0: i32) -> (i32, i32) {
    %c0_i32 = arith.constant 0 : i32
    %c0_i32_0 = arith.constant 0 : i32
    %c0_i32_1 = arith.constant 0 : i32
    return %c0_i32, %c0_i32_0 : i32, i32
  }
  func.func @transform_1(%arg0: i32) -> (i32, i32) {
    %c0_i32 = arith.constant 0 : i32
    %c0_i32_0 = arith.constant 0 : i32
    return %c0_i32, %arg0 : i32, i32
  }
  func.func @transform_2(%arg0: i32) -> (i32, i32) {
    %c0_i32 = arith.constant 0 : i32
    %c0_i32_0 = arith.constant 0 : i32
    return %c0_i32, %arg0 : i32, i32
  }
  func.func @transform_3(%arg0: i32) -> (i32, i32) {
    %c0_i32 = arith.constant 0 : i32
    %c0_i32_0 = arith.constant 0 : i32
    return %c0_i32, %arg0 : i32, i32
  }
}

module attributes {stable_mosaic.version = 11 : i64} {
  func.func @_gemm_bn_lrelu_kernel(%arg0: i32, %arg1: memref<32x1024xbf16, #tpu.memory_space<vmem>>, %arg2: memref<1024x128xbf16, #tpu.memory_space<vmem>>, %arg3: memref<1x128xf32, #tpu.memory_space<vmem>>, %arg4: memref<1x128xf32, #tpu.memory_space<vmem>>, %arg5: memref<1x128xf32, #tpu.memory_space<vmem>>, %arg6: memref<32x128xf32, #tpu.memory_space<vmem>>) attributes {dimension_semantics = [#tpu.dimension_semantics<parallel>], iteration_bounds = array<i64: 1>, scalar_prefetch = 0 : i64, scratch_operands = 0 : i64, tpu.core_type = #tpu.core_type<tc>, window_params = [{pipeline_mode = #tpu.pipeline_mode<synchronous>, transform_indices = @transform_0, window_bounds = array<i64: 32, 1024>}, {transform_indices = @transform_1, window_bounds = array<i64: 1024, 128>}, {transform_indices = @transform_2, window_bounds = array<i64: 1, 128>}, {transform_indices = @transform_3, window_bounds = array<i64: 1, 128>}, {transform_indices = @transform_4, window_bounds = array<i64: 1, 128>}, {transform_indices = @transform_5, window_bounds = array<i64: 32, 128>}]} {
    %c0 = arith.constant 0 : index
    %c0_0 = arith.constant 0 : index
    %0 = vector.load %arg1[%c0, %c0_0] : memref<32x1024xbf16, #tpu.memory_space<vmem>>, vector<32x1024xbf16>
    %c0_1 = arith.constant 0 : index
    %c0_2 = arith.constant 0 : index
    %1 = vector.load %arg2[%c0_1, %c0_2] : memref<1024x128xbf16, #tpu.memory_space<vmem>>, vector<1024x128xbf16>
    %cst = arith.constant dense<0.000000e+00> : vector<32x128xf32>
    %2 = tpu.matmul %0, %1, %cst {dimension_numbers = #tpu.dot_dimension_numbers<[1], [0], [0], [1], [0, 0, 1, 1], [], []>} : vector<32x1024xbf16>, vector<1024x128xbf16>, vector<32x128xf32> -> vector<32x128xf32>
    %c0_3 = arith.constant 0 : index
    %c0_4 = arith.constant 0 : index
    %3 = vector.load %arg3[%c0_3, %c0_4] : memref<1x128xf32, #tpu.memory_space<vmem>>, vector<1x128xf32>
    %4 = vector.broadcast %3 : vector<1x128xf32> to vector<32x128xf32>
    %5 = arith.addf %2, %4 : vector<32x128xf32>
    %cst_5 = arith.constant dense<0.000000e+00> : vector<128xf32>
    %6 = vector.multi_reduction <add>, %5, %cst_5 [0] : vector<32x128xf32> to vector<128xf32>
    %7 = vector.shape_cast %6 : vector<128xf32> to vector<1x128xf32>
    %cst_6 = arith.constant 3.200000e+01 : f32
    %8 = vector.broadcast %cst_6 : f32 to vector<1x128xf32>
    %9 = arith.divf %7, %8 : vector<1x128xf32>
    %10 = vector.broadcast %9 : vector<1x128xf32> to vector<32x128xf32>
    %11 = arith.subf %5, %10 : vector<32x128xf32>
    %12 = arith.mulf %11, %11 : vector<32x128xf32>
    %cst_7 = arith.constant dense<0.000000e+00> : vector<128xf32>
    %13 = vector.multi_reduction <add>, %12, %cst_7 [0] : vector<32x128xf32> to vector<128xf32>
    %14 = vector.shape_cast %13 : vector<128xf32> to vector<1x128xf32>
    %cst_8 = arith.constant 3.200000e+01 : f32
    %15 = vector.broadcast %cst_8 : f32 to vector<1x128xf32>
    %16 = arith.divf %14, %15 : vector<1x128xf32>
    %cst_9 = arith.constant 9.99999974E-6 : f32
    %17 = vector.broadcast %cst_9 : f32 to vector<1x128xf32>
    %18 = arith.addf %16, %17 : vector<1x128xf32>
    %19 = math.rsqrt %18 : vector<1x128xf32>
    %20 = vector.broadcast %19 : vector<1x128xf32> to vector<32x128xf32>
    %21 = arith.mulf %11, %20 : vector<32x128xf32>
    %c0_10 = arith.constant 0 : index
    %c0_11 = arith.constant 0 : index
    %22 = vector.load %arg4[%c0_10, %c0_11] : memref<1x128xf32, #tpu.memory_space<vmem>>, vector<1x128xf32>
    %23 = vector.broadcast %22 : vector<1x128xf32> to vector<32x128xf32>
    %24 = arith.mulf %21, %23 : vector<32x128xf32>
    %c0_12 = arith.constant 0 : index
    %c0_13 = arith.constant 0 : index
    %25 = vector.load %arg5[%c0_12, %c0_13] : memref<1x128xf32, #tpu.memory_space<vmem>>, vector<1x128xf32>
    %26 = vector.broadcast %25 : vector<1x128xf32> to vector<32x128xf32>
    %27 = arith.addf %24, %26 : vector<32x128xf32>
    %cst_14 = arith.constant 0.000000e+00 : f32
    %28 = vector.broadcast %cst_14 : f32 to vector<32x128xf32>
    %29 = arith.cmpf ogt, %27, %28 : vector<32x128xf32>
    %cst_15 = arith.constant 2.000000e-01 : f32
    %30 = vector.broadcast %cst_15 : f32 to vector<32x128xf32>
    %31 = arith.mulf %30, %27 : vector<32x128xf32>
    %32 = arith.select %29, %27, %31 : vector<32x128xi1>, vector<32x128xf32>
    %c0_16 = arith.constant 0 : index
    %c0_17 = arith.constant 0 : index
    %33 = vector.load %arg6[%c0_16, %c0_17] : memref<32x128xf32, #tpu.memory_space<vmem>>, vector<32x128xf32>
    tpu.vector_store %arg6[%c0_16, %c0_17], %32 {strides = array<i32>} : memref<32x128xf32, #tpu.memory_space<vmem>>, vector<32x128xf32>,
    return
  }
  func.func @transform_0(%arg0: i32) -> (i32, i32) {
    %c0_i32 = arith.constant 0 : i32
    %c0_i32_0 = arith.constant 0 : i32
    %c0_i32_1 = arith.constant 0 : i32
    return %c0_i32, %c0_i32_0 : i32, i32
  }
  func.func @transform_1(%arg0: i32) -> (i32, i32) {
    %c0_i32 = arith.constant 0 : i32
    %c0_i32_0 = arith.constant 0 : i32
    return %c0_i32, %arg0 : i32, i32
  }
  func.func @transform_2(%arg0: i32) -> (i32, i32) {
    %c0_i32 = arith.constant 0 : i32
    %c0_i32_0 = arith.constant 0 : i32
    return %c0_i32, %arg0 : i32, i32
  }
  func.func @transform_3(%arg0: i32) -> (i32, i32) {
    %c0_i32 = arith.constant 0 : i32
    %c0_i32_0 = arith.constant 0 : i32
    return %c0_i32, %arg0 : i32, i32
  }
  func.func @transform_4(%arg0: i32) -> (i32, i32) {
    %c0_i32 = arith.constant 0 : i32
    %c0_i32_0 = arith.constant 0 : i32
    return %c0_i32, %arg0 : i32, i32
  }
  func.func @transform_5(%arg0: i32) -> (i32, i32) {
    %c0_i32 = arith.constant 0 : i32
    %c0_i32_0 = arith.constant 0 : i32
    return %c0_i32, %arg0 : i32, i32
  }
}

module attributes {stable_mosaic.version = 11 : i64} {
  func.func @_gemm_bn_lrelu_kernel(%arg0: i32, %arg1: memref<8x2048xbf16, #tpu.memory_space<vmem>>, %arg2: memref<2048x256xbf16, #tpu.memory_space<vmem>>, %arg3: memref<1x256xf32, #tpu.memory_space<vmem>>, %arg4: memref<1x256xf32, #tpu.memory_space<vmem>>, %arg5: memref<1x256xf32, #tpu.memory_space<vmem>>, %arg6: memref<8x256xf32, #tpu.memory_space<vmem>>) attributes {dimension_semantics = [#tpu.dimension_semantics<parallel>], iteration_bounds = array<i64: 1>, scalar_prefetch = 0 : i64, scratch_operands = 0 : i64, tpu.core_type = #tpu.core_type<tc>, window_params = [{pipeline_mode = #tpu.pipeline_mode<synchronous>, transform_indices = @transform_0, window_bounds = array<i64: 8, 2048>}, {transform_indices = @transform_1, window_bounds = array<i64: 2048, 256>}, {transform_indices = @transform_2, window_bounds = array<i64: 1, 256>}, {transform_indices = @transform_3, window_bounds = array<i64: 1, 256>}, {transform_indices = @transform_4, window_bounds = array<i64: 1, 256>}, {transform_indices = @transform_5, window_bounds = array<i64: 8, 256>}]} {
    %c0 = arith.constant 0 : index
    %c0_0 = arith.constant 0 : index
    %0 = vector.load %arg1[%c0, %c0_0] : memref<8x2048xbf16, #tpu.memory_space<vmem>>, vector<8x2048xbf16>
    %c0_1 = arith.constant 0 : index
    %c0_2 = arith.constant 0 : index
    %1 = vector.load %arg2[%c0_1, %c0_2] : memref<2048x256xbf16, #tpu.memory_space<vmem>>, vector<2048x256xbf16>
    %cst = arith.constant dense<0.000000e+00> : vector<8x256xf32>
    %2 = tpu.matmul %0, %1, %cst {dimension_numbers = #tpu.dot_dimension_numbers<[1], [0], [0], [1], [0, 0, 1, 1], [], []>} : vector<8x2048xbf16>, vector<2048x256xbf16>, vector<8x256xf32> -> vector<8x256xf32>
    %c0_3 = arith.constant 0 : index
    %c0_4 = arith.constant 0 : index
    %3 = vector.load %arg3[%c0_3, %c0_4] : memref<1x256xf32, #tpu.memory_space<vmem>>, vector<1x256xf32>
    %4 = vector.broadcast %3 : vector<1x256xf32> to vector<8x256xf32>
    %5 = arith.addf %2, %4 : vector<8x256xf32>
    %cst_5 = arith.constant dense<0.000000e+00> : vector<256xf32>
    %6 = vector.multi_reduction <add>, %5, %cst_5 [0] : vector<8x256xf32> to vector<256xf32>
    %7 = vector.shape_cast %6 : vector<256xf32> to vector<1x256xf32>
    %cst_6 = arith.constant 8.000000e+00 : f32
    %8 = vector.broadcast %cst_6 : f32 to vector<1x256xf32>
    %9 = arith.divf %7, %8 : vector<1x256xf32>
    %10 = vector.broadcast %9 : vector<1x256xf32> to vector<8x256xf32>
    %11 = arith.subf %5, %10 : vector<8x256xf32>
    %12 = arith.mulf %11, %11 : vector<8x256xf32>
    %cst_7 = arith.constant dense<0.000000e+00> : vector<256xf32>
    %13 = vector.multi_reduction <add>, %12, %cst_7 [0] : vector<8x256xf32> to vector<256xf32>
    %14 = vector.shape_cast %13 : vector<256xf32> to vector<1x256xf32>
    %cst_8 = arith.constant 8.000000e+00 : f32
    %15 = vector.broadcast %cst_8 : f32 to vector<1x256xf32>
    %16 = arith.divf %14, %15 : vector<1x256xf32>
    %cst_9 = arith.constant 9.99999974E-6 : f32
    %17 = vector.broadcast %cst_9 : f32 to vector<1x256xf32>
    %18 = arith.addf %16, %17 : vector<1x256xf32>
    %19 = math.rsqrt %18 : vector<1x256xf32>
    %20 = vector.broadcast %19 : vector<1x256xf32> to vector<8x256xf32>
    %21 = arith.mulf %11, %20 : vector<8x256xf32>
    %c0_10 = arith.constant 0 : index
    %c0_11 = arith.constant 0 : index
    %22 = vector.load %arg4[%c0_10, %c0_11] : memref<1x256xf32, #tpu.memory_space<vmem>>, vector<1x256xf32>
    %23 = vector.broadcast %22 : vector<1x256xf32> to vector<8x256xf32>
    %24 = arith.mulf %21, %23 : vector<8x256xf32>
    %c0_12 = arith.constant 0 : index
    %c0_13 = arith.constant 0 : index
    %25 = vector.load %arg5[%c0_12, %c0_13] : memref<1x256xf32, #tpu.memory_space<vmem>>, vector<1x256xf32>
    %26 = vector.broadcast %25 : vector<1x256xf32> to vector<8x256xf32>
    %27 = arith.addf %24, %26 : vector<8x256xf32>
    %cst_14 = arith.constant 0.000000e+00 : f32
    %28 = vector.broadcast %cst_14 : f32 to vector<8x256xf32>
    %29 = arith.cmpf ogt, %27, %28 : vector<8x256xf32>
    %cst_15 = arith.constant 2.000000e-01 : f32
    %30 = vector.broadcast %cst_15 : f32 to vector<8x256xf32>
    %31 = arith.mulf %30, %27 : vector<8x256xf32>
    %32 = arith.select %29, %27, %31 : vector<8x256xi1>, vector<8x256xf32>
    %c0_16 = arith.constant 0 : index
    %c0_17 = arith.constant 0 : index
    %33 = vector.load %arg6[%c0_16, %c0_17] : memref<8x256xf32, #tpu.memory_space<vmem>>, vector<8x256xf32>
    tpu.vector_store %arg6[%c0_16, %c0_17], %32 {strides = array<i32>} : memref<8x256xf32, #tpu.memory_space<vmem>>, vector<8x256xf32>,
    return
  }
  func.func @transform_0(%arg0: i32) -> (i32, i32) {
    %c0_i32 = arith.constant 0 : i32
    %c0_i32_0 = arith.constant 0 : i32
    %c0_i32_1 = arith.constant 0 : i32
    return %c0_i32, %c0_i32_0 : i32, i32
  }
  func.func @transform_1(%arg0: i32) -> (i32, i32) {
    %c0_i32 = arith.constant 0 : i32
    %c0_i32_0 = arith.constant 0 : i32
    return %c0_i32, %arg0 : i32, i32
  }
  func.func @transform_2(%arg0: i32) -> (i32, i32) {
    %c0_i32 = arith.constant 0 : i32
    %c0_i32_0 = arith.constant 0 : i32
    return %c0_i32, %arg0 : i32, i32
  }
  func.func @transform_3(%arg0: i32) -> (i32, i32) {
    %c0_i32 = arith.constant 0 : i32
    %c0_i32_0 = arith.constant 0 : i32
    return %c0_i32, %arg0 : i32, i32
  }
  func.func @transform_4(%arg0: i32) -> (i32, i32) {
    %c0_i32 = arith.constant 0 : i32
    %c0_i32_0 = arith.constant 0 : i32
    return %c0_i32, %arg0 : i32, i32
  }
  func.func @transform_5(%arg0: i32) -> (i32, i32) {
    %c0_i32 = arith.constant 0 : i32
    %c0_i32_0 = arith.constant 0 : i32
    return %c0_i32, %arg0 : i32, i32
  }
}

module attributes {stable_mosaic.version = 11 : i64} {
  func.func @_gemm_bn_lrelu_kernel(%arg0: i32, %arg1: memref<2x4096xbf16, #tpu.memory_space<vmem>>, %arg2: memref<4096x256xbf16, #tpu.memory_space<vmem>>, %arg3: memref<1x256xf32, #tpu.memory_space<vmem>>, %arg4: memref<1x256xf32, #tpu.memory_space<vmem>>, %arg5: memref<1x256xf32, #tpu.memory_space<vmem>>, %arg6: memref<2x256xf32, #tpu.memory_space<vmem>>) attributes {dimension_semantics = [#tpu.dimension_semantics<parallel>], iteration_bounds = array<i64: 2>, scalar_prefetch = 0 : i64, scratch_operands = 0 : i64, tpu.core_type = #tpu.core_type<tc>, window_params = [{pipeline_mode = #tpu.pipeline_mode<synchronous>, transform_indices = @transform_0, window_bounds = array<i64: 2, 4096>}, {transform_indices = @transform_1, window_bounds = array<i64: 4096, 256>}, {transform_indices = @transform_2, window_bounds = array<i64: 1, 256>}, {transform_indices = @transform_3, window_bounds = array<i64: 1, 256>}, {transform_indices = @transform_4, window_bounds = array<i64: 1, 256>}, {transform_indices = @transform_5, window_bounds = array<i64: 2, 256>}]} {
    %c0 = arith.constant 0 : index
    %c0_0 = arith.constant 0 : index
    %0 = vector.load %arg1[%c0, %c0_0] : memref<2x4096xbf16, #tpu.memory_space<vmem>>, vector<2x4096xbf16>
    %c0_1 = arith.constant 0 : index
    %c0_2 = arith.constant 0 : index
    %1 = vector.load %arg2[%c0_1, %c0_2] : memref<4096x256xbf16, #tpu.memory_space<vmem>>, vector<4096x256xbf16>
    %cst = arith.constant dense<0.000000e+00> : vector<2x256xf32>
    %2 = tpu.matmul %0, %1, %cst {dimension_numbers = #tpu.dot_dimension_numbers<[1], [0], [0], [1], [0, 0, 1, 1], [], []>} : vector<2x4096xbf16>, vector<4096x256xbf16>, vector<2x256xf32> -> vector<2x256xf32>
    %c0_3 = arith.constant 0 : index
    %c0_4 = arith.constant 0 : index
    %3 = vector.load %arg3[%c0_3, %c0_4] : memref<1x256xf32, #tpu.memory_space<vmem>>, vector<1x256xf32>
    %4 = vector.broadcast %3 : vector<1x256xf32> to vector<2x256xf32>
    %5 = arith.addf %2, %4 : vector<2x256xf32>
    %cst_5 = arith.constant dense<0.000000e+00> : vector<256xf32>
    %6 = vector.multi_reduction <add>, %5, %cst_5 [0] : vector<2x256xf32> to vector<256xf32>
    %7 = vector.shape_cast %6 : vector<256xf32> to vector<1x256xf32>
    %cst_6 = arith.constant 2.000000e+00 : f32
    %8 = vector.broadcast %cst_6 : f32 to vector<1x256xf32>
    %9 = arith.divf %7, %8 : vector<1x256xf32>
    %10 = vector.broadcast %9 : vector<1x256xf32> to vector<2x256xf32>
    %11 = arith.subf %5, %10 : vector<2x256xf32>
    %12 = arith.mulf %11, %11 : vector<2x256xf32>
    %cst_7 = arith.constant dense<0.000000e+00> : vector<256xf32>
    %13 = vector.multi_reduction <add>, %12, %cst_7 [0] : vector<2x256xf32> to vector<256xf32>
    %14 = vector.shape_cast %13 : vector<256xf32> to vector<1x256xf32>
    %cst_8 = arith.constant 2.000000e+00 : f32
    %15 = vector.broadcast %cst_8 : f32 to vector<1x256xf32>
    %16 = arith.divf %14, %15 : vector<1x256xf32>
    %cst_9 = arith.constant 9.99999974E-6 : f32
    %17 = vector.broadcast %cst_9 : f32 to vector<1x256xf32>
    %18 = arith.addf %16, %17 : vector<1x256xf32>
    %19 = math.rsqrt %18 : vector<1x256xf32>
    %20 = vector.broadcast %19 : vector<1x256xf32> to vector<2x256xf32>
    %21 = arith.mulf %11, %20 : vector<2x256xf32>
    %c0_10 = arith.constant 0 : index
    %c0_11 = arith.constant 0 : index
    %22 = vector.load %arg4[%c0_10, %c0_11] : memref<1x256xf32, #tpu.memory_space<vmem>>, vector<1x256xf32>
    %23 = vector.broadcast %22 : vector<1x256xf32> to vector<2x256xf32>
    %24 = arith.mulf %21, %23 : vector<2x256xf32>
    %c0_12 = arith.constant 0 : index
    %c0_13 = arith.constant 0 : index
    %25 = vector.load %arg5[%c0_12, %c0_13] : memref<1x256xf32, #tpu.memory_space<vmem>>, vector<1x256xf32>
    %26 = vector.broadcast %25 : vector<1x256xf32> to vector<2x256xf32>
    %27 = arith.addf %24, %26 : vector<2x256xf32>
    %cst_14 = arith.constant 0.000000e+00 : f32
    %28 = vector.broadcast %cst_14 : f32 to vector<2x256xf32>
    %29 = arith.cmpf ogt, %27, %28 : vector<2x256xf32>
    %cst_15 = arith.constant 2.000000e-01 : f32
    %30 = vector.broadcast %cst_15 : f32 to vector<2x256xf32>
    %31 = arith.mulf %30, %27 : vector<2x256xf32>
    %32 = arith.select %29, %27, %31 : vector<2x256xi1>, vector<2x256xf32>
    %c0_16 = arith.constant 0 : index
    %c0_17 = arith.constant 0 : index
    %33 = vector.load %arg6[%c0_16, %c0_17] : memref<2x256xf32, #tpu.memory_space<vmem>>, vector<2x256xf32>
    tpu.vector_store %arg6[%c0_16, %c0_17], %32 {strides = array<i32>} : memref<2x256xf32, #tpu.memory_space<vmem>>, vector<2x256xf32>,
    return
  }
  func.func @transform_0(%arg0: i32) -> (i32, i32) {
    %c0_i32 = arith.constant 0 : i32
    %c0_i32_0 = arith.constant 0 : i32
    %c0_i32_1 = arith.constant 0 : i32
    return %c0_i32, %c0_i32_0 : i32, i32
  }
  func.func @transform_1(%arg0: i32) -> (i32, i32) {
    %c0_i32 = arith.constant 0 : i32
    %c0_i32_0 = arith.constant 0 : i32
    return %c0_i32, %arg0 : i32, i32
  }
  func.func @transform_2(%arg0: i32) -> (i32, i32) {
    %c0_i32 = arith.constant 0 : i32
    %c0_i32_0 = arith.constant 0 : i32
    return %c0_i32, %arg0 : i32, i32
  }
  func.func @transform_3(%arg0: i32) -> (i32, i32) {
    %c0_i32 = arith.constant 0 : i32
    %c0_i32_0 = arith.constant 0 : i32
    return %c0_i32, %arg0 : i32, i32
  }
  func.func @transform_4(%arg0: i32) -> (i32, i32) {
    %c0_i32 = arith.constant 0 : i32
    %c0_i32_0 = arith.constant 0 : i32
    return %c0_i32, %arg0 : i32, i32
  }
  func.func @transform_5(%arg0: i32) -> (i32, i32) {
    %c0_i32 = arith.constant 0 : i32
    %c0_i32_0 = arith.constant 0 : i32
    return %c0_i32, %arg0 : i32, i32
  }
}

</mosaic_0001>

<llo_original>
// kernel: discriminator_forward.4
$region0: #{discriminator_forward.4}
  #allocation0 [shape = 'u32[]', space=smem, size = 0x4, offset = 0x4, fixed_abs, tag = 'smem constant byte address 0x4 - core index']
  #allocation1 [shape = 'u32[72,128]{1,0:T(1,128)}', space=vmem, size = 0x9000, scoped, tag = 'internal scratch']
  %s0 = inlined_call_operand.vmem [shape: bf16[128,128], index: 0, kind: input, shape index: {}]
  %s1 = inlined_call_operand.hbm [shape: bf16[128,128], index: 1, kind: input, shape index: {}]
  %s2 = inlined_call_operand.hbm [shape: f32[1,128], index: 2, kind: input, shape index: {}]
  %s3 = inlined_call_operand.vmem [shape: f32[128,128], index: 3, kind: output, shape index: {}]
  %s4 = sld [smem:[#allocation0]]
  $region30: #{discriminator_forward.4} parent=0
    _
  %s6 = ssub.s32 1, %s4
  %s7 = scalar_select 0, %s6, %s4
  $region1: #{discriminator_forward.4} parent=0
    #allocation2 [shape = 'u8[32768]{0}', space=vmem, size = 0x8000, scoped, tag = 'input window, operand 1, single buffered']
    #allocation3 [shape = 's32[1]{0}', space=sflag, size = 0x4, scoped, tag = 'scoped memory for discriminator_forward.4']
    #allocation4 [shape = 'u8[512]{0}', space=vmem, size = 0x400, scoped, tag = 'input window, operand 2, single buffered']
    #allocation5 [shape = 's32[1]{0}', space=sflag, size = 0x4, scoped, tag = 'scoped memory for discriminator_forward.4']
    %8 = vsyncpa [#allocation3], 0
    %9 = vsyncpa [#allocation5], 0
    // Predicated region
    $region2: #{discriminator_forward.4} parent=1 // pred_check
      _
    $region3: #{discriminator_forward.4} parent=1 // pred_check_branch
      %11 = sbr.rel (0) target = $region5
    $region4: #{discriminator_forward.4} parent=1 // pred_region
      _
    $region5: #{discriminator_forward.4} parent=1 // pred_fallthru
      _
    // Predicated region
    $region6: #{discriminator_forward.4} parent=1 // pred_check
      _
    $region7: #{discriminator_forward.4} parent=1 // pred_check_branch
      %13 = sbr.rel (0) target = $region9
    $region8: #{discriminator_forward.4} parent=1 // pred_region
      %15 = vsyncadd [#allocation3], 0
      %s16 = sshll.u32 %s1, 4
      %s17 = int_to_ptr.hbm [resolvable:$true] %s16
      %s18 = sshll.u32 [#allocation2], 4
      %s19 = int_to_ptr.vmem [resolvable:$true] %s18
      %24 = dma.hbm_to_vmem [thread:$0]  %s17, 1024, %s19, [#allocation3], 64, 64, 4
    $region9: #{discriminator_forward.4} parent=1 // pred_fallthru
      _
    // Predicated region
    $region10: #{discriminator_forward.4} parent=1 // pred_check
      _
    $region11: #{discriminator_forward.4} parent=1 // pred_check_branch
      %26 = sbr.rel (0) target = $region13
    $region12: #{discriminator_forward.4} parent=1 // pred_region
      %28 = vsyncadd [#allocation5], 0
      %s30 = sshll.u32 %s2, 4
      %s31 = int_to_ptr.hbm [resolvable:$true] %s30
      %s32 = sshll.u32 [#allocation4], 4
      %s33 = int_to_ptr.vmem [resolvable:$true] %s32
      %35 = dma.hbm_to_vmem [thread:$0]  %s31, 16, %s33, [#allocation5]
    $region13: #{discriminator_forward.4} parent=1 // pred_fallthru
      _
    // Predicated region
    $region14: #{discriminator_forward.4} parent=1 // pred_check
      _
    $region15: #{discriminator_forward.4} parent=1 // pred_check_branch
      %37 = sbr.rel (0) target = $region17
    $region16: #{discriminator_forward.4} parent=1 // pred_region
      %39 = dma.done [#allocation3], 1024
    $region17: #{discriminator_forward.4} parent=1 // pred_fallthru
      _
    // Predicated region
    $region18: #{discriminator_forward.4} parent=1 // pred_check
      _
    $region19: #{discriminator_forward.4} parent=1 // pred_check_branch
      %41 = sbr.rel (0) target = $region21
    $region20: #{discriminator_forward.4} parent=1 // pred_region
      %43 = dma.done [#allocation5], 16
    $region21: #{discriminator_forward.4} parent=1 // pred_fallthru
      _
    %v44 = vld [vmem:[%s0] sm:$0xf]
    %v45 = vld [vmem:[%s0 + $0x4] sm:$0xf]
    %v46 = vld [vmem:[%s0 + $0x8] sm:$0xf]
    %v47 = vld [vmem:[%s0 + $0xc] sm:$0xf]
    %v48 = vld [vmem:[%s0 + $0x10] sm:$0xf]
    %v49 = vld [vmem:[%s0 + $0x14] sm:$0xf]
    %v50 = vld [vmem:[%s0 + $0x18] sm:$0xf]
    %v51 = vld [vmem:[%s0 + $0x1c] sm:$0xf]
    %v52 = vld [vmem:[%s0 + $0x20] sm:$0xf]
    %v53 = vld [vmem:[%s0 + $0x24] sm:$0xf]
    %v54 = vld [vmem:[%s0 + $0x28] sm:$0xf]
    %v55 = vld [vmem:[%s0 + $0x2c] sm:$0xf]
    %v56 = vld [vmem:[%s0 + $0x30] sm:$0xf]
    %v57 = vld [vmem:[%s0 + $0x34] sm:$0xf]
    %v58 = vld [vmem:[%s0 + $0x38] sm:$0xf]
    %v59 = vld [vmem:[%s0 + $0x3c] sm:$0xf]
    %v60 = vld [vmem:[#allocation2] sm:$0xf]
    %v61 = vld [vmem:[#allocation2 + $0x4] sm:$0xf]
    %v62 = vld [vmem:[#allocation2 + $0x8] sm:$0xf]
    %v63 = vld [vmem:[#allocation2 + $0xc] sm:$0xf]
    %v64 = vld [vmem:[#allocation2 + $0x10] sm:$0xf]
    %v65 = vld [vmem:[#allocation2 + $0x14] sm:$0xf]
    %v66 = vld [vmem:[#allocation2 + $0x18] sm:$0xf]
    %v67 = vld [vmem:[#allocation2 + $0x1c] sm:$0xf]
    %v68 = vld [vmem:[#allocation2 + $0x20] sm:$0xf]
    %v69 = vld [vmem:[#allocation2 + $0x24] sm:$0xf]
    %v70 = vld [vmem:[#allocation2 + $0x28] sm:$0xf]
    %v71 = vld [vmem:[#allocation2 + $0x2c] sm:$0xf]
    %v72 = vld [vmem:[#allocation2 + $0x30] sm:$0xf]
    %v73 = vld [vmem:[#allocation2 + $0x34] sm:$0xf]
    %v74 = vld [vmem:[#allocation2 + $0x38] sm:$0xf]
    %v75 = vld [vmem:[#allocation2 + $0x3c] sm:$0xf]
    %v76 = vld [vmem:[#allocation4] sm:$0x1]
    %v78 = vperm.slane %v76, 0
    %v96 = vunpack.c.l.b16 %v44
    %v97 = vunpack.c.l.b16 %v45
    %v98 = vunpack.c.l.b16 %v46
    %v99 = vunpack.c.l.b16 %v47
    %v100 = vunpack.c.l.b16 %v48
    %v101 = vunpack.c.l.b16 %v49
    %v102 = vunpack.c.l.b16 %v50
    %v103 = vunpack.c.l.b16 %v51
    %v104 = vunpack.c.l.b16 %v52
    %v105 = vunpack.c.l.b16 %v53
    %v106 = vunpack.c.l.b16 %v54
    %v107 = vunpack.c.l.b16 %v55
    %v108 = vunpack.c.l.b16 %v56
    %v109 = vunpack.c.l.b16 %v57
    %v110 = vunpack.c.l.b16 %v58
    %v111 = vunpack.c.l.b16 %v59
    %v112 = vpack.c.b16 %v97, %v96
    %v113 = vpack.c.b16 %v99, %v98
    %v114 = vpack.c.b16 %v101, %v100
    %v115 = vpack.c.b16 %v103, %v102
    %v116 = vpack.c.b16 %v105, %v104
    %v117 = vpack.c.b16 %v107, %v106
    %v118 = vpack.c.b16 %v109, %v108
    %v119 = vpack.c.b16 %v111, %v110
    %v144 = vunpack.c.l.b16 %v60
    %v145 = vunpack.c.l.b16 %v61
    %v146 = vunpack.c.l.b16 %v62
    %v147 = vunpack.c.l.b16 %v63
    %v148 = vunpack.c.l.b16 %v64
    %v149 = vunpack.c.l.b16 %v65
    %v150 = vunpack.c.l.b16 %v66
    %v151 = vunpack.c.l.b16 %v67
    %v152 = vunpack.c.l.b16 %v68
    %v153 = vunpack.c.l.b16 %v69
    %v154 = vunpack.c.l.b16 %v70
    %v155 = vunpack.c.l.b16 %v71
    %v156 = vunpack.c.l.b16 %v72
    %v157 = vunpack.c.l.b16 %v73
    %v158 = vunpack.c.l.b16 %v74
    %v159 = vunpack.c.l.b16 %v75
    %v160 = vpack.c.b16 %v145, %v144
    %v161 = vpack.c.b16 %v147, %v146
    %v162 = vpack.c.b16 %v149, %v148
    %v163 = vpack.c.b16 %v151, %v150
    %v164 = vpack.c.b16 %v153, %v152
    %v165 = vpack.c.b16 %v155, %v154
    %v166 = vpack.c.b16 %v157, %v156
    %v167 = vpack.c.b16 %v159, %v158
    %176 = vmatpush.bf16.msra.mxu0 %v167
    %177 = vmatpush.bf16.msra.mxu0 %v166
    %178 = vmatpush.bf16.msra.mxu0 %v165
    %179 = vmatpush.bf16.msra.mxu0 %v164
    %180 = vmatpush.bf16.msra.mxu0 %v163
    %181 = vmatpush.bf16.msra.mxu0 %v162
    %182 = vmatpush.bf16.msra.mxu0 %v161
    %183 = vmatpush.bf16.msra.mxu0 %v160
    %184 = vmatmul.bf16.gmra.mxu0 %v112
    %v185 = vpop.f32.mrf.mxu0
    %v186 = vadd.f32 %v78, %v185
    %v187 = vpop.f32.mrf.mxu0
    %v188 = vadd.f32 %v78, %v187
    %189 = vmatmul.bf16.gmra.mxu0 %v113
    %v190 = vpop.f32.mrf.mxu0
    %v191 = vadd.f32 %v78, %v190
    %v192 = vpop.f32.mrf.mxu0
    %v193 = vadd.f32 %v78, %v192
    %194 = vmatmul.bf16.gmra.mxu0 %v114
    %v195 = vpop.f32.mrf.mxu0
    %v196 = vadd.f32 %v78, %v195
    %v197 = vpop.f32.mrf.mxu0
    %v198 = vadd.f32 %v78, %v197
    %199 = vmatmul.bf16.gmra.mxu0 %v115
    %v200 = vpop.f32.mrf.mxu0
    %v201 = vadd.f32 %v78, %v200
    %v202 = vpop.f32.mrf.mxu0
    %v203 = vadd.f32 %v78, %v202
    %204 = vmatmul.bf16.gmra.mxu0 %v116
    %v205 = vpop.f32.mrf.mxu0
    %v206 = vadd.f32 %v78, %v205
    %v207 = vpop.f32.mrf.mxu0
    %v208 = vadd.f32 %v78, %v207
    %209 = vmatmul.bf16.gmra.mxu0 %v117
    %v210 = vpop.f32.mrf.mxu0
    %v211 = vadd.f32 %v78, %v210
    %v212 = vpop.f32.mrf.mxu0
    %v213 = vadd.f32 %v78, %v212
    %214 = vmatmul.bf16.gmra.mxu0 %v118
    %v215 = vpop.f32.mrf.mxu0
    %v216 = vadd.f32 %v78, %v215
    %v217 = vpop.f32.mrf.mxu0
    %v218 = vadd.f32 %v78, %v217
    %219 = vmatmul.bf16.gmra.mxu0 %v119
    %v220 = vpop.f32.mrf.mxu0
    %v221 = vadd.f32 %v78, %v220
    %v222 = vpop.f32.mrf.mxu0
    %v223 = vadd.f32 %v78, %v222
    %224 = vdwg.mxu0
    %vm225 = vcmp.gt.f32.partialorder %v186, 0.0
    %vm226 = vcmp.gt.f32.partialorder %v188, 0.0
    %vm227 = vcmp.gt.f32.partialorder %v191, 0.0
    %vm228 = vcmp.gt.f32.partialorder %v193, 0.0
    %vm229 = vcmp.gt.f32.partialorder %v196, 0.0
    %vm230 = vcmp.gt.f32.partialorder %v198, 0.0
    %vm231 = vcmp.gt.f32.partialorder %v201, 0.0
    %vm232 = vcmp.gt.f32.partialorder %v203, 0.0
    %vm233 = vcmp.gt.f32.partialorder %v206, 0.0
    %vm234 = vcmp.gt.f32.partialorder %v208, 0.0
    %vm235 = vcmp.gt.f32.partialorder %v211, 0.0
    %vm236 = vcmp.gt.f32.partialorder %v213, 0.0
    %vm237 = vcmp.gt.f32.partialorder %v216, 0.0
    %vm238 = vcmp.gt.f32.partialorder %v218, 0.0
    %vm239 = vcmp.gt.f32.partialorder %v221, 0.0
    %vm240 = vcmp.gt.f32.partialorder %v223, 0.0
    %v241 = vmul.f32 %v186, 0.2
    %v242 = vmul.f32 %v188, 0.2
    %v243 = vmul.f32 %v191, 0.2
    %v244 = vmul.f32 %v193, 0.2
    %v245 = vmul.f32 %v196, 0.2
    %v246 = vmul.f32 %v198, 0.2
    %v247 = vmul.f32 %v201, 0.2
    %v248 = vmul.f32 %v203, 0.2
    %v249 = vmul.f32 %v206, 0.2
    %v250 = vmul.f32 %v208, 0.2
    %v251 = vmul.f32 %v211, 0.2
    %v252 = vmul.f32 %v213, 0.2
    %v253 = vmul.f32 %v216, 0.2
    %v254 = vmul.f32 %v218, 0.2
    %v255 = vmul.f32 %v221, 0.2
    %v256 = vmul.f32 %v223, 0.2
    %v257 = vsel %vm225, %v186, %v241
    %v258 = vsel %vm226, %v188, %v242
    %v259 = vsel %vm227, %v191, %v243
    %v260 = vsel %vm228, %v193, %v244
    %v261 = vsel %vm229, %v196, %v245
    %v262 = vsel %vm230, %v198, %v246
    %v263 = vsel %vm231, %v201, %v247
    %v264 = vsel %vm232, %v203, %v248
    %v265 = vsel %vm233, %v206, %v249
    %v266 = vsel %vm234, %v208, %v250
    %v267 = vsel %vm235, %v211, %v251
    %v268 = vsel %vm236, %v213, %v252
    %v269 = vsel %vm237, %v216, %v253
    %v270 = vsel %vm238, %v218, %v254
    %v271 = vsel %vm239, %v221, %v255
    %v272 = vsel %vm240, %v223, %v256
    %273 = vst [vmem:[%s3] sm:$0xff] %v257
    %274 = vst [vmem:[%s3 + $0x8] sm:$0xff] %v258
    %275 = vst [vmem:[%s3 + $0x10] sm:$0xff] %v259
    %276 = vst [vmem:[%s3 + $0x18] sm:$0xff] %v260
    %277 = vst [vmem:[%s3 + $0x20] sm:$0xff] %v261
    %278 = vst [vmem:[%s3 + $0x28] sm:$0xff] %v262
    %279 = vst [vmem:[%s3 + $0x30] sm:$0xff] %v263
    %280 = vst [vmem:[%s3 + $0x38] sm:$0xff] %v264
    %281 = vst [vmem:[%s3 + $0x40] sm:$0xff] %v265
    %282 = vst [vmem:[%s3 + $0x48] sm:$0xff] %v266
    %283 = vst [vmem:[%s3 + $0x50] sm:$0xff] %v267
    %284 = vst [vmem:[%s3 + $0x58] sm:$0xff] %v268
    %285 = vst [vmem:[%s3 + $0x60] sm:$0xff] %v269
    %286 = vst [vmem:[%s3 + $0x68] sm:$0xff] %v270
    %287 = vst [vmem:[%s3 + $0x70] sm:$0xff] %v271
    %288 = vst [vmem:[%s3 + $0x78] sm:$0xff] %v272
    // Predicated region
    $region22: #{discriminator_forward.4} parent=1 // pred_check
      _
    $region23: #{discriminator_forward.4} parent=1 // pred_check_branch
      %290 = sbr.rel (0) target = $region25
    $region24: #{discriminator_forward.4} parent=1 // pred_region
      _
    $region25: #{discriminator_forward.4} parent=1 // pred_fallthru
      _
    // Predicated region
    $region26: #{discriminator_forward.4} parent=1 // pred_check
      _
    $region27: #{discriminator_forward.4} parent=1 // pred_check_branch
      %292 = sbr.rel (0) target = $region29
    $region28: #{discriminator_forward.4} parent=1 // pred_region
      _
    $region29: #{discriminator_forward.4} parent=1 // pred_fallthru
      _
    %293 = vsyncpa [#allocation3], 1
    %294 = vsyncpa [#allocation5], 1

// kernel: discriminator_forward.5
$region0: #{discriminator_forward.5}
  #allocation0 [shape = 'u32[]', space=smem, size = 0x4, offset = 0x4, fixed_abs, tag = 'smem constant byte address 0x4 - core index']
  #allocation1 [shape = 'u32[72,128]{1,0:T(1,128)}', space=vmem, size = 0x9000, scoped, tag = 'internal scratch']
  %s0 = inlined_call_operand.vmem [shape: bf16[32,1024], index: 0, kind: input, shape index: {}]
  %s1 = inlined_call_operand.hbm [shape: bf16[1024,128], index: 1, kind: input, shape index: {}]
  %s2 = inlined_call_operand.hbm [shape: f32[1,128], index: 2, kind: input, shape index: {}]
  %s3 = inlined_call_operand.hbm [shape: f32[1,128], index: 3, kind: input, shape index: {}]
  %s4 = inlined_call_operand.hbm [shape: f32[1,128], index: 4, kind: input, shape index: {}]
  %s5 = inlined_call_operand.vmem [shape: f32[32,128], index: 5, kind: output, shape index: {}]
  %s6 = sld [smem:[#allocation0]]
  $region46: #{discriminator_forward.5} parent=0
    _
  %s8 = ssub.s32 1, %s6
  %s9 = scalar_select 0, %s8, %s6
  $region1: #{discriminator_forward.5} parent=0
    #allocation2 [shape = 'u8[262144]{0}', space=vmem, size = 0x40000, scoped, tag = 'input window, operand 1, single buffered']
    #allocation3 [shape = 's32[1]{0}', space=sflag, size = 0x4, scoped, tag = 'scoped memory for discriminator_forward.5']
    #allocation4 [shape = 'u8[512]{0}', space=vmem, size = 0x400, scoped, tag = 'input window, operand 2, single buffered']
    #allocation5 [shape = 's32[1]{0}', space=sflag, size = 0x4, scoped, tag = 'scoped memory for discriminator_forward.5']
    #allocation6 [shape = 'u8[512]{0}', space=vmem, size = 0x400, scoped, tag = 'input window, operand 3, single buffered']
    #allocation7 [shape = 'u8[512]{0}', space=vmem, size = 0x400, scoped, tag = 'input window, operand 4, single buffered']
    #allocation8 [shape = 's32[1]{0}', space=sflag, size = 0x4, scoped, tag = 'scoped memory for discriminator_forward.5']
    %10 = vsyncpa [#allocation3], 0
    %11 = vsyncpa [#allocation5], 0
    %12 = vsyncpa [#allocation8], 0
    // Predicated region
    $region2: #{discriminator_forward.5} parent=1 // pred_check
      _
    $region3: #{discriminator_forward.5} parent=1 // pred_check_branch
      %14 = sbr.rel (0) target = $region5
    $region4: #{discriminator_forward.5} parent=1 // pred_region
      _
    $region5: #{discriminator_forward.5} parent=1 // pred_fallthru
      _
    // Predicated region
    $region6: #{discriminator_forward.5} parent=1 // pred_check
      _
    $region7: #{discriminator_forward.5} parent=1 // pred_check_branch
      %16 = sbr.rel (0) target = $region9
    $region8: #{discriminator_forward.5} parent=1 // pred_region
      %18 = vsyncadd [#allocation3], 0
      %s19 = sshll.u32 %s1, 4
      %s20 = int_to_ptr.hbm [resolvable:$true] %s19
      %s21 = sshll.u32 [#allocation2], 4
      %s22 = int_to_ptr.vmem [resolvable:$true] %s21
      %27 = dma.hbm_to_vmem [thread:$0]  %s20, 8192, %s22, [#allocation3], 64, 64, 4
    $region9: #{discriminator_forward.5} parent=1 // pred_fallthru
      _
    // Predicated region
    $region10: #{discriminator_forward.5} parent=1 // pred_check
      _
    $region11: #{discriminator_forward.5} parent=1 // pred_check_branch
      %29 = sbr.rel (0) target = $region13
    $region12: #{discriminator_forward.5} parent=1 // pred_region
      %31 = vsyncadd [#allocation5], 0
      %s33 = sshll.u32 %s2, 4
      %s34 = int_to_ptr.hbm [resolvable:$true] %s33
      %s35 = sshll.u32 [#allocation4], 4
      %s36 = int_to_ptr.vmem [resolvable:$true] %s35
      %38 = dma.hbm_to_vmem [thread:$0]  %s34, 16, %s36, [#allocation5]
    $region13: #{discriminator_forward.5} parent=1 // pred_fallthru
      _
    // Predicated region
    $region14: #{discriminator_forward.5} parent=1 // pred_check
      _
    $region15: #{discriminator_forward.5} parent=1 // pred_check_branch
      %40 = sbr.rel (0) target = $region17
    $region16: #{discriminator_forward.5} parent=1 // pred_region
      %42 = vsyncadd [#allocation5], 0
      %s44 = sshll.u32 %s3, 4
      %s45 = int_to_ptr.hbm [resolvable:$true] %s44
      %s46 = sshll.u32 [#allocation6], 4
      %s47 = int_to_ptr.vmem [resolvable:$true] %s46
      %49 = dma.hbm_to_vmem [thread:$0]  %s45, 16, %s47, [#allocation5]
    $region17: #{discriminator_forward.5} parent=1 // pred_fallthru
      _
    // Predicated region
    $region18: #{discriminator_forward.5} parent=1 // pred_check
      _
    $region19: #{discriminator_forward.5} parent=1 // pred_check_branch
      %51 = sbr.rel (0) target = $region21
    $region20: #{discriminator_forward.5} parent=1 // pred_region
      %53 = vsyncadd [#allocation8], 0
      %s55 = sshll.u32 %s4, 4
      %s56 = int_to_ptr.hbm [resolvable:$true] %s55
      %s57 = sshll.u32 [#allocation7], 4
      %s58 = int_to_ptr.vmem [resolvable:$true] %s57
      %60 = dma.hbm_to_vmem [thread:$0]  %s56, 16, %s58, [#allocation8]
    $region21: #{discriminator_forward.5} parent=1 // pred_fallthru
      _
    // Predicated region
    $region22: #{discriminator_forward.5} parent=1 // pred_check
      _
    $region23: #{discriminator_forward.5} parent=1 // pred_check_branch
      %62 = sbr.rel (0) target = $region25
    $region24: #{discriminator_forward.5} parent=1 // pred_region
      %64 = dma.done [#allocation3], 8192
    $region25: #{discriminator_forward.5} parent=1 // pred_fallthru
      _
    // Predicated region
    $region26: #{discriminator_forward.5} parent=1 // pred_check
      _
    $region27: #{discriminator_forward.5} parent=1 // pred_check_branch
      %66 = sbr.rel (0) target = $region29
    $region28: #{discriminator_forward.5} parent=1 // pred_region
      %68 = dma.done [#allocation5], 16
    $region29: #{discriminator_forward.5} parent=1 // pred_fallthru
      _
    // Predicated region
    $region30: #{discriminator_forward.5} parent=1 // pred_check
      _
    $region31: #{discriminator_forward.5} parent=1 // pred_check_branch
      %70 = sbr.rel (0) target = $region33
    $region32: #{discriminator_forward.5} parent=1 // pred_region
      %72 = dma.done [#allocation5], 16
    $region33: #{discriminator_forward.5} parent=1 // pred_fallthru
      _
    // Predicated region
    $region34: #{discriminator_forward.5} parent=1 // pred_check
      _
    $region35: #{discriminator_forward.5} parent=1 // pred_check_branch
      %74 = sbr.rel (0) target = $region37
    $region36: #{discriminator_forward.5} parent=1 // pred_region
      %76 = dma.done [#allocation8], 16
    $region37: #{discriminator_forward.5} parent=1 // pred_fallthru
      _
    %v77 = vld [vmem:[%s0] sm:$0xff]
    %v78 = vld [vmem:[%s0 + $0x8] sm:$0xff]
    %v79 = vld [vmem:[%s0 + $0x10] sm:$0xff]
    %v80 = vld [vmem:[%s0 + $0x18] sm:$0xff]
    %v81 = vld [vmem:[%s0 + $0x20] sm:$0xff]
    %v82 = vld [vmem:[%s0 + $0x28] sm:$0xff]
    %v83 = vld [vmem:[%s0 + $0x30] sm:$0xff]
    %v84 = vld [vmem:[%s0 + $0x38] sm:$0xff]
    %v85 = vld [vmem:[%s0 + $0x40] sm:$0xff]
    %v86 = vld [vmem:[%s0 + $0x48] sm:$0xff]
    %v87 = vld [vmem:[%s0 + $0x50] sm:$0xff]
    %v88 = vld [vmem:[%s0 + $0x58] sm:$0xff]
    %v89 = vld [vmem:[%s0 + $0x60] sm:$0xff]
    %v90 = vld [vmem:[%s0 + $0x68] sm:$0xff]
    %v91 = vld [vmem:[%s0 + $0x70] sm:$0xff]
    %v92 = vld [vmem:[%s0 + $0x78] sm:$0xff]
    %v93 = vld [vmem:[#allocation2] sm:$0xf]
    %v94 = vld [vmem:[#allocation2 + $0x4] sm:$0xf]
    %v95 = vld [vmem:[#allocation2 + $0x8] sm:$0xf]
    %v96 = vld [vmem:[#allocation2 + $0xc] sm:$0xf]
    %v97 = vld [vmem:[#allocation2 + $0x10] sm:$0xf]
    %v98 = vld [vmem:[#allocation2 + $0x14] sm:$0xf]
    %v99 = vld [vmem:[#allocation2 + $0x18] sm:$0xf]
    %v100 = vld [vmem:[#allocation2 + $0x1c] sm:$0xf]
    %v101 = vld [vmem:[#allocation2 + $0x20] sm:$0xf]
    %v102 = vld [vmem:[#allocation2 + $0x24] sm:$0xf]
    %v103 = vld [vmem:[#allocation2 + $0x28] sm:$0xf]
    %v104 = vld [vmem:[#allocation2 + $0x2c] sm:$0xf]
    %v105 = vld [vmem:[#allocation2 + $0x30] sm:$0xf]
    %v106 = vld [vmem:[#allocation2 + $0x34] sm:$0xf]
    %v107 = vld [vmem:[#allocation2 + $0x38] sm:$0xf]
    %v108 = vld [vmem:[#allocation2 + $0x3c] sm:$0xf]
    %v109 = vld [vmem:[#allocation2 + $0x40] sm:$0xf]
    %v110 = vld [vmem:[#allocation2 + $0x44] sm:$0xf]
    %v111 = vld [vmem:[#allocation2 + $0x48] sm:$0xf]
    %v112 = vld [vmem:[#allocation2 + $0x4c] sm:$0xf]
    %v113 = vld [vmem:[#allocation2 + $0x50] sm:$0xf]
    %v114 = vld [vmem:[#allocation2 + $0x54] sm:$0xf]
    %v115 = vld [vmem:[#allocation2 + $0x58] sm:$0xf]
    %v116 = vld [vmem:[#allocation2 + $0x5c] sm:$0xf]
    %v117 = vld [vmem:[#allocation2 + $0x60] sm:$0xf]
    %v118 = vld [vmem:[#allocation2 + $0x64] sm:$0xf]
    %v119 = vld [vmem:[#allocation2 + $0x68] sm:$0xf]
    %v120 = vld [vmem:[#allocation2 + $0x6c] sm:$0xf]
    %v121 = vld [vmem:[#allocation2 + $0x70] sm:$0xf]
    %v122 = vld [vmem:[#allocation2 + $0x74] sm:$0xf]
    %v123 = vld [vmem:[#allocation2 + $0x78] sm:$0xf]
    %v124 = vld [vmem:[#allocation2 + $0x7c] sm:$0xf]
    %v125 = vld [vmem:[#allocation2 + $0x80] sm:$0xf]
    %v126 = vld [vmem:[#allocation2 + $0x84] sm:$0xf]
    %v127 = vld [vmem:[#allocation2 + $0x88] sm:$0xf]
    %v128 = vld [vmem:[#allocation2 + $0x8c] sm:$0xf]
    %v129 = vld [vmem:[#allocation2 + $0x90] sm:$0xf]
    %v130 = vld [vmem:[#allocation2 + $0x94] sm:$0xf]
    %v131 = vld [vmem:[#allocation2 + $0x98] sm:$0xf]
    %v132 = vld [vmem:[#allocation2 + $0x9c] sm:$0xf]
    %v133 = vld [vmem:[#allocation2 + $0xa0] sm:$0xf]
    %v134 = vld [vmem:[#allocation2 + $0xa4] sm:$0xf]
    %v135 = vld [vmem:[#allocation2 + $0xa8] sm:$0xf]
    %v136 = vld [vmem:[#allocation2 + $0xac] sm:$0xf]
    %v137 = vld [vmem:[#allocation2 + $0xb0] sm:$0xf]
    %v138 = vld [vmem:[#allocation2 + $0xb4] sm:$0xf]
    %v139 = vld [vmem:[#allocation2 + $0xb8] sm:$0xf]
    %v140 = vld [vmem:[#allocation2 + $0xbc] sm:$0xf]
    %v141 = vld [vmem:[#allocation2 + $0xc0] sm:$0xf]
    %v142 = vld [vmem:[#allocation2 + $0xc4] sm:$0xf]
    %v143 = vld [vmem:[#allocation2 + $0xc8] sm:$0xf]
    %v144 = vld [vmem:[#allocation2 + $0xcc] sm:$0xf]
    %v145 = vld [vmem:[#allocation2 + $0xd0] sm:$0xf]
    %v146 = vld [vmem:[#allocation2 + $0xd4] sm:$0xf]
    %v147 = vld [vmem:[#allocation2 + $0xd8] sm:$0xf]
    %v148 = vld [vmem:[#allocation2 + $0xdc] sm:$0xf]
    %v149 = vld [vmem:[#allocation2 + $0xe0] sm:$0xf]
    %v150 = vld [vmem:[#allocation2 + $0xe4] sm:$0xf]
    %v151 = vld [vmem:[#allocation2 + $0xe8] sm:$0xf]
    %v152 = vld [vmem:[#allocation2 + $0xec] sm:$0xf]
    %v153 = vld [vmem:[#allocation2 + $0xf0] sm:$0xf]
    %v154 = vld [vmem:[#allocation2 + $0xf4] sm:$0xf]
    %v155 = vld [vmem:[#allocation2 + $0xf8] sm:$0xf]
    %v156 = vld [vmem:[#allocation2 + $0xfc] sm:$0xf]
    %v157 = vld [vmem:[#allocation2 + $0x100] sm:$0xf]
    %v158 = vld [vmem:[#allocation2 + $0x104] sm:$0xf]
    %v159 = vld [vmem:[#allocation2 + $0x108] sm:$0xf]
    %v160 = vld [vmem:[#allocation2 + $0x10c] sm:$0xf]
    %v161 = vld [vmem:[#allocation2 + $0x110] sm:$0xf]
    %v162 = vld [vmem:[#allocation2 + $0x114] sm:$0xf]
    %v163 = vld [vmem:[#allocation2 + $0x118] sm:$0xf]
    %v164 = vld [vmem:[#allocation2 + $0x11c] sm:$0xf]
    %v165 = vld [vmem:[#allocation2 + $0x120] sm:$0xf]
    %v166 = vld [vmem:[#allocation2 + $0x124] sm:$0xf]
    %v167 = vld [vmem:[#allocation2 + $0x128] sm:$0xf]
    %v168 = vld [vmem:[#allocation2 + $0x12c] sm:$0xf]
    %v169 = vld [vmem:[#allocation2 + $0x130] sm:$0xf]
    %v170 = vld [vmem:[#allocation2 + $0x134] sm:$0xf]
    %v171 = vld [vmem:[#allocation2 + $0x138] sm:$0xf]
    %v172 = vld [vmem:[#allocation2 + $0x13c] sm:$0xf]
    %v173 = vld [vmem:[#allocation2 + $0x140] sm:$0xf]
    %v174 = vld [vmem:[#allocation2 + $0x144] sm:$0xf]
    %v175 = vld [vmem:[#allocation2 + $0x148] sm:$0xf]
    %v176 = vld [vmem:[#allocation2 + $0x14c] sm:$0xf]
    %v177 = vld [vmem:[#allocation2 + $0x150] sm:$0xf]
    %v178 = vld [vmem:[#allocation2 + $0x154] sm:$0xf]
    %v179 = vld [vmem:[#allocation2 + $0x158] sm:$0xf]
    %v180 = vld [vmem:[#allocation2 + $0x15c] sm:$0xf]
    %v181 = vld [vmem:[#allocation2 + $0x160] sm:$0xf]
    %v182 = vld [vmem:[#allocation2 + $0x164] sm:$0xf]
    %v183 = vld [vmem:[#allocation2 + $0x168] sm:$0xf]
    %v184 = vld [vmem:[#allocation2 + $0x16c] sm:$0xf]
    %v185 = vld [vmem:[#allocation2 + $0x170] sm:$0xf]
    %v186 = vld [vmem:[#allocation2 + $0x174] sm:$0xf]
    %v187 = vld [vmem:[#allocation2 + $0x178] sm:$0xf]
    %v188 = vld [vmem:[#allocation2 + $0x17c] sm:$0xf]
    %v189 = vld [vmem:[#allocation2 + $0x180] sm:$0xf]
    %v190 = vld [vmem:[#allocation2 + $0x184] sm:$0xf]
    %v191 = vld [vmem:[#allocation2 + $0x188] sm:$0xf]
    %v192 = vld [vmem:[#allocation2 + $0x18c] sm:$0xf]
    %v193 = vld [vmem:[#allocation2 + $0x190] sm:$0xf]
    %v194 = vld [vmem:[#allocation2 + $0x194] sm:$0xf]
    %v195 = vld [vmem:[#allocation2 + $0x198] sm:$0xf]
    %v196 = vld [vmem:[#allocation2 + $0x19c] sm:$0xf]
    %v197 = vld [vmem:[#allocation2 + $0x1a0] sm:$0xf]
    %v198 = vld [vmem:[#allocation2 + $0x1a4] sm:$0xf]
    %v199 = vld [vmem:[#allocation2 + $0x1a8] sm:$0xf]
    %v200 = vld [vmem:[#allocation2 + $0x1ac] sm:$0xf]
    %v201 = vld [vmem:[#allocation2 + $0x1b0] sm:$0xf]
    %v202 = vld [vmem:[#allocation2 + $0x1b4] sm:$0xf]
    %v203 = vld [vmem:[#allocation2 + $0x1b8] sm:$0xf]
    %v204 = vld [vmem:[#allocation2 + $0x1bc] sm:$0xf]
    %v205 = vld [vmem:[#allocation2 + $0x1c0] sm:$0xf]
    %v206 = vld [vmem:[#allocation2 + $0x1c4] sm:$0xf]
    %v207 = vld [vmem:[#allocation2 + $0x1c8] sm:$0xf]
    %v208 = vld [vmem:[#allocation2 + $0x1cc] sm:$0xf]
    %v209 = vld [vmem:[#allocation2 + $0x1d0] sm:$0xf]
    %v210 = vld [vmem:[#allocation2 + $0x1d4] sm:$0xf]
    %v211 = vld [vmem:[#allocation2 + $0x1d8] sm:$0xf]
    %v212 = vld [vmem:[#allocation2 + $0x1dc] sm:$0xf]
    %v213 = vld [vmem:[#allocation2 + $0x1e0] sm:$0xf]
    %v214 = vld [vmem:[#allocation2 + $0x1e4] sm:$0xf]
    %v215 = vld [vmem:[#allocation2 + $0x1e8] sm:$0xf]
    %v216 = vld [vmem:[#allocation2 + $0x1ec] sm:$0xf]
    %v217 = vld [vmem:[#allocation2 + $0x1f0] sm:$0xf]
    %v218 = vld [vmem:[#allocation2 + $0x1f4] sm:$0xf]
    %v219 = vld [vmem:[#allocation2 + $0x1f8] sm:$0xf]
    %v220 = vld [vmem:[#allocation2 + $0x1fc] sm:$0xf]
    %v221 = vld [vmem:[#allocation4] sm:$0x1]
    %v223 = vperm.slane %v221, 0
    %v241 = vunpack.c.l.b16 %v77
    %v242 = vunpack.c.h.b16 %v77
    %v243 = vunpack.c.l.b16 %v78
    %v244 = vunpack.c.h.b16 %v78
    %v245 = vunpack.c.l.b16 %v79
    %v246 = vunpack.c.h.b16 %v79
    %v247 = vunpack.c.l.b16 %v80
    %v248 = vunpack.c.h.b16 %v80
    %v249 = vunpack.c.l.b16 %v81
    %v250 = vunpack.c.h.b16 %v81
    %v251 = vunpack.c.l.b16 %v82
    %v252 = vunpack.c.h.b16 %v82
    %v253 = vunpack.c.l.b16 %v83
    %v254 = vunpack.c.h.b16 %v83
    %v255 = vunpack.c.l.b16 %v84
    %v256 = vunpack.c.h.b16 %v84
    %v257 = vunpack.c.l.b16 %v85
    %v258 = vunpack.c.h.b16 %v85
    %v259 = vunpack.c.l.b16 %v86
    %v260 = vunpack.c.h.b16 %v86
    %v261 = vunpack.c.l.b16 %v87
    %v262 = vunpack.c.h.b16 %v87
    %v263 = vunpack.c.l.b16 %v88
    %v264 = vunpack.c.h.b16 %v88
    %v265 = vunpack.c.l.b16 %v89
    %v266 = vunpack.c.h.b16 %v89
    %v267 = vunpack.c.l.b16 %v90
    %v268 = vunpack.c.h.b16 %v90
    %v269 = vunpack.c.l.b16 %v91
    %v270 = vunpack.c.h.b16 %v91
    %v271 = vunpack.c.l.b16 %v92
    %v272 = vunpack.c.h.b16 %v92
    %v273 = vpack.c.b16 %v249, %v241
    %v274 = vpack.c.b16 %v250, %v242
    %v275 = vpack.c.b16 %v251, %v243
    %v276 = vpack.c.b16 %v252, %v244
    %v277 = vpack.c.b16 %v253, %v245
    %v278 = vpack.c.b16 %v254, %v246
    %v279 = vpack.c.b16 %v255, %v247
    %v280 = vpack.c.b16 %v256, %v248
    %v281 = vpack.c.b16 %v265, %v257
    %v282 = vpack.c.b16 %v266, %v258
    %v283 = vpack.c.b16 %v267, %v259
    %v284 = vpack.c.b16 %v268, %v260
    %v285 = vpack.c.b16 %v269, %v261
    %v286 = vpack.c.b16 %v270, %v262
    %v287 = vpack.c.b16 %v271, %v263
    %v288 = vpack.c.b16 %v272, %v264
    %v433 = vunpack.c.l.b16 %v93
    %v434 = vunpack.c.l.b16 %v94
    %v435 = vunpack.c.l.b16 %v95
    %v436 = vunpack.c.l.b16 %v96
    %v437 = vunpack.c.l.b16 %v97
    %v438 = vunpack.c.l.b16 %v98
    %v439 = vunpack.c.l.b16 %v99
    %v440 = vunpack.c.l.b16 %v100
    %v441 = vunpack.c.l.b16 %v101
    %v442 = vunpack.c.l.b16 %v102
    %v443 = vunpack.c.l.b16 %v103
    %v444 = vunpack.c.l.b16 %v104
    %v445 = vunpack.c.l.b16 %v105
    %v446 = vunpack.c.l.b16 %v106
    %v447 = vunpack.c.l.b16 %v107
    %v448 = vunpack.c.l.b16 %v108
    %v449 = vunpack.c.l.b16 %v109
    %v450 = vunpack.c.l.b16 %v110
    %v451 = vunpack.c.l.b16 %v111
    %v452 = vunpack.c.l.b16 %v112
    %v453 = vunpack.c.l.b16 %v113
    %v454 = vunpack.c.l.b16 %v114
    %v455 = vunpack.c.l.b16 %v115
    %v456 = vunpack.c.l.b16 %v116
    %v457 = vunpack.c.l.b16 %v117
    %v458 = vunpack.c.l.b16 %v118
    %v459 = vunpack.c.l.b16 %v119
    %v460 = vunpack.c.l.b16 %v120
    %v461 = vunpack.c.l.b16 %v121
    %v462 = vunpack.c.l.b16 %v122
    %v463 = vunpack.c.l.b16 %v123
    %v464 = vunpack.c.l.b16 %v124
    %v465 = vunpack.c.l.b16 %v125
    %v466 = vunpack.c.l.b16 %v126
    %v467 = vunpack.c.l.b16 %v127
    %v468 = vunpack.c.l.b16 %v128
    %v469 = vunpack.c.l.b16 %v129
    %v470 = vunpack.c.l.b16 %v130
    %v471 = vunpack.c.l.b16 %v131
    %v472 = vunpack.c.l.b16 %v132
    %v473 = vunpack.c.l.b16 %v133
    %v474 = vunpack.c.l.b16 %v134
    %v475 = vunpack.c.l.b16 %v135
    %v476 = vunpack.c.l.b16 %v136
    %v477 = vunpack.c.l.b16 %v137
    %v478 = vunpack.c.l.b16 %v138
    %v479 = vunpack.c.l.b16 %v139
    %v480 = vunpack.c.l.b16 %v140
    %v481 = vunpack.c.l.b16 %v141
    %v482 = vunpack.c.l.b16 %v142
    %v483 = vunpack.c.l.b16 %v143
    %v484 = vunpack.c.l.b16 %v144
    %v485 = vunpack.c.l.b16 %v145
    %v486 = vunpack.c.l.b16 %v146
    %v487 = vunpack.c.l.b16 %v147
    %v488 = vunpack.c.l.b16 %v148
    %v489 = vunpack.c.l.b16 %v149
    %v490 = vunpack.c.l.b16 %v150
    %v491 = vunpack.c.l.b16 %v151
    %v492 = vunpack.c.l.b16 %v152
    %v493 = vunpack.c.l.b16 %v153
    %v494 = vunpack.c.l.b16 %v154
    %v495 = vunpack.c.l.b16 %v155
    %v496 = vunpack.c.l.b16 %v156
    %v497 = vunpack.c.l.b16 %v157
    %v498 = vunpack.c.l.b16 %v158
    %v499 = vunpack.c.l.b16 %v159
    %v500 = vunpack.c.l.b16 %v160
    %v501 = vunpack.c.l.b16 %v161
    %v502 = vunpack.c.l.b16 %v162
    %v503 = vunpack.c.l.b16 %v163
    %v504 = vunpack.c.l.b16 %v164
    %v505 = vunpack.c.l.b16 %v165
    %v506 = vunpack.c.l.b16 %v166
    %v507 = vunpack.c.l.b16 %v167
    %v508 = vunpack.c.l.b16 %v168
    %v509 = vunpack.c.l.b16 %v169
    %v510 = vunpack.c.l.b16 %v170
    %v511 = vunpack.c.l.b16 %v171
    %v512 = vunpack.c.l.b16 %v172
    %v513 = vunpack.c.l.b16 %v173
    %v514 = vunpack.c.l.b16 %v174
    %v515 = vunpack.c.l.b16 %v175
    %v516 = vunpack.c.l.b16 %v176
    %v517 = vunpack.c.l.b16 %v177
    %v518 = vunpack.c.l.b16 %v178
    %v519 = vunpack.c.l.b16 %v179
    %v520 = vunpack.c.l.b16 %v180
    %v521 = vunpack.c.l.b16 %v181
    %v522 = vunpack.c.l.b16 %v182
    %v523 = vunpack.c.l.b16 %v183
    %v524 = vunpack.c.l.b16 %v184
    %v525 = vunpack.c.l.b16 %v185
    %v526 = vunpack.c.l.b16 %v186
    %v527 = vunpack.c.l.b16 %v187
    %v528 = vunpack.c.l.b16 %v188
    %v529 = vunpack.c.l.b16 %v189
    %v530 = vunpack.c.l.b16 %v190
    %v531 = vunpack.c.l.b16 %v191
    %v532 = vunpack.c.l.b16 %v192
    %v533 = vunpack.c.l.b16 %v193
    %v534 = vunpack.c.l.b16 %v194
    %v535 = vunpack.c.l.b16 %v195
    %v536 = vunpack.c.l.b16 %v196
    %v537 = vunpack.c.l.b16 %v197
    %v538 = vunpack.c.l.b16 %v198
    %v539 = vunpack.c.l.b16 %v199
    %v540 = vunpack.c.l.b16 %v200
    %v541 = vunpack.c.l.b16 %v201
    %v542 = vunpack.c.l.b16 %v202
    %v543 = vunpack.c.l.b16 %v203
    %v544 = vunpack.c.l.b16 %v204
    %v545 = vunpack.c.l.b16 %v205
    %v546 = vunpack.c.l.b16 %v206
    %v547 = vunpack.c.l.b16 %v207
    %v548 = vunpack.c.l.b16 %v208
    %v549 = vunpack.c.l.b16 %v209
    %v550 = vunpack.c.l.b16 %v210
    %v551 = vunpack.c.l.b16 %v211
    %v552 = vunpack.c.l.b16 %v212
    %v553 = vunpack.c.l.b16 %v213
    %v554 = vunpack.c.l.b16 %v214
    %v555 = vunpack.c.l.b16 %v215
    %v556 = vunpack.c.l.b16 %v216
    %v557 = vunpack.c.l.b16 %v217
    %v558 = vunpack.c.l.b16 %v218
    %v559 = vunpack.c.l.b16 %v219
    %v560 = vunpack.c.l.b16 %v220
    %v561 = vpack.c.b16 %v434, %v433
    %v562 = vpack.c.b16 %v436, %v435
    %v563 = vpack.c.b16 %v438, %v437
    %v564 = vpack.c.b16 %v440, %v439
    %v565 = vpack.c.b16 %v442, %v441
    %v566 = vpack.c.b16 %v444, %v443
    %v567 = vpack.c.b16 %v446, %v445
    %v568 = vpack.c.b16 %v448, %v447
    %v569 = vpack.c.b16 %v450, %v449
    %v570 = vpack.c.b16 %v452, %v451
    %v571 = vpack.c.b16 %v454, %v453
    %v572 = vpack.c.b16 %v456, %v455
    %v573 = vpack.c.b16 %v458, %v457
    %v574 = vpack.c.b16 %v460, %v459
    %v575 = vpack.c.b16 %v462, %v461
    %v576 = vpack.c.b16 %v464, %v463
    %v577 = vpack.c.b16 %v466, %v465
    %v578 = vpack.c.b16 %v468, %v467
    %v579 = vpack.c.b16 %v470, %v469
    %v580 = vpack.c.b16 %v472, %v471
    %v581 = vpack.c.b16 %v474, %v473
    %v582 = vpack.c.b16 %v476, %v475
    %v583 = vpack.c.b16 %v478, %v477
    %v584 = vpack.c.b16 %v480, %v479
    %v585 = vpack.c.b16 %v482, %v481
    %v586 = vpack.c.b16 %v484, %v483
    %v587 = vpack.c.b16 %v486, %v485
    %v588 = vpack.c.b16 %v488, %v487
    %v589 = vpack.c.b16 %v490, %v489
    %v590 = vpack.c.b16 %v492, %v491
    %v591 = vpack.c.b16 %v494, %v493
    %v592 = vpack.c.b16 %v496, %v495
    %v593 = vpack.c.b16 %v498, %v497
    %v594 = vpack.c.b16 %v500, %v499
    %v595 = vpack.c.b16 %v502, %v501
    %v596 = vpack.c.b16 %v504, %v503
    %v597 = vpack.c.b16 %v506, %v505
    %v598 = vpack.c.b16 %v508, %v507
    %v599 = vpack.c.b16 %v510, %v509
    %v600 = vpack.c.b16 %v512, %v511
    %v601 = vpack.c.b16 %v514, %v513
    %v602 = vpack.c.b16 %v516, %v515
    %v603 = vpack.c.b16 %v518, %v517
    %v604 = vpack.c.b16 %v520, %v519
    %v605 = vpack.c.b16 %v522, %v521
    %v606 = vpack.c.b16 %v524, %v523
    %v607 = vpack.c.b16 %v526, %v525
    %v608 = vpack.c.b16 %v528, %v527
    %v609 = vpack.c.b16 %v530, %v529
    %v610 = vpack.c.b16 %v532, %v531
    %v611 = vpack.c.b16 %v534, %v533
    %v612 = vpack.c.b16 %v536, %v535
    %v613 = vpack.c.b16 %v538, %v537
    %v614 = vpack.c.b16 %v540, %v539
    %v615 = vpack.c.b16 %v542, %v541
    %v616 = vpack.c.b16 %v544, %v543
    %v617 = vpack.c.b16 %v546, %v545
    %v618 = vpack.c.b16 %v548, %v547
    %v619 = vpack.c.b16 %v550, %v549
    %v620 = vpack.c.b16 %v552, %v551
    %v621 = vpack.c.b16 %v554, %v553
    %v622 = vpack.c.b16 %v556, %v555
    %v623 = vpack.c.b16 %v558, %v557
    %v624 = vpack.c.b16 %v560, %v559
    %689 = vmatpush.bf16.msra.mxu0 %v568
    %690 = vmatpush.bf16.msra.mxu0 %v567
    %691 = vmatpush.bf16.msra.mxu0 %v566
    %692 = vmatpush.bf16.msra.mxu0 %v565
    %693 = vmatpush.bf16.msra.mxu0 %v564
    %694 = vmatpush.bf16.msra.mxu0 %v563
    %695 = vmatpush.bf16.msra.mxu0 %v562
    %696 = vmatpush.bf16.msra.mxu0 %v561
    %697 = vmatmul.bf16.gmra.mxu0 %v273
    %v698 = vpop.f32.mrf.mxu0
    %v699 = vadd.f32 %v223, %v698
    %v700 = vpop.f32.mrf.mxu0
    %v701 = vadd.f32 %v223, %v700
    %702 = vmatmul.bf16.gmra.mxu0 %v281
    %v703 = vpop.f32.mrf.mxu0
    %v704 = vadd.f32 %v223, %v703
    %v705 = vpop.f32.mrf.mxu0
    %v706 = vadd.f32 %v223, %v705
    %707 = vdwg.mxu0
    %708 = vmatpush.bf16.msra.mxu0 %v576
    %709 = vmatpush.bf16.msra.mxu0 %v575
    %710 = vmatpush.bf16.msra.mxu0 %v574
    %711 = vmatpush.bf16.msra.mxu0 %v573
    %712 = vmatpush.bf16.msra.mxu0 %v572
    %713 = vmatpush.bf16.msra.mxu0 %v571
    %714 = vmatpush.bf16.msra.mxu0 %v570
    %715 = vmatpush.bf16.msra.mxu0 %v569
    %716 = vmatmul.bf16.gmra.mxu0 %v274
    %v717 = vpop.f32.mrf.mxu0
    %v718 = vadd.f32 %v699, %v717
    %v719 = vpop.f32.mrf.mxu0
    %v720 = vadd.f32 %v701, %v719
    %721 = vmatmul.bf16.gmra.mxu0 %v282
    %v722 = vpop.f32.mrf.mxu0
    %v723 = vadd.f32 %v704, %v722
    %v724 = vpop.f32.mrf.mxu0
    %v725 = vadd.f32 %v706, %v724
    %726 = vdwg.mxu0
    %727 = vmatpush.bf16.msra.mxu0 %v584
    %728 = vmatpush.bf16.msra.mxu0 %v583
    %729 = vmatpush.bf16.msra.mxu0 %v582
    %730 = vmatpush.bf16.msra.mxu0 %v581
    %731 = vmatpush.bf16.msra.mxu0 %v580
    %732 = vmatpush.bf16.msra.mxu0 %v579
    %733 = vmatpush.bf16.msra.mxu0 %v578
    %734 = vmatpush.bf16.msra.mxu0 %v577
    %735 = vmatmul.bf16.gmra.mxu0 %v275
    %v736 = vpop.f32.mrf.mxu0
    %v737 = vadd.f32 %v718, %v736
    %v738 = vpop.f32.mrf.mxu0
    %v739 = vadd.f32 %v720, %v738
    %740 = vmatmul.bf16.gmra.mxu0 %v283
    %v741 = vpop.f32.mrf.mxu0
    %v742 = vadd.f32 %v723, %v741
    %v743 = vpop.f32.mrf.mxu0
    %v744 = vadd.f32 %v725, %v743
    %745 = vdwg.mxu0
    %746 = vmatpush.bf16.msra.mxu0 %v592
    %747 = vmatpush.bf16.msra.mxu0 %v591
    %748 = vmatpush.bf16.msra.mxu0 %v590
    %749 = vmatpush.bf16.msra.mxu0 %v589
    %750 = vmatpush.bf16.msra.mxu0 %v588
    %751 = vmatpush.bf16.msra.mxu0 %v587
    %752 = vmatpush.bf16.msra.mxu0 %v586
    %753 = vmatpush.bf16.msra.mxu0 %v585
    %754 = vmatmul.bf16.gmra.mxu0 %v276
    %v755 = vpop.f32.mrf.mxu0
    %v756 = vadd.f32 %v737, %v755
    %v757 = vpop.f32.mrf.mxu0
    %v758 = vadd.f32 %v739, %v757
    %759 = vmatmul.bf16.gmra.mxu0 %v284
    %v760 = vpop.f32.mrf.mxu0
    %v761 = vadd.f32 %v742, %v760
    %v762 = vpop.f32.mrf.mxu0
    %v763 = vadd.f32 %v744, %v762
    %764 = vdwg.mxu0
    %765 = vmatpush.bf16.msra.mxu0 %v600
    %766 = vmatpush.bf16.msra.mxu0 %v599
    %767 = vmatpush.bf16.msra.mxu0 %v598
    %768 = vmatpush.bf16.msra.mxu0 %v597
    %769 = vmatpush.bf16.msra.mxu0 %v596
    %770 = vmatpush.bf16.msra.mxu0 %v595
    %771 = vmatpush.bf16.msra.mxu0 %v594
    %772 = vmatpush.bf16.msra.mxu0 %v593
    %773 = vmatmul.bf16.gmra.mxu0 %v277
    %v774 = vpop.f32.mrf.mxu0
    %v775 = vadd.f32 %v756, %v774
    %v776 = vpop.f32.mrf.mxu0
    %v777 = vadd.f32 %v758, %v776
    %778 = vmatmul.bf16.gmra.mxu0 %v285
    %v779 = vpop.f32.mrf.mxu0
    %v780 = vadd.f32 %v761, %v779
    %v781 = vpop.f32.mrf.mxu0
    %v782 = vadd.f32 %v763, %v781
    %783 = vdwg.mxu0
    %784 = vmatpush.bf16.msra.mxu0 %v608
    %785 = vmatpush.bf16.msra.mxu0 %v607
    %786 = vmatpush.bf16.msra.mxu0 %v606
    %787 = vmatpush.bf16.msra.mxu0 %v605
    %788 = vmatpush.bf16.msra.mxu0 %v604
    %789 = vmatpush.bf16.msra.mxu0 %v603
    %790 = vmatpush.bf16.msra.mxu0 %v602
    %791 = vmatpush.bf16.msra.mxu0 %v601
    %792 = vmatmul.bf16.gmra.mxu0 %v278
    %v793 = vpop.f32.mrf.mxu0
    %v794 = vadd.f32 %v775, %v793
    %v795 = vpop.f32.mrf.mxu0
    %v796 = vadd.f32 %v777, %v795
    %797 = vmatmul.bf16.gmra.mxu0 %v286
    %v798 = vpop.f32.mrf.mxu0
    %v799 = vadd.f32 %v780, %v798
    %v800 = vpop.f32.mrf.mxu0
    %v801 = vadd.f32 %v782, %v800
    %802 = vdwg.mxu0
    %803 = vmatpush.bf16.msra.mxu0 %v616
    %804 = vmatpush.bf16.msra.mxu0 %v615
    %805 = vmatpush.bf16.msra.mxu0 %v614
    %806 = vmatpush.bf16.msra.mxu0 %v613
    %807 = vmatpush.bf16.msra.mxu0 %v612
    %808 = vmatpush.bf16.msra.mxu0 %v611
    %809 = vmatpush.bf16.msra.mxu0 %v610
    %810 = vmatpush.bf16.msra.mxu0 %v609
    %811 = vmatmul.bf16.gmra.mxu0 %v279
    %v812 = vpop.f32.mrf.mxu0
    %v813 = vadd.f32 %v794, %v812
    %v814 = vpop.f32.mrf.mxu0
    %v815 = vadd.f32 %v796, %v814
    %816 = vmatmul.bf16.gmra.mxu0 %v287
    %v817 = vpop.f32.mrf.mxu0
    %v818 = vadd.f32 %v799, %v817
    %v819 = vpop.f32.mrf.mxu0
    %v820 = vadd.f32 %v801, %v819
    %821 = vdwg.mxu0
    %822 = vmatpush.bf16.msra.mxu0 %v624
    %823 = vmatpush.bf16.msra.mxu0 %v623
    %824 = vmatpush.bf16.msra.mxu0 %v622
    %825 = vmatpush.bf16.msra.mxu0 %v621
    %826 = vmatpush.bf16.msra.mxu0 %v620
    %827 = vmatpush.bf16.msra.mxu0 %v619
    %828 = vmatpush.bf16.msra.mxu0 %v618
    %829 = vmatpush.bf16.msra.mxu0 %v617
    %830 = vmatmul.bf16.gmra.mxu0 %v280
    %v831 = vpop.f32.mrf.mxu0
    %v832 = vadd.f32 %v813, %v831
    %v833 = vpop.f32.mrf.mxu0
    %v834 = vadd.f32 %v815, %v833
    %835 = vmatmul.bf16.gmra.mxu0 %v288
    %v836 = vpop.f32.mrf.mxu0
    %v837 = vadd.f32 %v818, %v836
    %v838 = vpop.f32.mrf.mxu0
    %v839 = vadd.f32 %v820, %v838
    %840 = vdwg.mxu0
    %v841 = vadd.f32 %v832, %v834
    %v842 = vadd.f32 %v841, %v837
    %v843 = vadd.f32 %v842, %v839
    %v844 = vrot.slane %v843, 4
    %v845 = vadd.f32 %v843, %v844
    %v846 = vrot.slane %v845, 2
    %v847 = vadd.f32 %v845, %v846
    %v848 = vrot.slane %v847, 1
    %v849 = vadd.f32 %v847, %v848
    %v850 = vrcp.pop 32.0
    %v851 = vmul.f32 32.0, %v850
    %v852 = vsub.f32 1.0, %v851
    %v853 = vmul.f32 %v850, %v852
    %v854 = vadd.f32 %v850, %v853
    %vm855 = vweird.f32 %v850
    %v856 = vsel %vm855, %v850, %v854
    %v857 = vmul.f32 %v849, %v856
    %v858 = vsub.f32 %v832, %v857
    %v859 = vsub.f32 %v834, %v857
    %v860 = vsub.f32 %v837, %v857
    %v861 = vsub.f32 %v839, %v857
    %v862 = vmul.f32 %v858, %v858
    %v863 = vmul.f32 %v859, %v859
    %v864 = vmul.f32 %v860, %v860
    %v865 = vmul.f32 %v861, %v861
    %v866 = vadd.f32 %v862, %v863
    %v867 = vadd.f32 %v866, %v864
    %v868 = vadd.f32 %v867, %v865
    %v869 = vrot.slane %v868, 4
    %v870 = vadd.f32 %v868, %v869
    %v871 = vrot.slane %v870, 2
    %v872 = vadd.f32 %v870, %v871
    %v873 = vrot.slane %v872, 1
    %v874 = vadd.f32 %v872, %v873
    %v875 = vmul.f32 %v874, %v856
    %v876 = vadd.f32 %v875, 1e-05
    %v877 = vrsqrt.pop %v876
    %v878 = vmul.f32 %v877, %v876
    %v879 = vmul.f32 %v878, %v877
    %v880 = vmul.f32 0.5, %v879
    %v881 = vsub.f32 1.5, %v880
    %v882 = vmul.f32 %v877, %v881
    %vm883 = vweird.f32 %v876
    %vm884 = vweird.f32 %v877
    %vm885 = vmor %vm883, %vm884
    %v886 = vsel %vm885, %v877, %v882
    %v887 = vmul.f32 %v858, %v886
    %v888 = vmul.f32 %v859, %v886
    %v889 = vmul.f32 %v860, %v886
    %v890 = vmul.f32 %v861, %v886
    %v891 = vld [vmem:[#allocation6] sm:$0x1]
    %v893 = vperm.slane %v891, 0
    %v895 = vmul.f32 %v887, %v893
    %v896 = vmul.f32 %v888, %v893
    %v897 = vmul.f32 %v889, %v893
    %v898 = vmul.f32 %v890, %v893
    %v899 = vld [vmem:[#allocation7] sm:$0x1]
    %v901 = vperm.slane %v899, 0
    %v903 = vadd.f32 %v895, %v901
    %v904 = vadd.f32 %v896, %v901
    %v905 = vadd.f32 %v897, %v901
    %v906 = vadd.f32 %v898, %v901
    %vm907 = vcmp.gt.f32.partialorder %v903, 0.0
    %vm908 = vcmp.gt.f32.partialorder %v904, 0.0
    %vm909 = vcmp.gt.f32.partialorder %v905, 0.0
    %vm910 = vcmp.gt.f32.partialorder %v906, 0.0
    %v911 = vmul.f32 %v903, 0.2
    %v912 = vmul.f32 %v904, 0.2
    %v913 = vmul.f32 %v905, 0.2
    %v914 = vmul.f32 %v906, 0.2
    %v915 = vsel %vm907, %v903, %v911
    %v916 = vsel %vm908, %v904, %v912
    %v917 = vsel %vm909, %v905, %v913
    %v918 = vsel %vm910, %v906, %v914
    %919 = vst [vmem:[%s5] sm:$0xff] %v915
    %920 = vst [vmem:[%s5 + $0x8] sm:$0xff] %v916
    %921 = vst [vmem:[%s5 + $0x10] sm:$0xff] %v917
    %922 = vst [vmem:[%s5 + $0x18] sm:$0xff] %v918
    // Predicated region
    $region38: #{discriminator_forward.5} parent=1 // pred_check
      _
    $region39: #{discriminator_forward.5} parent=1 // pred_check_branch
      %924 = sbr.rel (0) target = $region41
    $region40: #{discriminator_forward.5} parent=1 // pred_region
      _
    $region41: #{discriminator_forward.5} parent=1 // pred_fallthru
      _
    // Predicated region
    $region42: #{discriminator_forward.5} parent=1 // pred_check
      _
    $region43: #{discriminator_forward.5} parent=1 // pred_check_branch
      %926 = sbr.rel (0) target = $region45
    $region44: #{discriminator_forward.5} parent=1 // pred_region
      _
    $region45: #{discriminator_forward.5} parent=1 // pred_fallthru
      _
    %927 = vsyncpa [#allocation3], 1
    %928 = vsyncpa [#allocation5], 1
    %929 = vsyncpa [#allocation8], 1

// kernel: discriminator_forward.6
$region0: #{discriminator_forward.6}
  #allocation0 [shape = 'u32[]', space=smem, size = 0x4, offset = 0x4, fixed_abs, tag = 'smem constant byte address 0x4 - core index']
  #allocation1 [shape = 'u32[72,128]{1,0:T(1,128)}', space=vmem, size = 0x9000, scoped, tag = 'internal scratch']
  %s0 = inlined_call_operand.vmem [shape: bf16[8,2048], index: 0, kind: input, shape index: {}]
  %s1 = inlined_call_operand.hbm [shape: bf16[2048,256], index: 1, kind: input, shape index: {}]
  %s2 = inlined_call_operand.hbm [shape: f32[1,256], index: 2, kind: input, shape index: {}]
  %s3 = inlined_call_operand.hbm [shape: f32[1,256], index: 3, kind: input, shape index: {}]
  %s4 = inlined_call_operand.hbm [shape: f32[1,256], index: 4, kind: input, shape index: {}]
  %s5 = inlined_call_operand.vmem [shape: f32[8,256], index: 5, kind: output, shape index: {}]
  %s6 = sld [smem:[#allocation0]]
  $region46: #{discriminator_forward.6} parent=0
    _
  %s8 = ssub.s32 1, %s6
  %s9 = scalar_select 0, %s8, %s6
  $region1: #{discriminator_forward.6} parent=0
    #allocation2 [shape = 'u8[1048576]{0}', space=vmem, size = 0x100000, scoped, tag = 'input window, operand 1, single buffered']
    #allocation3 [shape = 's32[1]{0}', space=sflag, size = 0x4, scoped, tag = 'scoped memory for discriminator_forward.6']
    #allocation4 [shape = 'u8[1024]{0}', space=vmem, size = 0x400, scoped, tag = 'input window, operand 2, single buffered']
    #allocation5 [shape = 's32[1]{0}', space=sflag, size = 0x4, scoped, tag = 'scoped memory for discriminator_forward.6']
    #allocation6 [shape = 'u8[1024]{0}', space=vmem, size = 0x400, scoped, tag = 'input window, operand 3, single buffered']
    #allocation7 [shape = 'u8[1024]{0}', space=vmem, size = 0x400, scoped, tag = 'input window, operand 4, single buffered']
    #allocation8 [shape = 's32[1]{0}', space=sflag, size = 0x4, scoped, tag = 'scoped memory for discriminator_forward.6']
    %10 = vsyncpa [#allocation3], 0
    %11 = vsyncpa [#allocation5], 0
    %12 = vsyncpa [#allocation8], 0
    // Predicated region
    $region2: #{discriminator_forward.6} parent=1 // pred_check
      _
    $region3: #{discriminator_forward.6} parent=1 // pred_check_branch
      %14 = sbr.rel (0) target = $region5
    $region4: #{discriminator_forward.6} parent=1 // pred_region
      _
    $region5: #{discriminator_forward.6} parent=1 // pred_fallthru
      _
    // Predicated region
    $region6: #{discriminator_forward.6} parent=1 // pred_check
      _
    $region7: #{discriminator_forward.6} parent=1 // pred_check_branch
      %16 = sbr.rel (0) target = $region9
    $region8: #{discriminator_forward.6} parent=1 // pred_region
      %18 = vsyncadd [#allocation3], 0
      %s19 = sshll.u32 %s1, 4
      %s20 = int_to_ptr.hbm [resolvable:$true] %s19
      %s21 = sshll.u32 [#allocation2], 4
      %s22 = int_to_ptr.vmem [resolvable:$true] %s21
      %27 = dma.hbm_to_vmem [thread:$0]  %s20, 32768, %s22, [#allocation3], 128, 128, 8
    $region9: #{discriminator_forward.6} parent=1 // pred_fallthru
      _
    // Predicated region
    $region10: #{discriminator_forward.6} parent=1 // pred_check
      _
    $region11: #{discriminator_forward.6} parent=1 // pred_check_branch
      %29 = sbr.rel (0) target = $region13
    $region12: #{discriminator_forward.6} parent=1 // pred_region
      %31 = vsyncadd [#allocation5], 0
      %s33 = sshll.u32 %s2, 4
      %s34 = int_to_ptr.hbm [resolvable:$true] %s33
      %s35 = sshll.u32 [#allocation4], 4
      %s36 = int_to_ptr.vmem [resolvable:$true] %s35
      %38 = dma.hbm_to_vmem [thread:$0]  %s34, 32, %s36, [#allocation5]
    $region13: #{discriminator_forward.6} parent=1 // pred_fallthru
      _
    // Predicated region
    $region14: #{discriminator_forward.6} parent=1 // pred_check
      _
    $region15: #{discriminator_forward.6} parent=1 // pred_check_branch
      %40 = sbr.rel (0) target = $region17
    $region16: #{discriminator_forward.6} parent=1 // pred_region
      %42 = vsyncadd [#allocation5], 0
      %s44 = sshll.u32 %s3, 4
      %s45 = int_to_ptr.hbm [resolvable:$true] %s44
      %s46 = sshll.u32 [#allocation6], 4
      %s47 = int_to_ptr.vmem [resolvable:$true] %s46
      %49 = dma.hbm_to_vmem [thread:$0]  %s45, 32, %s47, [#allocation5]
    $region17: #{discriminator_forward.6} parent=1 // pred_fallthru
      _
    // Predicated region
    $region18: #{discriminator_forward.6} parent=1 // pred_check
      _
    $region19: #{discriminator_forward.6} parent=1 // pred_check_branch
      %51 = sbr.rel (0) target = $region21
    $region20: #{discriminator_forward.6} parent=1 // pred_region
      %53 = vsyncadd [#allocation8], 0
      %s55 = sshll.u32 %s4, 4
      %s56 = int_to_ptr.hbm [resolvable:$true] %s55
      %s57 = sshll.u32 [#allocation7], 4
      %s58 = int_to_ptr.vmem [resolvable:$true] %s57
      %60 = dma.hbm_to_vmem [thread:$0]  %s56, 32, %s58, [#allocation8]
    $region21: #{discriminator_forward.6} parent=1 // pred_fallthru
      _
    // Predicated region
    $region22: #{discriminator_forward.6} parent=1 // pred_check
      _
    $region23: #{discriminator_forward.6} parent=1 // pred_check_branch
      %62 = sbr.rel (0) target = $region25
    $region24: #{discriminator_forward.6} parent=1 // pred_region
      %64 = dma.done [#allocation3], 32768
    $region25: #{discriminator_forward.6} parent=1 // pred_fallthru
      _
    // Predicated region
    $region26: #{discriminator_forward.6} parent=1 // pred_check
      _
    $region27: #{discriminator_forward.6} parent=1 // pred_check_branch
      %66 = sbr.rel (0) target = $region29
    $region28: #{discriminator_forward.6} parent=1 // pred_region
      %68 = dma.done [#allocation5], 32
    $region29: #{discriminator_forward.6} parent=1 // pred_fallthru
      _
    // Predicated region
    $region30: #{discriminator_forward.6} parent=1 // pred_check
      _
    $region31: #{discriminator_forward.6} parent=1 // pred_check_branch
      %70 = sbr.rel (0) target = $region33
    $region32: #{discriminator_forward.6} parent=1 // pred_region
      %72 = dma.done [#allocation5], 32
    $region33: #{discriminator_forward.6} parent=1 // pred_fallthru
      _
    // Predicated region
    $region34: #{discriminator_forward.6} parent=1 // pred_check
      _
    $region35: #{discriminator_forward.6} parent=1 // pred_check_branch
      %74 = sbr.rel (0) target = $region37
    $region36: #{discriminator_forward.6} parent=1 // pred_region
      %76 = dma.done [#allocation8], 32
    $region37: #{discriminator_forward.6} parent=1 // pred_fallthru
      _
    %v77 = vld [vmem:[%s0] sm:$0xff]
    %v78 = vld [vmem:[%s0 + $0x8] sm:$0xff]
    %v79 = vld [vmem:[%s0 + $0x10] sm:$0xff]
    %v80 = vld [vmem:[%s0 + $0x18] sm:$0xff]
    %v81 = vld [vmem:[%s0 + $0x20] sm:$0xff]
    %v82 = vld [vmem:[%s0 + $0x28] sm:$0xff]
    %v83 = vld [vmem:[%s0 + $0x30] sm:$0xff]
    %v84 = vld [vmem:[%s0 + $0x38] sm:$0xff]
    %v85 = vld [vmem:[#allocation2] sm:$0xff]
    %v86 = vld [vmem:[#allocation2 + $0x8] sm:$0xff]
    %v87 = vld [vmem:[#allocation2 + $0x10] sm:$0xff]
    %v88 = vld [vmem:[#allocation2 + $0x18] sm:$0xff]
    %v89 = vld [vmem:[#allocation2 + $0x20] sm:$0xff]
    %v90 = vld [vmem:[#allocation2 + $0x28] sm:$0xff]
    %v91 = vld [vmem:[#allocation2 + $0x30] sm:$0xff]
    %v92 = vld [vmem:[#allocation2 + $0x38] sm:$0xff]
    %v93 = vld [vmem:[#allocation2 + $0x40] sm:$0xff]
    %v94 = vld [vmem:[#allocation2 + $0x48] sm:$0xff]
    %v95 = vld [vmem:[#allocation2 + $0x50] sm:$0xff]
    %v96 = vld [vmem:[#allocation2 + $0x58] sm:$0xff]
    %v97 = vld [vmem:[#allocation2 + $0x60] sm:$0xff]
    %v98 = vld [vmem:[#allocation2 + $0x68] sm:$0xff]
    %v99 = vld [vmem:[#allocation2 + $0x70] sm:$0xff]
    %v100 = vld [vmem:[#allocation2 + $0x78] sm:$0xff]
    %v101 = vld [vmem:[#allocation2 + $0x80] sm:$0xff]
    %v102 = vld [vmem:[#allocation2 + $0x88] sm:$0xff]
    %v103 = vld [vmem:[#allocation2 + $0x90] sm:$0xff]
    %v104 = vld [vmem:[#allocation2 + $0x98] sm:$0xff]
    %v105 = vld [vmem:[#allocation2 + $0xa0] sm:$0xff]
    %v106 = vld [vmem:[#allocation2 + $0xa8] sm:$0xff]
    %v107 = vld [vmem:[#allocation2 + $0xb0] sm:$0xff]
    %v108 = vld [vmem:[#allocation2 + $0xb8] sm:$0xff]
    %v109 = vld [vmem:[#allocation2 + $0xc0] sm:$0xff]
    %v110 = vld [vmem:[#allocation2 + $0xc8] sm:$0xff]
    %v111 = vld [vmem:[#allocation2 + $0xd0] sm:$0xff]
    %v112 = vld [vmem:[#allocation2 + $0xd8] sm:$0xff]
    %v113 = vld [vmem:[#allocation2 + $0xe0] sm:$0xff]
    %v114 = vld [vmem:[#allocation2 + $0xe8] sm:$0xff]
    %v115 = vld [vmem:[#allocation2 + $0xf0] sm:$0xff]
    %v116 = vld [vmem:[#allocation2 + $0xf8] sm:$0xff]
    %v117 = vld [vmem:[#allocation2 + $0x100] sm:$0xff]
    %v118 = vld [vmem:[#allocation2 + $0x108] sm:$0xff]
    %v119 = vld [vmem:[#allocation2 + $0x110] sm:$0xff]
    %v120 = vld [vmem:[#allocation2 + $0x118] sm:$0xff]
    %v121 = vld [vmem:[#allocation2 + $0x120] sm:$0xff]
    %v122 = vld [vmem:[#allocation2 + $0x128] sm:$0xff]
    %v123 = vld [vmem:[#allocation2 + $0x130] sm:$0xff]
    %v124 = vld [vmem:[#allocation2 + $0x138] sm:$0xff]
    %v125 = vld [vmem:[#allocation2 + $0x140] sm:$0xff]
    %v126 = vld [vmem:[#allocation2 + $0x148] sm:$0xff]
    %v127 = vld [vmem:[#allocation2 + $0x150] sm:$0xff]
    %v128 = vld [vmem:[#allocation2 + $0x158] sm:$0xff]
    %v129 = vld [vmem:[#allocation2 + $0x160] sm:$0xff]
    %v130 = vld [vmem:[#allocation2 + $0x168] sm:$0xff]
    %v131 = vld [vmem:[#allocation2 + $0x170] sm:$0xff]
    %v132 = vld [vmem:[#allocation2 + $0x178] sm:$0xff]
    %v133 = vld [vmem:[#allocation2 + $0x180] sm:$0xff]
    %v134 = vld [vmem:[#allocation2 + $0x188] sm:$0xff]
    %v135 = vld [vmem:[#allocation2 + $0x190] sm:$0xff]
    %v136 = vld [vmem:[#allocation2 + $0x198] sm:$0xff]
    %v137 = vld [vmem:[#allocation2 + $0x1a0] sm:$0xff]
    %v138 = vld [vmem:[#allocation2 + $0x1a8] sm:$0xff]
    %v139 = vld [vmem:[#allocation2 + $0x1b0] sm:$0xff]
    %v140 = vld [vmem:[#allocation2 + $0x1b8] sm:$0xff]
    %v141 = vld [vmem:[#allocation2 + $0x1c0] sm:$0xff]
    %v142 = vld [vmem:[#allocation2 + $0x1c8] sm:$0xff]
    %v143 = vld [vmem:[#allocation2 + $0x1d0] sm:$0xff]
    %v144 = vld [vmem:[#allocation2 + $0x1d8] sm:$0xff]
    %v145 = vld [vmem:[#allocation2 + $0x1e0] sm:$0xff]
    %v146 = vld [vmem:[#allocation2 + $0x1e8] sm:$0xff]
    %v147 = vld [vmem:[#allocation2 + $0x1f0] sm:$0xff]
    %v148 = vld [vmem:[#allocation2 + $0x1f8] sm:$0xff]
    %v149 = vld [vmem:[#allocation2 + $0x200] sm:$0xff]
    %v150 = vld [vmem:[#allocation2 + $0x208] sm:$0xff]
    %v151 = vld [vmem:[#allocation2 + $0x210] sm:$0xff]
    %v152 = vld [vmem:[#allocation2 + $0x218] sm:$0xff]
    %v153 = vld [vmem:[#allocation2 + $0x220] sm:$0xff]
    %v154 = vld [vmem:[#allocation2 + $0x228] sm:$0xff]
    %v155 = vld [vmem:[#allocation2 + $0x230] sm:$0xff]
    %v156 = vld [vmem:[#allocation2 + $0x238] sm:$0xff]
    %v157 = vld [vmem:[#allocation2 + $0x240] sm:$0xff]
    %v158 = vld [vmem:[#allocation2 + $0x248] sm:$0xff]
    %v159 = vld [vmem:[#allocation2 + $0x250] sm:$0xff]
    %v160 = vld [vmem:[#allocation2 + $0x258] sm:$0xff]
    %v161 = vld [vmem:[#allocation2 + $0x260] sm:$0xff]
    %v162 = vld [vmem:[#allocation2 + $0x268] sm:$0xff]
    %v163 = vld [vmem:[#allocation2 + $0x270] sm:$0xff]
    %v164 = vld [vmem:[#allocation2 + $0x278] sm:$0xff]
    %v165 = vld [vmem:[#allocation2 + $0x280] sm:$0xff]
    %v166 = vld [vmem:[#allocation2 + $0x288] sm:$0xff]
    %v167 = vld [vmem:[#allocation2 + $0x290] sm:$0xff]
    %v168 = vld [vmem:[#allocation2 + $0x298] sm:$0xff]
    %v169 = vld [vmem:[#allocation2 + $0x2a0] sm:$0xff]
    %v170 = vld [vmem:[#allocation2 + $0x2a8] sm:$0xff]
    %v171 = vld [vmem:[#allocation2 + $0x2b0] sm:$0xff]
    %v172 = vld [vmem:[#allocation2 + $0x2b8] sm:$0xff]
    %v173 = vld [vmem:[#allocation2 + $0x2c0] sm:$0xff]
    %v174 = vld [vmem:[#allocation2 + $0x2c8] sm:$0xff]
    %v175 = vld [vmem:[#allocation2 + $0x2d0] sm:$0xff]
    %v176 = vld [vmem:[#allocation2 + $0x2d8] sm:$0xff]
    %v177 = vld [vmem:[#allocation2 + $0x2e0] sm:$0xff]
    %v178 = vld [vmem:[#allocation2 + $0x2e8] sm:$0xff]
    %v179 = vld [vmem:[#allocation2 + $0x2f0] sm:$0xff]
    %v180 = vld [vmem:[#allocation2 + $0x2f8] sm:$0xff]
    %v181 = vld [vmem:[#allocation2 + $0x300] sm:$0xff]
    %v182 = vld [vmem:[#allocation2 + $0x308] sm:$0xff]
    %v183 = vld [vmem:[#allocation2 + $0x310] sm:$0xff]
    %v184 = vld [vmem:[#allocation2 + $0x318] sm:$0xff]
    %v185 = vld [vmem:[#allocation2 + $0x320] sm:$0xff]
    %v186 = vld [vmem:[#allocation2 + $0x328] sm:$0xff]
    %v187 = vld [vmem:[#allocation2 + $0x330] sm:$0xff]
    %v188 = vld [vmem:[#allocation2 + $0x338] sm:$0xff]
    %v189 = vld [vmem:[#allocation2 + $0x340] sm:$0xff]
    %v190 = vld [vmem:[#allocation2 + $0x348] sm:$0xff]
    %v191 = vld [vmem:[#allocation2 + $0x350] sm:$0xff]
    %v192 = vld [vmem:[#allocation2 + $0x358] sm:$0xff]
    %v193 = vld [vmem:[#allocation2 + $0x360] sm:$0xff]
    %v194 = vld [vmem:[#allocation2 + $0x368] sm:$0xff]
    %v195 = vld [vmem:[#allocation2 + $0x370] sm:$0xff]
    %v196 = vld [vmem:[#allocation2 + $0x378] sm:$0xff]
    %v197 = vld [vmem:[#allocation2 + $0x380] sm:$0xff]
    %v198 = vld [vmem:[#allocation2 + $0x388] sm:$0xff]
    %v199 = vld [vmem:[#allocation2 + $0x390] sm:$0xff]
    %v200 = vld [vmem:[#allocation2 + $0x398] sm:$0xff]
    %v201 = vld [vmem:[#allocation2 + $0x3a0] sm:$0xff]
    %v202 = vld [vmem:[#allocation2 + $0x3a8] sm:$0xff]
    %v203 = vld [vmem:[#allocation2 + $0x3b0] sm:$0xff]
    %v204 = vld [vmem:[#allocation2 + $0x3b8] sm:$0xff]
    %v205 = vld [vmem:[#allocation2 + $0x3c0] sm:$0xff]
    %v206 = vld [vmem:[#allocation2 + $0x3c8] sm:$0xff]
    %v207 = vld [vmem:[#allocation2 + $0x3d0] sm:$0xff]
    %v208 = vld [vmem:[#allocation2 + $0x3d8] sm:$0xff]
    %v209 = vld [vmem:[#allocation2 + $0x3e0] sm:$0xff]
    %v210 = vld [vmem:[#allocation2 + $0x3e8] sm:$0xff]
    %v211 = vld [vmem:[#allocation2 + $0x3f0] sm:$0xff]
    %v212 = vld [vmem:[#allocation2 + $0x3f8] sm:$0xff]
    %v213 = vld [vmem:[#allocation2 + $0x400] sm:$0xff]
    %v214 = vld [vmem:[#allocation2 + $0x408] sm:$0xff]
    %v215 = vld [vmem:[#allocation2 + $0x410] sm:$0xff]
    %v216 = vld [vmem:[#allocation2 + $0x418] sm:$0xff]
    %v217 = vld [vmem:[#allocation2 + $0x420] sm:$0xff]
    %v218 = vld [vmem:[#allocation2 + $0x428] sm:$0xff]
    %v219 = vld [vmem:[#allocation2 + $0x430] sm:$0xff]
    %v220 = vld [vmem:[#allocation2 + $0x438] sm:$0xff]
    %v221 = vld [vmem:[#allocation2 + $0x440] sm:$0xff]
    %v222 = vld [vmem:[#allocation2 + $0x448] sm:$0xff]
    %v223 = vld [vmem:[#allocation2 + $0x450] sm:$0xff]
    %v224 = vld [vmem:[#allocation2 + $0x458] sm:$0xff]
    %v225 = vld [vmem:[#allocation2 + $0x460] sm:$0xff]
    %v226 = vld [vmem:[#allocation2 + $0x468] sm:$0xff]
    %v227 = vld [vmem:[#allocation2 + $0x470] sm:$0xff]
    %v228 = vld [vmem:[#allocation2 + $0x478] sm:$0xff]
    %v229 = vld [vmem:[#allocation2 + $0x480] sm:$0xff]
    %v230 = vld [vmem:[#allocation2 + $0x488] sm:$0xff]
    %v231 = vld [vmem:[#allocation2 + $0x490] sm:$0xff]
    %v232 = vld [vmem:[#allocation2 + $0x498] sm:$0xff]
    %v233 = vld [vmem:[#allocation2 + $0x4a0] sm:$0xff]
    %v234 = vld [vmem:[#allocation2 + $0x4a8] sm:$0xff]
    %v235 = vld [vmem:[#allocation2 + $0x4b0] sm:$0xff]
    %v236 = vld [vmem:[#allocation2 + $0x4b8] sm:$0xff]
    %v237 = vld [vmem:[#allocation2 + $0x4c0] sm:$0xff]
    %v238 = vld [vmem:[#allocation2 + $0x4c8] sm:$0xff]
    %v239 = vld [vmem:[#allocation2 + $0x4d0] sm:$0xff]
    %v240 = vld [vmem:[#allocation2 + $0x4d8] sm:$0xff]
    %v241 = vld [vmem:[#allocation2 + $0x4e0] sm:$0xff]
    %v242 = vld [vmem:[#allocation2 + $0x4e8] sm:$0xff]
    %v243 = vld [vmem:[#allocation2 + $0x4f0] sm:$0xff]
    %v244 = vld [vmem:[#allocation2 + $0x4f8] sm:$0xff]
    %v245 = vld [vmem:[#allocation2 + $0x500] sm:$0xff]
    %v246 = vld [vmem:[#allocation2 + $0x508] sm:$0xff]
    %v247 = vld [vmem:[#allocation2 + $0x510] sm:$0xff]
    %v248 = vld [vmem:[#allocation2 + $0x518] sm:$0xff]
    %v249 = vld [vmem:[#allocation2 + $0x520] sm:$0xff]
    %v250 = vld [vmem:[#allocation2 + $0x528] sm:$0xff]
    %v251 = vld [vmem:[#allocation2 + $0x530] sm:$0xff]
    %v252 = vld [vmem:[#allocation2 + $0x538] sm:$0xff]
    %v253 = vld [vmem:[#allocation2 + $0x540] sm:$0xff]
    %v254 = vld [vmem:[#allocation2 + $0x548] sm:$0xff]
    %v255 = vld [vmem:[#allocation2 + $0x550] sm:$0xff]
    %v256 = vld [vmem:[#allocation2 + $0x558] sm:$0xff]
    %v257 = vld [vmem:[#allocation2 + $0x560] sm:$0xff]
    %v258 = vld [vmem:[#allocation2 + $0x568] sm:$0xff]
    %v259 = vld [vmem:[#allocation2 + $0x570] sm:$0xff]
    %v260 = vld [vmem:[#allocation2 + $0x578] sm:$0xff]
    %v261 = vld [vmem:[#allocation2 + $0x580] sm:$0xff]
    %v262 = vld [vmem:[#allocation2 + $0x588] sm:$0xff]
    %v263 = vld [vmem:[#allocation2 + $0x590] sm:$0xff]
    %v264 = vld [vmem:[#allocation2 + $0x598] sm:$0xff]
    %v265 = vld [vmem:[#allocation2 + $0x5a0] sm:$0xff]
    %v266 = vld [vmem:[#allocation2 + $0x5a8] sm:$0xff]
    %v267 = vld [vmem:[#allocation2 + $0x5b0] sm:$0xff]
    %v268 = vld [vmem:[#allocation2 + $0x5b8] sm:$0xff]
    %v269 = vld [vmem:[#allocation2 + $0x5c0] sm:$0xff]
    %v270 = vld [vmem:[#allocation2 + $0x5c8] sm:$0xff]
    %v271 = vld [vmem:[#allocation2 + $0x5d0] sm:$0xff]
    %v272 = vld [vmem:[#allocation2 + $0x5d8] sm:$0xff]
    %v273 = vld [vmem:[#allocation2 + $0x5e0] sm:$0xff]
    %v274 = vld [vmem:[#allocation2 + $0x5e8] sm:$0xff]
    %v275 = vld [vmem:[#allocation2 + $0x5f0] sm:$0xff]
    %v276 = vld [vmem:[#allocation2 + $0x5f8] sm:$0xff]
    %v277 = vld [vmem:[#allocation2 + $0x600] sm:$0xff]
    %v278 = vld [vmem:[#allocation2 + $0x608] sm:$0xff]
    %v279 = vld [vmem:[#allocation2 + $0x610] sm:$0xff]
    %v280 = vld [vmem:[#allocation2 + $0x618] sm:$0xff]
    %v281 = vld [vmem:[#allocation2 + $0x620] sm:$0xff]
    %v282 = vld [vmem:[#allocation2 + $0x628] sm:$0xff]
    %v283 = vld [vmem:[#allocation2 + $0x630] sm:$0xff]
    %v284 = vld [vmem:[#allocation2 + $0x638] sm:$0xff]
    %v285 = vld [vmem:[#allocation2 + $0x640] sm:$0xff]
    %v286 = vld [vmem:[#allocation2 + $0x648] sm:$0xff]
    %v287 = vld [vmem:[#allocation2 + $0x650] sm:$0xff]
    %v288 = vld [vmem:[#allocation2 + $0x658] sm:$0xff]
    %v289 = vld [vmem:[#allocation2 + $0x660] sm:$0xff]
    %v290 = vld [vmem:[#allocation2 + $0x668] sm:$0xff]
    %v291 = vld [vmem:[#allocation2 + $0x670] sm:$0xff]
    %v292 = vld [vmem:[#allocation2 + $0x678] sm:$0xff]
    %v293 = vld [vmem:[#allocation2 + $0x680] sm:$0xff]
    %v294 = vld [vmem:[#allocation2 + $0x688] sm:$0xff]
    %v295 = vld [vmem:[#allocation2 + $0x690] sm:$0xff]
    %v296 = vld [vmem:[#allocation2 + $0x698] sm:$0xff]
    %v297 = vld [vmem:[#allocation2 + $0x6a0] sm:$0xff]
    %v298 = vld [vmem:[#allocation2 + $0x6a8] sm:$0xff]
    %v299 = vld [vmem:[#allocation2 + $0x6b0] sm:$0xff]
    %v300 = vld [vmem:[#allocation2 + $0x6b8] sm:$0xff]
    %v301 = vld [vmem:[#allocation2 + $0x6c0] sm:$0xff]
    %v302 = vld [vmem:[#allocation2 + $0x6c8] sm:$0xff]
    %v303 = vld [vmem:[#allocation2 + $0x6d0] sm:$0xff]
    %v304 = vld [vmem:[#allocation2 + $0x6d8] sm:$0xff]
    %v305 = vld [vmem:[#allocation2 + $0x6e0] sm:$0xff]
    %v306 = vld [vmem:[#allocation2 + $0x6e8] sm:$0xff]
    %v307 = vld [vmem:[#allocation2 + $0x6f0] sm:$0xff]
    %v308 = vld [vmem:[#allocation2 + $0x6f8] sm:$0xff]
    %v309 = vld [vmem:[#allocation2 + $0x700] sm:$0xff]
    %v310 = vld [vmem:[#allocation2 + $0x708] sm:$0xff]
    %v311 = vld [vmem:[#allocation2 + $0x710] sm:$0xff]
    %v312 = vld [vmem:[#allocation2 + $0x718] sm:$0xff]
    %v313 = vld [vmem:[#allocation2 + $0x720] sm:$0xff]
    %v314 = vld [vmem:[#allocation2 + $0x728] sm:$0xff]
    %v315 = vld [vmem:[#allocation2 + $0x730] sm:$0xff]
    %v316 = vld [vmem:[#allocation2 + $0x738] sm:$0xff]
    %v317 = vld [vmem:[#allocation2 + $0x740] sm:$0xff]
    %v318 = vld [vmem:[#allocation2 + $0x748] sm:$0xff]
    %v319 = vld [vmem:[#allocation2 + $0x750] sm:$0xff]
    %v320 = vld [vmem:[#allocation2 + $0x758] sm:$0xff]
    %v321 = vld [vmem:[#allocation2 + $0x760] sm:$0xff]
    %v322 = vld [vmem:[#allocation2 + $0x768] sm:$0xff]
    %v323 = vld [vmem:[#allocation2 + $0x770] sm:$0xff]
    %v324 = vld [vmem:[#allocation2 + $0x778] sm:$0xff]
    %v325 = vld [vmem:[#allocation2 + $0x780] sm:$0xff]
    %v326 = vld [vmem:[#allocation2 + $0x788] sm:$0xff]
    %v327 = vld [vmem:[#allocation2 + $0x790] sm:$0xff]
    %v328 = vld [vmem:[#allocation2 + $0x798] sm:$0xff]
    %v329 = vld [vmem:[#allocation2 + $0x7a0] sm:$0xff]
    %v330 = vld [vmem:[#allocation2 + $0x7a8] sm:$0xff]
    %v331 = vld [vmem:[#allocation2 + $0x7b0] sm:$0xff]
    %v332 = vld [vmem:[#allocation2 + $0x7b8] sm:$0xff]
    %v333 = vld [vmem:[#allocation2 + $0x7c0] sm:$0xff]
    %v334 = vld [vmem:[#allocation2 + $0x7c8] sm:$0xff]
    %v335 = vld [vmem:[#allocation2 + $0x7d0] sm:$0xff]
    %v336 = vld [vmem:[#allocation2 + $0x7d8] sm:$0xff]
    %v337 = vld [vmem:[#allocation2 + $0x7e0] sm:$0xff]
    %v338 = vld [vmem:[#allocation2 + $0x7e8] sm:$0xff]
    %v339 = vld [vmem:[#allocation2 + $0x7f0] sm:$0xff]
    %v340 = vld [vmem:[#allocation2 + $0x7f8] sm:$0xff]
    %v341 = vld [vmem:[#allocation4] sm:$0x3]
    %v343 = vperm.slane %v341, 0
    %v344 = vperm.slane %v341, 1
    %v355 = vunpack.c.l.b16 %v77
    %v356 = vunpack.c.h.b16 %v77
    %v357 = vunpack.c.l.b16 %v78
    %v358 = vunpack.c.h.b16 %v78
    %v359 = vunpack.c.l.b16 %v79
    %v360 = vunpack.c.h.b16 %v79
    %v361 = vunpack.c.l.b16 %v80
    %v362 = vunpack.c.h.b16 %v80
    %v363 = vunpack.c.l.b16 %v81
    %v364 = vunpack.c.h.b16 %v81
    %v365 = vunpack.c.l.b16 %v82
    %v366 = vunpack.c.h.b16 %v82
    %v367 = vunpack.c.l.b16 %v83
    %v368 = vunpack.c.h.b16 %v83
    %v369 = vunpack.c.l.b16 %v84
    %v370 = vunpack.c.h.b16 %v84
    %v371 = vpack.c.b16 %v355, %v355
    %v372 = vpack.c.b16 %v356, %v356
    %v373 = vpack.c.b16 %v357, %v357
    %v374 = vpack.c.b16 %v358, %v358
    %v375 = vpack.c.b16 %v359, %v359
    %v376 = vpack.c.b16 %v360, %v360
    %v377 = vpack.c.b16 %v361, %v361
    %v378 = vpack.c.b16 %v362, %v362
    %v379 = vpack.c.b16 %v363, %v363
    %v380 = vpack.c.b16 %v364, %v364
    %v381 = vpack.c.b16 %v365, %v365
    %v382 = vpack.c.b16 %v366, %v366
    %v383 = vpack.c.b16 %v367, %v367
    %v384 = vpack.c.b16 %v368, %v368
    %v385 = vpack.c.b16 %v369, %v369
    %v386 = vpack.c.b16 %v370, %v370
    %v659 = vunpack.c.l.b16 %v85
    %v660 = vunpack.c.h.b16 %v85
    %v661 = vunpack.c.l.b16 %v86
    %v662 = vunpack.c.h.b16 %v86
    %v663 = vunpack.c.l.b16 %v87
    %v664 = vunpack.c.h.b16 %v87
    %v665 = vunpack.c.l.b16 %v88
    %v666 = vunpack.c.h.b16 %v88
    %v667 = vunpack.c.l.b16 %v89
    %v668 = vunpack.c.h.b16 %v89
    %v669 = vunpack.c.l.b16 %v90
    %v670 = vunpack.c.h.b16 %v90
    %v671 = vunpack.c.l.b16 %v91
    %v672 = vunpack.c.h.b16 %v91
    %v673 = vunpack.c.l.b16 %v92
    %v674 = vunpack.c.h.b16 %v92
    %v675 = vunpack.c.l.b16 %v93
    %v676 = vunpack.c.h.b16 %v93
    %v677 = vunpack.c.l.b16 %v94
    %v678 = vunpack.c.h.b16 %v94
    %v679 = vunpack.c.l.b16 %v95
    %v680 = vunpack.c.h.b16 %v95
    %v681 = vunpack.c.l.b16 %v96
    %v682 = vunpack.c.h.b16 %v96
    %v683 = vunpack.c.l.b16 %v97
    %v684 = vunpack.c.h.b16 %v97
    %v685 = vunpack.c.l.b16 %v98
    %v686 = vunpack.c.h.b16 %v98
    %v687 = vunpack.c.l.b16 %v99
    %v688 = vunpack.c.h.b16 %v99
    %v689 = vunpack.c.l.b16 %v100
    %v690 = vunpack.c.h.b16 %v100
    %v691 = vunpack.c.l.b16 %v101
    %v692 = vunpack.c.h.b16 %v101
    %v693 = vunpack.c.l.b16 %v102
    %v694 = vunpack.c.h.b16 %v102
    %v695 = vunpack.c.l.b16 %v103
    %v696 = vunpack.c.h.b16 %v103
    %v697 = vunpack.c.l.b16 %v104
    %v698 = vunpack.c.h.b16 %v104
    %v699 = vunpack.c.l.b16 %v105
    %v700 = vunpack.c.h.b16 %v105
    %v701 = vunpack.c.l.b16 %v106
    %v702 = vunpack.c.h.b16 %v106
    %v703 = vunpack.c.l.b16 %v107
    %v704 = vunpack.c.h.b16 %v107
    %v705 = vunpack.c.l.b16 %v108
    %v706 = vunpack.c.h.b16 %v108
    %v707 = vunpack.c.l.b16 %v109
    %v708 = vunpack.c.h.b16 %v109
    %v709 = vunpack.c.l.b16 %v110
    %v710 = vunpack.c.h.b16 %v110
    %v711 = vunpack.c.l.b16 %v111
    %v712 = vunpack.c.h.b16 %v111
    %v713 = vunpack.c.l.b16 %v112
    %v714 = vunpack.c.h.b16 %v112
    %v715 = vunpack.c.l.b16 %v113
    %v716 = vunpack.c.h.b16 %v113
    %v717 = vunpack.c.l.b16 %v114
    %v718 = vunpack.c.h.b16 %v114
    %v719 = vunpack.c.l.b16 %v115
    %v720 = vunpack.c.h.b16 %v115
    %v721 = vunpack.c.l.b16 %v116
    %v722 = vunpack.c.h.b16 %v116
    %v723 = vunpack.c.l.b16 %v117
    %v724 = vunpack.c.h.b16 %v117
    %v725 = vunpack.c.l.b16 %v118
    %v726 = vunpack.c.h.b16 %v118
    %v727 = vunpack.c.l.b16 %v119
    %v728 = vunpack.c.h.b16 %v119
    %v729 = vunpack.c.l.b16 %v120
    %v730 = vunpack.c.h.b16 %v120
    %v731 = vunpack.c.l.b16 %v121
    %v732 = vunpack.c.h.b16 %v121
    %v733 = vunpack.c.l.b16 %v122
    %v734 = vunpack.c.h.b16 %v122
    %v735 = vunpack.c.l.b16 %v123
    %v736 = vunpack.c.h.b16 %v123
    %v737 = vunpack.c.l.b16 %v124
    %v738 = vunpack.c.h.b16 %v124
    %v739 = vunpack.c.l.b16 %v125
    %v740 = vunpack.c.h.b16 %v125
    %v741 = vunpack.c.l.b16 %v126
    %v742 = vunpack.c.h.b16 %v126
    %v743 = vunpack.c.l.b16 %v127
    %v744 = vunpack.c.h.b16 %v127
    %v745 = vunpack.c.l.b16 %v128
    %v746 = vunpack.c.h.b16 %v128
    %v747 = vunpack.c.l.b16 %v129
    %v748 = vunpack.c.h.b16 %v129
    %v749 = vunpack.c.l.b16 %v130
    %v750 = vunpack.c.h.b16 %v130
    %v751 = vunpack.c.l.b16 %v131
    %v752 = vunpack.c.h.b16 %v131
    %v753 = vunpack.c.l.b16 %v132
    %v754 = vunpack.c.h.b16 %v132
    %v755 = vunpack.c.l.b16 %v133
    %v756 = vunpack.c.h.b16 %v133
    %v757 = vunpack.c.l.b16 %v134
    %v758 = vunpack.c.h.b16 %v134
    %v759 = vunpack.c.l.b16 %v135
    %v760 = vunpack.c.h.b16 %v135
    %v761 = vunpack.c.l.b16 %v136
    %v762 = vunpack.c.h.b16 %v136
    %v763 = vunpack.c.l.b16 %v137
    %v764 = vunpack.c.h.b16 %v137
    %v765 = vunpack.c.l.b16 %v138
    %v766 = vunpack.c.h.b16 %v138
    %v767 = vunpack.c.l.b16 %v139
    %v768 = vunpack.c.h.b16 %v139
    %v769 = vunpack.c.l.b16 %v140
    %v770 = vunpack.c.h.b16 %v140
    %v771 = vunpack.c.l.b16 %v141
    %v772 = vunpack.c.h.b16 %v141
    %v773 = vunpack.c.l.b16 %v142
    %v774 = vunpack.c.h.b16 %v142
    %v775 = vunpack.c.l.b16 %v143
    %v776 = vunpack.c.h.b16 %v143
    %v777 = vunpack.c.l.b16 %v144
    %v778 = vunpack.c.h.b16 %v144
    %v779 = vunpack.c.l.b16 %v145
    %v780 = vunpack.c.h.b16 %v145
    %v781 = vunpack.c.l.b16 %v146
    %v782 = vunpack.c.h.b16 %v146
    %v783 = vunpack.c.l.b16 %v147
    %v784 = vunpack.c.h.b16 %v147
    %v785 = vunpack.c.l.b16 %v148
    %v786 = vunpack.c.h.b16 %v148
    %v787 = vunpack.c.l.b16 %v149
    %v788 = vunpack.c.h.b16 %v149
    %v789 = vunpack.c.l.b16 %v150
    %v790 = vunpack.c.h.b16 %v150
    %v791 = vunpack.c.l.b16 %v151
    %v792 = vunpack.c.h.b16 %v151
    %v793 = vunpack.c.l.b16 %v152
    %v794 = vunpack.c.h.b16 %v152
    %v795 = vunpack.c.l.b16 %v153
    %v796 = vunpack.c.h.b16 %v153
    %v797 = vunpack.c.l.b16 %v154
    %v798 = vunpack.c.h.b16 %v154
    %v799 = vunpack.c.l.b16 %v155
    %v800 = vunpack.c.h.b16 %v155
    %v801 = vunpack.c.l.b16 %v156
    %v802 = vunpack.c.h.b16 %v156
    %v803 = vunpack.c.l.b16 %v157
    %v804 = vunpack.c.h.b16 %v157
    %v805 = vunpack.c.l.b16 %v158
    %v806 = vunpack.c.h.b16 %v158
    %v807 = vunpack.c.l.b16 %v159
    %v808 = vunpack.c.h.b16 %v159
    %v809 = vunpack.c.l.b16 %v160
    %v810 = vunpack.c.h.b16 %v160
    %v811 = vunpack.c.l.b16 %v161
    %v812 = vunpack.c.h.b16 %v161
    %v813 = vunpack.c.l.b16 %v162
    %v814 = vunpack.c.h.b16 %v162
    %v815 = vunpack.c.l.b16 %v163
    %v816 = vunpack.c.h.b16 %v163
    %v817 = vunpack.c.l.b16 %v164
    %v818 = vunpack.c.h.b16 %v164
    %v819 = vunpack.c.l.b16 %v165
    %v820 = vunpack.c.h.b16 %v165
    %v821 = vunpack.c.l.b16 %v166
    %v822 = vunpack.c.h.b16 %v166
    %v823 = vunpack.c.l.b16 %v167
    %v824 = vunpack.c.h.b16 %v167
    %v825 = vunpack.c.l.b16 %v168
    %v826 = vunpack.c.h.b16 %v168
    %v827 = vunpack.c.l.b16 %v169
    %v828 = vunpack.c.h.b16 %v169
    %v829 = vunpack.c.l.b16 %v170
    %v830 = vunpack.c.h.b16 %v170
    %v831 = vunpack.c.l.b16 %v171
    %v832 = vunpack.c.h.b16 %v171
    %v833 = vunpack.c.l.b16 %v172
    %v834 = vunpack.c.h.b16 %v172
    %v835 = vunpack.c.l.b16 %v173
    %v836 = vunpack.c.h.b16 %v173
    %v837 = vunpack.c.l.b16 %v174
    %v838 = vunpack.c.h.b16 %v174
    %v839 = vunpack.c.l.b16 %v175
    %v840 = vunpack.c.h.b16 %v175
    %v841 = vunpack.c.l.b16 %v176
    %v842 = vunpack.c.h.b16 %v176
    %v843 = vunpack.c.l.b16 %v177
    %v844 = vunpack.c.h.b16 %v177
    %v845 = vunpack.c.l.b16 %v178
    %v846 = vunpack.c.h.b16 %v178
    %v847 = vunpack.c.l.b16 %v179
    %v848 = vunpack.c.h.b16 %v179
    %v849 = vunpack.c.l.b16 %v180
    %v850 = vunpack.c.h.b16 %v180
    %v851 = vunpack.c.l.b16 %v181
    %v852 = vunpack.c.h.b16 %v181
    %v853 = vunpack.c.l.b16 %v182
    %v854 = vunpack.c.h.b16 %v182
    %v855 = vunpack.c.l.b16 %v183
    %v856 = vunpack.c.h.b16 %v183
    %v857 = vunpack.c.l.b16 %v184
    %v858 = vunpack.c.h.b16 %v184
    %v859 = vunpack.c.l.b16 %v185
    %v860 = vunpack.c.h.b16 %v185
    %v861 = vunpack.c.l.b16 %v186
    %v862 = vunpack.c.h.b16 %v186
    %v863 = vunpack.c.l.b16 %v187
    %v864 = vunpack.c.h.b16 %v187
    %v865 = vunpack.c.l.b16 %v188
    %v866 = vunpack.c.h.b16 %v188
    %v867 = vunpack.c.l.b16 %v189
    %v868 = vunpack.c.h.b16 %v189
    %v869 = vunpack.c.l.b16 %v190
    %v870 = vunpack.c.h.b16 %v190
    %v871 = vunpack.c.l.b16 %v191
    %v872 = vunpack.c.h.b16 %v191
    %v873 = vunpack.c.l.b16 %v192
    %v874 = vunpack.c.h.b16 %v192
    %v875 = vunpack.c.l.b16 %v193
    %v876 = vunpack.c.h.b16 %v193
    %v877 = vunpack.c.l.b16 %v194
    %v878 = vunpack.c.h.b16 %v194
    %v879 = vunpack.c.l.b16 %v195
    %v880 = vunpack.c.h.b16 %v195
    %v881 = vunpack.c.l.b16 %v196
    %v882 = vunpack.c.h.b16 %v196
    %v883 = vunpack.c.l.b16 %v197
    %v884 = vunpack.c.h.b16 %v197
    %v885 = vunpack.c.l.b16 %v198
    %v886 = vunpack.c.h.b16 %v198
    %v887 = vunpack.c.l.b16 %v199
    %v888 = vunpack.c.h.b16 %v199
    %v889 = vunpack.c.l.b16 %v200
    %v890 = vunpack.c.h.b16 %v200
    %v891 = vunpack.c.l.b16 %v201
    %v892 = vunpack.c.h.b16 %v201
    %v893 = vunpack.c.l.b16 %v202
    %v894 = vunpack.c.h.b16 %v202
    %v895 = vunpack.c.l.b16 %v203
    %v896 = vunpack.c.h.b16 %v203
    %v897 = vunpack.c.l.b16 %v204
    %v898 = vunpack.c.h.b16 %v204
    %v899 = vunpack.c.l.b16 %v205
    %v900 = vunpack.c.h.b16 %v205
    %v901 = vunpack.c.l.b16 %v206
    %v902 = vunpack.c.h.b16 %v206
    %v903 = vunpack.c.l.b16 %v207
    %v904 = vunpack.c.h.b16 %v207
    %v905 = vunpack.c.l.b16 %v208
    %v906 = vunpack.c.h.b16 %v208
    %v907 = vunpack.c.l.b16 %v209
    %v908 = vunpack.c.h.b16 %v209
    %v909 = vunpack.c.l.b16 %v210
    %v910 = vunpack.c.h.b16 %v210
    %v911 = vunpack.c.l.b16 %v211
    %v912 = vunpack.c.h.b16 %v211
    %v913 = vunpack.c.l.b16 %v212
    %v914 = vunpack.c.h.b16 %v212
    %v915 = vunpack.c.l.b16 %v213
    %v916 = vunpack.c.h.b16 %v213
    %v917 = vunpack.c.l.b16 %v214
    %v918 = vunpack.c.h.b16 %v214
    %v919 = vunpack.c.l.b16 %v215
    %v920 = vunpack.c.h.b16 %v215
    %v921 = vunpack.c.l.b16 %v216
    %v922 = vunpack.c.h.b16 %v216
    %v923 = vunpack.c.l.b16 %v217
    %v924 = vunpack.c.h.b16 %v217
    %v925 = vunpack.c.l.b16 %v218
    %v926 = vunpack.c.h.b16 %v218
    %v927 = vunpack.c.l.b16 %v219
    %v928 = vunpack.c.h.b16 %v219
    %v929 = vunpack.c.l.b16 %v220
    %v930 = vunpack.c.h.b16 %v220
    %v931 = vunpack.c.l.b16 %v221
    %v932 = vunpack.c.h.b16 %v221
    %v933 = vunpack.c.l.b16 %v222
    %v934 = vunpack.c.h.b16 %v222
    %v935 = vunpack.c.l.b16 %v223
    %v936 = vunpack.c.h.b16 %v223
    %v937 = vunpack.c.l.b16 %v224
    %v938 = vunpack.c.h.b16 %v224
    %v939 = vunpack.c.l.b16 %v225
    %v940 = vunpack.c.h.b16 %v225
    %v941 = vunpack.c.l.b16 %v226
    %v942 = vunpack.c.h.b16 %v226
    %v943 = vunpack.c.l.b16 %v227
    %v944 = vunpack.c.h.b16 %v227
    %v945 = vunpack.c.l.b16 %v228
    %v946 = vunpack.c.h.b16 %v228
    %v947 = vunpack.c.l.b16 %v229
    %v948 = vunpack.c.h.b16 %v229
    %v949 = vunpack.c.l.b16 %v230
    %v950 = vunpack.c.h.b16 %v230
    %v951 = vunpack.c.l.b16 %v231
    %v952 = vunpack.c.h.b16 %v231
    %v953 = vunpack.c.l.b16 %v232
    %v954 = vunpack.c.h.b16 %v232
    %v955 = vunpack.c.l.b16 %v233
    %v956 = vunpack.c.h.b16 %v233
    %v957 = vunpack.c.l.b16 %v234
    %v958 = vunpack.c.h.b16 %v234
    %v959 = vunpack.c.l.b16 %v235
    %v960 = vunpack.c.h.b16 %v235
    %v961 = vunpack.c.l.b16 %v236
    %v962 = vunpack.c.h.b16 %v236
    %v963 = vunpack.c.l.b16 %v237
    %v964 = vunpack.c.h.b16 %v237
    %v965 = vunpack.c.l.b16 %v238
    %v966 = vunpack.c.h.b16 %v238
    %v967 = vunpack.c.l.b16 %v239
    %v968 = vunpack.c.h.b16 %v239
    %v969 = vunpack.c.l.b16 %v240
    %v970 = vunpack.c.h.b16 %v240
    %v971 = vunpack.c.l.b16 %v241
    %v972 = vunpack.c.h.b16 %v241
    %v973 = vunpack.c.l.b16 %v242
    %v974 = vunpack.c.h.b16 %v242
    %v975 = vunpack.c.l.b16 %v243
    %v976 = vunpack.c.h.b16 %v243
    %v977 = vunpack.c.l.b16 %v244
    %v978 = vunpack.c.h.b16 %v244
    %v979 = vunpack.c.l.b16 %v245
    %v980 = vunpack.c.h.b16 %v245
    %v981 = vunpack.c.l.b16 %v246
    %v982 = vunpack.c.h.b16 %v246
    %v983 = vunpack.c.l.b16 %v247
    %v984 = vunpack.c.h.b16 %v247
    %v985 = vunpack.c.l.b16 %v248
    %v986 = vunpack.c.h.b16 %v248
    %v987 = vunpack.c.l.b16 %v249
    %v988 = vunpack.c.h.b16 %v249
    %v989 = vunpack.c.l.b16 %v250
    %v990 = vunpack.c.h.b16 %v250
    %v991 = vunpack.c.l.b16 %v251
    %v992 = vunpack.c.h.b16 %v251
    %v993 = vunpack.c.l.b16 %v252
    %v994 = vunpack.c.h.b16 %v252
    %v995 = vunpack.c.l.b16 %v253
    %v996 = vunpack.c.h.b16 %v253
    %v997 = vunpack.c.l.b16 %v254
    %v998 = vunpack.c.h.b16 %v254
    %v999 = vunpack.c.l.b16 %v255
    %v1000 = vunpack.c.h.b16 %v255
    %v1001 = vunpack.c.l.b16 %v256
    %v1002 = vunpack.c.h.b16 %v256
    %v1003 = vunpack.c.l.b16 %v257
    %v1004 = vunpack.c.h.b16 %v257
    %v1005 = vunpack.c.l.b16 %v258
    %v1006 = vunpack.c.h.b16 %v258
    %v1007 = vunpack.c.l.b16 %v259
    %v1008 = vunpack.c.h.b16 %v259
    %v1009 = vunpack.c.l.b16 %v260
    %v1010 = vunpack.c.h.b16 %v260
    %v1011 = vunpack.c.l.b16 %v261
    %v1012 = vunpack.c.h.b16 %v261
    %v1013 = vunpack.c.l.b16 %v262
    %v1014 = vunpack.c.h.b16 %v262
    %v1015 = vunpack.c.l.b16 %v263
    %v1016 = vunpack.c.h.b16 %v263
    %v1017 = vunpack.c.l.b16 %v264
    %v1018 = vunpack.c.h.b16 %v264
    %v1019 = vunpack.c.l.b16 %v265
    %v1020 = vunpack.c.h.b16 %v265
    %v1021 = vunpack.c.l.b16 %v266
    %v1022 = vunpack.c.h.b16 %v266
    %v1023 = vunpack.c.l.b16 %v267
    %v1024 = vunpack.c.h.b16 %v267
    %v1025 = vunpack.c.l.b16 %v268
    %v1026 = vunpack.c.h.b16 %v268
    %v1027 = vunpack.c.l.b16 %v269
    %v1028 = vunpack.c.h.b16 %v269
    %v1029 = vunpack.c.l.b16 %v270
    %v1030 = vunpack.c.h.b16 %v270
    %v1031 = vunpack.c.l.b16 %v271
    %v1032 = vunpack.c.h.b16 %v271
    %v1033 = vunpack.c.l.b16 %v272
    %v1034 = vunpack.c.h.b16 %v272
    %v1035 = vunpack.c.l.b16 %v273
    %v1036 = vunpack.c.h.b16 %v273
    %v1037 = vunpack.c.l.b16 %v274
    %v1038 = vunpack.c.h.b16 %v274
    %v1039 = vunpack.c.l.b16 %v275
    %v1040 = vunpack.c.h.b16 %v275
    %v1041 = vunpack.c.l.b16 %v276
    %v1042 = vunpack.c.h.b16 %v276
    %v1043 = vunpack.c.l.b16 %v277
    %v1044 = vunpack.c.h.b16 %v277
    %v1045 = vunpack.c.l.b16 %v278
    %v1046 = vunpack.c.h.b16 %v278
    %v1047 = vunpack.c.l.b16 %v279
    %v1048 = vunpack.c.h.b16 %v279
    %v1049 = vunpack.c.l.b16 %v280
    %v1050 = vunpack.c.h.b16 %v280
    %v1051 = vunpack.c.l.b16 %v281
    %v1052 = vunpack.c.h.b16 %v281
    %v1053 = vunpack.c.l.b16 %v282
    %v1054 = vunpack.c.h.b16 %v282
    %v1055 = vunpack.c.l.b16 %v283
    %v1056 = vunpack.c.h.b16 %v283
    %v1057 = vunpack.c.l.b16 %v284
    %v1058 = vunpack.c.h.b16 %v284
    %v1059 = vunpack.c.l.b16 %v285
    %v1060 = vunpack.c.h.b16 %v285
    %v1061 = vunpack.c.l.b16 %v286
    %v1062 = vunpack.c.h.b16 %v286
    %v1063 = vunpack.c.l.b16 %v287
    %v1064 = vunpack.c.h.b16 %v287
    %v1065 = vunpack.c.l.b16 %v288
    %v1066 = vunpack.c.h.b16 %v288
    %v1067 = vunpack.c.l.b16 %v289
    %v1068 = vunpack.c.h.b16 %v289
    %v1069 = vunpack.c.l.b16 %v290
    %v1070 = vunpack.c.h.b16 %v290
    %v1071 = vunpack.c.l.b16 %v291
    %v1072 = vunpack.c.h.b16 %v291
    %v1073 = vunpack.c.l.b16 %v292
    %v1074 = vunpack.c.h.b16 %v292
    %v1075 = vunpack.c.l.b16 %v293
    %v1076 = vunpack.c.h.b16 %v293
    %v1077 = vunpack.c.l.b16 %v294
    %v1078 = vunpack.c.h.b16 %v294
    %v1079 = vunpack.c.l.b16 %v295
    %v1080 = vunpack.c.h.b16 %v295
    %v1081 = vunpack.c.l.b16 %v296
    %v1082 = vunpack.c.h.b16 %v296
    %v1083 = vunpack.c.l.b16 %v297
    %v1084 = vunpack.c.h.b16 %v297
    %v1085 = vunpack.c.l.b16 %v298
    %v1086 = vunpack.c.h.b16 %v298
    %v1087 = vunpack.c.l.b16 %v299
    %v1088 = vunpack.c.h.b16 %v299
    %v1089 = vunpack.c.l.b16 %v300
    %v1090 = vunpack.c.h.b16 %v300
    %v1091 = vunpack.c.l.b16 %v301
    %v1092 = vunpack.c.h.b16 %v301
    %v1093 = vunpack.c.l.b16 %v302
    %v1094 = vunpack.c.h.b16 %v302
    %v1095 = vunpack.c.l.b16 %v303
    %v1096 = vunpack.c.h.b16 %v303
    %v1097 = vunpack.c.l.b16 %v304
    %v1098 = vunpack.c.h.b16 %v304
    %v1099 = vunpack.c.l.b16 %v305
    %v1100 = vunpack.c.h.b16 %v305
    %v1101 = vunpack.c.l.b16 %v306
    %v1102 = vunpack.c.h.b16 %v306
    %v1103 = vunpack.c.l.b16 %v307
    %v1104 = vunpack.c.h.b16 %v307
    %v1105 = vunpack.c.l.b16 %v308
    %v1106 = vunpack.c.h.b16 %v308
    %v1107 = vunpack.c.l.b16 %v309
    %v1108 = vunpack.c.h.b16 %v309
    %v1109 = vunpack.c.l.b16 %v310
    %v1110 = vunpack.c.h.b16 %v310
    %v1111 = vunpack.c.l.b16 %v311
    %v1112 = vunpack.c.h.b16 %v311
    %v1113 = vunpack.c.l.b16 %v312
    %v1114 = vunpack.c.h.b16 %v312
    %v1115 = vunpack.c.l.b16 %v313
    %v1116 = vunpack.c.h.b16 %v313
    %v1117 = vunpack.c.l.b16 %v314
    %v1118 = vunpack.c.h.b16 %v314
    %v1119 = vunpack.c.l.b16 %v315
    %v1120 = vunpack.c.h.b16 %v315
    %v1121 = vunpack.c.l.b16 %v316
    %v1122 = vunpack.c.h.b16 %v316
    %v1123 = vunpack.c.l.b16 %v317
    %v1124 = vunpack.c.h.b16 %v317
    %v1125 = vunpack.c.l.b16 %v318
    %v1126 = vunpack.c.h.b16 %v318
    %v1127 = vunpack.c.l.b16 %v319
    %v1128 = vunpack.c.h.b16 %v319
    %v1129 = vunpack.c.l.b16 %v320
    %v1130 = vunpack.c.h.b16 %v320
    %v1131 = vunpack.c.l.b16 %v321
    %v1132 = vunpack.c.h.b16 %v321
    %v1133 = vunpack.c.l.b16 %v322
    %v1134 = vunpack.c.h.b16 %v322
    %v1135 = vunpack.c.l.b16 %v323
    %v1136 = vunpack.c.h.b16 %v323
    %v1137 = vunpack.c.l.b16 %v324
    %v1138 = vunpack.c.h.b16 %v324
    %v1139 = vunpack.c.l.b16 %v325
    %v1140 = vunpack.c.h.b16 %v325
    %v1141 = vunpack.c.l.b16 %v326
    %v1142 = vunpack.c.h.b16 %v326
    %v1143 = vunpack.c.l.b16 %v327
    %v1144 = vunpack.c.h.b16 %v327
    %v1145 = vunpack.c.l.b16 %v328
    %v1146 = vunpack.c.h.b16 %v328
    %v1147 = vunpack.c.l.b16 %v329
    %v1148 = vunpack.c.h.b16 %v329
    %v1149 = vunpack.c.l.b16 %v330
    %v1150 = vunpack.c.h.b16 %v330
    %v1151 = vunpack.c.l.b16 %v331
    %v1152 = vunpack.c.h.b16 %v331
    %v1153 = vunpack.c.l.b16 %v332
    %v1154 = vunpack.c.h.b16 %v332
    %v1155 = vunpack.c.l.b16 %v333
    %v1156 = vunpack.c.h.b16 %v333
    %v1157 = vunpack.c.l.b16 %v334
    %v1158 = vunpack.c.h.b16 %v334
    %v1159 = vunpack.c.l.b16 %v335
    %v1160 = vunpack.c.h.b16 %v335
    %v1161 = vunpack.c.l.b16 %v336
    %v1162 = vunpack.c.h.b16 %v336
    %v1163 = vunpack.c.l.b16 %v337
    %v1164 = vunpack.c.h.b16 %v337
    %v1165 = vunpack.c.l.b16 %v338
    %v1166 = vunpack.c.h.b16 %v338
    %v1167 = vunpack.c.l.b16 %v339
    %v1168 = vunpack.c.h.b16 %v339
    %v1169 = vunpack.c.l.b16 %v340
    %v1170 = vunpack.c.h.b16 %v340
    %v1171 = vpack.c.b16 %v661, %v659
    %v1172 = vpack.c.b16 %v662, %v660
    %v1173 = vpack.c.b16 %v665, %v663
    %v1174 = vpack.c.b16 %v666, %v664
    %v1175 = vpack.c.b16 %v669, %v667
    %v1176 = vpack.c.b16 %v670, %v668
    %v1177 = vpack.c.b16 %v673, %v671
    %v1178 = vpack.c.b16 %v674, %v672
    %v1179 = vpack.c.b16 %v677, %v675
    %v1180 = vpack.c.b16 %v678, %v676
    %v1181 = vpack.c.b16 %v681, %v679
    %v1182 = vpack.c.b16 %v682, %v680
    %v1183 = vpack.c.b16 %v685, %v683
    %v1184 = vpack.c.b16 %v686, %v684
    %v1185 = vpack.c.b16 %v689, %v687
    %v1186 = vpack.c.b16 %v690, %v688
    %v1187 = vpack.c.b16 %v693, %v691
    %v1188 = vpack.c.b16 %v694, %v692
    %v1189 = vpack.c.b16 %v697, %v695
    %v1190 = vpack.c.b16 %v698, %v696
    %v1191 = vpack.c.b16 %v701, %v699
    %v1192 = vpack.c.b16 %v702, %v700
    %v1193 = vpack.c.b16 %v705, %v703
    %v1194 = vpack.c.b16 %v706, %v704
    %v1195 = vpack.c.b16 %v709, %v707
    %v1196 = vpack.c.b16 %v710, %v708
    %v1197 = vpack.c.b16 %v713, %v711
    %v1198 = vpack.c.b16 %v714, %v712
    %v1199 = vpack.c.b16 %v717, %v715
    %v1200 = vpack.c.b16 %v718, %v716
    %v1201 = vpack.c.b16 %v721, %v719
    %v1202 = vpack.c.b16 %v722, %v720
    %v1203 = vpack.c.b16 %v725, %v723
    %v1204 = vpack.c.b16 %v726, %v724
    %v1205 = vpack.c.b16 %v729, %v727
    %v1206 = vpack.c.b16 %v730, %v728
    %v1207 = vpack.c.b16 %v733, %v731
    %v1208 = vpack.c.b16 %v734, %v732
    %v1209 = vpack.c.b16 %v737, %v735
    %v1210 = vpack.c.b16 %v738, %v736
    %v1211 = vpack.c.b16 %v741, %v739
    %v1212 = vpack.c.b16 %v742, %v740
    %v1213 = vpack.c.b16 %v745, %v743
    %v1214 = vpack.c.b16 %v746, %v744
    %v1215 = vpack.c.b16 %v749, %v747
    %v1216 = vpack.c.b16 %v750, %v748
    %v1217 = vpack.c.b16 %v753, %v751
    %v1218 = vpack.c.b16 %v754, %v752
    %v1219 = vpack.c.b16 %v757, %v755
    %v1220 = vpack.c.b16 %v758, %v756
    %v1221 = vpack.c.b16 %v761, %v759
    %v1222 = vpack.c.b16 %v762, %v760
    %v1223 = vpack.c.b16 %v765, %v763
    %v1224 = vpack.c.b16 %v766, %v764
    %v1225 = vpack.c.b16 %v769, %v767
    %v1226 = vpack.c.b16 %v770, %v768
    %v1227 = vpack.c.b16 %v773, %v771
    %v1228 = vpack.c.b16 %v774, %v772
    %v1229 = vpack.c.b16 %v777, %v775
    %v1230 = vpack.c.b16 %v778, %v776
    %v1231 = vpack.c.b16 %v781, %v779
    %v1232 = vpack.c.b16 %v782, %v780
    %v1233 = vpack.c.b16 %v785, %v783
    %v1234 = vpack.c.b16 %v786, %v784
    %v1235 = vpack.c.b16 %v789, %v787
    %v1236 = vpack.c.b16 %v790, %v788
    %v1237 = vpack.c.b16 %v793, %v791
    %v1238 = vpack.c.b16 %v794, %v792
    %v1239 = vpack.c.b16 %v797, %v795
    %v1240 = vpack.c.b16 %v798, %v796
    %v1241 = vpack.c.b16 %v801, %v799
    %v1242 = vpack.c.b16 %v802, %v800
    %v1243 = vpack.c.b16 %v805, %v803
    %v1244 = vpack.c.b16 %v806, %v804
    %v1245 = vpack.c.b16 %v809, %v807
    %v1246 = vpack.c.b16 %v810, %v808
    %v1247 = vpack.c.b16 %v813, %v811
    %v1248 = vpack.c.b16 %v814, %v812
    %v1249 = vpack.c.b16 %v817, %v815
    %v1250 = vpack.c.b16 %v818, %v816
    %v1251 = vpack.c.b16 %v821, %v819
    %v1252 = vpack.c.b16 %v822, %v820
    %v1253 = vpack.c.b16 %v825, %v823
    %v1254 = vpack.c.b16 %v826, %v824
    %v1255 = vpack.c.b16 %v829, %v827
    %v1256 = vpack.c.b16 %v830, %v828
    %v1257 = vpack.c.b16 %v833, %v831
    %v1258 = vpack.c.b16 %v834, %v832
    %v1259 = vpack.c.b16 %v837, %v835
    %v1260 = vpack.c.b16 %v838, %v836
    %v1261 = vpack.c.b16 %v841, %v839
    %v1262 = vpack.c.b16 %v842, %v840
    %v1263 = vpack.c.b16 %v845, %v843
    %v1264 = vpack.c.b16 %v846, %v844
    %v1265 = vpack.c.b16 %v849, %v847
    %v1266 = vpack.c.b16 %v850, %v848
    %v1267 = vpack.c.b16 %v853, %v851
    %v1268 = vpack.c.b16 %v854, %v852
    %v1269 = vpack.c.b16 %v857, %v855
    %v1270 = vpack.c.b16 %v858, %v856
    %v1271 = vpack.c.b16 %v861, %v859
    %v1272 = vpack.c.b16 %v862, %v860
    %v1273 = vpack.c.b16 %v865, %v863
    %v1274 = vpack.c.b16 %v866, %v864
    %v1275 = vpack.c.b16 %v869, %v867
    %v1276 = vpack.c.b16 %v870, %v868
    %v1277 = vpack.c.b16 %v873, %v871
    %v1278 = vpack.c.b16 %v874, %v872
    %v1279 = vpack.c.b16 %v877, %v875
    %v1280 = vpack.c.b16 %v878, %v876
    %v1281 = vpack.c.b16 %v881, %v879
    %v1282 = vpack.c.b16 %v882, %v880
    %v1283 = vpack.c.b16 %v885, %v883
    %v1284 = vpack.c.b16 %v886, %v884
    %v1285 = vpack.c.b16 %v889, %v887
    %v1286 = vpack.c.b16 %v890, %v888
    %v1287 = vpack.c.b16 %v893, %v891
    %v1288 = vpack.c.b16 %v894, %v892
    %v1289 = vpack.c.b16 %v897, %v895
    %v1290 = vpack.c.b16 %v898, %v896
    %v1291 = vpack.c.b16 %v901, %v899
    %v1292 = vpack.c.b16 %v902, %v900
    %v1293 = vpack.c.b16 %v905, %v903
    %v1294 = vpack.c.b16 %v906, %v904
    %v1295 = vpack.c.b16 %v909, %v907
    %v1296 = vpack.c.b16 %v910, %v908
    %v1297 = vpack.c.b16 %v913, %v911
    %v1298 = vpack.c.b16 %v914, %v912
    %v1299 = vpack.c.b16 %v917, %v915
    %v1300 = vpack.c.b16 %v918, %v916
    %v1301 = vpack.c.b16 %v921, %v919
    %v1302 = vpack.c.b16 %v922, %v920
    %v1303 = vpack.c.b16 %v925, %v923
    %v1304 = vpack.c.b16 %v926, %v924
    %v1305 = vpack.c.b16 %v929, %v927
    %v1306 = vpack.c.b16 %v930, %v928
    %v1307 = vpack.c.b16 %v933, %v931
    %v1308 = vpack.c.b16 %v934, %v932
    %v1309 = vpack.c.b16 %v937, %v935
    %v1310 = vpack.c.b16 %v938, %v936
    %v1311 = vpack.c.b16 %v941, %v939
    %v1312 = vpack.c.b16 %v942, %v940
    %v1313 = vpack.c.b16 %v945, %v943
    %v1314 = vpack.c.b16 %v946, %v944
    %v1315 = vpack.c.b16 %v949, %v947
    %v1316 = vpack.c.b16 %v950, %v948
    %v1317 = vpack.c.b16 %v953, %v951
    %v1318 = vpack.c.b16 %v954, %v952
    %v1319 = vpack.c.b16 %v957, %v955
    %v1320 = vpack.c.b16 %v958, %v956
    %v1321 = vpack.c.b16 %v961, %v959
    %v1322 = vpack.c.b16 %v962, %v960
    %v1323 = vpack.c.b16 %v965, %v963
    %v1324 = vpack.c.b16 %v966, %v964
    %v1325 = vpack.c.b16 %v969, %v967
    %v1326 = vpack.c.b16 %v970, %v968
    %v1327 = vpack.c.b16 %v973, %v971
    %v1328 = vpack.c.b16 %v974, %v972
    %v1329 = vpack.c.b16 %v977, %v975
    %v1330 = vpack.c.b16 %v978, %v976
    %v1331 = vpack.c.b16 %v981, %v979
    %v1332 = vpack.c.b16 %v982, %v980
    %v1333 = vpack.c.b16 %v985, %v983
    %v1334 = vpack.c.b16 %v986, %v984
    %v1335 = vpack.c.b16 %v989, %v987
    %v1336 = vpack.c.b16 %v990, %v988
    %v1337 = vpack.c.b16 %v993, %v991
    %v1338 = vpack.c.b16 %v994, %v992
    %v1339 = vpack.c.b16 %v997, %v995
    %v1340 = vpack.c.b16 %v998, %v996
    %v1341 = vpack.c.b16 %v1001, %v999
    %v1342 = vpack.c.b16 %v1002, %v1000
    %v1343 = vpack.c.b16 %v1005, %v1003
    %v1344 = vpack.c.b16 %v1006, %v1004
    %v1345 = vpack.c.b16 %v1009, %v1007
    %v1346 = vpack.c.b16 %v1010, %v1008
    %v1347 = vpack.c.b16 %v1013, %v1011
    %v1348 = vpack.c.b16 %v1014, %v1012
    %v1349 = vpack.c.b16 %v1017, %v1015
    %v1350 = vpack.c.b16 %v1018, %v1016
    %v1351 = vpack.c.b16 %v1021, %v1019
    %v1352 = vpack.c.b16 %v1022, %v1020
    %v1353 = vpack.c.b16 %v1025, %v1023
    %v1354 = vpack.c.b16 %v1026, %v1024
    %v1355 = vpack.c.b16 %v1029, %v1027
    %v1356 = vpack.c.b16 %v1030, %v1028
    %v1357 = vpack.c.b16 %v1033, %v1031
    %v1358 = vpack.c.b16 %v1034, %v1032
    %v1359 = vpack.c.b16 %v1037, %v1035
    %v1360 = vpack.c.b16 %v1038, %v1036
    %v1361 = vpack.c.b16 %v1041, %v1039
    %v1362 = vpack.c.b16 %v1042, %v1040
    %v1363 = vpack.c.b16 %v1045, %v1043
    %v1364 = vpack.c.b16 %v1046, %v1044
    %v1365 = vpack.c.b16 %v1049, %v1047
    %v1366 = vpack.c.b16 %v1050, %v1048
    %v1367 = vpack.c.b16 %v1053, %v1051
    %v1368 = vpack.c.b16 %v1054, %v1052
    %v1369 = vpack.c.b16 %v1057, %v1055
    %v1370 = vpack.c.b16 %v1058, %v1056
    %v1371 = vpack.c.b16 %v1061, %v1059
    %v1372 = vpack.c.b16 %v1062, %v1060
    %v1373 = vpack.c.b16 %v1065, %v1063
    %v1374 = vpack.c.b16 %v1066, %v1064
    %v1375 = vpack.c.b16 %v1069, %v1067
    %v1376 = vpack.c.b16 %v1070, %v1068
    %v1377 = vpack.c.b16 %v1073, %v1071
    %v1378 = vpack.c.b16 %v1074, %v1072
    %v1379 = vpack.c.b16 %v1077, %v1075
    %v1380 = vpack.c.b16 %v1078, %v1076
    %v1381 = vpack.c.b16 %v1081, %v1079
    %v1382 = vpack.c.b16 %v1082, %v1080
    %v1383 = vpack.c.b16 %v1085, %v1083
    %v1384 = vpack.c.b16 %v1086, %v1084
    %v1385 = vpack.c.b16 %v1089, %v1087
    %v1386 = vpack.c.b16 %v1090, %v1088
    %v1387 = vpack.c.b16 %v1093, %v1091
    %v1388 = vpack.c.b16 %v1094, %v1092
    %v1389 = vpack.c.b16 %v1097, %v1095
    %v1390 = vpack.c.b16 %v1098, %v1096
    %v1391 = vpack.c.b16 %v1101, %v1099
    %v1392 = vpack.c.b16 %v1102, %v1100
    %v1393 = vpack.c.b16 %v1105, %v1103
    %v1394 = vpack.c.b16 %v1106, %v1104
    %v1395 = vpack.c.b16 %v1109, %v1107
    %v1396 = vpack.c.b16 %v1110, %v1108
    %v1397 = vpack.c.b16 %v1113, %v1111
    %v1398 = vpack.c.b16 %v1114, %v1112
    %v1399 = vpack.c.b16 %v1117, %v1115
    %v1400 = vpack.c.b16 %v1118, %v1116
    %v1401 = vpack.c.b16 %v1121, %v1119
    %v1402 = vpack.c.b16 %v1122, %v1120
    %v1403 = vpack.c.b16 %v1125, %v1123
    %v1404 = vpack.c.b16 %v1126, %v1124
    %v1405 = vpack.c.b16 %v1129, %v1127
    %v1406 = vpack.c.b16 %v1130, %v1128
    %v1407 = vpack.c.b16 %v1133, %v1131
    %v1408 = vpack.c.b16 %v1134, %v1132
    %v1409 = vpack.c.b16 %v1137, %v1135
    %v1410 = vpack.c.b16 %v1138, %v1136
    %v1411 = vpack.c.b16 %v1141, %v1139
    %v1412 = vpack.c.b16 %v1142, %v1140
    %v1413 = vpack.c.b16 %v1145, %v1143
    %v1414 = vpack.c.b16 %v1146, %v1144
    %v1415 = vpack.c.b16 %v1149, %v1147
    %v1416 = vpack.c.b16 %v1150, %v1148
    %v1417 = vpack.c.b16 %v1153, %v1151
    %v1418 = vpack.c.b16 %v1154, %v1152
    %v1419 = vpack.c.b16 %v1157, %v1155
    %v1420 = vpack.c.b16 %v1158, %v1156
    %v1421 = vpack.c.b16 %v1161, %v1159
    %v1422 = vpack.c.b16 %v1162, %v1160
    %v1423 = vpack.c.b16 %v1165, %v1163
    %v1424 = vpack.c.b16 %v1166, %v1164
    %v1425 = vpack.c.b16 %v1169, %v1167
    %v1426 = vpack.c.b16 %v1170, %v1168
    %1683 = vmatpush.bf16.msra.mxu0 %v1185
    %1684 = vmatpush.bf16.msra.mxu0 %v1183
    %1685 = vmatpush.bf16.msra.mxu0 %v1181
    %1686 = vmatpush.bf16.msra.mxu0 %v1179
    %1687 = vmatpush.bf16.msra.mxu0 %v1177
    %1688 = vmatpush.bf16.msra.mxu0 %v1175
    %1689 = vmatpush.bf16.msra.mxu0 %v1173
    %1690 = vmatpush.bf16.msra.mxu0 %v1171
    %1691 = vmatmul.bf16.gmra.mxu0 %v371
    %v1692 = vpop.f32.mrf.mxu0
    %v1693 = vadd.f32 %v343, %v1692
    %v1694 = vpop.f32.mrf.mxu0
    %1695 = vdwg.mxu0
    %1696 = vmatpush.bf16.msra.mxu0 %v1201
    %1697 = vmatpush.bf16.msra.mxu0 %v1199
    %1698 = vmatpush.bf16.msra.mxu0 %v1197
    %1699 = vmatpush.bf16.msra.mxu0 %v1195
    %1700 = vmatpush.bf16.msra.mxu0 %v1193
    %1701 = vmatpush.bf16.msra.mxu0 %v1191
    %1702 = vmatpush.bf16.msra.mxu0 %v1189
    %1703 = vmatpush.bf16.msra.mxu0 %v1187
    %1704 = vmatmul.bf16.gmra.mxu0 %v372
    %v1705 = vpop.f32.mrf.mxu0
    %v1706 = vadd.f32 %v1693, %v1705
    %v1707 = vpop.f32.mrf.mxu0
    %1708 = vdwg.mxu0
    %1709 = vmatpush.bf16.msra.mxu0 %v1217
    %1710 = vmatpush.bf16.msra.mxu0 %v1215
    %1711 = vmatpush.bf16.msra.mxu0 %v1213
    %1712 = vmatpush.bf16.msra.mxu0 %v1211
    %1713 = vmatpush.bf16.msra.mxu0 %v1209
    %1714 = vmatpush.bf16.msra.mxu0 %v1207
    %1715 = vmatpush.bf16.msra.mxu0 %v1205
    %1716 = vmatpush.bf16.msra.mxu0 %v1203
    %1717 = vmatmul.bf16.gmra.mxu0 %v373
    %v1718 = vpop.f32.mrf.mxu0
    %v1719 = vadd.f32 %v1706, %v1718
    %v1720 = vpop.f32.mrf.mxu0
    %1721 = vdwg.mxu0
    %1722 = vmatpush.bf16.msra.mxu0 %v1233
    %1723 = vmatpush.bf16.msra.mxu0 %v1231
    %1724 = vmatpush.bf16.msra.mxu0 %v1229
    %1725 = vmatpush.bf16.msra.mxu0 %v1227
    %1726 = vmatpush.bf16.msra.mxu0 %v1225
    %1727 = vmatpush.bf16.msra.mxu0 %v1223
    %1728 = vmatpush.bf16.msra.mxu0 %v1221
    %1729 = vmatpush.bf16.msra.mxu0 %v1219
    %1730 = vmatmul.bf16.gmra.mxu0 %v374
    %v1731 = vpop.f32.mrf.mxu0
    %v1732 = vadd.f32 %v1719, %v1731
    %v1733 = vpop.f32.mrf.mxu0
    %1734 = vdwg.mxu0
    %1735 = vmatpush.bf16.msra.mxu0 %v1249
    %1736 = vmatpush.bf16.msra.mxu0 %v1247
    %1737 = vmatpush.bf16.msra.mxu0 %v1245
    %1738 = vmatpush.bf16.msra.mxu0 %v1243
    %1739 = vmatpush.bf16.msra.mxu0 %v1241
    %1740 = vmatpush.bf16.msra.mxu0 %v1239
    %1741 = vmatpush.bf16.msra.mxu0 %v1237
    %1742 = vmatpush.bf16.msra.mxu0 %v1235
    %1743 = vmatmul.bf16.gmra.mxu0 %v375
    %v1744 = vpop.f32.mrf.mxu0
    %v1745 = vadd.f32 %v1732, %v1744
    %v1746 = vpop.f32.mrf.mxu0
    %1747 = vdwg.mxu0
    %1748 = vmatpush.bf16.msra.mxu0 %v1265
    %1749 = vmatpush.bf16.msra.mxu0 %v1263
    %1750 = vmatpush.bf16.msra.mxu0 %v1261
    %1751 = vmatpush.bf16.msra.mxu0 %v1259
    %1752 = vmatpush.bf16.msra.mxu0 %v1257
    %1753 = vmatpush.bf16.msra.mxu0 %v1255
    %1754 = vmatpush.bf16.msra.mxu0 %v1253
    %1755 = vmatpush.bf16.msra.mxu0 %v1251
    %1756 = vmatmul.bf16.gmra.mxu0 %v376
    %v1757 = vpop.f32.mrf.mxu0
    %v1758 = vadd.f32 %v1745, %v1757
    %v1759 = vpop.f32.mrf.mxu0
    %1760 = vdwg.mxu0
    %1761 = vmatpush.bf16.msra.mxu0 %v1281
    %1762 = vmatpush.bf16.msra.mxu0 %v1279
    %1763 = vmatpush.bf16.msra.mxu0 %v1277
    %1764 = vmatpush.bf16.msra.mxu0 %v1275
    %1765 = vmatpush.bf16.msra.mxu0 %v1273
    %1766 = vmatpush.bf16.msra.mxu0 %v1271
    %1767 = vmatpush.bf16.msra.mxu0 %v1269
    %1768 = vmatpush.bf16.msra.mxu0 %v1267
    %1769 = vmatmul.bf16.gmra.mxu0 %v377
    %v1770 = vpop.f32.mrf.mxu0
    %v1771 = vadd.f32 %v1758, %v1770
    %v1772 = vpop.f32.mrf.mxu0
    %1773 = vdwg.mxu0
    %1774 = vmatpush.bf16.msra.mxu0 %v1297
    %1775 = vmatpush.bf16.msra.mxu0 %v1295
    %1776 = vmatpush.bf16.msra.mxu0 %v1293
    %1777 = vmatpush.bf16.msra.mxu0 %v1291
    %1778 = vmatpush.bf16.msra.mxu0 %v1289
    %1779 = vmatpush.bf16.msra.mxu0 %v1287
    %1780 = vmatpush.bf16.msra.mxu0 %v1285
    %1781 = vmatpush.bf16.msra.mxu0 %v1283
    %1782 = vmatmul.bf16.gmra.mxu0 %v378
    %v1783 = vpop.f32.mrf.mxu0
    %v1784 = vadd.f32 %v1771, %v1783
    %v1785 = vpop.f32.mrf.mxu0
    %1786 = vdwg.mxu0
    %1787 = vmatpush.bf16.msra.mxu0 %v1313
    %1788 = vmatpush.bf16.msra.mxu0 %v1311
    %1789 = vmatpush.bf16.msra.mxu0 %v1309
    %1790 = vmatpush.bf16.msra.mxu0 %v1307
    %1791 = vmatpush.bf16.msra.mxu0 %v1305
    %1792 = vmatpush.bf16.msra.mxu0 %v1303
    %1793 = vmatpush.bf16.msra.mxu0 %v1301
    %1794 = vmatpush.bf16.msra.mxu0 %v1299
    %1795 = vmatmul.bf16.gmra.mxu0 %v379
    %v1796 = vpop.f32.mrf.mxu0
    %v1797 = vadd.f32 %v1784, %v1796
    %v1798 = vpop.f32.mrf.mxu0
    %1799 = vdwg.mxu0
    %1800 = vmatpush.bf16.msra.mxu0 %v1329
    %1801 = vmatpush.bf16.msra.mxu0 %v1327
    %1802 = vmatpush.bf16.msra.mxu0 %v1325
    %1803 = vmatpush.bf16.msra.mxu0 %v1323
    %1804 = vmatpush.bf16.msra.mxu0 %v1321
    %1805 = vmatpush.bf16.msra.mxu0 %v1319
    %1806 = vmatpush.bf16.msra.mxu0 %v1317
    %1807 = vmatpush.bf16.msra.mxu0 %v1315
    %1808 = vmatmul.bf16.gmra.mxu0 %v380
    %v1809 = vpop.f32.mrf.mxu0
    %v1810 = vadd.f32 %v1797, %v1809
    %v1811 = vpop.f32.mrf.mxu0
    %1812 = vdwg.mxu0
    %1813 = vmatpush.bf16.msra.mxu0 %v1345
    %1814 = vmatpush.bf16.msra.mxu0 %v1343
    %1815 = vmatpush.bf16.msra.mxu0 %v1341
    %1816 = vmatpush.bf16.msra.mxu0 %v1339
    %1817 = vmatpush.bf16.msra.mxu0 %v1337
    %1818 = vmatpush.bf16.msra.mxu0 %v1335
    %1819 = vmatpush.bf16.msra.mxu0 %v1333
    %1820 = vmatpush.bf16.msra.mxu0 %v1331
    %1821 = vmatmul.bf16.gmra.mxu0 %v381
    %v1822 = vpop.f32.mrf.mxu0
    %v1823 = vadd.f32 %v1810, %v1822
    %v1824 = vpop.f32.mrf.mxu0
    %1825 = vdwg.mxu0
    %1826 = vmatpush.bf16.msra.mxu0 %v1361
    %1827 = vmatpush.bf16.msra.mxu0 %v1359
    %1828 = vmatpush.bf16.msra.mxu0 %v1357
    %1829 = vmatpush.bf16.msra.mxu0 %v1355
    %1830 = vmatpush.bf16.msra.mxu0 %v1353
    %1831 = vmatpush.bf16.msra.mxu0 %v1351
    %1832 = vmatpush.bf16.msra.mxu0 %v1349
    %1833 = vmatpush.bf16.msra.mxu0 %v1347
    %1834 = vmatmul.bf16.gmra.mxu0 %v382
    %v1835 = vpop.f32.mrf.mxu0
    %v1836 = vadd.f32 %v1823, %v1835
    %v1837 = vpop.f32.mrf.mxu0
    %1838 = vdwg.mxu0
    %1839 = vmatpush.bf16.msra.mxu0 %v1377
    %1840 = vmatpush.bf16.msra.mxu0 %v1375
    %1841 = vmatpush.bf16.msra.mxu0 %v1373
    %1842 = vmatpush.bf16.msra.mxu0 %v1371
    %1843 = vmatpush.bf16.msra.mxu0 %v1369
    %1844 = vmatpush.bf16.msra.mxu0 %v1367
    %1845 = vmatpush.bf16.msra.mxu0 %v1365
    %1846 = vmatpush.bf16.msra.mxu0 %v1363
    %1847 = vmatmul.bf16.gmra.mxu0 %v383
    %v1848 = vpop.f32.mrf.mxu0
    %v1849 = vadd.f32 %v1836, %v1848
    %v1850 = vpop.f32.mrf.mxu0
    %1851 = vdwg.mxu0
    %1852 = vmatpush.bf16.msra.mxu0 %v1393
    %1853 = vmatpush.bf16.msra.mxu0 %v1391
    %1854 = vmatpush.bf16.msra.mxu0 %v1389
    %1855 = vmatpush.bf16.msra.mxu0 %v1387
    %1856 = vmatpush.bf16.msra.mxu0 %v1385
    %1857 = vmatpush.bf16.msra.mxu0 %v1383
    %1858 = vmatpush.bf16.msra.mxu0 %v1381
    %1859 = vmatpush.bf16.msra.mxu0 %v1379
    %1860 = vmatmul.bf16.gmra.mxu0 %v384
    %v1861 = vpop.f32.mrf.mxu0
    %v1862 = vadd.f32 %v1849, %v1861
    %v1863 = vpop.f32.mrf.mxu0
    %1864 = vdwg.mxu0
    %1865 = vmatpush.bf16.msra.mxu0 %v1409
    %1866 = vmatpush.bf16.msra.mxu0 %v1407
    %1867 = vmatpush.bf16.msra.mxu0 %v1405
    %1868 = vmatpush.bf16.msra.mxu0 %v1403
    %1869 = vmatpush.bf16.msra.mxu0 %v1401
    %1870 = vmatpush.bf16.msra.mxu0 %v1399
    %1871 = vmatpush.bf16.msra.mxu0 %v1397
    %1872 = vmatpush.bf16.msra.mxu0 %v1395
    %1873 = vmatmul.bf16.gmra.mxu0 %v385
    %v1874 = vpop.f32.mrf.mxu0
    %v1875 = vadd.f32 %v1862, %v1874
    %v1876 = vpop.f32.mrf.mxu0
    %1877 = vdwg.mxu0
    %1878 = vmatpush.bf16.msra.mxu0 %v1425
    %1879 = vmatpush.bf16.msra.mxu0 %v1423
    %1880 = vmatpush.bf16.msra.mxu0 %v1421
    %1881 = vmatpush.bf16.msra.mxu0 %v1419
    %1882 = vmatpush.bf16.msra.mxu0 %v1417
    %1883 = vmatpush.bf16.msra.mxu0 %v1415
    %1884 = vmatpush.bf16.msra.mxu0 %v1413
    %1885 = vmatpush.bf16.msra.mxu0 %v1411
    %1886 = vmatmul.bf16.gmra.mxu0 %v386
    %v1887 = vpop.f32.mrf.mxu0
    %v1888 = vadd.f32 %v1875, %v1887
    %v1889 = vpop.f32.mrf.mxu0
    %1890 = vdwg.mxu0
    %1891 = vmatpush.bf16.msra.mxu0 %v1186
    %1892 = vmatpush.bf16.msra.mxu0 %v1184
    %1893 = vmatpush.bf16.msra.mxu0 %v1182
    %1894 = vmatpush.bf16.msra.mxu0 %v1180
    %1895 = vmatpush.bf16.msra.mxu0 %v1178
    %1896 = vmatpush.bf16.msra.mxu0 %v1176
    %1897 = vmatpush.bf16.msra.mxu0 %v1174
    %1898 = vmatpush.bf16.msra.mxu0 %v1172
    %1899 = vmatmul.bf16.gmra.mxu0 %v371
    %v1900 = vpop.f32.mrf.mxu0
    %v1901 = vadd.f32 %v344, %v1900
    %v1902 = vpop.f32.mrf.mxu0
    %1903 = vdwg.mxu0
    %1904 = vmatpush.bf16.msra.mxu0 %v1202
    %1905 = vmatpush.bf16.msra.mxu0 %v1200
    %1906 = vmatpush.bf16.msra.mxu0 %v1198
    %1907 = vmatpush.bf16.msra.mxu0 %v1196
    %1908 = vmatpush.bf16.msra.mxu0 %v1194
    %1909 = vmatpush.bf16.msra.mxu0 %v1192
    %1910 = vmatpush.bf16.msra.mxu0 %v1190
    %1911 = vmatpush.bf16.msra.mxu0 %v1188
    %1912 = vmatmul.bf16.gmra.mxu0 %v372
    %v1913 = vpop.f32.mrf.mxu0
    %v1914 = vadd.f32 %v1901, %v1913
    %v1915 = vpop.f32.mrf.mxu0
    %1916 = vdwg.mxu0
    %1917 = vmatpush.bf16.msra.mxu0 %v1218
    %1918 = vmatpush.bf16.msra.mxu0 %v1216
    %1919 = vmatpush.bf16.msra.mxu0 %v1214
    %1920 = vmatpush.bf16.msra.mxu0 %v1212
    %1921 = vmatpush.bf16.msra.mxu0 %v1210
    %1922 = vmatpush.bf16.msra.mxu0 %v1208
    %1923 = vmatpush.bf16.msra.mxu0 %v1206
    %1924 = vmatpush.bf16.msra.mxu0 %v1204
    %1925 = vmatmul.bf16.gmra.mxu0 %v373
    %v1926 = vpop.f32.mrf.mxu0
    %v1927 = vadd.f32 %v1914, %v1926
    %v1928 = vpop.f32.mrf.mxu0
    %1929 = vdwg.mxu0
    %1930 = vmatpush.bf16.msra.mxu0 %v1234
    %1931 = vmatpush.bf16.msra.mxu0 %v1232
    %1932 = vmatpush.bf16.msra.mxu0 %v1230
    %1933 = vmatpush.bf16.msra.mxu0 %v1228
    %1934 = vmatpush.bf16.msra.mxu0 %v1226
    %1935 = vmatpush.bf16.msra.mxu0 %v1224
    %1936 = vmatpush.bf16.msra.mxu0 %v1222
    %1937 = vmatpush.bf16.msra.mxu0 %v1220
    %1938 = vmatmul.bf16.gmra.mxu0 %v374
    %v1939 = vpop.f32.mrf.mxu0
    %v1940 = vadd.f32 %v1927, %v1939
    %v1941 = vpop.f32.mrf.mxu0
    %1942 = vdwg.mxu0
    %1943 = vmatpush.bf16.msra.mxu0 %v1250
    %1944 = vmatpush.bf16.msra.mxu0 %v1248
    %1945 = vmatpush.bf16.msra.mxu0 %v1246
    %1946 = vmatpush.bf16.msra.mxu0 %v1244
    %1947 = vmatpush.bf16.msra.mxu0 %v1242
    %1948 = vmatpush.bf16.msra.mxu0 %v1240
    %1949 = vmatpush.bf16.msra.mxu0 %v1238
    %1950 = vmatpush.bf16.msra.mxu0 %v1236
    %1951 = vmatmul.bf16.gmra.mxu0 %v375
    %v1952 = vpop.f32.mrf.mxu0
    %v1953 = vadd.f32 %v1940, %v1952
    %v1954 = vpop.f32.mrf.mxu0
    %1955 = vdwg.mxu0
    %1956 = vmatpush.bf16.msra.mxu0 %v1266
    %1957 = vmatpush.bf16.msra.mxu0 %v1264
    %1958 = vmatpush.bf16.msra.mxu0 %v1262
    %1959 = vmatpush.bf16.msra.mxu0 %v1260
    %1960 = vmatpush.bf16.msra.mxu0 %v1258
    %1961 = vmatpush.bf16.msra.mxu0 %v1256
    %1962 = vmatpush.bf16.msra.mxu0 %v1254
    %1963 = vmatpush.bf16.msra.mxu0 %v1252
    %1964 = vmatmul.bf16.gmra.mxu0 %v376
    %v1965 = vpop.f32.mrf.mxu0
    %v1966 = vadd.f32 %v1953, %v1965
    %v1967 = vpop.f32.mrf.mxu0
    %1968 = vdwg.mxu0
    %1969 = vmatpush.bf16.msra.mxu0 %v1282
    %1970 = vmatpush.bf16.msra.mxu0 %v1280
    %1971 = vmatpush.bf16.msra.mxu0 %v1278
    %1972 = vmatpush.bf16.msra.mxu0 %v1276
    %1973 = vmatpush.bf16.msra.mxu0 %v1274
    %1974 = vmatpush.bf16.msra.mxu0 %v1272
    %1975 = vmatpush.bf16.msra.mxu0 %v1270
    %1976 = vmatpush.bf16.msra.mxu0 %v1268
    %1977 = vmatmul.bf16.gmra.mxu0 %v377
    %v1978 = vpop.f32.mrf.mxu0
    %v1979 = vadd.f32 %v1966, %v1978
    %v1980 = vpop.f32.mrf.mxu0
    %1981 = vdwg.mxu0
    %1982 = vmatpush.bf16.msra.mxu0 %v1298
    %1983 = vmatpush.bf16.msra.mxu0 %v1296
    %1984 = vmatpush.bf16.msra.mxu0 %v1294
    %1985 = vmatpush.bf16.msra.mxu0 %v1292
    %1986 = vmatpush.bf16.msra.mxu0 %v1290
    %1987 = vmatpush.bf16.msra.mxu0 %v1288
    %1988 = vmatpush.bf16.msra.mxu0 %v1286
    %1989 = vmatpush.bf16.msra.mxu0 %v1284
    %1990 = vmatmul.bf16.gmra.mxu0 %v378
    %v1991 = vpop.f32.mrf.mxu0
    %v1992 = vadd.f32 %v1979, %v1991
    %v1993 = vpop.f32.mrf.mxu0
    %1994 = vdwg.mxu0
    %1995 = vmatpush.bf16.msra.mxu0 %v1314
    %1996 = vmatpush.bf16.msra.mxu0 %v1312
    %1997 = vmatpush.bf16.msra.mxu0 %v1310
    %1998 = vmatpush.bf16.msra.mxu0 %v1308
    %1999 = vmatpush.bf16.msra.mxu0 %v1306
    %2000 = vmatpush.bf16.msra.mxu0 %v1304
    %2001 = vmatpush.bf16.msra.mxu0 %v1302
    %2002 = vmatpush.bf16.msra.mxu0 %v1300
    %2003 = vmatmul.bf16.gmra.mxu0 %v379
    %v2004 = vpop.f32.mrf.mxu0
    %v2005 = vadd.f32 %v1992, %v2004
    %v2006 = vpop.f32.mrf.mxu0
    %2007 = vdwg.mxu0
    %2008 = vmatpush.bf16.msra.mxu0 %v1330
    %2009 = vmatpush.bf16.msra.mxu0 %v1328
    %2010 = vmatpush.bf16.msra.mxu0 %v1326
    %2011 = vmatpush.bf16.msra.mxu0 %v1324
    %2012 = vmatpush.bf16.msra.mxu0 %v1322
    %2013 = vmatpush.bf16.msra.mxu0 %v1320
    %2014 = vmatpush.bf16.msra.mxu0 %v1318
    %2015 = vmatpush.bf16.msra.mxu0 %v1316
    %2016 = vmatmul.bf16.gmra.mxu0 %v380
    %v2017 = vpop.f32.mrf.mxu0
    %v2018 = vadd.f32 %v2005, %v2017
    %v2019 = vpop.f32.mrf.mxu0
    %2020 = vdwg.mxu0
    %2021 = vmatpush.bf16.msra.mxu0 %v1346
    %2022 = vmatpush.bf16.msra.mxu0 %v1344
    %2023 = vmatpush.bf16.msra.mxu0 %v1342
    %2024 = vmatpush.bf16.msra.mxu0 %v1340
    %2025 = vmatpush.bf16.msra.mxu0 %v1338
    %2026 = vmatpush.bf16.msra.mxu0 %v1336
    %2027 = vmatpush.bf16.msra.mxu0 %v1334
    %2028 = vmatpush.bf16.msra.mxu0 %v1332
    %2029 = vmatmul.bf16.gmra.mxu0 %v381
    %v2030 = vpop.f32.mrf.mxu0
    %v2031 = vadd.f32 %v2018, %v2030
    %v2032 = vpop.f32.mrf.mxu0
    %2033 = vdwg.mxu0
    %2034 = vmatpush.bf16.msra.mxu0 %v1362
    %2035 = vmatpush.bf16.msra.mxu0 %v1360
    %2036 = vmatpush.bf16.msra.mxu0 %v1358
    %2037 = vmatpush.bf16.msra.mxu0 %v1356
    %2038 = vmatpush.bf16.msra.mxu0 %v1354
    %2039 = vmatpush.bf16.msra.mxu0 %v1352
    %2040 = vmatpush.bf16.msra.mxu0 %v1350
    %2041 = vmatpush.bf16.msra.mxu0 %v1348
    %2042 = vmatmul.bf16.gmra.mxu0 %v382
    %v2043 = vpop.f32.mrf.mxu0
    %v2044 = vadd.f32 %v2031, %v2043
    %v2045 = vpop.f32.mrf.mxu0
    %2046 = vdwg.mxu0
    %2047 = vmatpush.bf16.msra.mxu0 %v1378
    %2048 = vmatpush.bf16.msra.mxu0 %v1376
    %2049 = vmatpush.bf16.msra.mxu0 %v1374
    %2050 = vmatpush.bf16.msra.mxu0 %v1372
    %2051 = vmatpush.bf16.msra.mxu0 %v1370
    %2052 = vmatpush.bf16.msra.mxu0 %v1368
    %2053 = vmatpush.bf16.msra.mxu0 %v1366
    %2054 = vmatpush.bf16.msra.mxu0 %v1364
    %2055 = vmatmul.bf16.gmra.mxu0 %v383
    %v2056 = vpop.f32.mrf.mxu0
    %v2057 = vadd.f32 %v2044, %v2056
    %v2058 = vpop.f32.mrf.mxu0
    %2059 = vdwg.mxu0
    %2060 = vmatpush.bf16.msra.mxu0 %v1394
    %2061 = vmatpush.bf16.msra.mxu0 %v1392
    %2062 = vmatpush.bf16.msra.mxu0 %v1390
    %2063 = vmatpush.bf16.msra.mxu0 %v1388
    %2064 = vmatpush.bf16.msra.mxu0 %v1386
    %2065 = vmatpush.bf16.msra.mxu0 %v1384
    %2066 = vmatpush.bf16.msra.mxu0 %v1382
    %2067 = vmatpush.bf16.msra.mxu0 %v1380
    %2068 = vmatmul.bf16.gmra.mxu0 %v384
    %v2069 = vpop.f32.mrf.mxu0
    %v2070 = vadd.f32 %v2057, %v2069
    %v2071 = vpop.f32.mrf.mxu0
    %2072 = vdwg.mxu0
    %2073 = vmatpush.bf16.msra.mxu0 %v1410
    %2074 = vmatpush.bf16.msra.mxu0 %v1408
    %2075 = vmatpush.bf16.msra.mxu0 %v1406
    %2076 = vmatpush.bf16.msra.mxu0 %v1404
    %2077 = vmatpush.bf16.msra.mxu0 %v1402
    %2078 = vmatpush.bf16.msra.mxu0 %v1400
    %2079 = vmatpush.bf16.msra.mxu0 %v1398
    %2080 = vmatpush.bf16.msra.mxu0 %v1396
    %2081 = vmatmul.bf16.gmra.mxu0 %v385
    %v2082 = vpop.f32.mrf.mxu0
    %v2083 = vadd.f32 %v2070, %v2082
    %v2084 = vpop.f32.mrf.mxu0
    %2085 = vdwg.mxu0
    %2086 = vmatpush.bf16.msra.mxu0 %v1426
    %2087 = vmatpush.bf16.msra.mxu0 %v1424
    %2088 = vmatpush.bf16.msra.mxu0 %v1422
    %2089 = vmatpush.bf16.msra.mxu0 %v1420
    %2090 = vmatpush.bf16.msra.mxu0 %v1418
    %2091 = vmatpush.bf16.msra.mxu0 %v1416
    %2092 = vmatpush.bf16.msra.mxu0 %v1414
    %2093 = vmatpush.bf16.msra.mxu0 %v1412
    %2094 = vmatmul.bf16.gmra.mxu0 %v386
    %v2095 = vpop.f32.mrf.mxu0
    %v2096 = vadd.f32 %v2083, %v2095
    %v2097 = vpop.f32.mrf.mxu0
    %2098 = vdwg.mxu0
    %v2099 = vrot.slane %v1888, 4
    %v2100 = vadd.f32 %v1888, %v2099
    %v2101 = vrot.slane %v2100, 2
    %v2102 = vadd.f32 %v2100, %v2101
    %v2103 = vrot.slane %v2102, 1
    %v2104 = vadd.f32 %v2102, %v2103
    %v2105 = vrot.slane %v2096, 4
    %v2106 = vadd.f32 %v2096, %v2105
    %v2107 = vrot.slane %v2106, 2
    %v2108 = vadd.f32 %v2106, %v2107
    %v2109 = vrot.slane %v2108, 1
    %v2110 = vadd.f32 %v2108, %v2109
    %v2111 = vrcp.pop 8.0
    %v2112 = vmul.f32 8.0, %v2111
    %v2113 = vsub.f32 1.0, %v2112
    %v2114 = vmul.f32 %v2111, %v2113
    %v2115 = vadd.f32 %v2111, %v2114
    %vm2116 = vweird.f32 %v2111
    %v2117 = vsel %vm2116, %v2111, %v2115
    %v2118 = vmul.f32 %v2104, %v2117
    %v2119 = vmul.f32 %v2110, %v2117
    %v2120 = vsub.f32 %v1888, %v2118
    %v2121 = vsub.f32 %v2096, %v2119
    %v2122 = vmul.f32 %v2120, %v2120
    %v2123 = vmul.f32 %v2121, %v2121
    %v2124 = vrot.slane %v2122, 4
    %v2125 = vadd.f32 %v2122, %v2124
    %v2126 = vrot.slane %v2125, 2
    %v2127 = vadd.f32 %v2125, %v2126
    %v2128 = vrot.slane %v2127, 1
    %v2129 = vadd.f32 %v2127, %v2128
    %v2130 = vrot.slane %v2123, 4
    %v2131 = vadd.f32 %v2123, %v2130
    %v2132 = vrot.slane %v2131, 2
    %v2133 = vadd.f32 %v2131, %v2132
    %v2134 = vrot.slane %v2133, 1
    %v2135 = vadd.f32 %v2133, %v2134
    %v2136 = vmul.f32 %v2129, %v2117
    %v2137 = vmul.f32 %v2135, %v2117
    %v2138 = vadd.f32 %v2136, 1e-05
    %v2139 = vadd.f32 %v2137, 1e-05
    %v2140 = vrsqrt.pop %v2138
    %v2141 = vmul.f32 %v2140, %v2138
    %v2142 = vmul.f32 %v2141, %v2140
    %v2143 = vmul.f32 0.5, %v2142
    %v2144 = vsub.f32 1.5, %v2143
    %v2145 = vmul.f32 %v2140, %v2144
    %vm2146 = vweird.f32 %v2138
    %vm2147 = vweird.f32 %v2140
    %vm2148 = vmor %vm2146, %vm2147
    %v2149 = vsel %vm2148, %v2140, %v2145
    %v2150 = vrsqrt.pop %v2139
    %v2151 = vmul.f32 %v2150, %v2139
    %v2152 = vmul.f32 %v2151, %v2150
    %v2153 = vmul.f32 0.5, %v2152
    %v2154 = vsub.f32 1.5, %v2153
    %v2155 = vmul.f32 %v2150, %v2154
    %vm2156 = vweird.f32 %v2139
    %vm2157 = vweird.f32 %v2150
    %vm2158 = vmor %vm2156, %vm2157
    %v2159 = vsel %vm2158, %v2150, %v2155
    %v2160 = vmul.f32 %v2120, %v2149
    %v2161 = vmul.f32 %v2121, %v2159
    %v2162 = vld [vmem:[#allocation6] sm:$0x3]
    %v2164 = vperm.slane %v2162, 0
    %v2165 = vperm.slane %v2162, 1
    %v2168 = vmul.f32 %v2160, %v2164
    %v2169 = vmul.f32 %v2161, %v2165
    %v2170 = vld [vmem:[#allocation7] sm:$0x3]
    %v2172 = vperm.slane %v2170, 0
    %v2173 = vperm.slane %v2170, 1
    %v2176 = vadd.f32 %v2168, %v2172
    %v2177 = vadd.f32 %v2169, %v2173
    %vm2178 = vcmp.gt.f32.partialorder %v2176, 0.0
    %vm2179 = vcmp.gt.f32.partialorder %v2177, 0.0
    %v2180 = vmul.f32 %v2176, 0.2
    %v2181 = vmul.f32 %v2177, 0.2
    %v2182 = vsel %vm2178, %v2176, %v2180
    %v2183 = vsel %vm2179, %v2177, %v2181
    %2184 = vst [vmem:[%s5] sm:$0xff] %v2182
    %2185 = vst [vmem:[%s5 + $0x8] sm:$0xff] %v2183
    // Predicated region
    $region38: #{discriminator_forward.6} parent=1 // pred_check
      _
    $region39: #{discriminator_forward.6} parent=1 // pred_check_branch
      %2187 = sbr.rel (0) target = $region41
    $region40: #{discriminator_forward.6} parent=1 // pred_region
      _
    $region41: #{discriminator_forward.6} parent=1 // pred_fallthru
      _
    // Predicated region
    $region42: #{discriminator_forward.6} parent=1 // pred_check
      _
    $region43: #{discriminator_forward.6} parent=1 // pred_check_branch
      %2189 = sbr.rel (0) target = $region45
    $region44: #{discriminator_forward.6} parent=1 // pred_region
      _
    $region45: #{discriminator_forward.6} parent=1 // pred_fallthru
      _
    %2190 = vsyncpa [#allocation3], 1
    %2191 = vsyncpa [#allocation5], 1
    %2192 = vsyncpa [#allocation8], 1

// kernel: discriminator_forward.7
$region0: #{discriminator_forward.7}
  #allocation0 [shape = 'u32[]', space=smem, size = 0x4, offset = 0x4, fixed_abs, tag = 'smem constant byte address 0x4 - core index']
  #allocation1 [shape = 'u32[72,128]{1,0:T(1,128)}', space=vmem, size = 0x9000, scoped, tag = 'internal scratch']
  %s0 = inlined_call_operand.vmem [shape: bf16[2,4096], index: 0, kind: input, shape index: {}]
  %s1 = inlined_call_operand.hbm [shape: bf16[4096,512], index: 1, kind: input, shape index: {}]
  %s2 = inlined_call_operand.hbm [shape: f32[1,512], index: 2, kind: input, shape index: {}]
  %s3 = inlined_call_operand.hbm [shape: f32[1,512], index: 3, kind: input, shape index: {}]
  %s4 = inlined_call_operand.hbm [shape: f32[1,512], index: 4, kind: input, shape index: {}]
  %s5 = inlined_call_operand.vmem [shape: f32[2,512], index: 5, kind: output, shape index: {}]
  %s6 = sld [smem:[#allocation0]]
  $region69: #{discriminator_forward.7} parent=0
    _
  %s8 = ssub.s32 1, %s6
  %s9 = scalar_select 0, %s8, %s6
  $region1: #{discriminator_forward.7} parent=0
    #allocation2 [shape = 'u8[4194304]{0}', space=vmem, size = 0x400000, scoped, tag = 'input window, operand 1']
    #allocation3 [shape = 's32[2]{0}', space=sflag, size = 0x8, scoped, tag = 'scoped memory for discriminator_forward.7']
    #allocation4 [shape = 'u8[2048]{0}', space=vmem, size = 0x800, scoped, tag = 'input window, operand 2']
    #allocation5 [shape = 's32[2]{0}', space=sflag, size = 0x8, scoped, tag = 'scoped memory for discriminator_forward.7']
    #allocation6 [shape = 'u8[2048]{0}', space=vmem, size = 0x800, scoped, tag = 'input window, operand 3']
    #allocation7 [shape = 'u8[2048]{0}', space=vmem, size = 0x800, scoped, tag = 'input window, operand 4']
    #allocation8 [shape = 's32[2]{0}', space=sflag, size = 0x8, scoped, tag = 'scoped memory for discriminator_forward.7']
    %10 = vsyncpa [#allocation3], 0
    %s11 = scalar_lea.sflag [#allocation3], 1
    %12 = vsyncpa %s11, 0
    %13 = vsyncpa [#allocation5], 0
    %s14 = scalar_lea.sflag [#allocation5], 1
    %15 = vsyncpa %s14, 0
    %16 = vsyncpa [#allocation8], 0
    %s17 = scalar_lea.sflag [#allocation8], 1
    %18 = vsyncpa %s17, 0
    loop: start=0, step=1, limit=4
    $region2: #{discriminator_forward.7} parent=1 // loop_pre_header
      _
    $region3: #{discriminator_forward.7} parent=1 // loop_header
      %s20 = sphi 0, %s24
      %p21 = scmp.ge.s32.totalorder %s20, 4
      %s28 = sphi 0, %s28
      %s30 = sphi 0, %s28
      %s31 = sphi 0, %s30
      %s45 = sphi 0, %s31
      %s51 = sphi 0, %s53
      %s54 = sphi 0, %s51
      %s55 = sphi 0, %s54
      %s71 = sphi 0, %s55
      %s77 = sphi 0, %s79
      %s80 = sphi 0, %s77
      %s81 = sphi 0, %s80
      %s97 = sphi 0, %s81
      %s103 = sphi 0, %s105
      %s106 = sphi 0, %s103
      %s107 = sphi 0, %s106
      %s123 = sphi 0, %s107
      %s129 = sphi 0, %s131
      %s132 = sphi 0, %s129
      %s133 = sphi 0, %s132
      %s149 = sphi 0, %s133
      %s155 = sphi 0, %s157
      %s158 = sphi 0, %s155
      %s159 = sphi 0, %s158
      %s175 = sphi 0, %s159
    $region4: #{discriminator_forward.7} parent=1 // loop_header_branch
      %23 = sbr.rel (%p21) target = $region8
    $region5: #{discriminator_forward.7} parent=1 // loop_body
      %s25 = ssub.s32 %s20, 1
      %s26 = ssub.s32 %s20, 2
      %s27 = sadd.s32 %s20, 1
      %s29 = sadd.s32 %s28, 1
      %p32 = scmp.eq.s32.totalorder %s20, 1
      %p33 = scmp.ne.s32.totalorder %s28, %s30
      %p34 = scmp.eq.s32.totalorder %s20, 0
      %p35 = por %p33, %p34
      %p36 = scmp.ne.s32.totalorder %s28, %s30
      %p37 = scmp.eq.s32.totalorder %s25, 1
      %p38 = por %p36, %p37
      %p39 = scmp.ne.s32.totalorder %s30, %s31
      %p40 = scmp.eq.s32.totalorder %s25, 0
      %p41 = por %p39, %p40
      %p42 = scmp.ne.s32.totalorder %s30, %s31
      %p43 = scmp.eq.s32.totalorder %s26, 1
      %p44 = por %p42, %p43
      %p46 = scmp.ne.s32.totalorder %s31, %s45
      %p47 = scmp.eq.s32.totalorder %s26, 0
      %p48 = por %p46, %p47
      %s49 = ssub.s32 %s20, %s27
      %p50 = scmp.eq.s32.totalorder %s49, 0
      %s52 = sadd.s32 %s51, 1
      %s53 = scalar_select %p50, %s51, %s52
      %p56 = pneg %p50
      %p57 = scmp.eq.s32.totalorder %s20, 1
      %p58 = por %p56, %p57
      %p59 = scmp.ne.s32.totalorder %s51, %s54
      %p60 = scmp.eq.s32.totalorder %s20, 0
      %p61 = por %p59, %p60
      %p62 = scmp.ne.s32.totalorder %s51, %s54
      %p63 = scmp.eq.s32.totalorder %s25, 1
      %p64 = por %p62, %p63
      %p65 = scmp.ne.s32.totalorder %s54, %s55
      %p66 = scmp.eq.s32.totalorder %s25, 0
      %p67 = por %p65, %p66
      %p68 = scmp.ne.s32.totalorder %s54, %s55
      %p69 = scmp.eq.s32.totalorder %s26, 1
      %p70 = por %p68, %p69
      %p72 = scmp.ne.s32.totalorder %s55, %s71
      %p73 = scmp.eq.s32.totalorder %s26, 0
      %p74 = por %p72, %p73
      %s75 = ssub.s32 %s20, %s27
      %p76 = scmp.eq.s32.totalorder %s75, 0
      %s78 = sadd.s32 %s77, 1
      %s79 = scalar_select %p76, %s77, %s78
      %p82 = pneg %p76
      %p83 = scmp.eq.s32.totalorder %s20, 1
      %p84 = por %p82, %p83
      %p85 = scmp.ne.s32.totalorder %s77, %s80
      %p86 = scmp.eq.s32.totalorder %s20, 0
      %p87 = por %p85, %p86
      %p88 = scmp.ne.s32.totalorder %s77, %s80
      %p89 = scmp.eq.s32.totalorder %s25, 1
      %p90 = por %p88, %p89
      %p91 = scmp.ne.s32.totalorder %s80, %s81
      %p92 = scmp.eq.s32.totalorder %s25, 0
      %p93 = por %p91, %p92
      %p94 = scmp.ne.s32.totalorder %s80, %s81
      %p95 = scmp.eq.s32.totalorder %s26, 1
      %p96 = por %p94, %p95
      %p98 = scmp.ne.s32.totalorder %s81, %s97
      %p99 = scmp.eq.s32.totalorder %s26, 0
      %p100 = por %p98, %p99
      %s101 = ssub.s32 %s20, %s27
      %p102 = scmp.eq.s32.totalorder %s101, 0
      %s104 = sadd.s32 %s103, 1
      %s105 = scalar_select %p102, %s103, %s104
      %p108 = pneg %p102
      %p109 = scmp.eq.s32.totalorder %s20, 1
      %p110 = por %p108, %p109
      %p111 = scmp.ne.s32.totalorder %s103, %s106
      %p112 = scmp.eq.s32.totalorder %s20, 0
      %p113 = por %p111, %p112
      %p114 = scmp.ne.s32.totalorder %s103, %s106
      %p115 = scmp.eq.s32.totalorder %s25, 1
      %p116 = por %p114, %p115
      %p117 = scmp.ne.s32.totalorder %s106, %s107
      %p118 = scmp.eq.s32.totalorder %s25, 0
      %p119 = por %p117, %p118
      %p120 = scmp.ne.s32.totalorder %s106, %s107
      %p121 = scmp.eq.s32.totalorder %s26, 1
      %p122 = por %p120, %p121
      %p124 = scmp.ne.s32.totalorder %s107, %s123
      %p125 = scmp.eq.s32.totalorder %s26, 0
      %p126 = por %p124, %p125
      %s127 = ssub.s32 %s20, %s27
      %p128 = scmp.eq.s32.totalorder %s127, 0
      %s130 = sadd.s32 %s129, 1
      %s131 = scalar_select %p128, %s129, %s130
      %p134 = pneg %p128
      %p135 = scmp.eq.s32.totalorder %s20, 1
      %p136 = por %p134, %p135
      %p137 = scmp.ne.s32.totalorder %s129, %s132
      %p138 = scmp.eq.s32.totalorder %s20, 0
      %p139 = por %p137, %p138
      %p140 = scmp.ne.s32.totalorder %s129, %s132
      %p141 = scmp.eq.s32.totalorder %s25, 1
      %p142 = por %p140, %p141
      %p143 = scmp.ne.s32.totalorder %s132, %s133
      %p144 = scmp.eq.s32.totalorder %s25, 0
      %p145 = por %p143, %p144
      %p146 = scmp.ne.s32.totalorder %s132, %s133
      %p147 = scmp.eq.s32.totalorder %s26, 1
      %p148 = por %p146, %p147
      %p150 = scmp.ne.s32.totalorder %s133, %s149
      %p151 = scmp.eq.s32.totalorder %s26, 0
      %p152 = por %p150, %p151
      %s153 = ssub.s32 %s20, %s27
      %p154 = scmp.eq.s32.totalorder %s153, 0
      %s156 = sadd.s32 %s155, 1
      %s157 = scalar_select %p154, %s155, %s156
      %p160 = pneg %p154
      %p161 = scmp.eq.s32.totalorder %s20, 1
      %p162 = por %p160, %p161
      %p163 = scmp.ne.s32.totalorder %s155, %s158
      %p164 = scmp.eq.s32.totalorder %s20, 0
      %p165 = por %p163, %p164
      %p166 = scmp.ne.s32.totalorder %s155, %s158
      %p167 = scmp.eq.s32.totalorder %s25, 1
      %p168 = por %p166, %p167
      %p169 = scmp.ne.s32.totalorder %s158, %s159
      %p170 = scmp.eq.s32.totalorder %s25, 0
      %p171 = por %p169, %p170
      %p172 = scmp.ne.s32.totalorder %s158, %s159
      %p173 = scmp.eq.s32.totalorder %s26, 1
      %p174 = por %p172, %p173
      %p176 = scmp.ne.s32.totalorder %s159, %s175
      %p177 = scmp.eq.s32.totalorder %s26, 0
      %p178 = por %p176, %p177
      %p179 = scmp.le.s32.totalorder 1, %s20
      %p180 = scmp.lt.s32.totalorder %s20, 3
      %p181 = pnand %p179, %p180
      %p182 = pneg %p181
      // Predicated region
      $region9: #{discriminator_forward.7} parent=5 // pred_check
        _
      $region10: #{discriminator_forward.7} parent=5 // pred_check_branch
        %184 = sbr.rel (%p181) target = $region12
      $region11: #{discriminator_forward.7} parent=5 // pred_region
        %s185 = ssub.s32 %s20, 1
        // Predicated region
        $region13: #{discriminator_forward.7} parent=11 // pred_check
          %p186 = pneg %p41
        $region14: #{discriminator_forward.7} parent=11 // pred_check_branch
          %188 = sbr.rel (%p186) target = $region16
        $region15: #{discriminator_forward.7} parent=11 // pred_region
          _
        $region16: #{discriminator_forward.7} parent=11 // pred_fallthru
          _
      $region12: #{discriminator_forward.7} parent=5 // pred_fallthru
        _
      %p189 = scmp.lt.s32.totalorder %s20, 2
      // Predicated region
      $region17: #{discriminator_forward.7} parent=5 // pred_check
        %p190 = pneg %p189
      $region18: #{discriminator_forward.7} parent=5 // pred_check_branch
        %192 = sbr.rel (%p190) target = $region20
      $region19: #{discriminator_forward.7} parent=5 // pred_region
        // Predicated region
        $region21: #{discriminator_forward.7} parent=19 // pred_check
          %p193 = pneg %p61
        $region22: #{discriminator_forward.7} parent=19 // pred_check_branch
          %195 = sbr.rel (%p193) target = $region24
        $region23: #{discriminator_forward.7} parent=19 // pred_region
          %s196 = sand.u32 %s51, 1
          %s197 = scalar_lea.sflag [#allocation3], %s196
          %s198 = sand.u32 %s51, 1
          %s199 = smul.addr %s198, 4096
          %s200 = scalar_lea.vmem [#allocation2], %s199
          %s201 = smul.u32 2, %s20
          %203 = vsyncadd %s197, 0
          %s204 = smul.addr %s201, 4
          %s205 = scalar_lea.hbm %s1, %s204
          %s206 = sshll.u32 %s205, 4
          %s207 = int_to_ptr.hbm [resolvable:$true] %s206
          %s208 = sshll.u32 %s200, 4
          %s209 = int_to_ptr.vmem [resolvable:$true] %s208
          %214 = dma.hbm_to_vmem [thread:$0]  %s207, 65536, %s209, %s197, 256, 128, 8
        $region24: #{discriminator_forward.7} parent=19 // pred_fallthru
          _
        // Predicated region
        $region25: #{discriminator_forward.7} parent=19 // pred_check
          %p215 = pneg %p87
        $region26: #{discriminator_forward.7} parent=19 // pred_check_branch
          %217 = sbr.rel (%p215) target = $region28
        $region27: #{discriminator_forward.7} parent=19 // pred_region
          %s218 = sand.u32 %s20, 1
          %s219 = scalar_lea.sflag [#allocation5], %s218
          %s220 = sand.u32 %s77, 1
          %s221 = smul.addr %s220, 2
          %s222 = scalar_lea.vmem [#allocation4], %s221
          %s223 = smul.u32 2, %s20
          %225 = vsyncadd %s219, 0
          %s226 = scalar_lea.hbm %s2, %s223
          %s228 = sshll.u32 %s226, 4
          %s229 = int_to_ptr.hbm [resolvable:$true] %s228
          %s230 = sshll.u32 %s222, 4
          %s231 = int_to_ptr.vmem [resolvable:$true] %s230
          %233 = dma.hbm_to_vmem [thread:$0]  %s229, 32, %s231, %s219
        $region28: #{discriminator_forward.7} parent=19 // pred_fallthru
          _
        // Predicated region
        $region29: #{discriminator_forward.7} parent=19 // pred_check
          %p234 = pneg %p113
        $region30: #{discriminator_forward.7} parent=19 // pred_check_branch
          %236 = sbr.rel (%p234) target = $region32
        $region31: #{discriminator_forward.7} parent=19 // pred_region
          %s237 = sand.u32 %s20, 1
          %s238 = scalar_lea.sflag [#allocation5], %s237
          %s239 = sand.u32 %s103, 1
          %s240 = smul.addr %s239, 2
          %s241 = scalar_lea.vmem [#allocation6], %s240
          %s242 = smul.u32 2, %s20
          %244 = vsyncadd %s238, 0
          %s245 = scalar_lea.hbm %s3, %s242
          %s247 = sshll.u32 %s245, 4
          %s248 = int_to_ptr.hbm [resolvable:$true] %s247
          %s249 = sshll.u32 %s241, 4
          %s250 = int_to_ptr.vmem [resolvable:$true] %s249
          %252 = dma.hbm_to_vmem [thread:$0]  %s248, 32, %s250, %s238
        $region32: #{discriminator_forward.7} parent=19 // pred_fallthru
          _
        // Predicated region
        $region33: #{discriminator_forward.7} parent=19 // pred_check
          %p253 = pneg %p139
        $region34: #{discriminator_forward.7} parent=19 // pred_check_branch
          %255 = sbr.rel (%p253) target = $region36
        $region35: #{discriminator_forward.7} parent=19 // pred_region
          %s256 = sand.u32 %s129, 1
          %s257 = scalar_lea.sflag [#allocation8], %s256
          %s258 = sand.u32 %s129, 1
          %s259 = smul.addr %s258, 2
          %s260 = scalar_lea.vmem [#allocation7], %s259
          %s261 = smul.u32 2, %s20
          %263 = vsyncadd %s257, 0
          %s264 = scalar_lea.hbm %s4, %s261
          %s266 = sshll.u32 %s264, 4
          %s267 = int_to_ptr.hbm [resolvable:$true] %s266
          %s268 = sshll.u32 %s260, 4
          %s269 = int_to_ptr.vmem [resolvable:$true] %s268
          %271 = dma.hbm_to_vmem [thread:$0]  %s267, 32, %s269, %s257
        $region36: #{discriminator_forward.7} parent=19 // pred_fallthru
          _
      $region20: #{discriminator_forward.7} parent=5 // pred_fallthru
        _
      %p272 = scmp.le.s32.totalorder 1, %s20
      %p273 = scmp.lt.s32.totalorder %s20, 3
      %p274 = pnand %p272, %p273
      %p275 = pneg %p274
      // Predicated region
      $region37: #{discriminator_forward.7} parent=5 // pred_check
        _
      $region38: #{discriminator_forward.7} parent=5 // pred_check_branch
        %277 = sbr.rel (%p274) target = $region40
      $region39: #{discriminator_forward.7} parent=5 // pred_region
        %s278 = ssub.s32 %s20, 1
        %s279 = sand.u32 %s54, 1
        %s280 = scalar_lea.sflag [#allocation3], %s279
        %s281 = sand.u32 %s54, 1
        %s282 = smul.addr %s281, 4096
        %s283 = scalar_lea.vmem [#allocation2], %s282
        // Predicated region
        $region41: #{discriminator_forward.7} parent=39 // pred_check
          %p284 = pneg %p67
        $region42: #{discriminator_forward.7} parent=39 // pred_check_branch
          %286 = sbr.rel (%p284) target = $region44
        $region43: #{discriminator_forward.7} parent=39 // pred_region
          %288 = dma.done %s280, 65536
        $region44: #{discriminator_forward.7} parent=39 // pred_fallthru
          _
        %s289 = sand.u32 %s25, 1
        %s290 = scalar_lea.sflag [#allocation5], %s289
        %s291 = sand.u32 %s80, 1
        %s292 = smul.addr %s291, 2
        %s293 = scalar_lea.vmem [#allocation4], %s292
        // Predicated region
        $region45: #{discriminator_forward.7} parent=39 // pred_check
          %p294 = pneg %p93
        $region46: #{discriminator_forward.7} parent=39 // pred_check_branch
          %296 = sbr.rel (%p294) target = $region48
        $region47: #{discriminator_forward.7} parent=39 // pred_region
          %298 = dma.done %s290, 32
        $region48: #{discriminator_forward.7} parent=39 // pred_fallthru
          _
        %s299 = sand.u32 %s25, 1
        %s300 = scalar_lea.sflag [#allocation5], %s299
        %s301 = sand.u32 %s106, 1
        %s302 = smul.addr %s301, 2
        %s303 = scalar_lea.vmem [#allocation6], %s302
        // Predicated region
        $region49: #{discriminator_forward.7} parent=39 // pred_check
          %p304 = pneg %p119
        $region50: #{discriminator_forward.7} parent=39 // pred_check_branch
          %306 = sbr.rel (%p304) target = $region52
        $region51: #{discriminator_forward.7} parent=39 // pred_region
          %308 = dma.done %s300, 32
        $region52: #{discriminator_forward.7} parent=39 // pred_fallthru
          _
        %s309 = sand.u32 %s132, 1
        %s310 = scalar_lea.sflag [#allocation8], %s309
        %s311 = sand.u32 %s132, 1
        %s312 = smul.addr %s311, 2
        %s313 = scalar_lea.vmem [#allocation7], %s312
        // Predicated region
        $region53: #{discriminator_forward.7} parent=39 // pred_check
          %p314 = pneg %p145
        $region54: #{discriminator_forward.7} parent=39 // pred_check_branch
          %316 = sbr.rel (%p314) target = $region56
        $region55: #{discriminator_forward.7} parent=39 // pred_region
          %318 = dma.done %s310, 32
        $region56: #{discriminator_forward.7} parent=39 // pred_fallthru
          _
        %p319 = pneg %p41
        %p320 = pneg %p38
        %s321 = sand.u32 %s54, 1
        %s322 = scalar_lea.sflag [#allocation3], %s321
        %s323 = sand.u32 %s54, 1
        %s324 = smul.addr %s323, 4096
        %s325 = scalar_lea.vmem [#allocation2], %s324
        %p326 = pneg %p67
        %p327 = pneg %p64
        %s328 = sand.u32 %s25, 1
        %s329 = scalar_lea.sflag [#allocation5], %s328
        %s330 = sand.u32 %s80, 1
        %s331 = smul.addr %s330, 2
        %s332 = scalar_lea.vmem [#allocation4], %s331
        %p333 = pneg %p93
        %p334 = pneg %p90
        %s335 = sand.u32 %s25, 1
        %s336 = scalar_lea.sflag [#allocation5], %s335
        %s337 = sand.u32 %s106, 1
        %s338 = smul.addr %s337, 2
        %s339 = scalar_lea.vmem [#allocation6], %s338
        %p340 = pneg %p119
        %p341 = pneg %p116
        %s342 = sand.u32 %s132, 1
        %s343 = scalar_lea.sflag [#allocation8], %s342
        %s344 = sand.u32 %s132, 1
        %s345 = smul.addr %s344, 2
        %s346 = scalar_lea.vmem [#allocation7], %s345
        %p347 = pneg %p145
        %p348 = pneg %p142
        %p349 = pneg %p171
        %p350 = pneg %p168
        %s351 = smul.u32 2, %s25
        %p352 = scmp.lt.s32.totalorder %s351, 3
        %s353 = scalar_select %p352, %s351, 3
        %s354 = smul.addr %s353, 2
        %s355 = scalar_lea.vmem %s5, %s354
        %s356 = smul.u32 2, %s25
        %s357 = smul.u32 2, %s25
        %s358 = smul.u32 2, %s25
        %s359 = smul.u32 2, %s25
        %s360 = smul.u32 2, %s25
        %p361 = scmp.lt.s32.totalorder %s360, 3
        %s362 = scalar_select %p361, %s360, 3
        %s363 = smul.addr %s362, 2
        %s364 = scalar_lea.vmem %s5, %s363
        %s365 = smul.u32 2, %s25
        %v366 = vld [vmem:[%s0] sm:$0xff]
        %v367 = vld [vmem:[%s0 + $0x8] sm:$0xff]
        %v368 = vld [vmem:[%s0 + $0x10] sm:$0xff]
        %v369 = vld [vmem:[%s0 + $0x18] sm:$0xff]
        %v370 = vld [vmem:[%s283] sm:$0xff]
        %v371 = vld [vmem:[%s283 + $0x8] sm:$0xff]
        %v372 = vld [vmem:[%s283 + $0x10] sm:$0xff]
        %v373 = vld [vmem:[%s283 + $0x18] sm:$0xff]
        %v374 = vld [vmem:[%s283 + $0x20] sm:$0xff]
        %v375 = vld [vmem:[%s283 + $0x28] sm:$0xff]
        %v376 = vld [vmem:[%s283 + $0x30] sm:$0xff]
        %v377 = vld [vmem:[%s283 + $0x38] sm:$0xff]
        %v378 = vld [vmem:[%s283 + $0x40] sm:$0xff]
        %v379 = vld [vmem:[%s283 + $0x48] sm:$0xff]
        %v380 = vld [vmem:[%s283 + $0x50] sm:$0xff]
        %v381 = vld [vmem:[%s283 + $0x58] sm:$0xff]
        %v382 = vld [vmem:[%s283 + $0x60] sm:$0xff]
        %v383 = vld [vmem:[%s283 + $0x68] sm:$0xff]
        %v384 = vld [vmem:[%s283 + $0x70] sm:$0xff]
        %v385 = vld [vmem:[%s283 + $0x78] sm:$0xff]
        %v386 = vld [vmem:[%s283 + $0x80] sm:$0xff]
        %v387 = vld [vmem:[%s283 + $0x88] sm:$0xff]
        %v388 = vld [vmem:[%s283 + $0x90] sm:$0xff]
        %v389 = vld [vmem:[%s283 + $0x98] sm:$0xff]
        %v390 = vld [vmem:[%s283 + $0xa0] sm:$0xff]
        %v391 = vld [vmem:[%s283 + $0xa8] sm:$0xff]
        %v392 = vld [vmem:[%s283 + $0xb0] sm:$0xff]
        %v393 = vld [vmem:[%s283 + $0xb8] sm:$0xff]
        %v394 = vld [vmem:[%s283 + $0xc0] sm:$0xff]
        %v395 = vld [vmem:[%s283 + $0xc8] sm:$0xff]
        %v396 = vld [vmem:[%s283 + $0xd0] sm:$0xff]
        %v397 = vld [vmem:[%s283 + $0xd8] sm:$0xff]
        %v398 = vld [vmem:[%s283 + $0xe0] sm:$0xff]
        %v399 = vld [vmem:[%s283 + $0xe8] sm:$0xff]
        %v400 = vld [vmem:[%s283 + $0xf0] sm:$0xff]
        %v401 = vld [vmem:[%s283 + $0xf8] sm:$0xff]
        %v402 = vld [vmem:[%s283 + $0x100] sm:$0xff]
        %v403 = vld [vmem:[%s283 + $0x108] sm:$0xff]
        %v404 = vld [vmem:[%s283 + $0x110] sm:$0xff]
        %v405 = vld [vmem:[%s283 + $0x118] sm:$0xff]
        %v406 = vld [vmem:[%s283 + $0x120] sm:$0xff]
        %v407 = vld [vmem:[%s283 + $0x128] sm:$0xff]
        %v408 = vld [vmem:[%s283 + $0x130] sm:$0xff]
        %v409 = vld [vmem:[%s283 + $0x138] sm:$0xff]
        %v410 = vld [vmem:[%s283 + $0x140] sm:$0xff]
        %v411 = vld [vmem:[%s283 + $0x148] sm:$0xff]
        %v412 = vld [vmem:[%s283 + $0x150] sm:$0xff]
        %v413 = vld [vmem:[%s283 + $0x158] sm:$0xff]
        %v414 = vld [vmem:[%s283 + $0x160] sm:$0xff]
        %v415 = vld [vmem:[%s283 + $0x168] sm:$0xff]
        %v416 = vld [vmem:[%s283 + $0x170] sm:$0xff]
        %v417 = vld [vmem:[%s283 + $0x178] sm:$0xff]
        %v418 = vld [vmem:[%s283 + $0x180] sm:$0xff]
        %v419 = vld [vmem:[%s283 + $0x188] sm:$0xff]
        %v420 = vld [vmem:[%s283 + $0x190] sm:$0xff]
        %v421 = vld [vmem:[%s283 + $0x198] sm:$0xff]
        %v422 = vld [vmem:[%s283 + $0x1a0] sm:$0xff]
        %v423 = vld [vmem:[%s283 + $0x1a8] sm:$0xff]
        %v424 = vld [vmem:[%s283 + $0x1b0] sm:$0xff]
        %v425 = vld [vmem:[%s283 + $0x1b8] sm:$0xff]
        %v426 = vld [vmem:[%s283 + $0x1c0] sm:$0xff]
        %v427 = vld [vmem:[%s283 + $0x1c8] sm:$0xff]
        %v428 = vld [vmem:[%s283 + $0x1d0] sm:$0xff]
        %v429 = vld [vmem:[%s283 + $0x1d8] sm:$0xff]
        %v430 = vld [vmem:[%s283 + $0x1e0] sm:$0xff]
        %v431 = vld [vmem:[%s283 + $0x1e8] sm:$0xff]
        %v432 = vld [vmem:[%s283 + $0x1f0] sm:$0xff]
        %v433 = vld [vmem:[%s283 + $0x1f8] sm:$0xff]
        %v434 = vld [vmem:[%s283 + $0x200] sm:$0xff]
        %v435 = vld [vmem:[%s283 + $0x208] sm:$0xff]
        %v436 = vld [vmem:[%s283 + $0x210] sm:$0xff]
        %v437 = vld [vmem:[%s283 + $0x218] sm:$0xff]
        %v438 = vld [vmem:[%s283 + $0x220] sm:$0xff]
        %v439 = vld [vmem:[%s283 + $0x228] sm:$0xff]
        %v440 = vld [vmem:[%s283 + $0x230] sm:$0xff]
        %v441 = vld [vmem:[%s283 + $0x238] sm:$0xff]
        %v442 = vld [vmem:[%s283 + $0x240] sm:$0xff]
        %v443 = vld [vmem:[%s283 + $0x248] sm:$0xff]
        %v444 = vld [vmem:[%s283 + $0x250] sm:$0xff]
        %v445 = vld [vmem:[%s283 + $0x258] sm:$0xff]
        %v446 = vld [vmem:[%s283 + $0x260] sm:$0xff]
        %v447 = vld [vmem:[%s283 + $0x268] sm:$0xff]
        %v448 = vld [vmem:[%s283 + $0x270] sm:$0xff]
        %v449 = vld [vmem:[%s283 + $0x278] sm:$0xff]
        %v450 = vld [vmem:[%s283 + $0x280] sm:$0xff]
        %v451 = vld [vmem:[%s283 + $0x288] sm:$0xff]
        %v452 = vld [vmem:[%s283 + $0x290] sm:$0xff]
        %v453 = vld [vmem:[%s283 + $0x298] sm:$0xff]
        %v454 = vld [vmem:[%s283 + $0x2a0] sm:$0xff]
        %v455 = vld [vmem:[%s283 + $0x2a8] sm:$0xff]
        %v456 = vld [vmem:[%s283 + $0x2b0] sm:$0xff]
        %v457 = vld [vmem:[%s283 + $0x2b8] sm:$0xff]
        %v458 = vld [vmem:[%s283 + $0x2c0] sm:$0xff]
        %v459 = vld [vmem:[%s283 + $0x2c8] sm:$0xff]
        %v460 = vld [vmem:[%s283 + $0x2d0] sm:$0xff]
        %v461 = vld [vmem:[%s283 + $0x2d8] sm:$0xff]
        %v462 = vld [vmem:[%s283 + $0x2e0] sm:$0xff]
        %v463 = vld [vmem:[%s283 + $0x2e8] sm:$0xff]
        %v464 = vld [vmem:[%s283 + $0x2f0] sm:$0xff]
        %v465 = vld [vmem:[%s283 + $0x2f8] sm:$0xff]
        %v466 = vld [vmem:[%s283 + $0x300] sm:$0xff]
        %v467 = vld [vmem:[%s283 + $0x308] sm:$0xff]
        %v468 = vld [vmem:[%s283 + $0x310] sm:$0xff]
        %v469 = vld [vmem:[%s283 + $0x318] sm:$0xff]
        %v470 = vld [vmem:[%s283 + $0x320] sm:$0xff]
        %v471 = vld [vmem:[%s283 + $0x328] sm:$0xff]
        %v472 = vld [vmem:[%s283 + $0x330] sm:$0xff]
        %v473 = vld [vmem:[%s283 + $0x338] sm:$0xff]
        %v474 = vld [vmem:[%s283 + $0x340] sm:$0xff]
        %v475 = vld [vmem:[%s283 + $0x348] sm:$0xff]
        %v476 = vld [vmem:[%s283 + $0x350] sm:$0xff]
        %v477 = vld [vmem:[%s283 + $0x358] sm:$0xff]
        %v478 = vld [vmem:[%s283 + $0x360] sm:$0xff]
        %v479 = vld [vmem:[%s283 + $0x368] sm:$0xff]
        %v480 = vld [vmem:[%s283 + $0x370] sm:$0xff]
        %v481 = vld [vmem:[%s283 + $0x378] sm:$0xff]
        %v482 = vld [vmem:[%s283 + $0x380] sm:$0xff]
        %v483 = vld [vmem:[%s283 + $0x388] sm:$0xff]
        %v484 = vld [vmem:[%s283 + $0x390] sm:$0xff]
        %v485 = vld [vmem:[%s283 + $0x398] sm:$0xff]
        %v486 = vld [vmem:[%s283 + $0x3a0] sm:$0xff]
        %v487 = vld [vmem:[%s283 + $0x3a8] sm:$0xff]
        %v488 = vld [vmem:[%s283 + $0x3b0] sm:$0xff]
        %v489 = vld [vmem:[%s283 + $0x3b8] sm:$0xff]
        %v490 = vld [vmem:[%s283 + $0x3c0] sm:$0xff]
        %v491 = vld [vmem:[%s283 + $0x3c8] sm:$0xff]
        %v492 = vld [vmem:[%s283 + $0x3d0] sm:$0xff]
        %v493 = vld [vmem:[%s283 + $0x3d8] sm:$0xff]
        %v494 = vld [vmem:[%s283 + $0x3e0] sm:$0xff]
        %v495 = vld [vmem:[%s283 + $0x3e8] sm:$0xff]
        %v496 = vld [vmem:[%s283 + $0x3f0] sm:$0xff]
        %v497 = vld [vmem:[%s283 + $0x3f8] sm:$0xff]
        %v498 = vld [vmem:[%s283 + $0x400] sm:$0xff]
        %v499 = vld [vmem:[%s283 + $0x408] sm:$0xff]
        %v500 = vld [vmem:[%s283 + $0x410] sm:$0xff]
        %v501 = vld [vmem:[%s283 + $0x418] sm:$0xff]
        %v502 = vld [vmem:[%s283 + $0x420] sm:$0xff]
        %v503 = vld [vmem:[%s283 + $0x428] sm:$0xff]
        %v504 = vld [vmem:[%s283 + $0x430] sm:$0xff]
        %v505 = vld [vmem:[%s283 + $0x438] sm:$0xff]
        %v506 = vld [vmem:[%s283 + $0x440] sm:$0xff]
        %v507 = vld [vmem:[%s283 + $0x448] sm:$0xff]
        %v508 = vld [vmem:[%s283 + $0x450] sm:$0xff]
        %v509 = vld [vmem:[%s283 + $0x458] sm:$0xff]
        %v510 = vld [vmem:[%s283 + $0x460] sm:$0xff]
        %v511 = vld [vmem:[%s283 + $0x468] sm:$0xff]
        %v512 = vld [vmem:[%s283 + $0x470] sm:$0xff]
        %v513 = vld [vmem:[%s283 + $0x478] sm:$0xff]
        %v514 = vld [vmem:[%s283 + $0x480] sm:$0xff]
        %v515 = vld [vmem:[%s283 + $0x488] sm:$0xff]
        %v516 = vld [vmem:[%s283 + $0x490] sm:$0xff]
        %v517 = vld [vmem:[%s283 + $0x498] sm:$0xff]
        %v518 = vld [vmem:[%s283 + $0x4a0] sm:$0xff]
        %v519 = vld [vmem:[%s283 + $0x4a8] sm:$0xff]
        %v520 = vld [vmem:[%s283 + $0x4b0] sm:$0xff]
        %v521 = vld [vmem:[%s283 + $0x4b8] sm:$0xff]
        %v522 = vld [vmem:[%s283 + $0x4c0] sm:$0xff]
        %v523 = vld [vmem:[%s283 + $0x4c8] sm:$0xff]
        %v524 = vld [vmem:[%s283 + $0x4d0] sm:$0xff]
        %v525 = vld [vmem:[%s283 + $0x4d8] sm:$0xff]
        %v526 = vld [vmem:[%s283 + $0x4e0] sm:$0xff]
        %v527 = vld [vmem:[%s283 + $0x4e8] sm:$0xff]
        %v528 = vld [vmem:[%s283 + $0x4f0] sm:$0xff]
        %v529 = vld [vmem:[%s283 + $0x4f8] sm:$0xff]
        %v530 = vld [vmem:[%s283 + $0x500] sm:$0xff]
        %v531 = vld [vmem:[%s283 + $0x508] sm:$0xff]
        %v532 = vld [vmem:[%s283 + $0x510] sm:$0xff]
        %v533 = vld [vmem:[%s283 + $0x518] sm:$0xff]
        %v534 = vld [vmem:[%s283 + $0x520] sm:$0xff]
        %v535 = vld [vmem:[%s283 + $0x528] sm:$0xff]
        %v536 = vld [vmem:[%s283 + $0x530] sm:$0xff]
        %v537 = vld [vmem:[%s283 + $0x538] sm:$0xff]
        %v538 = vld [vmem:[%s283 + $0x540] sm:$0xff]
        %v539 = vld [vmem:[%s283 + $0x548] sm:$0xff]
        %v540 = vld [vmem:[%s283 + $0x550] sm:$0xff]
        %v541 = vld [vmem:[%s283 + $0x558] sm:$0xff]
        %v542 = vld [vmem:[%s283 + $0x560] sm:$0xff]
        %v543 = vld [vmem:[%s283 + $0x568] sm:$0xff]
        %v544 = vld [vmem:[%s283 + $0x570] sm:$0xff]
        %v545 = vld [vmem:[%s283 + $0x578] sm:$0xff]
        %v546 = vld [vmem:[%s283 + $0x580] sm:$0xff]
        %v547 = vld [vmem:[%s283 + $0x588] sm:$0xff]
        %v548 = vld [vmem:[%s283 + $0x590] sm:$0xff]
        %v549 = vld [vmem:[%s283 + $0x598] sm:$0xff]
        %v550 = vld [vmem:[%s283 + $0x5a0] sm:$0xff]
        %v551 = vld [vmem:[%s283 + $0x5a8] sm:$0xff]
        %v552 = vld [vmem:[%s283 + $0x5b0] sm:$0xff]
        %v553 = vld [vmem:[%s283 + $0x5b8] sm:$0xff]
        %v554 = vld [vmem:[%s283 + $0x5c0] sm:$0xff]
        %v555 = vld [vmem:[%s283 + $0x5c8] sm:$0xff]
        %v556 = vld [vmem:[%s283 + $0x5d0] sm:$0xff]
        %v557 = vld [vmem:[%s283 + $0x5d8] sm:$0xff]
        %v558 = vld [vmem:[%s283 + $0x5e0] sm:$0xff]
        %v559 = vld [vmem:[%s283 + $0x5e8] sm:$0xff]
        %v560 = vld [vmem:[%s283 + $0x5f0] sm:$0xff]
        %v561 = vld [vmem:[%s283 + $0x5f8] sm:$0xff]
        %v562 = vld [vmem:[%s283 + $0x600] sm:$0xff]
        %v563 = vld [vmem:[%s283 + $0x608] sm:$0xff]
        %v564 = vld [vmem:[%s283 + $0x610] sm:$0xff]
        %v565 = vld [vmem:[%s283 + $0x618] sm:$0xff]
        %v566 = vld [vmem:[%s283 + $0x620] sm:$0xff]
        %v567 = vld [vmem:[%s283 + $0x628] sm:$0xff]
        %v568 = vld [vmem:[%s283 + $0x630] sm:$0xff]
        %v569 = vld [vmem:[%s283 + $0x638] sm:$0xff]
        %v570 = vld [vmem:[%s283 + $0x640] sm:$0xff]
        %v571 = vld [vmem:[%s283 + $0x648] sm:$0xff]
        %v572 = vld [vmem:[%s283 + $0x650] sm:$0xff]
        %v573 = vld [vmem:[%s283 + $0x658] sm:$0xff]
        %v574 = vld [vmem:[%s283 + $0x660] sm:$0xff]
        %v575 = vld [vmem:[%s283 + $0x668] sm:$0xff]
        %v576 = vld [vmem:[%s283 + $0x670] sm:$0xff]
        %v577 = vld [vmem:[%s283 + $0x678] sm:$0xff]
        %v578 = vld [vmem:[%s283 + $0x680] sm:$0xff]
        %v579 = vld [vmem:[%s283 + $0x688] sm:$0xff]
        %v580 = vld [vmem:[%s283 + $0x690] sm:$0xff]
        %v581 = vld [vmem:[%s283 + $0x698] sm:$0xff]
        %v582 = vld [vmem:[%s283 + $0x6a0] sm:$0xff]
        %v583 = vld [vmem:[%s283 + $0x6a8] sm:$0xff]
        %v584 = vld [vmem:[%s283 + $0x6b0] sm:$0xff]
        %v585 = vld [vmem:[%s283 + $0x6b8] sm:$0xff]
        %v586 = vld [vmem:[%s283 + $0x6c0] sm:$0xff]
        %v587 = vld [vmem:[%s283 + $0x6c8] sm:$0xff]
        %v588 = vld [vmem:[%s283 + $0x6d0] sm:$0xff]
        %v589 = vld [vmem:[%s283 + $0x6d8] sm:$0xff]
        %v590 = vld [vmem:[%s283 + $0x6e0] sm:$0xff]
        %v591 = vld [vmem:[%s283 + $0x6e8] sm:$0xff]
        %v592 = vld [vmem:[%s283 + $0x6f0] sm:$0xff]
        %v593 = vld [vmem:[%s283 + $0x6f8] sm:$0xff]
        %v594 = vld [vmem:[%s283 + $0x700] sm:$0xff]
        %v595 = vld [vmem:[%s283 + $0x708] sm:$0xff]
        %v596 = vld [vmem:[%s283 + $0x710] sm:$0xff]
        %v597 = vld [vmem:[%s283 + $0x718] sm:$0xff]
        %v598 = vld [vmem:[%s283 + $0x720] sm:$0xff]
        %v599 = vld [vmem:[%s283 + $0x728] sm:$0xff]
        %v600 = vld [vmem:[%s283 + $0x730] sm:$0xff]
        %v601 = vld [vmem:[%s283 + $0x738] sm:$0xff]
        %v602 = vld [vmem:[%s283 + $0x740] sm:$0xff]
        %v603 = vld [vmem:[%s283 + $0x748] sm:$0xff]
        %v604 = vld [vmem:[%s283 + $0x750] sm:$0xff]
        %v605 = vld [vmem:[%s283 + $0x758] sm:$0xff]
        %v606 = vld [vmem:[%s283 + $0x760] sm:$0xff]
        %v607 = vld [vmem:[%s283 + $0x768] sm:$0xff]
        %v608 = vld [vmem:[%s283 + $0x770] sm:$0xff]
        %v609 = vld [vmem:[%s283 + $0x778] sm:$0xff]
        %v610 = vld [vmem:[%s283 + $0x780] sm:$0xff]
        %v611 = vld [vmem:[%s283 + $0x788] sm:$0xff]
        %v612 = vld [vmem:[%s283 + $0x790] sm:$0xff]
        %v613 = vld [vmem:[%s283 + $0x798] sm:$0xff]
        %v614 = vld [vmem:[%s283 + $0x7a0] sm:$0xff]
        %v615 = vld [vmem:[%s283 + $0x7a8] sm:$0xff]
        %v616 = vld [vmem:[%s283 + $0x7b0] sm:$0xff]
        %v617 = vld [vmem:[%s283 + $0x7b8] sm:$0xff]
        %v618 = vld [vmem:[%s283 + $0x7c0] sm:$0xff]
        %v619 = vld [vmem:[%s283 + $0x7c8] sm:$0xff]
        %v620 = vld [vmem:[%s283 + $0x7d0] sm:$0xff]
        %v621 = vld [vmem:[%s283 + $0x7d8] sm:$0xff]
        %v622 = vld [vmem:[%s283 + $0x7e0] sm:$0xff]
        %v623 = vld [vmem:[%s283 + $0x7e8] sm:$0xff]
        %v624 = vld [vmem:[%s283 + $0x7f0] sm:$0xff]
        %v625 = vld [vmem:[%s283 + $0x7f8] sm:$0xff]
        %v626 = vld [vmem:[%s283 + $0x800] sm:$0xff]
        %v627 = vld [vmem:[%s283 + $0x808] sm:$0xff]
        %v628 = vld [vmem:[%s283 + $0x810] sm:$0xff]
        %v629 = vld [vmem:[%s283 + $0x818] sm:$0xff]
        %v630 = vld [vmem:[%s283 + $0x820] sm:$0xff]
        %v631 = vld [vmem:[%s283 + $0x828] sm:$0xff]
        %v632 = vld [vmem:[%s283 + $0x830] sm:$0xff]
        %v633 = vld [vmem:[%s283 + $0x838] sm:$0xff]
        %v634 = vld [vmem:[%s283 + $0x840] sm:$0xff]
        %v635 = vld [vmem:[%s283 + $0x848] sm:$0xff]
        %v636 = vld [vmem:[%s283 + $0x850] sm:$0xff]
        %v637 = vld [vmem:[%s283 + $0x858] sm:$0xff]
        %v638 = vld [vmem:[%s283 + $0x860] sm:$0xff]
        %v639 = vld [vmem:[%s283 + $0x868] sm:$0xff]
        %v640 = vld [vmem:[%s283 + $0x870] sm:$0xff]
        %v641 = vld [vmem:[%s283 + $0x878] sm:$0xff]
        %v642 = vld [vmem:[%s283 + $0x880] sm:$0xff]
        %v643 = vld [vmem:[%s283 + $0x888] sm:$0xff]
        %v644 = vld [vmem:[%s283 + $0x890] sm:$0xff]
        %v645 = vld [vmem:[%s283 + $0x898] sm:$0xff]
        %v646 = vld [vmem:[%s283 + $0x8a0] sm:$0xff]
        %v647 = vld [vmem:[%s283 + $0x8a8] sm:$0xff]
        %v648 = vld [vmem:[%s283 + $0x8b0] sm:$0xff]
        %v649 = vld [vmem:[%s283 + $0x8b8] sm:$0xff]
        %v650 = vld [vmem:[%s283 + $0x8c0] sm:$0xff]
        %v651 = vld [vmem:[%s283 + $0x8c8] sm:$0xff]
        %v652 = vld [vmem:[%s283 + $0x8d0] sm:$0xff]
        %v653 = vld [vmem:[%s283 + $0x8d8] sm:$0xff]
        %v654 = vld [vmem:[%s283 + $0x8e0] sm:$0xff]
        %v655 = vld [vmem:[%s283 + $0x8e8] sm:$0xff]
        %v656 = vld [vmem:[%s283 + $0x8f0] sm:$0xff]
        %v657 = vld [vmem:[%s283 + $0x8f8] sm:$0xff]
        %v658 = vld [vmem:[%s283 + $0x900] sm:$0xff]
        %v659 = vld [vmem:[%s283 + $0x908] sm:$0xff]
        %v660 = vld [vmem:[%s283 + $0x910] sm:$0xff]
        %v661 = vld [vmem:[%s283 + $0x918] sm:$0xff]
        %v662 = vld [vmem:[%s283 + $0x920] sm:$0xff]
        %v663 = vld [vmem:[%s283 + $0x928] sm:$0xff]
        %v664 = vld [vmem:[%s283 + $0x930] sm:$0xff]
        %v665 = vld [vmem:[%s283 + $0x938] sm:$0xff]
        %v666 = vld [vmem:[%s283 + $0x940] sm:$0xff]
        %v667 = vld [vmem:[%s283 + $0x948] sm:$0xff]
        %v668 = vld [vmem:[%s283 + $0x950] sm:$0xff]
        %v669 = vld [vmem:[%s283 + $0x958] sm:$0xff]
        %v670 = vld [vmem:[%s283 + $0x960] sm:$0xff]
        %v671 = vld [vmem:[%s283 + $0x968] sm:$0xff]
        %v672 = vld [vmem:[%s283 + $0x970] sm:$0xff]
        %v673 = vld [vmem:[%s283 + $0x978] sm:$0xff]
        %v674 = vld [vmem:[%s283 + $0x980] sm:$0xff]
        %v675 = vld [vmem:[%s283 + $0x988] sm:$0xff]
        %v676 = vld [vmem:[%s283 + $0x990] sm:$0xff]
        %v677 = vld [vmem:[%s283 + $0x998] sm:$0xff]
        %v678 = vld [vmem:[%s283 + $0x9a0] sm:$0xff]
        %v679 = vld [vmem:[%s283 + $0x9a8] sm:$0xff]
        %v680 = vld [vmem:[%s283 + $0x9b0] sm:$0xff]
        %v681 = vld [vmem:[%s283 + $0x9b8] sm:$0xff]
        %v682 = vld [vmem:[%s283 + $0x9c0] sm:$0xff]
        %v683 = vld [vmem:[%s283 + $0x9c8] sm:$0xff]
        %v684 = vld [vmem:[%s283 + $0x9d0] sm:$0xff]
        %v685 = vld [vmem:[%s283 + $0x9d8] sm:$0xff]
        %v686 = vld [vmem:[%s283 + $0x9e0] sm:$0xff]
        %v687 = vld [vmem:[%s283 + $0x9e8] sm:$0xff]
        %v688 = vld [vmem:[%s283 + $0x9f0] sm:$0xff]
        %v689 = vld [vmem:[%s283 + $0x9f8] sm:$0xff]
        %v690 = vld [vmem:[%s283 + $0xa00] sm:$0xff]
        %v691 = vld [vmem:[%s283 + $0xa08] sm:$0xff]
        %v692 = vld [vmem:[%s283 + $0xa10] sm:$0xff]
        %v693 = vld [vmem:[%s283 + $0xa18] sm:$0xff]
        %v694 = vld [vmem:[%s283 + $0xa20] sm:$0xff]
        %v695 = vld [vmem:[%s283 + $0xa28] sm:$0xff]
        %v696 = vld [vmem:[%s283 + $0xa30] sm:$0xff]
        %v697 = vld [vmem:[%s283 + $0xa38] sm:$0xff]
        %v698 = vld [vmem:[%s283 + $0xa40] sm:$0xff]
        %v699 = vld [vmem:[%s283 + $0xa48] sm:$0xff]
        %v700 = vld [vmem:[%s283 + $0xa50] sm:$0xff]
        %v701 = vld [vmem:[%s283 + $0xa58] sm:$0xff]
        %v702 = vld [vmem:[%s283 + $0xa60] sm:$0xff]
        %v703 = vld [vmem:[%s283 + $0xa68] sm:$0xff]
        %v704 = vld [vmem:[%s283 + $0xa70] sm:$0xff]
        %v705 = vld [vmem:[%s283 + $0xa78] sm:$0xff]
        %v706 = vld [vmem:[%s283 + $0xa80] sm:$0xff]
        %v707 = vld [vmem:[%s283 + $0xa88] sm:$0xff]
        %v708 = vld [vmem:[%s283 + $0xa90] sm:$0xff]
        %v709 = vld [vmem:[%s283 + $0xa98] sm:$0xff]
        %v710 = vld [vmem:[%s283 + $0xaa0] sm:$0xff]
        %v711 = vld [vmem:[%s283 + $0xaa8] sm:$0xff]
        %v712 = vld [vmem:[%s283 + $0xab0] sm:$0xff]
        %v713 = vld [vmem:[%s283 + $0xab8] sm:$0xff]
        %v714 = vld [vmem:[%s283 + $0xac0] sm:$0xff]
        %v715 = vld [vmem:[%s283 + $0xac8] sm:$0xff]
        %v716 = vld [vmem:[%s283 + $0xad0] sm:$0xff]
        %v717 = vld [vmem:[%s283 + $0xad8] sm:$0xff]
        %v718 = vld [vmem:[%s283 + $0xae0] sm:$0xff]
        %v719 = vld [vmem:[%s283 + $0xae8] sm:$0xff]
        %v720 = vld [vmem:[%s283 + $0xaf0] sm:$0xff]
        %v721 = vld [vmem:[%s283 + $0xaf8] sm:$0xff]
        %v722 = vld [vmem:[%s283 + $0xb00] sm:$0xff]
        %v723 = vld [vmem:[%s283 + $0xb08] sm:$0xff]
        %v724 = vld [vmem:[%s283 + $0xb10] sm:$0xff]
        %v725 = vld [vmem:[%s283 + $0xb18] sm:$0xff]
        %v726 = vld [vmem:[%s283 + $0xb20] sm:$0xff]
        %v727 = vld [vmem:[%s283 + $0xb28] sm:$0xff]
        %v728 = vld [vmem:[%s283 + $0xb30] sm:$0xff]
        %v729 = vld [vmem:[%s283 + $0xb38] sm:$0xff]
        %v730 = vld [vmem:[%s283 + $0xb40] sm:$0xff]
        %v731 = vld [vmem:[%s283 + $0xb48] sm:$0xff]
        %v732 = vld [vmem:[%s283 + $0xb50] sm:$0xff]
        %v733 = vld [vmem:[%s283 + $0xb58] sm:$0xff]
        %v734 = vld [vmem:[%s283 + $0xb60] sm:$0xff]
        %v735 = vld [vmem:[%s283 + $0xb68] sm:$0xff]
        %v736 = vld [vmem:[%s283 + $0xb70] sm:$0xff]
        %v737 = vld [vmem:[%s283 + $0xb78] sm:$0xff]
        %v738 = vld [vmem:[%s283 + $0xb80] sm:$0xff]
        %v739 = vld [vmem:[%s283 + $0xb88] sm:$0xff]
        %v740 = vld [vmem:[%s283 + $0xb90] sm:$0xff]
        %v741 = vld [vmem:[%s283 + $0xb98] sm:$0xff]
        %v742 = vld [vmem:[%s283 + $0xba0] sm:$0xff]
        %v743 = vld [vmem:[%s283 + $0xba8] sm:$0xff]
        %v744 = vld [vmem:[%s283 + $0xbb0] sm:$0xff]
        %v745 = vld [vmem:[%s283 + $0xbb8] sm:$0xff]
        %v746 = vld [vmem:[%s283 + $0xbc0] sm:$0xff]
        %v747 = vld [vmem:[%s283 + $0xbc8] sm:$0xff]
        %v748 = vld [vmem:[%s283 + $0xbd0] sm:$0xff]
        %v749 = vld [vmem:[%s283 + $0xbd8] sm:$0xff]
        %v750 = vld [vmem:[%s283 + $0xbe0] sm:$0xff]
        %v751 = vld [vmem:[%s283 + $0xbe8] sm:$0xff]
        %v752 = vld [vmem:[%s283 + $0xbf0] sm:$0xff]
        %v753 = vld [vmem:[%s283 + $0xbf8] sm:$0xff]
        %v754 = vld [vmem:[%s283 + $0xc00] sm:$0xff]
        %v755 = vld [vmem:[%s283 + $0xc08] sm:$0xff]
        %v756 = vld [vmem:[%s283 + $0xc10] sm:$0xff]
        %v757 = vld [vmem:[%s283 + $0xc18] sm:$0xff]
        %v758 = vld [vmem:[%s283 + $0xc20] sm:$0xff]
        %v759 = vld [vmem:[%s283 + $0xc28] sm:$0xff]
        %v760 = vld [vmem:[%s283 + $0xc30] sm:$0xff]
        %v761 = vld [vmem:[%s283 + $0xc38] sm:$0xff]
        %v762 = vld [vmem:[%s283 + $0xc40] sm:$0xff]
        %v763 = vld [vmem:[%s283 + $0xc48] sm:$0xff]
        %v764 = vld [vmem:[%s283 + $0xc50] sm:$0xff]
        %v765 = vld [vmem:[%s283 + $0xc58] sm:$0xff]
        %v766 = vld [vmem:[%s283 + $0xc60] sm:$0xff]
        %v767 = vld [vmem:[%s283 + $0xc68] sm:$0xff]
        %v768 = vld [vmem:[%s283 + $0xc70] sm:$0xff]
        %v769 = vld [vmem:[%s283 + $0xc78] sm:$0xff]
        %v770 = vld [vmem:[%s283 + $0xc80] sm:$0xff]
        %v771 = vld [vmem:[%s283 + $0xc88] sm:$0xff]
        %v772 = vld [vmem:[%s283 + $0xc90] sm:$0xff]
        %v773 = vld [vmem:[%s283 + $0xc98] sm:$0xff]
        %v774 = vld [vmem:[%s283 + $0xca0] sm:$0xff]
        %v775 = vld [vmem:[%s283 + $0xca8] sm:$0xff]
        %v776 = vld [vmem:[%s283 + $0xcb0] sm:$0xff]
        %v777 = vld [vmem:[%s283 + $0xcb8] sm:$0xff]
        %v778 = vld [vmem:[%s283 + $0xcc0] sm:$0xff]
        %v779 = vld [vmem:[%s283 + $0xcc8] sm:$0xff]
        %v780 = vld [vmem:[%s283 + $0xcd0] sm:$0xff]
        %v781 = vld [vmem:[%s283 + $0xcd8] sm:$0xff]
        %v782 = vld [vmem:[%s283 + $0xce0] sm:$0xff]
        %v783 = vld [vmem:[%s283 + $0xce8] sm:$0xff]
        %v784 = vld [vmem:[%s283 + $0xcf0] sm:$0xff]
        %v785 = vld [vmem:[%s283 + $0xcf8] sm:$0xff]
        %v786 = vld [vmem:[%s283 + $0xd00] sm:$0xff]
        %v787 = vld [vmem:[%s283 + $0xd08] sm:$0xff]
        %v788 = vld [vmem:[%s283 + $0xd10] sm:$0xff]
        %v789 = vld [vmem:[%s283 + $0xd18] sm:$0xff]
        %v790 = vld [vmem:[%s283 + $0xd20] sm:$0xff]
        %v791 = vld [vmem:[%s283 + $0xd28] sm:$0xff]
        %v792 = vld [vmem:[%s283 + $0xd30] sm:$0xff]
        %v793 = vld [vmem:[%s283 + $0xd38] sm:$0xff]
        %v794 = vld [vmem:[%s283 + $0xd40] sm:$0xff]
        %v795 = vld [vmem:[%s283 + $0xd48] sm:$0xff]
        %v796 = vld [vmem:[%s283 + $0xd50] sm:$0xff]
        %v797 = vld [vmem:[%s283 + $0xd58] sm:$0xff]
        %v798 = vld [vmem:[%s283 + $0xd60] sm:$0xff]
        %v799 = vld [vmem:[%s283 + $0xd68] sm:$0xff]
        %v800 = vld [vmem:[%s283 + $0xd70] sm:$0xff]
        %v801 = vld [vmem:[%s283 + $0xd78] sm:$0xff]
        %v802 = vld [vmem:[%s283 + $0xd80] sm:$0xff]
        %v803 = vld [vmem:[%s283 + $0xd88] sm:$0xff]
        %v804 = vld [vmem:[%s283 + $0xd90] sm:$0xff]
        %v805 = vld [vmem:[%s283 + $0xd98] sm:$0xff]
        %v806 = vld [vmem:[%s283 + $0xda0] sm:$0xff]
        %v807 = vld [vmem:[%s283 + $0xda8] sm:$0xff]
        %v808 = vld [vmem:[%s283 + $0xdb0] sm:$0xff]
        %v809 = vld [vmem:[%s283 + $0xdb8] sm:$0xff]
        %v810 = vld [vmem:[%s283 + $0xdc0] sm:$0xff]
        %v811 = vld [vmem:[%s283 + $0xdc8] sm:$0xff]
        %v812 = vld [vmem:[%s283 + $0xdd0] sm:$0xff]
        %v813 = vld [vmem:[%s283 + $0xdd8] sm:$0xff]
        %v814 = vld [vmem:[%s283 + $0xde0] sm:$0xff]
        %v815 = vld [vmem:[%s283 + $0xde8] sm:$0xff]
        %v816 = vld [vmem:[%s283 + $0xdf0] sm:$0xff]
        %v817 = vld [vmem:[%s283 + $0xdf8] sm:$0xff]
        %v818 = vld [vmem:[%s283 + $0xe00] sm:$0xff]
        %v819 = vld [vmem:[%s283 + $0xe08] sm:$0xff]
        %v820 = vld [vmem:[%s283 + $0xe10] sm:$0xff]
        %v821 = vld [vmem:[%s283 + $0xe18] sm:$0xff]
        %v822 = vld [vmem:[%s283 + $0xe20] sm:$0xff]
        %v823 = vld [vmem:[%s283 + $0xe28] sm:$0xff]
        %v824 = vld [vmem:[%s283 + $0xe30] sm:$0xff]
        %v825 = vld [vmem:[%s283 + $0xe38] sm:$0xff]
        %v826 = vld [vmem:[%s283 + $0xe40] sm:$0xff]
        %v827 = vld [vmem:[%s283 + $0xe48] sm:$0xff]
        %v828 = vld [vmem:[%s283 + $0xe50] sm:$0xff]
        %v829 = vld [vmem:[%s283 + $0xe58] sm:$0xff]
        %v830 = vld [vmem:[%s283 + $0xe60] sm:$0xff]
        %v831 = vld [vmem:[%s283 + $0xe68] sm:$0xff]
        %v832 = vld [vmem:[%s283 + $0xe70] sm:$0xff]
        %v833 = vld [vmem:[%s283 + $0xe78] sm:$0xff]
        %v834 = vld [vmem:[%s283 + $0xe80] sm:$0xff]
        %v835 = vld [vmem:[%s283 + $0xe88] sm:$0xff]
        %v836 = vld [vmem:[%s283 + $0xe90] sm:$0xff]
        %v837 = vld [vmem:[%s283 + $0xe98] sm:$0xff]
        %v838 = vld [vmem:[%s283 + $0xea0] sm:$0xff]
        %v839 = vld [vmem:[%s283 + $0xea8] sm:$0xff]
        %v840 = vld [vmem:[%s283 + $0xeb0] sm:$0xff]
        %v841 = vld [vmem:[%s283 + $0xeb8] sm:$0xff]
        %v842 = vld [vmem:[%s283 + $0xec0] sm:$0xff]
        %v843 = vld [vmem:[%s283 + $0xec8] sm:$0xff]
        %v844 = vld [vmem:[%s283 + $0xed0] sm:$0xff]
        %v845 = vld [vmem:[%s283 + $0xed8] sm:$0xff]
        %v846 = vld [vmem:[%s283 + $0xee0] sm:$0xff]
        %v847 = vld [vmem:[%s283 + $0xee8] sm:$0xff]
        %v848 = vld [vmem:[%s283 + $0xef0] sm:$0xff]
        %v849 = vld [vmem:[%s283 + $0xef8] sm:$0xff]
        %v850 = vld [vmem:[%s283 + $0xf00] sm:$0xff]
        %v851 = vld [vmem:[%s283 + $0xf08] sm:$0xff]
        %v852 = vld [vmem:[%s283 + $0xf10] sm:$0xff]
        %v853 = vld [vmem:[%s283 + $0xf18] sm:$0xff]
        %v854 = vld [vmem:[%s283 + $0xf20] sm:$0xff]
        %v855 = vld [vmem:[%s283 + $0xf28] sm:$0xff]
        %v856 = vld [vmem:[%s283 + $0xf30] sm:$0xff]
        %v857 = vld [vmem:[%s283 + $0xf38] sm:$0xff]
        %v858 = vld [vmem:[%s283 + $0xf40] sm:$0xff]
        %v859 = vld [vmem:[%s283 + $0xf48] sm:$0xff]
        %v860 = vld [vmem:[%s283 + $0xf50] sm:$0xff]
        %v861 = vld [vmem:[%s283 + $0xf58] sm:$0xff]
        %v862 = vld [vmem:[%s283 + $0xf60] sm:$0xff]
        %v863 = vld [vmem:[%s283 + $0xf68] sm:$0xff]
        %v864 = vld [vmem:[%s283 + $0xf70] sm:$0xff]
        %v865 = vld [vmem:[%s283 + $0xf78] sm:$0xff]
        %v866 = vld [vmem:[%s283 + $0xf80] sm:$0xff]
        %v867 = vld [vmem:[%s283 + $0xf88] sm:$0xff]
        %v868 = vld [vmem:[%s283 + $0xf90] sm:$0xff]
        %v869 = vld [vmem:[%s283 + $0xf98] sm:$0xff]
        %v870 = vld [vmem:[%s283 + $0xfa0] sm:$0xff]
        %v871 = vld [vmem:[%s283 + $0xfa8] sm:$0xff]
        %v872 = vld [vmem:[%s283 + $0xfb0] sm:$0xff]
        %v873 = vld [vmem:[%s283 + $0xfb8] sm:$0xff]
        %v874 = vld [vmem:[%s283 + $0xfc0] sm:$0xff]
        %v875 = vld [vmem:[%s283 + $0xfc8] sm:$0xff]
        %v876 = vld [vmem:[%s283 + $0xfd0] sm:$0xff]
        %v877 = vld [vmem:[%s283 + $0xfd8] sm:$0xff]
        %v878 = vld [vmem:[%s283 + $0xfe0] sm:$0xff]
        %v879 = vld [vmem:[%s283 + $0xfe8] sm:$0xff]
        %v880 = vld [vmem:[%s283 + $0xff0] sm:$0xff]
        %v881 = vld [vmem:[%s283 + $0xff8] sm:$0xff]
        %v882 = vld [vmem:[%s293] sm:$0x3]
        %v884 = vperm.slane %v882, 0
        %v885 = vperm.slane %v882, 1
        %889 = vst [vmem:[#allocation1] ss:$9 sm:$0xff] %v366
        %v890 = vld [vmem:[#allocation1] sm:$0xff]
        %v891 = vld [vmem:[#allocation1 + $0x9] sm:$0xff]
        %v892 = vld [vmem:[#allocation1 + $0x12] sm:$0xff]
        %v893 = vld [vmem:[#allocation1 + $0x1b] sm:$0xff]
        %v894 = vld [vmem:[#allocation1 + $0x24] sm:$0xff]
        %v895 = vld [vmem:[#allocation1 + $0x2d] sm:$0xff]
        %v896 = vld [vmem:[#allocation1 + $0x36] sm:$0xff]
        %v897 = vld [vmem:[#allocation1 + $0x3f] sm:$0xff]
        %899 = vst [vmem:[#allocation1] ss:$9 sm:$0xff] %v367
        %v900 = vld [vmem:[#allocation1] sm:$0xff]
        %v901 = vld [vmem:[#allocation1 + $0x9] sm:$0xff]
        %v902 = vld [vmem:[#allocation1 + $0x12] sm:$0xff]
        %v903 = vld [vmem:[#allocation1 + $0x1b] sm:$0xff]
        %v904 = vld [vmem:[#allocation1 + $0x24] sm:$0xff]
        %v905 = vld [vmem:[#allocation1 + $0x2d] sm:$0xff]
        %v906 = vld [vmem:[#allocation1 + $0x36] sm:$0xff]
        %v907 = vld [vmem:[#allocation1 + $0x3f] sm:$0xff]
        %909 = vst [vmem:[#allocation1] ss:$9 sm:$0xff] %v368
        %v910 = vld [vmem:[#allocation1] sm:$0xff]
        %v911 = vld [vmem:[#allocation1 + $0x9] sm:$0xff]
        %v912 = vld [vmem:[#allocation1 + $0x12] sm:$0xff]
        %v913 = vld [vmem:[#allocation1 + $0x1b] sm:$0xff]
        %v914 = vld [vmem:[#allocation1 + $0x24] sm:$0xff]
        %v915 = vld [vmem:[#allocation1 + $0x2d] sm:$0xff]
        %v916 = vld [vmem:[#allocation1 + $0x36] sm:$0xff]
        %v917 = vld [vmem:[#allocation1 + $0x3f] sm:$0xff]
        %919 = vst [vmem:[#allocation1] ss:$9 sm:$0xff] %v369
        %v920 = vld [vmem:[#allocation1] sm:$0xff]
        %v921 = vld [vmem:[#allocation1 + $0x9] sm:$0xff]
        %v922 = vld [vmem:[#allocation1 + $0x12] sm:$0xff]
        %v923 = vld [vmem:[#allocation1 + $0x1b] sm:$0xff]
        %v924 = vld [vmem:[#allocation1 + $0x24] sm:$0xff]
        %v925 = vld [vmem:[#allocation1 + $0x2d] sm:$0xff]
        %v926 = vld [vmem:[#allocation1 + $0x36] sm:$0xff]
        %v927 = vld [vmem:[#allocation1 + $0x3f] sm:$0xff]
        %v1472 = vunpack.c.l.b16 %v370
        %v1473 = vunpack.c.h.b16 %v370
        %v1474 = vunpack.c.l.b16 %v371
        %v1475 = vunpack.c.h.b16 %v371
        %v1476 = vunpack.c.l.b16 %v372
        %v1477 = vunpack.c.h.b16 %v372
        %v1478 = vunpack.c.l.b16 %v373
        %v1479 = vunpack.c.h.b16 %v373
        %v1480 = vunpack.c.l.b16 %v374
        %v1481 = vunpack.c.h.b16 %v374
        %v1482 = vunpack.c.l.b16 %v375
        %v1483 = vunpack.c.h.b16 %v375
        %v1484 = vunpack.c.l.b16 %v376
        %v1485 = vunpack.c.h.b16 %v376
        %v1486 = vunpack.c.l.b16 %v377
        %v1487 = vunpack.c.h.b16 %v377
        %v1488 = vunpack.c.l.b16 %v378
        %v1489 = vunpack.c.h.b16 %v378
        %v1490 = vunpack.c.l.b16 %v379
        %v1491 = vunpack.c.h.b16 %v379
        %v1492 = vunpack.c.l.b16 %v380
        %v1493 = vunpack.c.h.b16 %v380
        %v1494 = vunpack.c.l.b16 %v381
        %v1495 = vunpack.c.h.b16 %v381
        %v1496 = vunpack.c.l.b16 %v382
        %v1497 = vunpack.c.h.b16 %v382
        %v1498 = vunpack.c.l.b16 %v383
        %v1499 = vunpack.c.h.b16 %v383
        %v1500 = vunpack.c.l.b16 %v384
        %v1501 = vunpack.c.h.b16 %v384
        %v1502 = vunpack.c.l.b16 %v385
        %v1503 = vunpack.c.h.b16 %v385
        %v1504 = vunpack.c.l.b16 %v386
        %v1505 = vunpack.c.h.b16 %v386
        %v1506 = vunpack.c.l.b16 %v387
        %v1507 = vunpack.c.h.b16 %v387
        %v1508 = vunpack.c.l.b16 %v388
        %v1509 = vunpack.c.h.b16 %v388
        %v1510 = vunpack.c.l.b16 %v389
        %v1511 = vunpack.c.h.b16 %v389
        %v1512 = vunpack.c.l.b16 %v390
        %v1513 = vunpack.c.h.b16 %v390
        %v1514 = vunpack.c.l.b16 %v391
        %v1515 = vunpack.c.h.b16 %v391
        %v1516 = vunpack.c.l.b16 %v392
        %v1517 = vunpack.c.h.b16 %v392
        %v1518 = vunpack.c.l.b16 %v393
        %v1519 = vunpack.c.h.b16 %v393
        %v1520 = vunpack.c.l.b16 %v394
        %v1521 = vunpack.c.h.b16 %v394
        %v1522 = vunpack.c.l.b16 %v395
        %v1523 = vunpack.c.h.b16 %v395
        %v1524 = vunpack.c.l.b16 %v396
        %v1525 = vunpack.c.h.b16 %v396
        %v1526 = vunpack.c.l.b16 %v397
        %v1527 = vunpack.c.h.b16 %v397
        %v1528 = vunpack.c.l.b16 %v398
        %v1529 = vunpack.c.h.b16 %v398
        %v1530 = vunpack.c.l.b16 %v399
        %v1531 = vunpack.c.h.b16 %v399
        %v1532 = vunpack.c.l.b16 %v400
        %v1533 = vunpack.c.h.b16 %v400
        %v1534 = vunpack.c.l.b16 %v401
        %v1535 = vunpack.c.h.b16 %v401
        %v1536 = vunpack.c.l.b16 %v402
        %v1537 = vunpack.c.h.b16 %v402
        %v1538 = vunpack.c.l.b16 %v403
        %v1539 = vunpack.c.h.b16 %v403
        %v1540 = vunpack.c.l.b16 %v404
        %v1541 = vunpack.c.h.b16 %v404
        %v1542 = vunpack.c.l.b16 %v405
        %v1543 = vunpack.c.h.b16 %v405
        %v1544 = vunpack.c.l.b16 %v406
        %v1545 = vunpack.c.h.b16 %v406
        %v1546 = vunpack.c.l.b16 %v407
        %v1547 = vunpack.c.h.b16 %v407
        %v1548 = vunpack.c.l.b16 %v408
        %v1549 = vunpack.c.h.b16 %v408
        %v1550 = vunpack.c.l.b16 %v409
        %v1551 = vunpack.c.h.b16 %v409
        %v1552 = vunpack.c.l.b16 %v410
        %v1553 = vunpack.c.h.b16 %v410
        %v1554 = vunpack.c.l.b16 %v411
        %v1555 = vunpack.c.h.b16 %v411
        %v1556 = vunpack.c.l.b16 %v412
        %v1557 = vunpack.c.h.b16 %v412
        %v1558 = vunpack.c.l.b16 %v413
        %v1559 = vunpack.c.h.b16 %v413
        %v1560 = vunpack.c.l.b16 %v414
        %v1561 = vunpack.c.h.b16 %v414
        %v1562 = vunpack.c.l.b16 %v415
        %v1563 = vunpack.c.h.b16 %v415
        %v1564 = vunpack.c.l.b16 %v416
        %v1565 = vunpack.c.h.b16 %v416
        %v1566 = vunpack.c.l.b16 %v417
        %v1567 = vunpack.c.h.b16 %v417
        %v1568 = vunpack.c.l.b16 %v418
        %v1569 = vunpack.c.h.b16 %v418
        %v1570 = vunpack.c.l.b16 %v419
        %v1571 = vunpack.c.h.b16 %v419
        %v1572 = vunpack.c.l.b16 %v420
        %v1573 = vunpack.c.h.b16 %v420
        %v1574 = vunpack.c.l.b16 %v421
        %v1575 = vunpack.c.h.b16 %v421
        %v1576 = vunpack.c.l.b16 %v422
        %v1577 = vunpack.c.h.b16 %v422
        %v1578 = vunpack.c.l.b16 %v423
        %v1579 = vunpack.c.h.b16 %v423
        %v1580 = vunpack.c.l.b16 %v424
        %v1581 = vunpack.c.h.b16 %v424
        %v1582 = vunpack.c.l.b16 %v425
        %v1583 = vunpack.c.h.b16 %v425
        %v1584 = vunpack.c.l.b16 %v426
        %v1585 = vunpack.c.h.b16 %v426
        %v1586 = vunpack.c.l.b16 %v427
        %v1587 = vunpack.c.h.b16 %v427
        %v1588 = vunpack.c.l.b16 %v428
        %v1589 = vunpack.c.h.b16 %v428
        %v1590 = vunpack.c.l.b16 %v429
        %v1591 = vunpack.c.h.b16 %v429
        %v1592 = vunpack.c.l.b16 %v430
        %v1593 = vunpack.c.h.b16 %v430
        %v1594 = vunpack.c.l.b16 %v431
        %v1595 = vunpack.c.h.b16 %v431
        %v1596 = vunpack.c.l.b16 %v432
        %v1597 = vunpack.c.h.b16 %v432
        %v1598 = vunpack.c.l.b16 %v433
        %v1599 = vunpack.c.h.b16 %v433
        %v1600 = vunpack.c.l.b16 %v434
        %v1601 = vunpack.c.h.b16 %v434
        %v1602 = vunpack.c.l.b16 %v435
        %v1603 = vunpack.c.h.b16 %v435
        %v1604 = vunpack.c.l.b16 %v436
        %v1605 = vunpack.c.h.b16 %v436
        %v1606 = vunpack.c.l.b16 %v437
        %v1607 = vunpack.c.h.b16 %v437
        %v1608 = vunpack.c.l.b16 %v438
        %v1609 = vunpack.c.h.b16 %v438
        %v1610 = vunpack.c.l.b16 %v439
        %v1611 = vunpack.c.h.b16 %v439
        %v1612 = vunpack.c.l.b16 %v440
        %v1613 = vunpack.c.h.b16 %v440
        %v1614 = vunpack.c.l.b16 %v441
        %v1615 = vunpack.c.h.b16 %v441
        %v1616 = vunpack.c.l.b16 %v442
        %v1617 = vunpack.c.h.b16 %v442
        %v1618 = vunpack.c.l.b16 %v443
        %v1619 = vunpack.c.h.b16 %v443
        %v1620 = vunpack.c.l.b16 %v444
        %v1621 = vunpack.c.h.b16 %v444
        %v1622 = vunpack.c.l.b16 %v445
        %v1623 = vunpack.c.h.b16 %v445
        %v1624 = vunpack.c.l.b16 %v446
        %v1625 = vunpack.c.h.b16 %v446
        %v1626 = vunpack.c.l.b16 %v447
        %v1627 = vunpack.c.h.b16 %v447
        %v1628 = vunpack.c.l.b16 %v448
        %v1629 = vunpack.c.h.b16 %v448
        %v1630 = vunpack.c.l.b16 %v449
        %v1631 = vunpack.c.h.b16 %v449
        %v1632 = vunpack.c.l.b16 %v450
        %v1633 = vunpack.c.h.b16 %v450
        %v1634 = vunpack.c.l.b16 %v451
        %v1635 = vunpack.c.h.b16 %v451
        %v1636 = vunpack.c.l.b16 %v452
        %v1637 = vunpack.c.h.b16 %v452
        %v1638 = vunpack.c.l.b16 %v453
        %v1639 = vunpack.c.h.b16 %v453
        %v1640 = vunpack.c.l.b16 %v454
        %v1641 = vunpack.c.h.b16 %v454
        %v1642 = vunpack.c.l.b16 %v455
        %v1643 = vunpack.c.h.b16 %v455
        %v1644 = vunpack.c.l.b16 %v456
        %v1645 = vunpack.c.h.b16 %v456
        %v1646 = vunpack.c.l.b16 %v457
        %v1647 = vunpack.c.h.b16 %v457
        %v1648 = vunpack.c.l.b16 %v458
        %v1649 = vunpack.c.h.b16 %v458
        %v1650 = vunpack.c.l.b16 %v459
        %v1651 = vunpack.c.h.b16 %v459
        %v1652 = vunpack.c.l.b16 %v460
        %v1653 = vunpack.c.h.b16 %v460
        %v1654 = vunpack.c.l.b16 %v461
        %v1655 = vunpack.c.h.b16 %v461
        %v1656 = vunpack.c.l.b16 %v462
        %v1657 = vunpack.c.h.b16 %v462
        %v1658 = vunpack.c.l.b16 %v463
        %v1659 = vunpack.c.h.b16 %v463
        %v1660 = vunpack.c.l.b16 %v464
        %v1661 = vunpack.c.h.b16 %v464
        %v1662 = vunpack.c.l.b16 %v465
        %v1663 = vunpack.c.h.b16 %v465
        %v1664 = vunpack.c.l.b16 %v466
        %v1665 = vunpack.c.h.b16 %v466
        %v1666 = vunpack.c.l.b16 %v467
        %v1667 = vunpack.c.h.b16 %v467
        %v1668 = vunpack.c.l.b16 %v468
        %v1669 = vunpack.c.h.b16 %v468
        %v1670 = vunpack.c.l.b16 %v469
        %v1671 = vunpack.c.h.b16 %v469
        %v1672 = vunpack.c.l.b16 %v470
        %v1673 = vunpack.c.h.b16 %v470
        %v1674 = vunpack.c.l.b16 %v471
        %v1675 = vunpack.c.h.b16 %v471
        %v1676 = vunpack.c.l.b16 %v472
        %v1677 = vunpack.c.h.b16 %v472
        %v1678 = vunpack.c.l.b16 %v473
        %v1679 = vunpack.c.h.b16 %v473
        %v1680 = vunpack.c.l.b16 %v474
        %v1681 = vunpack.c.h.b16 %v474
        %v1682 = vunpack.c.l.b16 %v475
        %v1683 = vunpack.c.h.b16 %v475
        %v1684 = vunpack.c.l.b16 %v476
        %v1685 = vunpack.c.h.b16 %v476
        %v1686 = vunpack.c.l.b16 %v477
        %v1687 = vunpack.c.h.b16 %v477
        %v1688 = vunpack.c.l.b16 %v478
        %v1689 = vunpack.c.h.b16 %v478
        %v1690 = vunpack.c.l.b16 %v479
        %v1691 = vunpack.c.h.b16 %v479
        %v1692 = vunpack.c.l.b16 %v480
        %v1693 = vunpack.c.h.b16 %v480
        %v1694 = vunpack.c.l.b16 %v481
        %v1695 = vunpack.c.h.b16 %v481
        %v1696 = vunpack.c.l.b16 %v482
        %v1697 = vunpack.c.h.b16 %v482
        %v1698 = vunpack.c.l.b16 %v483
        %v1699 = vunpack.c.h.b16 %v483
        %v1700 = vunpack.c.l.b16 %v484
        %v1701 = vunpack.c.h.b16 %v484
        %v1702 = vunpack.c.l.b16 %v485
        %v1703 = vunpack.c.h.b16 %v485
        %v1704 = vunpack.c.l.b16 %v486
        %v1705 = vunpack.c.h.b16 %v486
        %v1706 = vunpack.c.l.b16 %v487
        %v1707 = vunpack.c.h.b16 %v487
        %v1708 = vunpack.c.l.b16 %v488
        %v1709 = vunpack.c.h.b16 %v488
        %v1710 = vunpack.c.l.b16 %v489
        %v1711 = vunpack.c.h.b16 %v489
        %v1712 = vunpack.c.l.b16 %v490
        %v1713 = vunpack.c.h.b16 %v490
        %v1714 = vunpack.c.l.b16 %v491
        %v1715 = vunpack.c.h.b16 %v491
        %v1716 = vunpack.c.l.b16 %v492
        %v1717 = vunpack.c.h.b16 %v492
        %v1718 = vunpack.c.l.b16 %v493
        %v1719 = vunpack.c.h.b16 %v493
        %v1720 = vunpack.c.l.b16 %v494
        %v1721 = vunpack.c.h.b16 %v494
        %v1722 = vunpack.c.l.b16 %v495
        %v1723 = vunpack.c.h.b16 %v495
        %v1724 = vunpack.c.l.b16 %v496
        %v1725 = vunpack.c.h.b16 %v496
        %v1726 = vunpack.c.l.b16 %v497
        %v1727 = vunpack.c.h.b16 %v497
        %v1728 = vunpack.c.l.b16 %v498
        %v1729 = vunpack.c.h.b16 %v498
        %v1730 = vunpack.c.l.b16 %v499
        %v1731 = vunpack.c.h.b16 %v499
        %v1732 = vunpack.c.l.b16 %v500
        %v1733 = vunpack.c.h.b16 %v500
        %v1734 = vunpack.c.l.b16 %v501
        %v1735 = vunpack.c.h.b16 %v501
        %v1736 = vunpack.c.l.b16 %v502
        %v1737 = vunpack.c.h.b16 %v502
        %v1738 = vunpack.c.l.b16 %v503
        %v1739 = vunpack.c.h.b16 %v503
        %v1740 = vunpack.c.l.b16 %v504
        %v1741 = vunpack.c.h.b16 %v504
        %v1742 = vunpack.c.l.b16 %v505
        %v1743 = vunpack.c.h.b16 %v505
        %v1744 = vunpack.c.l.b16 %v506
        %v1745 = vunpack.c.h.b16 %v506
        %v1746 = vunpack.c.l.b16 %v507
        %v1747 = vunpack.c.h.b16 %v507
        %v1748 = vunpack.c.l.b16 %v508
        %v1749 = vunpack.c.h.b16 %v508
        %v1750 = vunpack.c.l.b16 %v509
        %v1751 = vunpack.c.h.b16 %v509
        %v1752 = vunpack.c.l.b16 %v510
        %v1753 = vunpack.c.h.b16 %v510
        %v1754 = vunpack.c.l.b16 %v511
        %v1755 = vunpack.c.h.b16 %v511
        %v1756 = vunpack.c.l.b16 %v512
        %v1757 = vunpack.c.h.b16 %v512
        %v1758 = vunpack.c.l.b16 %v513
        %v1759 = vunpack.c.h.b16 %v513
        %v1760 = vunpack.c.l.b16 %v514
        %v1761 = vunpack.c.h.b16 %v514
        %v1762 = vunpack.c.l.b16 %v515
        %v1763 = vunpack.c.h.b16 %v515
        %v1764 = vunpack.c.l.b16 %v516
        %v1765 = vunpack.c.h.b16 %v516
        %v1766 = vunpack.c.l.b16 %v517
        %v1767 = vunpack.c.h.b16 %v517
        %v1768 = vunpack.c.l.b16 %v518
        %v1769 = vunpack.c.h.b16 %v518
        %v1770 = vunpack.c.l.b16 %v519
        %v1771 = vunpack.c.h.b16 %v519
        %v1772 = vunpack.c.l.b16 %v520
        %v1773 = vunpack.c.h.b16 %v520
        %v1774 = vunpack.c.l.b16 %v521
        %v1775 = vunpack.c.h.b16 %v521
        %v1776 = vunpack.c.l.b16 %v522
        %v1777 = vunpack.c.h.b16 %v522
        %v1778 = vunpack.c.l.b16 %v523
        %v1779 = vunpack.c.h.b16 %v523
        %v1780 = vunpack.c.l.b16 %v524
        %v1781 = vunpack.c.h.b16 %v524
        %v1782 = vunpack.c.l.b16 %v525
        %v1783 = vunpack.c.h.b16 %v525
        %v1784 = vunpack.c.l.b16 %v526
        %v1785 = vunpack.c.h.b16 %v526
        %v1786 = vunpack.c.l.b16 %v527
        %v1787 = vunpack.c.h.b16 %v527
        %v1788 = vunpack.c.l.b16 %v528
        %v1789 = vunpack.c.h.b16 %v528
        %v1790 = vunpack.c.l.b16 %v529
        %v1791 = vunpack.c.h.b16 %v529
        %v1792 = vunpack.c.l.b16 %v530
        %v1793 = vunpack.c.h.b16 %v530
        %v1794 = vunpack.c.l.b16 %v531
        %v1795 = vunpack.c.h.b16 %v531
        %v1796 = vunpack.c.l.b16 %v532
        %v1797 = vunpack.c.h.b16 %v532
        %v1798 = vunpack.c.l.b16 %v533
        %v1799 = vunpack.c.h.b16 %v533
        %v1800 = vunpack.c.l.b16 %v534
        %v1801 = vunpack.c.h.b16 %v534
        %v1802 = vunpack.c.l.b16 %v535
        %v1803 = vunpack.c.h.b16 %v535
        %v1804 = vunpack.c.l.b16 %v536
        %v1805 = vunpack.c.h.b16 %v536
        %v1806 = vunpack.c.l.b16 %v537
        %v1807 = vunpack.c.h.b16 %v537
        %v1808 = vunpack.c.l.b16 %v538
        %v1809 = vunpack.c.h.b16 %v538
        %v1810 = vunpack.c.l.b16 %v539
        %v1811 = vunpack.c.h.b16 %v539
        %v1812 = vunpack.c.l.b16 %v540
        %v1813 = vunpack.c.h.b16 %v540
        %v1814 = vunpack.c.l.b16 %v541
        %v1815 = vunpack.c.h.b16 %v541
        %v1816 = vunpack.c.l.b16 %v542
        %v1817 = vunpack.c.h.b16 %v542
        %v1818 = vunpack.c.l.b16 %v543
        %v1819 = vunpack.c.h.b16 %v543
        %v1820 = vunpack.c.l.b16 %v544
        %v1821 = vunpack.c.h.b16 %v544
        %v1822 = vunpack.c.l.b16 %v545
        %v1823 = vunpack.c.h.b16 %v545
        %v1824 = vunpack.c.l.b16 %v546
        %v1825 = vunpack.c.h.b16 %v546
        %v1826 = vunpack.c.l.b16 %v547
        %v1827 = vunpack.c.h.b16 %v547
        %v1828 = vunpack.c.l.b16 %v548
        %v1829 = vunpack.c.h.b16 %v548
        %v1830 = vunpack.c.l.b16 %v549
        %v1831 = vunpack.c.h.b16 %v549
        %v1832 = vunpack.c.l.b16 %v550
        %v1833 = vunpack.c.h.b16 %v550
        %v1834 = vunpack.c.l.b16 %v551
        %v1835 = vunpack.c.h.b16 %v551
        %v1836 = vunpack.c.l.b16 %v552
        %v1837 = vunpack.c.h.b16 %v552
        %v1838 = vunpack.c.l.b16 %v553
        %v1839 = vunpack.c.h.b16 %v553
        %v1840 = vunpack.c.l.b16 %v554
        %v1841 = vunpack.c.h.b16 %v554
        %v1842 = vunpack.c.l.b16 %v555
        %v1843 = vunpack.c.h.b16 %v555
        %v1844 = vunpack.c.l.b16 %v556
        %v1845 = vunpack.c.h.b16 %v556
        %v1846 = vunpack.c.l.b16 %v557
        %v1847 = vunpack.c.h.b16 %v557
        %v1848 = vunpack.c.l.b16 %v558
        %v1849 = vunpack.c.h.b16 %v558
        %v1850 = vunpack.c.l.b16 %v559
        %v1851 = vunpack.c.h.b16 %v559
        %v1852 = vunpack.c.l.b16 %v560
        %v1853 = vunpack.c.h.b16 %v560
        %v1854 = vunpack.c.l.b16 %v561
        %v1855 = vunpack.c.h.b16 %v561
        %v1856 = vunpack.c.l.b16 %v562
        %v1857 = vunpack.c.h.b16 %v562
        %v1858 = vunpack.c.l.b16 %v563
        %v1859 = vunpack.c.h.b16 %v563
        %v1860 = vunpack.c.l.b16 %v564
        %v1861 = vunpack.c.h.b16 %v564
        %v1862 = vunpack.c.l.b16 %v565
        %v1863 = vunpack.c.h.b16 %v565
        %v1864 = vunpack.c.l.b16 %v566
        %v1865 = vunpack.c.h.b16 %v566
        %v1866 = vunpack.c.l.b16 %v567
        %v1867 = vunpack.c.h.b16 %v567
        %v1868 = vunpack.c.l.b16 %v568
        %v1869 = vunpack.c.h.b16 %v568
        %v1870 = vunpack.c.l.b16 %v569
        %v1871 = vunpack.c.h.b16 %v569
        %v1872 = vunpack.c.l.b16 %v570
        %v1873 = vunpack.c.h.b16 %v570
        %v1874 = vunpack.c.l.b16 %v571
        %v1875 = vunpack.c.h.b16 %v571
        %v1876 = vunpack.c.l.b16 %v572
        %v1877 = vunpack.c.h.b16 %v572
        %v1878 = vunpack.c.l.b16 %v573
        %v1879 = vunpack.c.h.b16 %v573
        %v1880 = vunpack.c.l.b16 %v574
        %v1881 = vunpack.c.h.b16 %v574
        %v1882 = vunpack.c.l.b16 %v575
        %v1883 = vunpack.c.h.b16 %v575
        %v1884 = vunpack.c.l.b16 %v576
        %v1885 = vunpack.c.h.b16 %v576
        %v1886 = vunpack.c.l.b16 %v577
        %v1887 = vunpack.c.h.b16 %v577
        %v1888 = vunpack.c.l.b16 %v578
        %v1889 = vunpack.c.h.b16 %v578
        %v1890 = vunpack.c.l.b16 %v579
        %v1891 = vunpack.c.h.b16 %v579
        %v1892 = vunpack.c.l.b16 %v580
        %v1893 = vunpack.c.h.b16 %v580
        %v1894 = vunpack.c.l.b16 %v581
        %v1895 = vunpack.c.h.b16 %v581
        %v1896 = vunpack.c.l.b16 %v582
        %v1897 = vunpack.c.h.b16 %v582
        %v1898 = vunpack.c.l.b16 %v583
        %v1899 = vunpack.c.h.b16 %v583
        %v1900 = vunpack.c.l.b16 %v584
        %v1901 = vunpack.c.h.b16 %v584
        %v1902 = vunpack.c.l.b16 %v585
        %v1903 = vunpack.c.h.b16 %v585
        %v1904 = vunpack.c.l.b16 %v586
        %v1905 = vunpack.c.h.b16 %v586
        %v1906 = vunpack.c.l.b16 %v587
        %v1907 = vunpack.c.h.b16 %v587
        %v1908 = vunpack.c.l.b16 %v588
        %v1909 = vunpack.c.h.b16 %v588
        %v1910 = vunpack.c.l.b16 %v589
        %v1911 = vunpack.c.h.b16 %v589
        %v1912 = vunpack.c.l.b16 %v590
        %v1913 = vunpack.c.h.b16 %v590
        %v1914 = vunpack.c.l.b16 %v591
        %v1915 = vunpack.c.h.b16 %v591
        %v1916 = vunpack.c.l.b16 %v592
        %v1917 = vunpack.c.h.b16 %v592
        %v1918 = vunpack.c.l.b16 %v593
        %v1919 = vunpack.c.h.b16 %v593
        %v1920 = vunpack.c.l.b16 %v594
        %v1921 = vunpack.c.h.b16 %v594
        %v1922 = vunpack.c.l.b16 %v595
        %v1923 = vunpack.c.h.b16 %v595
        %v1924 = vunpack.c.l.b16 %v596
        %v1925 = vunpack.c.h.b16 %v596
        %v1926 = vunpack.c.l.b16 %v597
        %v1927 = vunpack.c.h.b16 %v597
        %v1928 = vunpack.c.l.b16 %v598
        %v1929 = vunpack.c.h.b16 %v598
        %v1930 = vunpack.c.l.b16 %v599
        %v1931 = vunpack.c.h.b16 %v599
        %v1932 = vunpack.c.l.b16 %v600
        %v1933 = vunpack.c.h.b16 %v600
        %v1934 = vunpack.c.l.b16 %v601
        %v1935 = vunpack.c.h.b16 %v601
        %v1936 = vunpack.c.l.b16 %v602
        %v1937 = vunpack.c.h.b16 %v602
        %v1938 = vunpack.c.l.b16 %v603
        %v1939 = vunpack.c.h.b16 %v603
        %v1940 = vunpack.c.l.b16 %v604
        %v1941 = vunpack.c.h.b16 %v604
        %v1942 = vunpack.c.l.b16 %v605
        %v1943 = vunpack.c.h.b16 %v605
        %v1944 = vunpack.c.l.b16 %v606
        %v1945 = vunpack.c.h.b16 %v606
        %v1946 = vunpack.c.l.b16 %v607
        %v1947 = vunpack.c.h.b16 %v607
        %v1948 = vunpack.c.l.b16 %v608
        %v1949 = vunpack.c.h.b16 %v608
        %v1950 = vunpack.c.l.b16 %v609
        %v1951 = vunpack.c.h.b16 %v609
        %v1952 = vunpack.c.l.b16 %v610
        %v1953 = vunpack.c.h.b16 %v610
        %v1954 = vunpack.c.l.b16 %v611
        %v1955 = vunpack.c.h.b16 %v611
        %v1956 = vunpack.c.l.b16 %v612
        %v1957 = vunpack.c.h.b16 %v612
        %v1958 = vunpack.c.l.b16 %v613
        %v1959 = vunpack.c.h.b16 %v613
        %v1960 = vunpack.c.l.b16 %v614
        %v1961 = vunpack.c.h.b16 %v614
        %v1962 = vunpack.c.l.b16 %v615
        %v1963 = vunpack.c.h.b16 %v615
        %v1964 = vunpack.c.l.b16 %v616
        %v1965 = vunpack.c.h.b16 %v616
        %v1966 = vunpack.c.l.b16 %v617
        %v1967 = vunpack.c.h.b16 %v617
        %v1968 = vunpack.c.l.b16 %v618
        %v1969 = vunpack.c.h.b16 %v618
        %v1970 = vunpack.c.l.b16 %v619
        %v1971 = vunpack.c.h.b16 %v619
        %v1972 = vunpack.c.l.b16 %v620
        %v1973 = vunpack.c.h.b16 %v620
        %v1974 = vunpack.c.l.b16 %v621
        %v1975 = vunpack.c.h.b16 %v621
        %v1976 = vunpack.c.l.b16 %v622
        %v1977 = vunpack.c.h.b16 %v622
        %v1978 = vunpack.c.l.b16 %v623
        %v1979 = vunpack.c.h.b16 %v623
        %v1980 = vunpack.c.l.b16 %v624
        %v1981 = vunpack.c.h.b16 %v624
        %v1982 = vunpack.c.l.b16 %v625
        %v1983 = vunpack.c.h.b16 %v625
        %v1984 = vunpack.c.l.b16 %v626
        %v1985 = vunpack.c.h.b16 %v626
        %v1986 = vunpack.c.l.b16 %v627
        %v1987 = vunpack.c.h.b16 %v627
        %v1988 = vunpack.c.l.b16 %v628
        %v1989 = vunpack.c.h.b16 %v628
        %v1990 = vunpack.c.l.b16 %v629
        %v1991 = vunpack.c.h.b16 %v629
        %v1992 = vunpack.c.l.b16 %v630
        %v1993 = vunpack.c.h.b16 %v630
        %v1994 = vunpack.c.l.b16 %v631
        %v1995 = vunpack.c.h.b16 %v631
        %v1996 = vunpack.c.l.b16 %v632
        %v1997 = vunpack.c.h.b16 %v632
        %v1998 = vunpack.c.l.b16 %v633
        %v1999 = vunpack.c.h.b16 %v633
        %v2000 = vunpack.c.l.b16 %v634
        %v2001 = vunpack.c.h.b16 %v634
        %v2002 = vunpack.c.l.b16 %v635
        %v2003 = vunpack.c.h.b16 %v635
        %v2004 = vunpack.c.l.b16 %v636
        %v2005 = vunpack.c.h.b16 %v636
        %v2006 = vunpack.c.l.b16 %v637
        %v2007 = vunpack.c.h.b16 %v637
        %v2008 = vunpack.c.l.b16 %v638
        %v2009 = vunpack.c.h.b16 %v638
        %v2010 = vunpack.c.l.b16 %v639
        %v2011 = vunpack.c.h.b16 %v639
        %v2012 = vunpack.c.l.b16 %v640
        %v2013 = vunpack.c.h.b16 %v640
        %v2014 = vunpack.c.l.b16 %v641
        %v2015 = vunpack.c.h.b16 %v641
        %v2016 = vunpack.c.l.b16 %v642
        %v2017 = vunpack.c.h.b16 %v642
        %v2018 = vunpack.c.l.b16 %v643
        %v2019 = vunpack.c.h.b16 %v643
        %v2020 = vunpack.c.l.b16 %v644
        %v2021 = vunpack.c.h.b16 %v644
        %v2022 = vunpack.c.l.b16 %v645
        %v2023 = vunpack.c.h.b16 %v645
        %v2024 = vunpack.c.l.b16 %v646
        %v2025 = vunpack.c.h.b16 %v646
        %v2026 = vunpack.c.l.b16 %v647
        %v2027 = vunpack.c.h.b16 %v647
        %v2028 = vunpack.c.l.b16 %v648
        %v2029 = vunpack.c.h.b16 %v648
        %v2030 = vunpack.c.l.b16 %v649
        %v2031 = vunpack.c.h.b16 %v649
        %v2032 = vunpack.c.l.b16 %v650
        %v2033 = vunpack.c.h.b16 %v650
        %v2034 = vunpack.c.l.b16 %v651
        %v2035 = vunpack.c.h.b16 %v651
        %v2036 = vunpack.c.l.b16 %v652
        %v2037 = vunpack.c.h.b16 %v652
        %v2038 = vunpack.c.l.b16 %v653
        %v2039 = vunpack.c.h.b16 %v653
        %v2040 = vunpack.c.l.b16 %v654
        %v2041 = vunpack.c.h.b16 %v654
        %v2042 = vunpack.c.l.b16 %v655
        %v2043 = vunpack.c.h.b16 %v655
        %v2044 = vunpack.c.l.b16 %v656
        %v2045 = vunpack.c.h.b16 %v656
        %v2046 = vunpack.c.l.b16 %v657
        %v2047 = vunpack.c.h.b16 %v657
        %v2048 = vunpack.c.l.b16 %v658
        %v2049 = vunpack.c.h.b16 %v658
        %v2050 = vunpack.c.l.b16 %v659
        %v2051 = vunpack.c.h.b16 %v659
        %v2052 = vunpack.c.l.b16 %v660
        %v2053 = vunpack.c.h.b16 %v660
        %v2054 = vunpack.c.l.b16 %v661
        %v2055 = vunpack.c.h.b16 %v661
        %v2056 = vunpack.c.l.b16 %v662
        %v2057 = vunpack.c.h.b16 %v662
        %v2058 = vunpack.c.l.b16 %v663
        %v2059 = vunpack.c.h.b16 %v663
        %v2060 = vunpack.c.l.b16 %v664
        %v2061 = vunpack.c.h.b16 %v664
        %v2062 = vunpack.c.l.b16 %v665
        %v2063 = vunpack.c.h.b16 %v665
        %v2064 = vunpack.c.l.b16 %v666
        %v2065 = vunpack.c.h.b16 %v666
        %v2066 = vunpack.c.l.b16 %v667
        %v2067 = vunpack.c.h.b16 %v667
        %v2068 = vunpack.c.l.b16 %v668
        %v2069 = vunpack.c.h.b16 %v668
        %v2070 = vunpack.c.l.b16 %v669
        %v2071 = vunpack.c.h.b16 %v669
        %v2072 = vunpack.c.l.b16 %v670
        %v2073 = vunpack.c.h.b16 %v670
        %v2074 = vunpack.c.l.b16 %v671
        %v2075 = vunpack.c.h.b16 %v671
        %v2076 = vunpack.c.l.b16 %v672
        %v2077 = vunpack.c.h.b16 %v672
        %v2078 = vunpack.c.l.b16 %v673
        %v2079 = vunpack.c.h.b16 %v673
        %v2080 = vunpack.c.l.b16 %v674
        %v2081 = vunpack.c.h.b16 %v674
        %v2082 = vunpack.c.l.b16 %v675
        %v2083 = vunpack.c.h.b16 %v675
        %v2084 = vunpack.c.l.b16 %v676
        %v2085 = vunpack.c.h.b16 %v676
        %v2086 = vunpack.c.l.b16 %v677
        %v2087 = vunpack.c.h.b16 %v677
        %v2088 = vunpack.c.l.b16 %v678
        %v2089 = vunpack.c.h.b16 %v678
        %v2090 = vunpack.c.l.b16 %v679
        %v2091 = vunpack.c.h.b16 %v679
        %v2092 = vunpack.c.l.b16 %v680
        %v2093 = vunpack.c.h.b16 %v680
        %v2094 = vunpack.c.l.b16 %v681
        %v2095 = vunpack.c.h.b16 %v681
        %v2096 = vunpack.c.l.b16 %v682
        %v2097 = vunpack.c.h.b16 %v682
        %v2098 = vunpack.c.l.b16 %v683
        %v2099 = vunpack.c.h.b16 %v683
        %v2100 = vunpack.c.l.b16 %v684
        %v2101 = vunpack.c.h.b16 %v684
        %v2102 = vunpack.c.l.b16 %v685
        %v2103 = vunpack.c.h.b16 %v685
        %v2104 = vunpack.c.l.b16 %v686
        %v2105 = vunpack.c.h.b16 %v686
        %v2106 = vunpack.c.l.b16 %v687
        %v2107 = vunpack.c.h.b16 %v687
        %v2108 = vunpack.c.l.b16 %v688
        %v2109 = vunpack.c.h.b16 %v688
        %v2110 = vunpack.c.l.b16 %v689
        %v2111 = vunpack.c.h.b16 %v689
        %v2112 = vunpack.c.l.b16 %v690
        %v2113 = vunpack.c.h.b16 %v690
        %v2114 = vunpack.c.l.b16 %v691
        %v2115 = vunpack.c.h.b16 %v691
        %v2116 = vunpack.c.l.b16 %v692
        %v2117 = vunpack.c.h.b16 %v692
        %v2118 = vunpack.c.l.b16 %v693
        %v2119 = vunpack.c.h.b16 %v693
        %v2120 = vunpack.c.l.b16 %v694
        %v2121 = vunpack.c.h.b16 %v694
        %v2122 = vunpack.c.l.b16 %v695
        %v2123 = vunpack.c.h.b16 %v695
        %v2124 = vunpack.c.l.b16 %v696
        %v2125 = vunpack.c.h.b16 %v696
        %v2126 = vunpack.c.l.b16 %v697
        %v2127 = vunpack.c.h.b16 %v697
        %v2128 = vunpack.c.l.b16 %v698
        %v2129 = vunpack.c.h.b16 %v698
        %v2130 = vunpack.c.l.b16 %v699
        %v2131 = vunpack.c.h.b16 %v699
        %v2132 = vunpack.c.l.b16 %v700
        %v2133 = vunpack.c.h.b16 %v700
        %v2134 = vunpack.c.l.b16 %v701
        %v2135 = vunpack.c.h.b16 %v701
        %v2136 = vunpack.c.l.b16 %v702
        %v2137 = vunpack.c.h.b16 %v702
        %v2138 = vunpack.c.l.b16 %v703
        %v2139 = vunpack.c.h.b16 %v703
        %v2140 = vunpack.c.l.b16 %v704
        %v2141 = vunpack.c.h.b16 %v704
        %v2142 = vunpack.c.l.b16 %v705
        %v2143 = vunpack.c.h.b16 %v705
        %v2144 = vunpack.c.l.b16 %v706
        %v2145 = vunpack.c.h.b16 %v706
        %v2146 = vunpack.c.l.b16 %v707
        %v2147 = vunpack.c.h.b16 %v707
        %v2148 = vunpack.c.l.b16 %v708
        %v2149 = vunpack.c.h.b16 %v708
        %v2150 = vunpack.c.l.b16 %v709
        %v2151 = vunpack.c.h.b16 %v709
        %v2152 = vunpack.c.l.b16 %v710
        %v2153 = vunpack.c.h.b16 %v710
        %v2154 = vunpack.c.l.b16 %v711
        %v2155 = vunpack.c.h.b16 %v711
        %v2156 = vunpack.c.l.b16 %v712
        %v2157 = vunpack.c.h.b16 %v712
        %v2158 = vunpack.c.l.b16 %v713
        %v2159 = vunpack.c.h.b16 %v713
        %v2160 = vunpack.c.l.b16 %v714
        %v2161 = vunpack.c.h.b16 %v714
        %v2162 = vunpack.c.l.b16 %v715
        %v2163 = vunpack.c.h.b16 %v715
        %v2164 = vunpack.c.l.b16 %v716
        %v2165 = vunpack.c.h.b16 %v716
        %v2166 = vunpack.c.l.b16 %v717
        %v2167 = vunpack.c.h.b16 %v717
        %v2168 = vunpack.c.l.b16 %v718
        %v2169 = vunpack.c.h.b16 %v718
        %v2170 = vunpack.c.l.b16 %v719
        %v2171 = vunpack.c.h.b16 %v719
        %v2172 = vunpack.c.l.b16 %v720
        %v2173 = vunpack.c.h.b16 %v720
        %v2174 = vunpack.c.l.b16 %v721
        %v2175 = vunpack.c.h.b16 %v721
        %v2176 = vunpack.c.l.b16 %v722
        %v2177 = vunpack.c.h.b16 %v722
        %v2178 = vunpack.c.l.b16 %v723
        %v2179 = vunpack.c.h.b16 %v723
        %v2180 = vunpack.c.l.b16 %v724
        %v2181 = vunpack.c.h.b16 %v724
        %v2182 = vunpack.c.l.b16 %v725
        %v2183 = vunpack.c.h.b16 %v725
        %v2184 = vunpack.c.l.b16 %v726
        %v2185 = vunpack.c.h.b16 %v726
        %v2186 = vunpack.c.l.b16 %v727
        %v2187 = vunpack.c.h.b16 %v727
        %v2188 = vunpack.c.l.b16 %v728
        %v2189 = vunpack.c.h.b16 %v728
        %v2190 = vunpack.c.l.b16 %v729
        %v2191 = vunpack.c.h.b16 %v729
        %v2192 = vunpack.c.l.b16 %v730
        %v2193 = vunpack.c.h.b16 %v730
        %v2194 = vunpack.c.l.b16 %v731
        %v2195 = vunpack.c.h.b16 %v731
        %v2196 = vunpack.c.l.b16 %v732
        %v2197 = vunpack.c.h.b16 %v732
        %v2198 = vunpack.c.l.b16 %v733
        %v2199 = vunpack.c.h.b16 %v733
        %v2200 = vunpack.c.l.b16 %v734
        %v2201 = vunpack.c.h.b16 %v734
        %v2202 = vunpack.c.l.b16 %v735
        %v2203 = vunpack.c.h.b16 %v735
        %v2204 = vunpack.c.l.b16 %v736
        %v2205 = vunpack.c.h.b16 %v736
        %v2206 = vunpack.c.l.b16 %v737
        %v2207 = vunpack.c.h.b16 %v737
        %v2208 = vunpack.c.l.b16 %v738
        %v2209 = vunpack.c.h.b16 %v738
        %v2210 = vunpack.c.l.b16 %v739
        %v2211 = vunpack.c.h.b16 %v739
        %v2212 = vunpack.c.l.b16 %v740
        %v2213 = vunpack.c.h.b16 %v740
        %v2214 = vunpack.c.l.b16 %v741
        %v2215 = vunpack.c.h.b16 %v741
        %v2216 = vunpack.c.l.b16 %v742
        %v2217 = vunpack.c.h.b16 %v742
        %v2218 = vunpack.c.l.b16 %v743
        %v2219 = vunpack.c.h.b16 %v743
        %v2220 = vunpack.c.l.b16 %v744
        %v2221 = vunpack.c.h.b16 %v744
        %v2222 = vunpack.c.l.b16 %v745
        %v2223 = vunpack.c.h.b16 %v745
        %v2224 = vunpack.c.l.b16 %v746
        %v2225 = vunpack.c.h.b16 %v746
        %v2226 = vunpack.c.l.b16 %v747
        %v2227 = vunpack.c.h.b16 %v747
        %v2228 = vunpack.c.l.b16 %v748
        %v2229 = vunpack.c.h.b16 %v748
        %v2230 = vunpack.c.l.b16 %v749
        %v2231 = vunpack.c.h.b16 %v749
        %v2232 = vunpack.c.l.b16 %v750
        %v2233 = vunpack.c.h.b16 %v750
        %v2234 = vunpack.c.l.b16 %v751
        %v2235 = vunpack.c.h.b16 %v751
        %v2236 = vunpack.c.l.b16 %v752
        %v2237 = vunpack.c.h.b16 %v752
        %v2238 = vunpack.c.l.b16 %v753
        %v2239 = vunpack.c.h.b16 %v753
        %v2240 = vunpack.c.l.b16 %v754
        %v2241 = vunpack.c.h.b16 %v754
        %v2242 = vunpack.c.l.b16 %v755
        %v2243 = vunpack.c.h.b16 %v755
        %v2244 = vunpack.c.l.b16 %v756
        %v2245 = vunpack.c.h.b16 %v756
        %v2246 = vunpack.c.l.b16 %v757
        %v2247 = vunpack.c.h.b16 %v757
        %v2248 = vunpack.c.l.b16 %v758
        %v2249 = vunpack.c.h.b16 %v758
        %v2250 = vunpack.c.l.b16 %v759
        %v2251 = vunpack.c.h.b16 %v759
        %v2252 = vunpack.c.l.b16 %v760
        %v2253 = vunpack.c.h.b16 %v760
        %v2254 = vunpack.c.l.b16 %v761
        %v2255 = vunpack.c.h.b16 %v761
        %v2256 = vunpack.c.l.b16 %v762
        %v2257 = vunpack.c.h.b16 %v762
        %v2258 = vunpack.c.l.b16 %v763
        %v2259 = vunpack.c.h.b16 %v763
        %v2260 = vunpack.c.l.b16 %v764
        %v2261 = vunpack.c.h.b16 %v764
        %v2262 = vunpack.c.l.b16 %v765
        %v2263 = vunpack.c.h.b16 %v765
        %v2264 = vunpack.c.l.b16 %v766
        %v2265 = vunpack.c.h.b16 %v766
        %v2266 = vunpack.c.l.b16 %v767
        %v2267 = vunpack.c.h.b16 %v767
        %v2268 = vunpack.c.l.b16 %v768
        %v2269 = vunpack.c.h.b16 %v768
        %v2270 = vunpack.c.l.b16 %v769
        %v2271 = vunpack.c.h.b16 %v769
        %v2272 = vunpack.c.l.b16 %v770
        %v2273 = vunpack.c.h.b16 %v770
        %v2274 = vunpack.c.l.b16 %v771
        %v2275 = vunpack.c.h.b16 %v771
        %v2276 = vunpack.c.l.b16 %v772
        %v2277 = vunpack.c.h.b16 %v772
        %v2278 = vunpack.c.l.b16 %v773
        %v2279 = vunpack.c.h.b16 %v773
        %v2280 = vunpack.c.l.b16 %v774
        %v2281 = vunpack.c.h.b16 %v774
        %v2282 = vunpack.c.l.b16 %v775
        %v2283 = vunpack.c.h.b16 %v775
        %v2284 = vunpack.c.l.b16 %v776
        %v2285 = vunpack.c.h.b16 %v776
        %v2286 = vunpack.c.l.b16 %v777
        %v2287 = vunpack.c.h.b16 %v777
        %v2288 = vunpack.c.l.b16 %v778
        %v2289 = vunpack.c.h.b16 %v778
        %v2290 = vunpack.c.l.b16 %v779
        %v2291 = vunpack.c.h.b16 %v779
        %v2292 = vunpack.c.l.b16 %v780
        %v2293 = vunpack.c.h.b16 %v780
        %v2294 = vunpack.c.l.b16 %v781
        %v2295 = vunpack.c.h.b16 %v781
        %v2296 = vunpack.c.l.b16 %v782
        %v2297 = vunpack.c.h.b16 %v782
        %v2298 = vunpack.c.l.b16 %v783
        %v2299 = vunpack.c.h.b16 %v783
        %v2300 = vunpack.c.l.b16 %v784
        %v2301 = vunpack.c.h.b16 %v784
        %v2302 = vunpack.c.l.b16 %v785
        %v2303 = vunpack.c.h.b16 %v785
        %v2304 = vunpack.c.l.b16 %v786
        %v2305 = vunpack.c.h.b16 %v786
        %v2306 = vunpack.c.l.b16 %v787
        %v2307 = vunpack.c.h.b16 %v787
        %v2308 = vunpack.c.l.b16 %v788
        %v2309 = vunpack.c.h.b16 %v788
        %v2310 = vunpack.c.l.b16 %v789
        %v2311 = vunpack.c.h.b16 %v789
        %v2312 = vunpack.c.l.b16 %v790
        %v2313 = vunpack.c.h.b16 %v790
        %v2314 = vunpack.c.l.b16 %v791
        %v2315 = vunpack.c.h.b16 %v791
        %v2316 = vunpack.c.l.b16 %v792
        %v2317 = vunpack.c.h.b16 %v792
        %v2318 = vunpack.c.l.b16 %v793
        %v2319 = vunpack.c.h.b16 %v793
        %v2320 = vunpack.c.l.b16 %v794
        %v2321 = vunpack.c.h.b16 %v794
        %v2322 = vunpack.c.l.b16 %v795
        %v2323 = vunpack.c.h.b16 %v795
        %v2324 = vunpack.c.l.b16 %v796
        %v2325 = vunpack.c.h.b16 %v796
        %v2326 = vunpack.c.l.b16 %v797
        %v2327 = vunpack.c.h.b16 %v797
        %v2328 = vunpack.c.l.b16 %v798
        %v2329 = vunpack.c.h.b16 %v798
        %v2330 = vunpack.c.l.b16 %v799
        %v2331 = vunpack.c.h.b16 %v799
        %v2332 = vunpack.c.l.b16 %v800
        %v2333 = vunpack.c.h.b16 %v800
        %v2334 = vunpack.c.l.b16 %v801
        %v2335 = vunpack.c.h.b16 %v801
        %v2336 = vunpack.c.l.b16 %v802
        %v2337 = vunpack.c.h.b16 %v802
        %v2338 = vunpack.c.l.b16 %v803
        %v2339 = vunpack.c.h.b16 %v803
        %v2340 = vunpack.c.l.b16 %v804
        %v2341 = vunpack.c.h.b16 %v804
        %v2342 = vunpack.c.l.b16 %v805
        %v2343 = vunpack.c.h.b16 %v805
        %v2344 = vunpack.c.l.b16 %v806
        %v2345 = vunpack.c.h.b16 %v806
        %v2346 = vunpack.c.l.b16 %v807
        %v2347 = vunpack.c.h.b16 %v807
        %v2348 = vunpack.c.l.b16 %v808
        %v2349 = vunpack.c.h.b16 %v808
        %v2350 = vunpack.c.l.b16 %v809
        %v2351 = vunpack.c.h.b16 %v809
        %v2352 = vunpack.c.l.b16 %v810
        %v2353 = vunpack.c.h.b16 %v810
        %v2354 = vunpack.c.l.b16 %v811
        %v2355 = vunpack.c.h.b16 %v811
        %v2356 = vunpack.c.l.b16 %v812
        %v2357 = vunpack.c.h.b16 %v812
        %v2358 = vunpack.c.l.b16 %v813
        %v2359 = vunpack.c.h.b16 %v813
        %v2360 = vunpack.c.l.b16 %v814
        %v2361 = vunpack.c.h.b16 %v814
        %v2362 = vunpack.c.l.b16 %v815
        %v2363 = vunpack.c.h.b16 %v815
        %v2364 = vunpack.c.l.b16 %v816
        %v2365 = vunpack.c.h.b16 %v816
        %v2366 = vunpack.c.l.b16 %v817
        %v2367 = vunpack.c.h.b16 %v817
        %v2368 = vunpack.c.l.b16 %v818
        %v2369 = vunpack.c.h.b16 %v818
        %v2370 = vunpack.c.l.b16 %v819
        %v2371 = vunpack.c.h.b16 %v819
        %v2372 = vunpack.c.l.b16 %v820
        %v2373 = vunpack.c.h.b16 %v820
        %v2374 = vunpack.c.l.b16 %v821
        %v2375 = vunpack.c.h.b16 %v821
        %v2376 = vunpack.c.l.b16 %v822
        %v2377 = vunpack.c.h.b16 %v822
        %v2378 = vunpack.c.l.b16 %v823
        %v2379 = vunpack.c.h.b16 %v823
        %v2380 = vunpack.c.l.b16 %v824
        %v2381 = vunpack.c.h.b16 %v824
        %v2382 = vunpack.c.l.b16 %v825
        %v2383 = vunpack.c.h.b16 %v825
        %v2384 = vunpack.c.l.b16 %v826
        %v2385 = vunpack.c.h.b16 %v826
        %v2386 = vunpack.c.l.b16 %v827
        %v2387 = vunpack.c.h.b16 %v827
        %v2388 = vunpack.c.l.b16 %v828
        %v2389 = vunpack.c.h.b16 %v828
        %v2390 = vunpack.c.l.b16 %v829
        %v2391 = vunpack.c.h.b16 %v829
        %v2392 = vunpack.c.l.b16 %v830
        %v2393 = vunpack.c.h.b16 %v830
        %v2394 = vunpack.c.l.b16 %v831
        %v2395 = vunpack.c.h.b16 %v831
        %v2396 = vunpack.c.l.b16 %v832
        %v2397 = vunpack.c.h.b16 %v832
        %v2398 = vunpack.c.l.b16 %v833
        %v2399 = vunpack.c.h.b16 %v833
        %v2400 = vunpack.c.l.b16 %v834
        %v2401 = vunpack.c.h.b16 %v834
        %v2402 = vunpack.c.l.b16 %v835
        %v2403 = vunpack.c.h.b16 %v835
        %v2404 = vunpack.c.l.b16 %v836
        %v2405 = vunpack.c.h.b16 %v836
        %v2406 = vunpack.c.l.b16 %v837
        %v2407 = vunpack.c.h.b16 %v837
        %v2408 = vunpack.c.l.b16 %v838
        %v2409 = vunpack.c.h.b16 %v838
        %v2410 = vunpack.c.l.b16 %v839
        %v2411 = vunpack.c.h.b16 %v839
        %v2412 = vunpack.c.l.b16 %v840
        %v2413 = vunpack.c.h.b16 %v840
        %v2414 = vunpack.c.l.b16 %v841
        %v2415 = vunpack.c.h.b16 %v841
        %v2416 = vunpack.c.l.b16 %v842
        %v2417 = vunpack.c.h.b16 %v842
        %v2418 = vunpack.c.l.b16 %v843
        %v2419 = vunpack.c.h.b16 %v843
        %v2420 = vunpack.c.l.b16 %v844
        %v2421 = vunpack.c.h.b16 %v844
        %v2422 = vunpack.c.l.b16 %v845
        %v2423 = vunpack.c.h.b16 %v845
        %v2424 = vunpack.c.l.b16 %v846
        %v2425 = vunpack.c.h.b16 %v846
        %v2426 = vunpack.c.l.b16 %v847
        %v2427 = vunpack.c.h.b16 %v847
        %v2428 = vunpack.c.l.b16 %v848
        %v2429 = vunpack.c.h.b16 %v848
        %v2430 = vunpack.c.l.b16 %v849
        %v2431 = vunpack.c.h.b16 %v849
        %v2432 = vunpack.c.l.b16 %v850
        %v2433 = vunpack.c.h.b16 %v850
        %v2434 = vunpack.c.l.b16 %v851
        %v2435 = vunpack.c.h.b16 %v851
        %v2436 = vunpack.c.l.b16 %v852
        %v2437 = vunpack.c.h.b16 %v852
        %v2438 = vunpack.c.l.b16 %v853
        %v2439 = vunpack.c.h.b16 %v853
        %v2440 = vunpack.c.l.b16 %v854
        %v2441 = vunpack.c.h.b16 %v854
        %v2442 = vunpack.c.l.b16 %v855
        %v2443 = vunpack.c.h.b16 %v855
        %v2444 = vunpack.c.l.b16 %v856
        %v2445 = vunpack.c.h.b16 %v856
        %v2446 = vunpack.c.l.b16 %v857
        %v2447 = vunpack.c.h.b16 %v857
        %v2448 = vunpack.c.l.b16 %v858
        %v2449 = vunpack.c.h.b16 %v858
        %v2450 = vunpack.c.l.b16 %v859
        %v2451 = vunpack.c.h.b16 %v859
        %v2452 = vunpack.c.l.b16 %v860
        %v2453 = vunpack.c.h.b16 %v860
        %v2454 = vunpack.c.l.b16 %v861
        %v2455 = vunpack.c.h.b16 %v861
        %v2456 = vunpack.c.l.b16 %v862
        %v2457 = vunpack.c.h.b16 %v862
        %v2458 = vunpack.c.l.b16 %v863
        %v2459 = vunpack.c.h.b16 %v863
        %v2460 = vunpack.c.l.b16 %v864
        %v2461 = vunpack.c.h.b16 %v864
        %v2462 = vunpack.c.l.b16 %v865
        %v2463 = vunpack.c.h.b16 %v865
        %v2464 = vunpack.c.l.b16 %v866
        %v2465 = vunpack.c.h.b16 %v866
        %v2466 = vunpack.c.l.b16 %v867
        %v2467 = vunpack.c.h.b16 %v867
        %v2468 = vunpack.c.l.b16 %v868
        %v2469 = vunpack.c.h.b16 %v868
        %v2470 = vunpack.c.l.b16 %v869
        %v2471 = vunpack.c.h.b16 %v869
        %v2472 = vunpack.c.l.b16 %v870
        %v2473 = vunpack.c.h.b16 %v870
        %v2474 = vunpack.c.l.b16 %v871
        %v2475 = vunpack.c.h.b16 %v871
        %v2476 = vunpack.c.l.b16 %v872
        %v2477 = vunpack.c.h.b16 %v872
        %v2478 = vunpack.c.l.b16 %v873
        %v2479 = vunpack.c.h.b16 %v873
        %v2480 = vunpack.c.l.b16 %v874
        %v2481 = vunpack.c.h.b16 %v874
        %v2482 = vunpack.c.l.b16 %v875
        %v2483 = vunpack.c.h.b16 %v875
        %v2484 = vunpack.c.l.b16 %v876
        %v2485 = vunpack.c.h.b16 %v876
        %v2486 = vunpack.c.l.b16 %v877
        %v2487 = vunpack.c.h.b16 %v877
        %v2488 = vunpack.c.l.b16 %v878
        %v2489 = vunpack.c.h.b16 %v878
        %v2490 = vunpack.c.l.b16 %v879
        %v2491 = vunpack.c.h.b16 %v879
        %v2492 = vunpack.c.l.b16 %v880
        %v2493 = vunpack.c.h.b16 %v880
        %v2494 = vunpack.c.l.b16 %v881
        %v2495 = vunpack.c.h.b16 %v881
        %v2496 = vpack.c.b16 %v1474, %v1472
        %v2497 = vpack.c.b16 %v1475, %v1473
        %v2498 = vpack.c.b16 %v1478, %v1476
        %v2499 = vpack.c.b16 %v1479, %v1477
        %v2500 = vpack.c.b16 %v1482, %v1480
        %v2501 = vpack.c.b16 %v1483, %v1481
        %v2502 = vpack.c.b16 %v1486, %v1484
        %v2503 = vpack.c.b16 %v1487, %v1485
        %v2504 = vpack.c.b16 %v1490, %v1488
        %v2505 = vpack.c.b16 %v1491, %v1489
        %v2506 = vpack.c.b16 %v1494, %v1492
        %v2507 = vpack.c.b16 %v1495, %v1493
        %v2508 = vpack.c.b16 %v1498, %v1496
        %v2509 = vpack.c.b16 %v1499, %v1497
        %v2510 = vpack.c.b16 %v1502, %v1500
        %v2511 = vpack.c.b16 %v1503, %v1501
        %v2512 = vpack.c.b16 %v1506, %v1504
        %v2513 = vpack.c.b16 %v1507, %v1505
        %v2514 = vpack.c.b16 %v1510, %v1508
        %v2515 = vpack.c.b16 %v1511, %v1509
        %v2516 = vpack.c.b16 %v1514, %v1512
        %v2517 = vpack.c.b16 %v1515, %v1513
        %v2518 = vpack.c.b16 %v1518, %v1516
        %v2519 = vpack.c.b16 %v1519, %v1517
        %v2520 = vpack.c.b16 %v1522, %v1520
        %v2521 = vpack.c.b16 %v1523, %v1521
        %v2522 = vpack.c.b16 %v1526, %v1524
        %v2523 = vpack.c.b16 %v1527, %v1525
        %v2524 = vpack.c.b16 %v1530, %v1528
        %v2525 = vpack.c.b16 %v1531, %v1529
        %v2526 = vpack.c.b16 %v1534, %v1532
        %v2527 = vpack.c.b16 %v1535, %v1533
        %v2528 = vpack.c.b16 %v1538, %v1536
        %v2529 = vpack.c.b16 %v1539, %v1537
        %v2530 = vpack.c.b16 %v1542, %v1540
        %v2531 = vpack.c.b16 %v1543, %v1541
        %v2532 = vpack.c.b16 %v1546, %v1544
        %v2533 = vpack.c.b16 %v1547, %v1545
        %v2534 = vpack.c.b16 %v1550, %v1548
        %v2535 = vpack.c.b16 %v1551, %v1549
        %v2536 = vpack.c.b16 %v1554, %v1552
        %v2537 = vpack.c.b16 %v1555, %v1553
        %v2538 = vpack.c.b16 %v1558, %v1556
        %v2539 = vpack.c.b16 %v1559, %v1557
        %v2540 = vpack.c.b16 %v1562, %v1560
        %v2541 = vpack.c.b16 %v1563, %v1561
        %v2542 = vpack.c.b16 %v1566, %v1564
        %v2543 = vpack.c.b16 %v1567, %v1565
        %v2544 = vpack.c.b16 %v1570, %v1568
        %v2545 = vpack.c.b16 %v1571, %v1569
        %v2546 = vpack.c.b16 %v1574, %v1572
        %v2547 = vpack.c.b16 %v1575, %v1573
        %v2548 = vpack.c.b16 %v1578, %v1576
        %v2549 = vpack.c.b16 %v1579, %v1577
        %v2550 = vpack.c.b16 %v1582, %v1580
        %v2551 = vpack.c.b16 %v1583, %v1581
        %v2552 = vpack.c.b16 %v1586, %v1584
        %v2553 = vpack.c.b16 %v1587, %v1585
        %v2554 = vpack.c.b16 %v1590, %v1588
        %v2555 = vpack.c.b16 %v1591, %v1589
        %v2556 = vpack.c.b16 %v1594, %v1592
        %v2557 = vpack.c.b16 %v1595, %v1593
        %v2558 = vpack.c.b16 %v1598, %v1596
        %v2559 = vpack.c.b16 %v1599, %v1597
        %v2560 = vpack.c.b16 %v1602, %v1600
        %v2561 = vpack.c.b16 %v1603, %v1601
        %v2562 = vpack.c.b16 %v1606, %v1604
        %v2563 = vpack.c.b16 %v1607, %v1605
        %v2564 = vpack.c.b16 %v1610, %v1608
        %v2565 = vpack.c.b16 %v1611, %v1609
        %v2566 = vpack.c.b16 %v1614, %v1612
        %v2567 = vpack.c.b16 %v1615, %v1613
        %v2568 = vpack.c.b16 %v1618, %v1616
        %v2569 = vpack.c.b16 %v1619, %v1617
        %v2570 = vpack.c.b16 %v1622, %v1620
        %v2571 = vpack.c.b16 %v1623, %v1621
        %v2572 = vpack.c.b16 %v1626, %v1624
        %v2573 = vpack.c.b16 %v1627, %v1625
        %v2574 = vpack.c.b16 %v1630, %v1628
        %v2575 = vpack.c.b16 %v1631, %v1629
        %v2576 = vpack.c.b16 %v1634, %v1632
        %v2577 = vpack.c.b16 %v1635, %v1633
        %v2578 = vpack.c.b16 %v1638, %v1636
        %v2579 = vpack.c.b16 %v1639, %v1637
        %v2580 = vpack.c.b16 %v1642, %v1640
        %v2581 = vpack.c.b16 %v1643, %v1641
        %v2582 = vpack.c.b16 %v1646, %v1644
        %v2583 = vpack.c.b16 %v1647, %v1645
        %v2584 = vpack.c.b16 %v1650, %v1648
        %v2585 = vpack.c.b16 %v1651, %v1649
        %v2586 = vpack.c.b16 %v1654, %v1652
        %v2587 = vpack.c.b16 %v1655, %v1653
        %v2588 = vpack.c.b16 %v1658, %v1656
        %v2589 = vpack.c.b16 %v1659, %v1657
        %v2590 = vpack.c.b16 %v1662, %v1660
        %v2591 = vpack.c.b16 %v1663, %v1661
        %v2592 = vpack.c.b16 %v1666, %v1664
        %v2593 = vpack.c.b16 %v1667, %v1665
        %v2594 = vpack.c.b16 %v1670, %v1668
        %v2595 = vpack.c.b16 %v1671, %v1669
        %v2596 = vpack.c.b16 %v1674, %v1672
        %v2597 = vpack.c.b16 %v1675, %v1673
        %v2598 = vpack.c.b16 %v1678, %v1676
        %v2599 = vpack.c.b16 %v1679, %v1677
        %v2600 = vpack.c.b16 %v1682, %v1680
        %v2601 = vpack.c.b16 %v1683, %v1681
        %v2602 = vpack.c.b16 %v1686, %v1684
        %v2603 = vpack.c.b16 %v1687, %v1685
        %v2604 = vpack.c.b16 %v1690, %v1688
        %v2605 = vpack.c.b16 %v1691, %v1689
        %v2606 = vpack.c.b16 %v1694, %v1692
        %v2607 = vpack.c.b16 %v1695, %v1693
        %v2608 = vpack.c.b16 %v1698, %v1696
        %v2609 = vpack.c.b16 %v1699, %v1697
        %v2610 = vpack.c.b16 %v1702, %v1700
        %v2611 = vpack.c.b16 %v1703, %v1701
        %v2612 = vpack.c.b16 %v1706, %v1704
        %v2613 = vpack.c.b16 %v1707, %v1705
        %v2614 = vpack.c.b16 %v1710, %v1708
        %v2615 = vpack.c.b16 %v1711, %v1709
        %v2616 = vpack.c.b16 %v1714, %v1712
        %v2617 = vpack.c.b16 %v1715, %v1713
        %v2618 = vpack.c.b16 %v1718, %v1716
        %v2619 = vpack.c.b16 %v1719, %v1717
        %v2620 = vpack.c.b16 %v1722, %v1720
        %v2621 = vpack.c.b16 %v1723, %v1721
        %v2622 = vpack.c.b16 %v1726, %v1724
        %v2623 = vpack.c.b16 %v1727, %v1725
        %v2624 = vpack.c.b16 %v1730, %v1728
        %v2625 = vpack.c.b16 %v1731, %v1729
        %v2626 = vpack.c.b16 %v1734, %v1732
        %v2627 = vpack.c.b16 %v1735, %v1733
        %v2628 = vpack.c.b16 %v1738, %v1736
        %v2629 = vpack.c.b16 %v1739, %v1737
        %v2630 = vpack.c.b16 %v1742, %v1740
        %v2631 = vpack.c.b16 %v1743, %v1741
        %v2632 = vpack.c.b16 %v1746, %v1744
        %v2633 = vpack.c.b16 %v1747, %v1745
        %v2634 = vpack.c.b16 %v1750, %v1748
        %v2635 = vpack.c.b16 %v1751, %v1749
        %v2636 = vpack.c.b16 %v1754, %v1752
        %v2637 = vpack.c.b16 %v1755, %v1753
        %v2638 = vpack.c.b16 %v1758, %v1756
        %v2639 = vpack.c.b16 %v1759, %v1757
        %v2640 = vpack.c.b16 %v1762, %v1760
        %v2641 = vpack.c.b16 %v1763, %v1761
        %v2642 = vpack.c.b16 %v1766, %v1764
        %v2643 = vpack.c.b16 %v1767, %v1765
        %v2644 = vpack.c.b16 %v1770, %v1768
        %v2645 = vpack.c.b16 %v1771, %v1769
        %v2646 = vpack.c.b16 %v1774, %v1772
        %v2647 = vpack.c.b16 %v1775, %v1773
        %v2648 = vpack.c.b16 %v1778, %v1776
        %v2649 = vpack.c.b16 %v1779, %v1777
        %v2650 = vpack.c.b16 %v1782, %v1780
        %v2651 = vpack.c.b16 %v1783, %v1781
        %v2652 = vpack.c.b16 %v1786, %v1784
        %v2653 = vpack.c.b16 %v1787, %v1785
        %v2654 = vpack.c.b16 %v1790, %v1788
        %v2655 = vpack.c.b16 %v1791, %v1789
        %v2656 = vpack.c.b16 %v1794, %v1792
        %v2657 = vpack.c.b16 %v1795, %v1793
        %v2658 = vpack.c.b16 %v1798, %v1796
        %v2659 = vpack.c.b16 %v1799, %v1797
        %v2660 = vpack.c.b16 %v1802, %v1800
        %v2661 = vpack.c.b16 %v1803, %v1801
        %v2662 = vpack.c.b16 %v1806, %v1804
        %v2663 = vpack.c.b16 %v1807, %v1805
        %v2664 = vpack.c.b16 %v1810, %v1808
        %v2665 = vpack.c.b16 %v1811, %v1809
        %v2666 = vpack.c.b16 %v1814, %v1812
        %v2667 = vpack.c.b16 %v1815, %v1813
        %v2668 = vpack.c.b16 %v1818, %v1816
        %v2669 = vpack.c.b16 %v1819, %v1817
        %v2670 = vpack.c.b16 %v1822, %v1820
        %v2671 = vpack.c.b16 %v1823, %v1821
        %v2672 = vpack.c.b16 %v1826, %v1824
        %v2673 = vpack.c.b16 %v1827, %v1825
        %v2674 = vpack.c.b16 %v1830, %v1828
        %v2675 = vpack.c.b16 %v1831, %v1829
        %v2676 = vpack.c.b16 %v1834, %v1832
        %v2677 = vpack.c.b16 %v1835, %v1833
        %v2678 = vpack.c.b16 %v1838, %v1836
        %v2679 = vpack.c.b16 %v1839, %v1837
        %v2680 = vpack.c.b16 %v1842, %v1840
        %v2681 = vpack.c.b16 %v1843, %v1841
        %v2682 = vpack.c.b16 %v1846, %v1844
        %v2683 = vpack.c.b16 %v1847, %v1845
        %v2684 = vpack.c.b16 %v1850, %v1848
        %v2685 = vpack.c.b16 %v1851, %v1849
        %v2686 = vpack.c.b16 %v1854, %v1852
        %v2687 = vpack.c.b16 %v1855, %v1853
        %v2688 = vpack.c.b16 %v1858, %v1856
        %v2689 = vpack.c.b16 %v1859, %v1857
        %v2690 = vpack.c.b16 %v1862, %v1860
        %v2691 = vpack.c.b16 %v1863, %v1861
        %v2692 = vpack.c.b16 %v1866, %v1864
        %v2693 = vpack.c.b16 %v1867, %v1865
        %v2694 = vpack.c.b16 %v1870, %v1868
        %v2695 = vpack.c.b16 %v1871, %v1869
        %v2696 = vpack.c.b16 %v1874, %v1872
        %v2697 = vpack.c.b16 %v1875, %v1873
        %v2698 = vpack.c.b16 %v1878, %v1876
        %v2699 = vpack.c.b16 %v1879, %v1877
        %v2700 = vpack.c.b16 %v1882, %v1880
        %v2701 = vpack.c.b16 %v1883, %v1881
        %v2702 = vpack.c.b16 %v1886, %v1884
        %v2703 = vpack.c.b16 %v1887, %v1885
        %v2704 = vpack.c.b16 %v1890, %v1888
        %v2705 = vpack.c.b16 %v1891, %v1889
        %v2706 = vpack.c.b16 %v1894, %v1892
        %v2707 = vpack.c.b16 %v1895, %v1893
        %v2708 = vpack.c.b16 %v1898, %v1896
        %v2709 = vpack.c.b16 %v1899, %v1897
        %v2710 = vpack.c.b16 %v1902, %v1900
        %v2711 = vpack.c.b16 %v1903, %v1901
        %v2712 = vpack.c.b16 %v1906, %v1904
        %v2713 = vpack.c.b16 %v1907, %v1905
        %v2714 = vpack.c.b16 %v1910, %v1908
        %v2715 = vpack.c.b16 %v1911, %v1909
        %v2716 = vpack.c.b16 %v1914, %v1912
        %v2717 = vpack.c.b16 %v1915, %v1913
        %v2718 = vpack.c.b16 %v1918, %v1916
        %v2719 = vpack.c.b16 %v1919, %v1917
        %v2720 = vpack.c.b16 %v1922, %v1920
        %v2721 = vpack.c.b16 %v1923, %v1921
        %v2722 = vpack.c.b16 %v1926, %v1924
        %v2723 = vpack.c.b16 %v1927, %v1925
        %v2724 = vpack.c.b16 %v1930, %v1928
        %v2725 = vpack.c.b16 %v1931, %v1929
        %v2726 = vpack.c.b16 %v1934, %v1932
        %v2727 = vpack.c.b16 %v1935, %v1933
        %v2728 = vpack.c.b16 %v1938, %v1936
        %v2729 = vpack.c.b16 %v1939, %v1937
        %v2730 = vpack.c.b16 %v1942, %v1940
        %v2731 = vpack.c.b16 %v1943, %v1941
        %v2732 = vpack.c.b16 %v1946, %v1944
        %v2733 = vpack.c.b16 %v1947, %v1945
        %v2734 = vpack.c.b16 %v1950, %v1948
        %v2735 = vpack.c.b16 %v1951, %v1949
        %v2736 = vpack.c.b16 %v1954, %v1952
        %v2737 = vpack.c.b16 %v1955, %v1953
        %v2738 = vpack.c.b16 %v1958, %v1956
        %v2739 = vpack.c.b16 %v1959, %v1957
        %v2740 = vpack.c.b16 %v1962, %v1960
        %v2741 = vpack.c.b16 %v1963, %v1961
        %v2742 = vpack.c.b16 %v1966, %v1964
        %v2743 = vpack.c.b16 %v1967, %v1965
        %v2744 = vpack.c.b16 %v1970, %v1968
        %v2745 = vpack.c.b16 %v1971, %v1969
        %v2746 = vpack.c.b16 %v1974, %v1972
        %v2747 = vpack.c.b16 %v1975, %v1973
        %v2748 = vpack.c.b16 %v1978, %v1976
        %v2749 = vpack.c.b16 %v1979, %v1977
        %v2750 = vpack.c.b16 %v1982, %v1980
        %v2751 = vpack.c.b16 %v1983, %v1981
        %v2752 = vpack.c.b16 %v1986, %v1984
        %v2753 = vpack.c.b16 %v1987, %v1985
        %v2754 = vpack.c.b16 %v1990, %v1988
        %v2755 = vpack.c.b16 %v1991, %v1989
        %v2756 = vpack.c.b16 %v1994, %v1992
        %v2757 = vpack.c.b16 %v1995, %v1993
        %v2758 = vpack.c.b16 %v1998, %v1996
        %v2759 = vpack.c.b16 %v1999, %v1997
        %v2760 = vpack.c.b16 %v2002, %v2000
        %v2761 = vpack.c.b16 %v2003, %v2001
        %v2762 = vpack.c.b16 %v2006, %v2004
        %v2763 = vpack.c.b16 %v2007, %v2005
        %v2764 = vpack.c.b16 %v2010, %v2008
        %v2765 = vpack.c.b16 %v2011, %v2009
        %v2766 = vpack.c.b16 %v2014, %v2012
        %v2767 = vpack.c.b16 %v2015, %v2013
        %v2768 = vpack.c.b16 %v2018, %v2016
        %v2769 = vpack.c.b16 %v2019, %v2017
        %v2770 = vpack.c.b16 %v2022, %v2020
        %v2771 = vpack.c.b16 %v2023, %v2021
        %v2772 = vpack.c.b16 %v2026, %v2024
        %v2773 = vpack.c.b16 %v2027, %v2025
        %v2774 = vpack.c.b16 %v2030, %v2028
        %v2775 = vpack.c.b16 %v2031, %v2029
        %v2776 = vpack.c.b16 %v2034, %v2032
        %v2777 = vpack.c.b16 %v2035, %v2033
        %v2778 = vpack.c.b16 %v2038, %v2036
        %v2779 = vpack.c.b16 %v2039, %v2037
        %v2780 = vpack.c.b16 %v2042, %v2040
        %v2781 = vpack.c.b16 %v2043, %v2041
        %v2782 = vpack.c.b16 %v2046, %v2044
        %v2783 = vpack.c.b16 %v2047, %v2045
        %v2784 = vpack.c.b16 %v2050, %v2048
        %v2785 = vpack.c.b16 %v2051, %v2049
        %v2786 = vpack.c.b16 %v2054, %v2052
        %v2787 = vpack.c.b16 %v2055, %v2053
        %v2788 = vpack.c.b16 %v2058, %v2056
        %v2789 = vpack.c.b16 %v2059, %v2057
        %v2790 = vpack.c.b16 %v2062, %v2060
        %v2791 = vpack.c.b16 %v2063, %v2061
        %v2792 = vpack.c.b16 %v2066, %v2064
        %v2793 = vpack.c.b16 %v2067, %v2065
        %v2794 = vpack.c.b16 %v2070, %v2068
        %v2795 = vpack.c.b16 %v2071, %v2069
        %v2796 = vpack.c.b16 %v2074, %v2072
        %v2797 = vpack.c.b16 %v2075, %v2073
        %v2798 = vpack.c.b16 %v2078, %v2076
        %v2799 = vpack.c.b16 %v2079, %v2077
        %v2800 = vpack.c.b16 %v2082, %v2080
        %v2801 = vpack.c.b16 %v2083, %v2081
        %v2802 = vpack.c.b16 %v2086, %v2084
        %v2803 = vpack.c.b16 %v2087, %v2085
        %v2804 = vpack.c.b16 %v2090, %v2088
        %v2805 = vpack.c.b16 %v2091, %v2089
        %v2806 = vpack.c.b16 %v2094, %v2092
        %v2807 = vpack.c.b16 %v2095, %v2093
        %v2808 = vpack.c.b16 %v2098, %v2096
        %v2809 = vpack.c.b16 %v2099, %v2097
        %v2810 = vpack.c.b16 %v2102, %v2100
        %v2811 = vpack.c.b16 %v2103, %v2101
        %v2812 = vpack.c.b16 %v2106, %v2104
        %v2813 = vpack.c.b16 %v2107, %v2105
        %v2814 = vpack.c.b16 %v2110, %v2108
        %v2815 = vpack.c.b16 %v2111, %v2109
        %v2816 = vpack.c.b16 %v2114, %v2112
        %v2817 = vpack.c.b16 %v2115, %v2113
        %v2818 = vpack.c.b16 %v2118, %v2116
        %v2819 = vpack.c.b16 %v2119, %v2117
        %v2820 = vpack.c.b16 %v2122, %v2120
        %v2821 = vpack.c.b16 %v2123, %v2121
        %v2822 = vpack.c.b16 %v2126, %v2124
        %v2823 = vpack.c.b16 %v2127, %v2125
        %v2824 = vpack.c.b16 %v2130, %v2128
        %v2825 = vpack.c.b16 %v2131, %v2129
        %v2826 = vpack.c.b16 %v2134, %v2132
        %v2827 = vpack.c.b16 %v2135, %v2133
        %v2828 = vpack.c.b16 %v2138, %v2136
        %v2829 = vpack.c.b16 %v2139, %v2137
        %v2830 = vpack.c.b16 %v2142, %v2140
        %v2831 = vpack.c.b16 %v2143, %v2141
        %v2832 = vpack.c.b16 %v2146, %v2144
        %v2833 = vpack.c.b16 %v2147, %v2145
        %v2834 = vpack.c.b16 %v2150, %v2148
        %v2835 = vpack.c.b16 %v2151, %v2149
        %v2836 = vpack.c.b16 %v2154, %v2152
        %v2837 = vpack.c.b16 %v2155, %v2153
        %v2838 = vpack.c.b16 %v2158, %v2156
        %v2839 = vpack.c.b16 %v2159, %v2157
        %v2840 = vpack.c.b16 %v2162, %v2160
        %v2841 = vpack.c.b16 %v2163, %v2161
        %v2842 = vpack.c.b16 %v2166, %v2164
        %v2843 = vpack.c.b16 %v2167, %v2165
        %v2844 = vpack.c.b16 %v2170, %v2168
        %v2845 = vpack.c.b16 %v2171, %v2169
        %v2846 = vpack.c.b16 %v2174, %v2172
        %v2847 = vpack.c.b16 %v2175, %v2173
        %v2848 = vpack.c.b16 %v2178, %v2176
        %v2849 = vpack.c.b16 %v2179, %v2177
        %v2850 = vpack.c.b16 %v2182, %v2180
        %v2851 = vpack.c.b16 %v2183, %v2181
        %v2852 = vpack.c.b16 %v2186, %v2184
        %v2853 = vpack.c.b16 %v2187, %v2185
        %v2854 = vpack.c.b16 %v2190, %v2188
        %v2855 = vpack.c.b16 %v2191, %v2189
        %v2856 = vpack.c.b16 %v2194, %v2192
        %v2857 = vpack.c.b16 %v2195, %v2193
        %v2858 = vpack.c.b16 %v2198, %v2196
        %v2859 = vpack.c.b16 %v2199, %v2197
        %v2860 = vpack.c.b16 %v2202, %v2200
        %v2861 = vpack.c.b16 %v2203, %v2201
        %v2862 = vpack.c.b16 %v2206, %v2204
        %v2863 = vpack.c.b16 %v2207, %v2205
        %v2864 = vpack.c.b16 %v2210, %v2208
        %v2865 = vpack.c.b16 %v2211, %v2209
        %v2866 = vpack.c.b16 %v2214, %v2212
        %v2867 = vpack.c.b16 %v2215, %v2213
        %v2868 = vpack.c.b16 %v2218, %v2216
        %v2869 = vpack.c.b16 %v2219, %v2217
        %v2870 = vpack.c.b16 %v2222, %v2220
        %v2871 = vpack.c.b16 %v2223, %v2221
        %v2872 = vpack.c.b16 %v2226, %v2224
        %v2873 = vpack.c.b16 %v2227, %v2225
        %v2874 = vpack.c.b16 %v2230, %v2228
        %v2875 = vpack.c.b16 %v2231, %v2229
        %v2876 = vpack.c.b16 %v2234, %v2232
        %v2877 = vpack.c.b16 %v2235, %v2233
        %v2878 = vpack.c.b16 %v2238, %v2236
        %v2879 = vpack.c.b16 %v2239, %v2237
        %v2880 = vpack.c.b16 %v2242, %v2240
        %v2881 = vpack.c.b16 %v2243, %v2241
        %v2882 = vpack.c.b16 %v2246, %v2244
        %v2883 = vpack.c.b16 %v2247, %v2245
        %v2884 = vpack.c.b16 %v2250, %v2248
        %v2885 = vpack.c.b16 %v2251, %v2249
        %v2886 = vpack.c.b16 %v2254, %v2252
        %v2887 = vpack.c.b16 %v2255, %v2253
        %v2888 = vpack.c.b16 %v2258, %v2256
        %v2889 = vpack.c.b16 %v2259, %v2257
        %v2890 = vpack.c.b16 %v2262, %v2260
        %v2891 = vpack.c.b16 %v2263, %v2261
        %v2892 = vpack.c.b16 %v2266, %v2264
        %v2893 = vpack.c.b16 %v2267, %v2265
        %v2894 = vpack.c.b16 %v2270, %v2268
        %v2895 = vpack.c.b16 %v2271, %v2269
        %v2896 = vpack.c.b16 %v2274, %v2272
        %v2897 = vpack.c.b16 %v2275, %v2273
        %v2898 = vpack.c.b16 %v2278, %v2276
        %v2899 = vpack.c.b16 %v2279, %v2277
        %v2900 = vpack.c.b16 %v2282, %v2280
        %v2901 = vpack.c.b16 %v2283, %v2281
        %v2902 = vpack.c.b16 %v2286, %v2284
        %v2903 = vpack.c.b16 %v2287, %v2285
        %v2904 = vpack.c.b16 %v2290, %v2288
        %v2905 = vpack.c.b16 %v2291, %v2289
        %v2906 = vpack.c.b16 %v2294, %v2292
        %v2907 = vpack.c.b16 %v2295, %v2293
        %v2908 = vpack.c.b16 %v2298, %v2296
        %v2909 = vpack.c.b16 %v2299, %v2297
        %v2910 = vpack.c.b16 %v2302, %v2300
        %v2911 = vpack.c.b16 %v2303, %v2301
        %v2912 = vpack.c.b16 %v2306, %v2304
        %v2913 = vpack.c.b16 %v2307, %v2305
        %v2914 = vpack.c.b16 %v2310, %v2308
        %v2915 = vpack.c.b16 %v2311, %v2309
        %v2916 = vpack.c.b16 %v2314, %v2312
        %v2917 = vpack.c.b16 %v2315, %v2313
        %v2918 = vpack.c.b16 %v2318, %v2316
        %v2919 = vpack.c.b16 %v2319, %v2317
        %v2920 = vpack.c.b16 %v2322, %v2320
        %v2921 = vpack.c.b16 %v2323, %v2321
        %v2922 = vpack.c.b16 %v2326, %v2324
        %v2923 = vpack.c.b16 %v2327, %v2325
        %v2924 = vpack.c.b16 %v2330, %v2328
        %v2925 = vpack.c.b16 %v2331, %v2329
        %v2926 = vpack.c.b16 %v2334, %v2332
        %v2927 = vpack.c.b16 %v2335, %v2333
        %v2928 = vpack.c.b16 %v2338, %v2336
        %v2929 = vpack.c.b16 %v2339, %v2337
        %v2930 = vpack.c.b16 %v2342, %v2340
        %v2931 = vpack.c.b16 %v2343, %v2341
        %v2932 = vpack.c.b16 %v2346, %v2344
        %v2933 = vpack.c.b16 %v2347, %v2345
        %v2934 = vpack.c.b16 %v2350, %v2348
        %v2935 = vpack.c.b16 %v2351, %v2349
        %v2936 = vpack.c.b16 %v2354, %v2352
        %v2937 = vpack.c.b16 %v2355, %v2353
        %v2938 = vpack.c.b16 %v2358, %v2356
        %v2939 = vpack.c.b16 %v2359, %v2357
        %v2940 = vpack.c.b16 %v2362, %v2360
        %v2941 = vpack.c.b16 %v2363, %v2361
        %v2942 = vpack.c.b16 %v2366, %v2364
        %v2943 = vpack.c.b16 %v2367, %v2365
        %v2944 = vpack.c.b16 %v2370, %v2368
        %v2945 = vpack.c.b16 %v2371, %v2369
        %v2946 = vpack.c.b16 %v2374, %v2372
        %v2947 = vpack.c.b16 %v2375, %v2373
        %v2948 = vpack.c.b16 %v2378, %v2376
        %v2949 = vpack.c.b16 %v2379, %v2377
        %v2950 = vpack.c.b16 %v2382, %v2380
        %v2951 = vpack.c.b16 %v2383, %v2381
        %v2952 = vpack.c.b16 %v2386, %v2384
        %v2953 = vpack.c.b16 %v2387, %v2385
        %v2954 = vpack.c.b16 %v2390, %v2388
        %v2955 = vpack.c.b16 %v2391, %v2389
        %v2956 = vpack.c.b16 %v2394, %v2392
        %v2957 = vpack.c.b16 %v2395, %v2393
        %v2958 = vpack.c.b16 %v2398, %v2396
        %v2959 = vpack.c.b16 %v2399, %v2397
        %v2960 = vpack.c.b16 %v2402, %v2400
        %v2961 = vpack.c.b16 %v2403, %v2401
        %v2962 = vpack.c.b16 %v2406, %v2404
        %v2963 = vpack.c.b16 %v2407, %v2405
        %v2964 = vpack.c.b16 %v2410, %v2408
        %v2965 = vpack.c.b16 %v2411, %v2409
        %v2966 = vpack.c.b16 %v2414, %v2412
        %v2967 = vpack.c.b16 %v2415, %v2413
        %v2968 = vpack.c.b16 %v2418, %v2416
        %v2969 = vpack.c.b16 %v2419, %v2417
        %v2970 = vpack.c.b16 %v2422, %v2420
        %v2971 = vpack.c.b16 %v2423, %v2421
        %v2972 = vpack.c.b16 %v2426, %v2424
        %v2973 = vpack.c.b16 %v2427, %v2425
        %v2974 = vpack.c.b16 %v2430, %v2428
        %v2975 = vpack.c.b16 %v2431, %v2429
        %v2976 = vpack.c.b16 %v2434, %v2432
        %v2977 = vpack.c.b16 %v2435, %v2433
        %v2978 = vpack.c.b16 %v2438, %v2436
        %v2979 = vpack.c.b16 %v2439, %v2437
        %v2980 = vpack.c.b16 %v2442, %v2440
        %v2981 = vpack.c.b16 %v2443, %v2441
        %v2982 = vpack.c.b16 %v2446, %v2444
        %v2983 = vpack.c.b16 %v2447, %v2445
        %v2984 = vpack.c.b16 %v2450, %v2448
        %v2985 = vpack.c.b16 %v2451, %v2449
        %v2986 = vpack.c.b16 %v2454, %v2452
        %v2987 = vpack.c.b16 %v2455, %v2453
        %v2988 = vpack.c.b16 %v2458, %v2456
        %v2989 = vpack.c.b16 %v2459, %v2457
        %v2990 = vpack.c.b16 %v2462, %v2460
        %v2991 = vpack.c.b16 %v2463, %v2461
        %v2992 = vpack.c.b16 %v2466, %v2464
        %v2993 = vpack.c.b16 %v2467, %v2465
        %v2994 = vpack.c.b16 %v2470, %v2468
        %v2995 = vpack.c.b16 %v2471, %v2469
        %v2996 = vpack.c.b16 %v2474, %v2472
        %v2997 = vpack.c.b16 %v2475, %v2473
        %v2998 = vpack.c.b16 %v2478, %v2476
        %v2999 = vpack.c.b16 %v2479, %v2477
        %v3000 = vpack.c.b16 %v2482, %v2480
        %v3001 = vpack.c.b16 %v2483, %v2481
        %v3002 = vpack.c.b16 %v2486, %v2484
        %v3003 = vpack.c.b16 %v2487, %v2485
        %v3004 = vpack.c.b16 %v2490, %v2488
        %v3005 = vpack.c.b16 %v2491, %v2489
        %v3006 = vpack.c.b16 %v2494, %v2492
        %v3007 = vpack.c.b16 %v2495, %v2493
        %3520 = vmatpush.bf16.msra.mxu0 %v2510
        %3521 = vmatpush.bf16.msra.mxu0 %v2508
        %3522 = vmatpush.bf16.msra.mxu0 %v2506
        %3523 = vmatpush.bf16.msra.mxu0 %v2504
        %3524 = vmatpush.bf16.msra.mxu0 %v2502
        %3525 = vmatpush.bf16.msra.mxu0 %v2500
        %3526 = vmatpush.bf16.msra.mxu0 %v2498
        %3527 = vmatpush.bf16.msra.mxu0 %v2496
        %3528 = vmatmul.bf16.gmra.mxu0 %v890
        %v3529 = vpop.f32.mrf.mxu0
        %v3530 = vadd.f32 %v884, %v3529
        %v3531 = vpop.f32.mrf.mxu0
        %3532 = vdwg.mxu0
        %3533 = vmatpush.bf16.msra.mxu0 %v2526
        %3534 = vmatpush.bf16.msra.mxu0 %v2524
        %3535 = vmatpush.bf16.msra.mxu0 %v2522
        %3536 = vmatpush.bf16.msra.mxu0 %v2520
        %3537 = vmatpush.bf16.msra.mxu0 %v2518
        %3538 = vmatpush.bf16.msra.mxu0 %v2516
        %3539 = vmatpush.bf16.msra.mxu0 %v2514
        %3540 = vmatpush.bf16.msra.mxu0 %v2512
        %3541 = vmatmul.bf16.gmra.mxu0 %v891
        %v3542 = vpop.f32.mrf.mxu0
        %v3543 = vadd.f32 %v3530, %v3542
        %v3544 = vpop.f32.mrf.mxu0
        %3545 = vdwg.mxu0
        %3546 = vmatpush.bf16.msra.mxu0 %v2542
        %3547 = vmatpush.bf16.msra.mxu0 %v2540
        %3548 = vmatpush.bf16.msra.mxu0 %v2538
        %3549 = vmatpush.bf16.msra.mxu0 %v2536
        %3550 = vmatpush.bf16.msra.mxu0 %v2534
        %3551 = vmatpush.bf16.msra.mxu0 %v2532
        %3552 = vmatpush.bf16.msra.mxu0 %v2530
        %3553 = vmatpush.bf16.msra.mxu0 %v2528
        %3554 = vmatmul.bf16.gmra.mxu0 %v892
        %v3555 = vpop.f32.mrf.mxu0
        %v3556 = vadd.f32 %v3543, %v3555
        %v3557 = vpop.f32.mrf.mxu0
        %3558 = vdwg.mxu0
        %3559 = vmatpush.bf16.msra.mxu0 %v2558
        %3560 = vmatpush.bf16.msra.mxu0 %v2556
        %3561 = vmatpush.bf16.msra.mxu0 %v2554
        %3562 = vmatpush.bf16.msra.mxu0 %v2552
        %3563 = vmatpush.bf16.msra.mxu0 %v2550
        %3564 = vmatpush.bf16.msra.mxu0 %v2548
        %3565 = vmatpush.bf16.msra.mxu0 %v2546
        %3566 = vmatpush.bf16.msra.mxu0 %v2544
        %3567 = vmatmul.bf16.gmra.mxu0 %v893
        %v3568 = vpop.f32.mrf.mxu0
        %v3569 = vadd.f32 %v3556, %v3568
        %v3570 = vpop.f32.mrf.mxu0
        %3571 = vdwg.mxu0
        %3572 = vmatpush.bf16.msra.mxu0 %v2574
        %3573 = vmatpush.bf16.msra.mxu0 %v2572
        %3574 = vmatpush.bf16.msra.mxu0 %v2570
        %3575 = vmatpush.bf16.msra.mxu0 %v2568
        %3576 = vmatpush.bf16.msra.mxu0 %v2566
        %3577 = vmatpush.bf16.msra.mxu0 %v2564
        %3578 = vmatpush.bf16.msra.mxu0 %v2562
        %3579 = vmatpush.bf16.msra.mxu0 %v2560
        %3580 = vmatmul.bf16.gmra.mxu0 %v894
        %v3581 = vpop.f32.mrf.mxu0
        %v3582 = vadd.f32 %v3569, %v3581
        %v3583 = vpop.f32.mrf.mxu0
        %3584 = vdwg.mxu0
        %3585 = vmatpush.bf16.msra.mxu0 %v2590
        %3586 = vmatpush.bf16.msra.mxu0 %v2588
        %3587 = vmatpush.bf16.msra.mxu0 %v2586
        %3588 = vmatpush.bf16.msra.mxu0 %v2584
        %3589 = vmatpush.bf16.msra.mxu0 %v2582
        %3590 = vmatpush.bf16.msra.mxu0 %v2580
        %3591 = vmatpush.bf16.msra.mxu0 %v2578
        %3592 = vmatpush.bf16.msra.mxu0 %v2576
        %3593 = vmatmul.bf16.gmra.mxu0 %v895
        %v3594 = vpop.f32.mrf.mxu0
        %v3595 = vadd.f32 %v3582, %v3594
        %v3596 = vpop.f32.mrf.mxu0
        %3597 = vdwg.mxu0
        %3598 = vmatpush.bf16.msra.mxu0 %v2606
        %3599 = vmatpush.bf16.msra.mxu0 %v2604
        %3600 = vmatpush.bf16.msra.mxu0 %v2602
        %3601 = vmatpush.bf16.msra.mxu0 %v2600
        %3602 = vmatpush.bf16.msra.mxu0 %v2598
        %3603 = vmatpush.bf16.msra.mxu0 %v2596
        %3604 = vmatpush.bf16.msra.mxu0 %v2594
        %3605 = vmatpush.bf16.msra.mxu0 %v2592
        %3606 = vmatmul.bf16.gmra.mxu0 %v896
        %v3607 = vpop.f32.mrf.mxu0
        %v3608 = vadd.f32 %v3595, %v3607
        %v3609 = vpop.f32.mrf.mxu0
        %3610 = vdwg.mxu0
        %3611 = vmatpush.bf16.msra.mxu0 %v2622
        %3612 = vmatpush.bf16.msra.mxu0 %v2620
        %3613 = vmatpush.bf16.msra.mxu0 %v2618
        %3614 = vmatpush.bf16.msra.mxu0 %v2616
        %3615 = vmatpush.bf16.msra.mxu0 %v2614
        %3616 = vmatpush.bf16.msra.mxu0 %v2612
        %3617 = vmatpush.bf16.msra.mxu0 %v2610
        %3618 = vmatpush.bf16.msra.mxu0 %v2608
        %3619 = vmatmul.bf16.gmra.mxu0 %v897
        %v3620 = vpop.f32.mrf.mxu0
        %v3621 = vadd.f32 %v3608, %v3620
        %v3622 = vpop.f32.mrf.mxu0
        %3623 = vdwg.mxu0
        %3624 = vmatpush.bf16.msra.mxu0 %v2638
        %3625 = vmatpush.bf16.msra.mxu0 %v2636
        %3626 = vmatpush.bf16.msra.mxu0 %v2634
        %3627 = vmatpush.bf16.msra.mxu0 %v2632
        %3628 = vmatpush.bf16.msra.mxu0 %v2630
        %3629 = vmatpush.bf16.msra.mxu0 %v2628
        %3630 = vmatpush.bf16.msra.mxu0 %v2626
        %3631 = vmatpush.bf16.msra.mxu0 %v2624
        %3632 = vmatmul.bf16.gmra.mxu0 %v900
        %v3633 = vpop.f32.mrf.mxu0
        %v3634 = vadd.f32 %v3621, %v3633
        %v3635 = vpop.f32.mrf.mxu0
        %3636 = vdwg.mxu0
        %3637 = vmatpush.bf16.msra.mxu0 %v2654
        %3638 = vmatpush.bf16.msra.mxu0 %v2652
        %3639 = vmatpush.bf16.msra.mxu0 %v2650
        %3640 = vmatpush.bf16.msra.mxu0 %v2648
        %3641 = vmatpush.bf16.msra.mxu0 %v2646
        %3642 = vmatpush.bf16.msra.mxu0 %v2644
        %3643 = vmatpush.bf16.msra.mxu0 %v2642
        %3644 = vmatpush.bf16.msra.mxu0 %v2640
        %3645 = vmatmul.bf16.gmra.mxu0 %v901
        %v3646 = vpop.f32.mrf.mxu0
        %v3647 = vadd.f32 %v3634, %v3646
        %v3648 = vpop.f32.mrf.mxu0
        %3649 = vdwg.mxu0
        %3650 = vmatpush.bf16.msra.mxu0 %v2670
        %3651 = vmatpush.bf16.msra.mxu0 %v2668
        %3652 = vmatpush.bf16.msra.mxu0 %v2666
        %3653 = vmatpush.bf16.msra.mxu0 %v2664
        %3654 = vmatpush.bf16.msra.mxu0 %v2662
        %3655 = vmatpush.bf16.msra.mxu0 %v2660
        %3656 = vmatpush.bf16.msra.mxu0 %v2658
        %3657 = vmatpush.bf16.msra.mxu0 %v2656
        %3658 = vmatmul.bf16.gmra.mxu0 %v902
        %v3659 = vpop.f32.mrf.mxu0
        %v3660 = vadd.f32 %v3647, %v3659
        %v3661 = vpop.f32.mrf.mxu0
        %3662 = vdwg.mxu0
        %3663 = vmatpush.bf16.msra.mxu0 %v2686
        %3664 = vmatpush.bf16.msra.mxu0 %v2684
        %3665 = vmatpush.bf16.msra.mxu0 %v2682
        %3666 = vmatpush.bf16.msra.mxu0 %v2680
        %3667 = vmatpush.bf16.msra.mxu0 %v2678
        %3668 = vmatpush.bf16.msra.mxu0 %v2676
        %3669 = vmatpush.bf16.msra.mxu0 %v2674
        %3670 = vmatpush.bf16.msra.mxu0 %v2672
        %3671 = vmatmul.bf16.gmra.mxu0 %v903
        %v3672 = vpop.f32.mrf.mxu0
        %v3673 = vadd.f32 %v3660, %v3672
        %v3674 = vpop.f32.mrf.mxu0
        %3675 = vdwg.mxu0
        %3676 = vmatpush.bf16.msra.mxu0 %v2702
        %3677 = vmatpush.bf16.msra.mxu0 %v2700
        %3678 = vmatpush.bf16.msra.mxu0 %v2698
        %3679 = vmatpush.bf16.msra.mxu0 %v2696
        %3680 = vmatpush.bf16.msra.mxu0 %v2694
        %3681 = vmatpush.bf16.msra.mxu0 %v2692
        %3682 = vmatpush.bf16.msra.mxu0 %v2690
        %3683 = vmatpush.bf16.msra.mxu0 %v2688
        %3684 = vmatmul.bf16.gmra.mxu0 %v904
        %v3685 = vpop.f32.mrf.mxu0
        %v3686 = vadd.f32 %v3673, %v3685
        %v3687 = vpop.f32.mrf.mxu0
        %3688 = vdwg.mxu0
        %3689 = vmatpush.bf16.msra.mxu0 %v2718
        %3690 = vmatpush.bf16.msra.mxu0 %v2716
        %3691 = vmatpush.bf16.msra.mxu0 %v2714
        %3692 = vmatpush.bf16.msra.mxu0 %v2712
        %3693 = vmatpush.bf16.msra.mxu0 %v2710
        %3694 = vmatpush.bf16.msra.mxu0 %v2708
        %3695 = vmatpush.bf16.msra.mxu0 %v2706
        %3696 = vmatpush.bf16.msra.mxu0 %v2704
        %3697 = vmatmul.bf16.gmra.mxu0 %v905
        %v3698 = vpop.f32.mrf.mxu0
        %v3699 = vadd.f32 %v3686, %v3698
        %v3700 = vpop.f32.mrf.mxu0
        %3701 = vdwg.mxu0
        %3702 = vmatpush.bf16.msra.mxu0 %v2734
        %3703 = vmatpush.bf16.msra.mxu0 %v2732
        %3704 = vmatpush.bf16.msra.mxu0 %v2730
        %3705 = vmatpush.bf16.msra.mxu0 %v2728
        %3706 = vmatpush.bf16.msra.mxu0 %v2726
        %3707 = vmatpush.bf16.msra.mxu0 %v2724
        %3708 = vmatpush.bf16.msra.mxu0 %v2722
        %3709 = vmatpush.bf16.msra.mxu0 %v2720
        %3710 = vmatmul.bf16.gmra.mxu0 %v906
        %v3711 = vpop.f32.mrf.mxu0
        %v3712 = vadd.f32 %v3699, %v3711
        %v3713 = vpop.f32.mrf.mxu0
        %3714 = vdwg.mxu0
        %3715 = vmatpush.bf16.msra.mxu0 %v2750
        %3716 = vmatpush.bf16.msra.mxu0 %v2748
        %3717 = vmatpush.bf16.msra.mxu0 %v2746
        %3718 = vmatpush.bf16.msra.mxu0 %v2744
        %3719 = vmatpush.bf16.msra.mxu0 %v2742
        %3720 = vmatpush.bf16.msra.mxu0 %v2740
        %3721 = vmatpush.bf16.msra.mxu0 %v2738
        %3722 = vmatpush.bf16.msra.mxu0 %v2736
        %3723 = vmatmul.bf16.gmra.mxu0 %v907
        %v3724 = vpop.f32.mrf.mxu0
        %v3725 = vadd.f32 %v3712, %v3724
        %v3726 = vpop.f32.mrf.mxu0
        %3727 = vdwg.mxu0
        %3728 = vmatpush.bf16.msra.mxu0 %v2766
        %3729 = vmatpush.bf16.msra.mxu0 %v2764
        %3730 = vmatpush.bf16.msra.mxu0 %v2762
        %3731 = vmatpush.bf16.msra.mxu0 %v2760
        %3732 = vmatpush.bf16.msra.mxu0 %v2758
        %3733 = vmatpush.bf16.msra.mxu0 %v2756
        %3734 = vmatpush.bf16.msra.mxu0 %v2754
        %3735 = vmatpush.bf16.msra.mxu0 %v2752
        %3736 = vmatmul.bf16.gmra.mxu0 %v910
        %v3737 = vpop.f32.mrf.mxu0
        %v3738 = vadd.f32 %v3725, %v3737
        %v3739 = vpop.f32.mrf.mxu0
        %3740 = vdwg.mxu0
        %3741 = vmatpush.bf16.msra.mxu0 %v2782
        %3742 = vmatpush.bf16.msra.mxu0 %v2780
        %3743 = vmatpush.bf16.msra.mxu0 %v2778
        %3744 = vmatpush.bf16.msra.mxu0 %v2776
        %3745 = vmatpush.bf16.msra.mxu0 %v2774
        %3746 = vmatpush.bf16.msra.mxu0 %v2772
        %3747 = vmatpush.bf16.msra.mxu0 %v2770
        %3748 = vmatpush.bf16.msra.mxu0 %v2768
        %3749 = vmatmul.bf16.gmra.mxu0 %v911
        %v3750 = vpop.f32.mrf.mxu0
        %v3751 = vadd.f32 %v3738, %v3750
        %v3752 = vpop.f32.mrf.mxu0
        %3753 = vdwg.mxu0
        %3754 = vmatpush.bf16.msra.mxu0 %v2798
        %3755 = vmatpush.bf16.msra.mxu0 %v2796
        %3756 = vmatpush.bf16.msra.mxu0 %v2794
        %3757 = vmatpush.bf16.msra.mxu0 %v2792
        %3758 = vmatpush.bf16.msra.mxu0 %v2790
        %3759 = vmatpush.bf16.msra.mxu0 %v2788
        %3760 = vmatpush.bf16.msra.mxu0 %v2786
        %3761 = vmatpush.bf16.msra.mxu0 %v2784
        %3762 = vmatmul.bf16.gmra.mxu0 %v912
        %v3763 = vpop.f32.mrf.mxu0
        %v3764 = vadd.f32 %v3751, %v3763
        %v3765 = vpop.f32.mrf.mxu0
        %3766 = vdwg.mxu0
        %3767 = vmatpush.bf16.msra.mxu0 %v2814
        %3768 = vmatpush.bf16.msra.mxu0 %v2812
        %3769 = vmatpush.bf16.msra.mxu0 %v2810
        %3770 = vmatpush.bf16.msra.mxu0 %v2808
        %3771 = vmatpush.bf16.msra.mxu0 %v2806
        %3772 = vmatpush.bf16.msra.mxu0 %v2804
        %3773 = vmatpush.bf16.msra.mxu0 %v2802
        %3774 = vmatpush.bf16.msra.mxu0 %v2800
        %3775 = vmatmul.bf16.gmra.mxu0 %v913
        %v3776 = vpop.f32.mrf.mxu0
        %v3777 = vadd.f32 %v3764, %v3776
        %v3778 = vpop.f32.mrf.mxu0
        %3779 = vdwg.mxu0
        %3780 = vmatpush.bf16.msra.mxu0 %v2830
        %3781 = vmatpush.bf16.msra.mxu0 %v2828
        %3782 = vmatpush.bf16.msra.mxu0 %v2826
        %3783 = vmatpush.bf16.msra.mxu0 %v2824
        %3784 = vmatpush.bf16.msra.mxu0 %v2822
        %3785 = vmatpush.bf16.msra.mxu0 %v2820
        %3786 = vmatpush.bf16.msra.mxu0 %v2818
        %3787 = vmatpush.bf16.msra.mxu0 %v2816
        %3788 = vmatmul.bf16.gmra.mxu0 %v914
        %v3789 = vpop.f32.mrf.mxu0
        %v3790 = vadd.f32 %v3777, %v3789
        %v3791 = vpop.f32.mrf.mxu0
        %3792 = vdwg.mxu0
        %3793 = vmatpush.bf16.msra.mxu0 %v2846
        %3794 = vmatpush.bf16.msra.mxu0 %v2844
        %3795 = vmatpush.bf16.msra.mxu0 %v2842
        %3796 = vmatpush.bf16.msra.mxu0 %v2840
        %3797 = vmatpush.bf16.msra.mxu0 %v2838
        %3798 = vmatpush.bf16.msra.mxu0 %v2836
        %3799 = vmatpush.bf16.msra.mxu0 %v2834
        %3800 = vmatpush.bf16.msra.mxu0 %v2832
        %3801 = vmatmul.bf16.gmra.mxu0 %v915
        %v3802 = vpop.f32.mrf.mxu0
        %v3803 = vadd.f32 %v3790, %v3802
        %v3804 = vpop.f32.mrf.mxu0
        %3805 = vdwg.mxu0
        %3806 = vmatpush.bf16.msra.mxu0 %v2862
        %3807 = vmatpush.bf16.msra.mxu0 %v2860
        %3808 = vmatpush.bf16.msra.mxu0 %v2858
        %3809 = vmatpush.bf16.msra.mxu0 %v2856
        %3810 = vmatpush.bf16.msra.mxu0 %v2854
        %3811 = vmatpush.bf16.msra.mxu0 %v2852
        %3812 = vmatpush.bf16.msra.mxu0 %v2850
        %3813 = vmatpush.bf16.msra.mxu0 %v2848
        %3814 = vmatmul.bf16.gmra.mxu0 %v916
        %v3815 = vpop.f32.mrf.mxu0
        %v3816 = vadd.f32 %v3803, %v3815
        %v3817 = vpop.f32.mrf.mxu0
        %3818 = vdwg.mxu0
        %3819 = vmatpush.bf16.msra.mxu0 %v2878
        %3820 = vmatpush.bf16.msra.mxu0 %v2876
        %3821 = vmatpush.bf16.msra.mxu0 %v2874
        %3822 = vmatpush.bf16.msra.mxu0 %v2872
        %3823 = vmatpush.bf16.msra.mxu0 %v2870
        %3824 = vmatpush.bf16.msra.mxu0 %v2868
        %3825 = vmatpush.bf16.msra.mxu0 %v2866
        %3826 = vmatpush.bf16.msra.mxu0 %v2864
        %3827 = vmatmul.bf16.gmra.mxu0 %v917
        %v3828 = vpop.f32.mrf.mxu0
        %v3829 = vadd.f32 %v3816, %v3828
        %v3830 = vpop.f32.mrf.mxu0
        %3831 = vdwg.mxu0
        %3832 = vmatpush.bf16.msra.mxu0 %v2894
        %3833 = vmatpush.bf16.msra.mxu0 %v2892
        %3834 = vmatpush.bf16.msra.mxu0 %v2890
        %3835 = vmatpush.bf16.msra.mxu0 %v2888
        %3836 = vmatpush.bf16.msra.mxu0 %v2886
        %3837 = vmatpush.bf16.msra.mxu0 %v2884
        %3838 = vmatpush.bf16.msra.mxu0 %v2882
        %3839 = vmatpush.bf16.msra.mxu0 %v2880
        %3840 = vmatmul.bf16.gmra.mxu0 %v920
        %v3841 = vpop.f32.mrf.mxu0
        %v3842 = vadd.f32 %v3829, %v3841
        %v3843 = vpop.f32.mrf.mxu0
        %3844 = vdwg.mxu0
        %3845 = vmatpush.bf16.msra.mxu0 %v2910
        %3846 = vmatpush.bf16.msra.mxu0 %v2908
        %3847 = vmatpush.bf16.msra.mxu0 %v2906
        %3848 = vmatpush.bf16.msra.mxu0 %v2904
        %3849 = vmatpush.bf16.msra.mxu0 %v2902
        %3850 = vmatpush.bf16.msra.mxu0 %v2900
        %3851 = vmatpush.bf16.msra.mxu0 %v2898
        %3852 = vmatpush.bf16.msra.mxu0 %v2896
        %3853 = vmatmul.bf16.gmra.mxu0 %v921
        %v3854 = vpop.f32.mrf.mxu0
        %v3855 = vadd.f32 %v3842, %v3854
        %v3856 = vpop.f32.mrf.mxu0
        %3857 = vdwg.mxu0
        %3858 = vmatpush.bf16.msra.mxu0 %v2926
        %3859 = vmatpush.bf16.msra.mxu0 %v2924
        %3860 = vmatpush.bf16.msra.mxu0 %v2922
        %3861 = vmatpush.bf16.msra.mxu0 %v2920
        %3862 = vmatpush.bf16.msra.mxu0 %v2918
        %3863 = vmatpush.bf16.msra.mxu0 %v2916
        %3864 = vmatpush.bf16.msra.mxu0 %v2914
        %3865 = vmatpush.bf16.msra.mxu0 %v2912
        %3866 = vmatmul.bf16.gmra.mxu0 %v922
        %v3867 = vpop.f32.mrf.mxu0
        %v3868 = vadd.f32 %v3855, %v3867
        %v3869 = vpop.f32.mrf.mxu0
        %3870 = vdwg.mxu0
        %3871 = vmatpush.bf16.msra.mxu0 %v2942
        %3872 = vmatpush.bf16.msra.mxu0 %v2940
        %3873 = vmatpush.bf16.msra.mxu0 %v2938
        %3874 = vmatpush.bf16.msra.mxu0 %v2936
        %3875 = vmatpush.bf16.msra.mxu0 %v2934
        %3876 = vmatpush.bf16.msra.mxu0 %v2932
        %3877 = vmatpush.bf16.msra.mxu0 %v2930
        %3878 = vmatpush.bf16.msra.mxu0 %v2928
        %3879 = vmatmul.bf16.gmra.mxu0 %v923
        %v3880 = vpop.f32.mrf.mxu0
        %v3881 = vadd.f32 %v3868, %v3880
        %v3882 = vpop.f32.mrf.mxu0
        %3883 = vdwg.mxu0
        %3884 = vmatpush.bf16.msra.mxu0 %v2958
        %3885 = vmatpush.bf16.msra.mxu0 %v2956
        %3886 = vmatpush.bf16.msra.mxu0 %v2954
        %3887 = vmatpush.bf16.msra.mxu0 %v2952
        %3888 = vmatpush.bf16.msra.mxu0 %v2950
        %3889 = vmatpush.bf16.msra.mxu0 %v2948
        %3890 = vmatpush.bf16.msra.mxu0 %v2946
        %3891 = vmatpush.bf16.msra.mxu0 %v2944
        %3892 = vmatmul.bf16.gmra.mxu0 %v924
        %v3893 = vpop.f32.mrf.mxu0
        %v3894 = vadd.f32 %v3881, %v3893
        %v3895 = vpop.f32.mrf.mxu0
        %3896 = vdwg.mxu0
        %3897 = vmatpush.bf16.msra.mxu0 %v2974
        %3898 = vmatpush.bf16.msra.mxu0 %v2972
        %3899 = vmatpush.bf16.msra.mxu0 %v2970
        %3900 = vmatpush.bf16.msra.mxu0 %v2968
        %3901 = vmatpush.bf16.msra.mxu0 %v2966
        %3902 = vmatpush.bf16.msra.mxu0 %v2964
        %3903 = vmatpush.bf16.msra.mxu0 %v2962
        %3904 = vmatpush.bf16.msra.mxu0 %v2960
        %3905 = vmatmul.bf16.gmra.mxu0 %v925
        %v3906 = vpop.f32.mrf.mxu0
        %v3907 = vadd.f32 %v3894, %v3906
        %v3908 = vpop.f32.mrf.mxu0
        %3909 = vdwg.mxu0
        %3910 = vmatpush.bf16.msra.mxu0 %v2990
        %3911 = vmatpush.bf16.msra.mxu0 %v2988
        %3912 = vmatpush.bf16.msra.mxu0 %v2986
        %3913 = vmatpush.bf16.msra.mxu0 %v2984
        %3914 = vmatpush.bf16.msra.mxu0 %v2982
        %3915 = vmatpush.bf16.msra.mxu0 %v2980
        %3916 = vmatpush.bf16.msra.mxu0 %v2978
        %3917 = vmatpush.bf16.msra.mxu0 %v2976
        %3918 = vmatmul.bf16.gmra.mxu0 %v926
        %v3919 = vpop.f32.mrf.mxu0
        %v3920 = vadd.f32 %v3907, %v3919
        %v3921 = vpop.f32.mrf.mxu0
        %3922 = vdwg.mxu0
        %3923 = vmatpush.bf16.msra.mxu0 %v3006
        %3924 = vmatpush.bf16.msra.mxu0 %v3004
        %3925 = vmatpush.bf16.msra.mxu0 %v3002
        %3926 = vmatpush.bf16.msra.mxu0 %v3000
        %3927 = vmatpush.bf16.msra.mxu0 %v2998
        %3928 = vmatpush.bf16.msra.mxu0 %v2996
        %3929 = vmatpush.bf16.msra.mxu0 %v2994
        %3930 = vmatpush.bf16.msra.mxu0 %v2992
        %3931 = vmatmul.bf16.gmra.mxu0 %v927
        %v3932 = vpop.f32.mrf.mxu0
        %v3933 = vadd.f32 %v3920, %v3932
        %v3934 = vpop.f32.mrf.mxu0
        %3935 = vdwg.mxu0
        %3936 = vmatpush.bf16.msra.mxu0 %v2511
        %3937 = vmatpush.bf16.msra.mxu0 %v2509
        %3938 = vmatpush.bf16.msra.mxu0 %v2507
        %3939 = vmatpush.bf16.msra.mxu0 %v2505
        %3940 = vmatpush.bf16.msra.mxu0 %v2503
        %3941 = vmatpush.bf16.msra.mxu0 %v2501
        %3942 = vmatpush.bf16.msra.mxu0 %v2499
        %3943 = vmatpush.bf16.msra.mxu0 %v2497
        %3944 = vmatmul.bf16.gmra.mxu0 %v890
        %v3945 = vpop.f32.mrf.mxu0
        %v3946 = vadd.f32 %v885, %v3945
        %v3947 = vpop.f32.mrf.mxu0
        %3948 = vdwg.mxu0
        %3949 = vmatpush.bf16.msra.mxu0 %v2527
        %3950 = vmatpush.bf16.msra.mxu0 %v2525
        %3951 = vmatpush.bf16.msra.mxu0 %v2523
        %3952 = vmatpush.bf16.msra.mxu0 %v2521
        %3953 = vmatpush.bf16.msra.mxu0 %v2519
        %3954 = vmatpush.bf16.msra.mxu0 %v2517
        %3955 = vmatpush.bf16.msra.mxu0 %v2515
        %3956 = vmatpush.bf16.msra.mxu0 %v2513
        %3957 = vmatmul.bf16.gmra.mxu0 %v891
        %v3958 = vpop.f32.mrf.mxu0
        %v3959 = vadd.f32 %v3946, %v3958
        %v3960 = vpop.f32.mrf.mxu0
        %3961 = vdwg.mxu0
        %3962 = vmatpush.bf16.msra.mxu0 %v2543
        %3963 = vmatpush.bf16.msra.mxu0 %v2541
        %3964 = vmatpush.bf16.msra.mxu0 %v2539
        %3965 = vmatpush.bf16.msra.mxu0 %v2537
        %3966 = vmatpush.bf16.msra.mxu0 %v2535
        %3967 = vmatpush.bf16.msra.mxu0 %v2533
        %3968 = vmatpush.bf16.msra.mxu0 %v2531
        %3969 = vmatpush.bf16.msra.mxu0 %v2529
        %3970 = vmatmul.bf16.gmra.mxu0 %v892
        %v3971 = vpop.f32.mrf.mxu0
        %v3972 = vadd.f32 %v3959, %v3971
        %v3973 = vpop.f32.mrf.mxu0
        %3974 = vdwg.mxu0
        %3975 = vmatpush.bf16.msra.mxu0 %v2559
        %3976 = vmatpush.bf16.msra.mxu0 %v2557
        %3977 = vmatpush.bf16.msra.mxu0 %v2555
        %3978 = vmatpush.bf16.msra.mxu0 %v2553
        %3979 = vmatpush.bf16.msra.mxu0 %v2551
        %3980 = vmatpush.bf16.msra.mxu0 %v2549
        %3981 = vmatpush.bf16.msra.mxu0 %v2547
        %3982 = vmatpush.bf16.msra.mxu0 %v2545
        %3983 = vmatmul.bf16.gmra.mxu0 %v893
        %v3984 = vpop.f32.mrf.mxu0
        %v3985 = vadd.f32 %v3972, %v3984
        %v3986 = vpop.f32.mrf.mxu0
        %3987 = vdwg.mxu0
        %3988 = vmatpush.bf16.msra.mxu0 %v2575
        %3989 = vmatpush.bf16.msra.mxu0 %v2573
        %3990 = vmatpush.bf16.msra.mxu0 %v2571
        %3991 = vmatpush.bf16.msra.mxu0 %v2569
        %3992 = vmatpush.bf16.msra.mxu0 %v2567
        %3993 = vmatpush.bf16.msra.mxu0 %v2565
        %3994 = vmatpush.bf16.msra.mxu0 %v2563
        %3995 = vmatpush.bf16.msra.mxu0 %v2561
        %3996 = vmatmul.bf16.gmra.mxu0 %v894
        %v3997 = vpop.f32.mrf.mxu0
        %v3998 = vadd.f32 %v3985, %v3997
        %v3999 = vpop.f32.mrf.mxu0
        %4000 = vdwg.mxu0
        %4001 = vmatpush.bf16.msra.mxu0 %v2591
        %4002 = vmatpush.bf16.msra.mxu0 %v2589
        %4003 = vmatpush.bf16.msra.mxu0 %v2587
        %4004 = vmatpush.bf16.msra.mxu0 %v2585
        %4005 = vmatpush.bf16.msra.mxu0 %v2583
        %4006 = vmatpush.bf16.msra.mxu0 %v2581
        %4007 = vmatpush.bf16.msra.mxu0 %v2579
        %4008 = vmatpush.bf16.msra.mxu0 %v2577
        %4009 = vmatmul.bf16.gmra.mxu0 %v895
        %v4010 = vpop.f32.mrf.mxu0
        %v4011 = vadd.f32 %v3998, %v4010
        %v4012 = vpop.f32.mrf.mxu0
        %4013 = vdwg.mxu0
        %4014 = vmatpush.bf16.msra.mxu0 %v2607
        %4015 = vmatpush.bf16.msra.mxu0 %v2605
        %4016 = vmatpush.bf16.msra.mxu0 %v2603
        %4017 = vmatpush.bf16.msra.mxu0 %v2601
        %4018 = vmatpush.bf16.msra.mxu0 %v2599
        %4019 = vmatpush.bf16.msra.mxu0 %v2597
        %4020 = vmatpush.bf16.msra.mxu0 %v2595
        %4021 = vmatpush.bf16.msra.mxu0 %v2593
        %4022 = vmatmul.bf16.gmra.mxu0 %v896
        %v4023 = vpop.f32.mrf.mxu0
        %v4024 = vadd.f32 %v4011, %v4023
        %v4025 = vpop.f32.mrf.mxu0
        %4026 = vdwg.mxu0
        %4027 = vmatpush.bf16.msra.mxu0 %v2623
        %4028 = vmatpush.bf16.msra.mxu0 %v2621
        %4029 = vmatpush.bf16.msra.mxu0 %v2619
        %4030 = vmatpush.bf16.msra.mxu0 %v2617
        %4031 = vmatpush.bf16.msra.mxu0 %v2615
        %4032 = vmatpush.bf16.msra.mxu0 %v2613
        %4033 = vmatpush.bf16.msra.mxu0 %v2611
        %4034 = vmatpush.bf16.msra.mxu0 %v2609
        %4035 = vmatmul.bf16.gmra.mxu0 %v897
        %v4036 = vpop.f32.mrf.mxu0
        %v4037 = vadd.f32 %v4024, %v4036
        %v4038 = vpop.f32.mrf.mxu0
        %4039 = vdwg.mxu0
        %4040 = vmatpush.bf16.msra.mxu0 %v2639
        %4041 = vmatpush.bf16.msra.mxu0 %v2637
        %4042 = vmatpush.bf16.msra.mxu0 %v2635
        %4043 = vmatpush.bf16.msra.mxu0 %v2633
        %4044 = vmatpush.bf16.msra.mxu0 %v2631
        %4045 = vmatpush.bf16.msra.mxu0 %v2629
        %4046 = vmatpush.bf16.msra.mxu0 %v2627
        %4047 = vmatpush.bf16.msra.mxu0 %v2625
        %4048 = vmatmul.bf16.gmra.mxu0 %v900
        %v4049 = vpop.f32.mrf.mxu0
        %v4050 = vadd.f32 %v4037, %v4049
        %v4051 = vpop.f32.mrf.mxu0
        %4052 = vdwg.mxu0
        %4053 = vmatpush.bf16.msra.mxu0 %v2655
        %4054 = vmatpush.bf16.msra.mxu0 %v2653
        %4055 = vmatpush.bf16.msra.mxu0 %v2651
        %4056 = vmatpush.bf16.msra.mxu0 %v2649
        %4057 = vmatpush.bf16.msra.mxu0 %v2647
        %4058 = vmatpush.bf16.msra.mxu0 %v2645
        %4059 = vmatpush.bf16.msra.mxu0 %v2643
        %4060 = vmatpush.bf16.msra.mxu0 %v2641
        %4061 = vmatmul.bf16.gmra.mxu0 %v901
        %v4062 = vpop.f32.mrf.mxu0
        %v4063 = vadd.f32 %v4050, %v4062
        %v4064 = vpop.f32.mrf.mxu0
        %4065 = vdwg.mxu0
        %4066 = vmatpush.bf16.msra.mxu0 %v2671
        %4067 = vmatpush.bf16.msra.mxu0 %v2669
        %4068 = vmatpush.bf16.msra.mxu0 %v2667
        %4069 = vmatpush.bf16.msra.mxu0 %v2665
        %4070 = vmatpush.bf16.msra.mxu0 %v2663
        %4071 = vmatpush.bf16.msra.mxu0 %v2661
        %4072 = vmatpush.bf16.msra.mxu0 %v2659
        %4073 = vmatpush.bf16.msra.mxu0 %v2657
        %4074 = vmatmul.bf16.gmra.mxu0 %v902
        %v4075 = vpop.f32.mrf.mxu0
        %v4076 = vadd.f32 %v4063, %v4075
        %v4077 = vpop.f32.mrf.mxu0
        %4078 = vdwg.mxu0
        %4079 = vmatpush.bf16.msra.mxu0 %v2687
        %4080 = vmatpush.bf16.msra.mxu0 %v2685
        %4081 = vmatpush.bf16.msra.mxu0 %v2683
        %4082 = vmatpush.bf16.msra.mxu0 %v2681
        %4083 = vmatpush.bf16.msra.mxu0 %v2679
        %4084 = vmatpush.bf16.msra.mxu0 %v2677
        %4085 = vmatpush.bf16.msra.mxu0 %v2675
        %4086 = vmatpush.bf16.msra.mxu0 %v2673
        %4087 = vmatmul.bf16.gmra.mxu0 %v903
        %v4088 = vpop.f32.mrf.mxu0
        %v4089 = vadd.f32 %v4076, %v4088
        %v4090 = vpop.f32.mrf.mxu0
        %4091 = vdwg.mxu0
        %4092 = vmatpush.bf16.msra.mxu0 %v2703
        %4093 = vmatpush.bf16.msra.mxu0 %v2701
        %4094 = vmatpush.bf16.msra.mxu0 %v2699
        %4095 = vmatpush.bf16.msra.mxu0 %v2697
        %4096 = vmatpush.bf16.msra.mxu0 %v2695
        %4097 = vmatpush.bf16.msra.mxu0 %v2693
        %4098 = vmatpush.bf16.msra.mxu0 %v2691
        %4099 = vmatpush.bf16.msra.mxu0 %v2689
        %4100 = vmatmul.bf16.gmra.mxu0 %v904
        %v4101 = vpop.f32.mrf.mxu0
        %v4102 = vadd.f32 %v4089, %v4101
        %v4103 = vpop.f32.mrf.mxu0
        %4104 = vdwg.mxu0
        %4105 = vmatpush.bf16.msra.mxu0 %v2719
        %4106 = vmatpush.bf16.msra.mxu0 %v2717
        %4107 = vmatpush.bf16.msra.mxu0 %v2715
        %4108 = vmatpush.bf16.msra.mxu0 %v2713
        %4109 = vmatpush.bf16.msra.mxu0 %v2711
        %4110 = vmatpush.bf16.msra.mxu0 %v2709
        %4111 = vmatpush.bf16.msra.mxu0 %v2707
        %4112 = vmatpush.bf16.msra.mxu0 %v2705
        %4113 = vmatmul.bf16.gmra.mxu0 %v905
        %v4114 = vpop.f32.mrf.mxu0
        %v4115 = vadd.f32 %v4102, %v4114
        %v4116 = vpop.f32.mrf.mxu0
        %4117 = vdwg.mxu0
        %4118 = vmatpush.bf16.msra.mxu0 %v2735
        %4119 = vmatpush.bf16.msra.mxu0 %v2733
        %4120 = vmatpush.bf16.msra.mxu0 %v2731
        %4121 = vmatpush.bf16.msra.mxu0 %v2729
        %4122 = vmatpush.bf16.msra.mxu0 %v2727
        %4123 = vmatpush.bf16.msra.mxu0 %v2725
        %4124 = vmatpush.bf16.msra.mxu0 %v2723
        %4125 = vmatpush.bf16.msra.mxu0 %v2721
        %4126 = vmatmul.bf16.gmra.mxu0 %v906
        %v4127 = vpop.f32.mrf.mxu0
        %v4128 = vadd.f32 %v4115, %v4127
        %v4129 = vpop.f32.mrf.mxu0
        %4130 = vdwg.mxu0
        %4131 = vmatpush.bf16.msra.mxu0 %v2751
        %4132 = vmatpush.bf16.msra.mxu0 %v2749
        %4133 = vmatpush.bf16.msra.mxu0 %v2747
        %4134 = vmatpush.bf16.msra.mxu0 %v2745
        %4135 = vmatpush.bf16.msra.mxu0 %v2743
        %4136 = vmatpush.bf16.msra.mxu0 %v2741
        %4137 = vmatpush.bf16.msra.mxu0 %v2739
        %4138 = vmatpush.bf16.msra.mxu0 %v2737
        %4139 = vmatmul.bf16.gmra.mxu0 %v907
        %v4140 = vpop.f32.mrf.mxu0
        %v4141 = vadd.f32 %v4128, %v4140
        %v4142 = vpop.f32.mrf.mxu0
        %4143 = vdwg.mxu0
        %4144 = vmatpush.bf16.msra.mxu0 %v2767
        %4145 = vmatpush.bf16.msra.mxu0 %v2765
        %4146 = vmatpush.bf16.msra.mxu0 %v2763
        %4147 = vmatpush.bf16.msra.mxu0 %v2761
        %4148 = vmatpush.bf16.msra.mxu0 %v2759
        %4149 = vmatpush.bf16.msra.mxu0 %v2757
        %4150 = vmatpush.bf16.msra.mxu0 %v2755
        %4151 = vmatpush.bf16.msra.mxu0 %v2753
        %4152 = vmatmul.bf16.gmra.mxu0 %v910
        %v4153 = vpop.f32.mrf.mxu0
        %v4154 = vadd.f32 %v4141, %v4153
        %v4155 = vpop.f32.mrf.mxu0
        %4156 = vdwg.mxu0
        %4157 = vmatpush.bf16.msra.mxu0 %v2783
        %4158 = vmatpush.bf16.msra.mxu0 %v2781
        %4159 = vmatpush.bf16.msra.mxu0 %v2779
        %4160 = vmatpush.bf16.msra.mxu0 %v2777
        %4161 = vmatpush.bf16.msra.mxu0 %v2775
        %4162 = vmatpush.bf16.msra.mxu0 %v2773
        %4163 = vmatpush.bf16.msra.mxu0 %v2771
        %4164 = vmatpush.bf16.msra.mxu0 %v2769
        %4165 = vmatmul.bf16.gmra.mxu0 %v911
        %v4166 = vpop.f32.mrf.mxu0
        %v4167 = vadd.f32 %v4154, %v4166
        %v4168 = vpop.f32.mrf.mxu0
        %4169 = vdwg.mxu0
        %4170 = vmatpush.bf16.msra.mxu0 %v2799
        %4171 = vmatpush.bf16.msra.mxu0 %v2797
        %4172 = vmatpush.bf16.msra.mxu0 %v2795
        %4173 = vmatpush.bf16.msra.mxu0 %v2793
        %4174 = vmatpush.bf16.msra.mxu0 %v2791
        %4175 = vmatpush.bf16.msra.mxu0 %v2789
        %4176 = vmatpush.bf16.msra.mxu0 %v2787
        %4177 = vmatpush.bf16.msra.mxu0 %v2785
        %4178 = vmatmul.bf16.gmra.mxu0 %v912
        %v4179 = vpop.f32.mrf.mxu0
        %v4180 = vadd.f32 %v4167, %v4179
        %v4181 = vpop.f32.mrf.mxu0
        %4182 = vdwg.mxu0
        %4183 = vmatpush.bf16.msra.mxu0 %v2815
        %4184 = vmatpush.bf16.msra.mxu0 %v2813
        %4185 = vmatpush.bf16.msra.mxu0 %v2811
        %4186 = vmatpush.bf16.msra.mxu0 %v2809
        %4187 = vmatpush.bf16.msra.mxu0 %v2807
        %4188 = vmatpush.bf16.msra.mxu0 %v2805
        %4189 = vmatpush.bf16.msra.mxu0 %v2803
        %4190 = vmatpush.bf16.msra.mxu0 %v2801
        %4191 = vmatmul.bf16.gmra.mxu0 %v913
        %v4192 = vpop.f32.mrf.mxu0
        %v4193 = vadd.f32 %v4180, %v4192
        %v4194 = vpop.f32.mrf.mxu0
        %4195 = vdwg.mxu0
        %4196 = vmatpush.bf16.msra.mxu0 %v2831
        %4197 = vmatpush.bf16.msra.mxu0 %v2829
        %4198 = vmatpush.bf16.msra.mxu0 %v2827
        %4199 = vmatpush.bf16.msra.mxu0 %v2825
        %4200 = vmatpush.bf16.msra.mxu0 %v2823
        %4201 = vmatpush.bf16.msra.mxu0 %v2821
        %4202 = vmatpush.bf16.msra.mxu0 %v2819
        %4203 = vmatpush.bf16.msra.mxu0 %v2817
        %4204 = vmatmul.bf16.gmra.mxu0 %v914
        %v4205 = vpop.f32.mrf.mxu0
        %v4206 = vadd.f32 %v4193, %v4205
        %v4207 = vpop.f32.mrf.mxu0
        %4208 = vdwg.mxu0
        %4209 = vmatpush.bf16.msra.mxu0 %v2847
        %4210 = vmatpush.bf16.msra.mxu0 %v2845
        %4211 = vmatpush.bf16.msra.mxu0 %v2843
        %4212 = vmatpush.bf16.msra.mxu0 %v2841
        %4213 = vmatpush.bf16.msra.mxu0 %v2839
        %4214 = vmatpush.bf16.msra.mxu0 %v2837
        %4215 = vmatpush.bf16.msra.mxu0 %v2835
        %4216 = vmatpush.bf16.msra.mxu0 %v2833
        %4217 = vmatmul.bf16.gmra.mxu0 %v915
        %v4218 = vpop.f32.mrf.mxu0
        %v4219 = vadd.f32 %v4206, %v4218
        %v4220 = vpop.f32.mrf.mxu0
        %4221 = vdwg.mxu0
        %4222 = vmatpush.bf16.msra.mxu0 %v2863
        %4223 = vmatpush.bf16.msra.mxu0 %v2861
        %4224 = vmatpush.bf16.msra.mxu0 %v2859
        %4225 = vmatpush.bf16.msra.mxu0 %v2857
        %4226 = vmatpush.bf16.msra.mxu0 %v2855
        %4227 = vmatpush.bf16.msra.mxu0 %v2853
        %4228 = vmatpush.bf16.msra.mxu0 %v2851
        %4229 = vmatpush.bf16.msra.mxu0 %v2849
        %4230 = vmatmul.bf16.gmra.mxu0 %v916
        %v4231 = vpop.f32.mrf.mxu0
        %v4232 = vadd.f32 %v4219, %v4231
        %v4233 = vpop.f32.mrf.mxu0
        %4234 = vdwg.mxu0
        %4235 = vmatpush.bf16.msra.mxu0 %v2879
        %4236 = vmatpush.bf16.msra.mxu0 %v2877
        %4237 = vmatpush.bf16.msra.mxu0 %v2875
        %4238 = vmatpush.bf16.msra.mxu0 %v2873
        %4239 = vmatpush.bf16.msra.mxu0 %v2871
        %4240 = vmatpush.bf16.msra.mxu0 %v2869
        %4241 = vmatpush.bf16.msra.mxu0 %v2867
        %4242 = vmatpush.bf16.msra.mxu0 %v2865
        %4243 = vmatmul.bf16.gmra.mxu0 %v917
        %v4244 = vpop.f32.mrf.mxu0
        %v4245 = vadd.f32 %v4232, %v4244
        %v4246 = vpop.f32.mrf.mxu0
        %4247 = vdwg.mxu0
        %4248 = vmatpush.bf16.msra.mxu0 %v2895
        %4249 = vmatpush.bf16.msra.mxu0 %v2893
        %4250 = vmatpush.bf16.msra.mxu0 %v2891
        %4251 = vmatpush.bf16.msra.mxu0 %v2889
        %4252 = vmatpush.bf16.msra.mxu0 %v2887
        %4253 = vmatpush.bf16.msra.mxu0 %v2885
        %4254 = vmatpush.bf16.msra.mxu0 %v2883
        %4255 = vmatpush.bf16.msra.mxu0 %v2881
        %4256 = vmatmul.bf16.gmra.mxu0 %v920
        %v4257 = vpop.f32.mrf.mxu0
        %v4258 = vadd.f32 %v4245, %v4257
        %v4259 = vpop.f32.mrf.mxu0
        %4260 = vdwg.mxu0
        %4261 = vmatpush.bf16.msra.mxu0 %v2911
        %4262 = vmatpush.bf16.msra.mxu0 %v2909
        %4263 = vmatpush.bf16.msra.mxu0 %v2907
        %4264 = vmatpush.bf16.msra.mxu0 %v2905
        %4265 = vmatpush.bf16.msra.mxu0 %v2903
        %4266 = vmatpush.bf16.msra.mxu0 %v2901
        %4267 = vmatpush.bf16.msra.mxu0 %v2899
        %4268 = vmatpush.bf16.msra.mxu0 %v2897
        %4269 = vmatmul.bf16.gmra.mxu0 %v921
        %v4270 = vpop.f32.mrf.mxu0
        %v4271 = vadd.f32 %v4258, %v4270
        %v4272 = vpop.f32.mrf.mxu0
        %4273 = vdwg.mxu0
        %4274 = vmatpush.bf16.msra.mxu0 %v2927
        %4275 = vmatpush.bf16.msra.mxu0 %v2925
        %4276 = vmatpush.bf16.msra.mxu0 %v2923
        %4277 = vmatpush.bf16.msra.mxu0 %v2921
        %4278 = vmatpush.bf16.msra.mxu0 %v2919
        %4279 = vmatpush.bf16.msra.mxu0 %v2917
        %4280 = vmatpush.bf16.msra.mxu0 %v2915
        %4281 = vmatpush.bf16.msra.mxu0 %v2913
        %4282 = vmatmul.bf16.gmra.mxu0 %v922
        %v4283 = vpop.f32.mrf.mxu0
        %v4284 = vadd.f32 %v4271, %v4283
        %v4285 = vpop.f32.mrf.mxu0
        %4286 = vdwg.mxu0
        %4287 = vmatpush.bf16.msra.mxu0 %v2943
        %4288 = vmatpush.bf16.msra.mxu0 %v2941
        %4289 = vmatpush.bf16.msra.mxu0 %v2939
        %4290 = vmatpush.bf16.msra.mxu0 %v2937
        %4291 = vmatpush.bf16.msra.mxu0 %v2935
        %4292 = vmatpush.bf16.msra.mxu0 %v2933
        %4293 = vmatpush.bf16.msra.mxu0 %v2931
        %4294 = vmatpush.bf16.msra.mxu0 %v2929
        %4295 = vmatmul.bf16.gmra.mxu0 %v923
        %v4296 = vpop.f32.mrf.mxu0
        %v4297 = vadd.f32 %v4284, %v4296
        %v4298 = vpop.f32.mrf.mxu0
        %4299 = vdwg.mxu0
        %4300 = vmatpush.bf16.msra.mxu0 %v2959
        %4301 = vmatpush.bf16.msra.mxu0 %v2957
        %4302 = vmatpush.bf16.msra.mxu0 %v2955
        %4303 = vmatpush.bf16.msra.mxu0 %v2953
        %4304 = vmatpush.bf16.msra.mxu0 %v2951
        %4305 = vmatpush.bf16.msra.mxu0 %v2949
        %4306 = vmatpush.bf16.msra.mxu0 %v2947
        %4307 = vmatpush.bf16.msra.mxu0 %v2945
        %4308 = vmatmul.bf16.gmra.mxu0 %v924
        %v4309 = vpop.f32.mrf.mxu0
        %v4310 = vadd.f32 %v4297, %v4309
        %v4311 = vpop.f32.mrf.mxu0
        %4312 = vdwg.mxu0
        %4313 = vmatpush.bf16.msra.mxu0 %v2975
        %4314 = vmatpush.bf16.msra.mxu0 %v2973
        %4315 = vmatpush.bf16.msra.mxu0 %v2971
        %4316 = vmatpush.bf16.msra.mxu0 %v2969
        %4317 = vmatpush.bf16.msra.mxu0 %v2967
        %4318 = vmatpush.bf16.msra.mxu0 %v2965
        %4319 = vmatpush.bf16.msra.mxu0 %v2963
        %4320 = vmatpush.bf16.msra.mxu0 %v2961
        %4321 = vmatmul.bf16.gmra.mxu0 %v925
        %v4322 = vpop.f32.mrf.mxu0
        %v4323 = vadd.f32 %v4310, %v4322
        %v4324 = vpop.f32.mrf.mxu0
        %4325 = vdwg.mxu0
        %4326 = vmatpush.bf16.msra.mxu0 %v2991
        %4327 = vmatpush.bf16.msra.mxu0 %v2989
        %4328 = vmatpush.bf16.msra.mxu0 %v2987
        %4329 = vmatpush.bf16.msra.mxu0 %v2985
        %4330 = vmatpush.bf16.msra.mxu0 %v2983
        %4331 = vmatpush.bf16.msra.mxu0 %v2981
        %4332 = vmatpush.bf16.msra.mxu0 %v2979
        %4333 = vmatpush.bf16.msra.mxu0 %v2977
        %4334 = vmatmul.bf16.gmra.mxu0 %v926
        %v4335 = vpop.f32.mrf.mxu0
        %v4336 = vadd.f32 %v4323, %v4335
        %v4337 = vpop.f32.mrf.mxu0
        %4338 = vdwg.mxu0
        %4339 = vmatpush.bf16.msra.mxu0 %v3007
        %4340 = vmatpush.bf16.msra.mxu0 %v3005
        %4341 = vmatpush.bf16.msra.mxu0 %v3003
        %4342 = vmatpush.bf16.msra.mxu0 %v3001
        %4343 = vmatpush.bf16.msra.mxu0 %v2999
        %4344 = vmatpush.bf16.msra.mxu0 %v2997
        %4345 = vmatpush.bf16.msra.mxu0 %v2995
        %4346 = vmatpush.bf16.msra.mxu0 %v2993
        %4347 = vmatmul.bf16.gmra.mxu0 %v927
        %v4348 = vpop.f32.mrf.mxu0
        %v4349 = vadd.f32 %v4336, %v4348
        %v4350 = vpop.f32.mrf.mxu0
        %4351 = vdwg.mxu0
        %vm4352 = vcmask 1041408
        %v4353 = vsel %vm4352, %v3933, 0.0
        %v4354 = vrot.slane %v4353, 4
        %v4355 = vadd.f32 %v4353, %v4354
        %v4356 = vrot.slane %v4355, 2
        %v4357 = vadd.f32 %v4355, %v4356
        %v4358 = vrot.slane %v4357, 1
        %v4359 = vadd.f32 %v4357, %v4358
        %v4360 = vsel %vm4352, %v4349, 0.0
        %v4361 = vrot.slane %v4360, 4
        %v4362 = vadd.f32 %v4360, %v4361
        %v4363 = vrot.slane %v4362, 2
        %v4364 = vadd.f32 %v4362, %v4363
        %v4365 = vrot.slane %v4364, 1
        %v4366 = vadd.f32 %v4364, %v4365
        %v4367 = vrcp.pop 2.0
        %v4368 = vmul.f32 2.0, %v4367
        %v4369 = vsub.f32 1.0, %v4368
        %v4370 = vmul.f32 %v4367, %v4369
        %v4371 = vadd.f32 %v4367, %v4370
        %vm4372 = vweird.f32 %v4367
        %v4373 = vsel %vm4372, %v4367, %v4371
        %v4374 = vmul.f32 %v4359, %v4373
        %v4375 = vmul.f32 %v4366, %v4373
        %v4376 = vsub.f32 %v3933, %v4374
        %v4377 = vsub.f32 %v4349, %v4375
        %v4378 = vmul.f32 %v4376, %v4376
        %v4379 = vmul.f32 %v4377, %v4377
        %v4380 = vsel %vm4352, %v4378, 0.0
        %v4381 = vrot.slane %v4380, 4
        %v4382 = vadd.f32 %v4380, %v4381
        %v4383 = vrot.slane %v4382, 2
        %v4384 = vadd.f32 %v4382, %v4383
        %v4385 = vrot.slane %v4384, 1
        %v4386 = vadd.f32 %v4384, %v4385
        %v4387 = vsel %vm4352, %v4379, 0.0
        %v4388 = vrot.slane %v4387, 4
        %v4389 = vadd.f32 %v4387, %v4388
        %v4390 = vrot.slane %v4389, 2
        %v4391 = vadd.f32 %v4389, %v4390
        %v4392 = vrot.slane %v4391, 1
        %v4393 = vadd.f32 %v4391, %v4392
        %v4394 = vmul.f32 %v4386, %v4373
        %v4395 = vmul.f32 %v4393, %v4373
        %v4396 = vadd.f32 %v4394, 1e-05
        %v4397 = vadd.f32 %v4395, 1e-05
        %v4398 = vrsqrt.pop %v4396
        %v4399 = vmul.f32 %v4398, %v4396
        %v4400 = vmul.f32 %v4399, %v4398
        %v4401 = vmul.f32 0.5, %v4400
        %v4402 = vsub.f32 1.5, %v4401
        %v4403 = vmul.f32 %v4398, %v4402
        %vm4404 = vweird.f32 %v4396
        %vm4405 = vweird.f32 %v4398
        %vm4406 = vmor %vm4404, %vm4405
        %v4407 = vsel %vm4406, %v4398, %v4403
        %v4408 = vrsqrt.pop %v4397
        %v4409 = vmul.f32 %v4408, %v4397
        %v4410 = vmul.f32 %v4409, %v4408
        %v4411 = vmul.f32 0.5, %v4410
        %v4412 = vsub.f32 1.5, %v4411
        %v4413 = vmul.f32 %v4408, %v4412
        %vm4414 = vweird.f32 %v4397
        %vm4415 = vweird.f32 %v4408
        %vm4416 = vmor %vm4414, %vm4415
        %v4417 = vsel %vm4416, %v4408, %v4413
        %v4418 = vmul.f32 %v4376, %v4407
        %v4419 = vmul.f32 %v4377, %v4417
        %v4420 = vld [vmem:[%s303] sm:$0x3]
        %v4422 = vperm.slane %v4420, 0
        %v4423 = vperm.slane %v4420, 1
        %v4426 = vmul.f32 %v4418, %v4422
        %v4427 = vmul.f32 %v4419, %v4423
        %v4428 = vld [vmem:[%s313] sm:$0x3]
        %v4430 = vperm.slane %v4428, 0
        %v4431 = vperm.slane %v4428, 1
        %v4434 = vadd.f32 %v4426, %v4430
        %v4435 = vadd.f32 %v4427, %v4431
        %vm4436 = vcmp.gt.f32.partialorder %v4434, 0.0
        %vm4437 = vcmp.gt.f32.partialorder %v4435, 0.0
        %v4438 = vmul.f32 %v4434, 0.2
        %v4439 = vmul.f32 %v4435, 0.2
        %v4440 = vsel %vm4436, %v4434, %v4438
        %v4441 = vsel %vm4437, %v4435, %v4439
        %v4444 = vrot.slane %v4441, 6
        %v4445 = vsel %vm4352, %v4440, %v4444
        %4447 = vst [vmem:[%s364] sm:$0xf] %v4445
        %s4448 = smul.u32 2, %s25
        %p4449 = scmp.lt.s32.totalorder %s4448, 3
        %s4450 = scalar_select %p4449, %s4448, 3
        %s4451 = smul.addr %s4450, 2
        %s4452 = scalar_lea.vmem %s5, %s4451
        // Predicated region
        $region57: #{discriminator_forward.7} parent=39 // pred_check
          %p4453 = pneg %p168
        $region58: #{discriminator_forward.7} parent=39 // pred_check_branch
          %4455 = sbr.rel (%p4453) target = $region60
        $region59: #{discriminator_forward.7} parent=39 // pred_region
          %s4456 = smul.u32 2, %s25
        $region60: #{discriminator_forward.7} parent=39 // pred_fallthru
          _
      $region40: #{discriminator_forward.7} parent=5 // pred_fallthru
        _
      %p4457 = scmp.le.s32.totalorder 2, %s20
      // Predicated region
      $region61: #{discriminator_forward.7} parent=5 // pred_check
        %p4458 = pneg %p4457
      $region62: #{discriminator_forward.7} parent=5 // pred_check_branch
        %4460 = sbr.rel (%p4458) target = $region64
      $region63: #{discriminator_forward.7} parent=5 // pred_region
        %s4461 = ssub.s32 %s20, 2
        // Predicated region
        $region65: #{discriminator_forward.7} parent=63 // pred_check
          %p4462 = pneg %p174
        $region66: #{discriminator_forward.7} parent=63 // pred_check_branch
          %4464 = sbr.rel (%p4462) target = $region68
        $region67: #{discriminator_forward.7} parent=63 // pred_region
          %s4465 = smul.u32 2, %s26
          %p4466 = scmp.lt.s32.totalorder %s4465, 3
          %s4467 = scalar_select %p4466, %s4465, 3
          %s4468 = smul.addr %s4467, 2
          %s4469 = scalar_lea.vmem %s5, %s4468
        $region68: #{discriminator_forward.7} parent=63 // pred_fallthru
          _
      $region64: #{discriminator_forward.7} parent=5 // pred_fallthru
        _
    $region6: #{discriminator_forward.7} parent=1 // loop_footer
      %s24 = sadd.s32 1, %s20
    $region7: #{discriminator_forward.7} parent=1 // loop_footer_branch
      %19 = sbr.rel target = $region3
    $region8: #{discriminator_forward.7} parent=1 // loop_exit
      _
    %4470 = vsyncpa [#allocation3], 1
    %s4471 = scalar_lea.sflag [#allocation3], 1
    %4472 = vsyncpa %s4471, 1
    %4473 = vsyncpa [#allocation5], 1
    %s4474 = scalar_lea.sflag [#allocation5], 1
    %4475 = vsyncpa %s4474, 1
    %4476 = vsyncpa [#allocation8], 1
    %s4477 = scalar_lea.sflag [#allocation8], 1
    %4478 = vsyncpa %s4477, 1

</llo_original>
